<compile_context>
chip_gen: v7x
topology: tpu7x:2x2x1
jax: 0.10.0
libtpu: 0.0.40
codegen_flags: <defaults>
</compile_context>

<pallas_src>
import functools

import jax
import jax.numpy as jnp
from jax.experimental import pallas as pl
from jax.experimental.pallas import tpu as pltpu


def _softplus(x):
    # Numerically stable softplus (matches torch.nn.Softplus, beta=1).
    return jnp.maximum(x, 0.0) + jnp.log1p(jnp.exp(-jnp.abs(x)))


def _start_gather(pos_ref, neg_ref, ent_ref, rel_ref, gbuf, sems,
                  tile_idx, slot, b_tile):
    """Issue the 6*b_tile row DMAs for batch tile `tile_idx` into slot `slot`."""
    stride = 6 * b_tile
    base = tile_idx * b_tile
    off = slot * stride
    for j in range(b_tile):
        rows = (
            (ent_ref, pos_ref[0, base + j]),   # k=0: pos head
            (rel_ref, pos_ref[1, base + j]),   # k=1: pos relation
            (ent_ref, pos_ref[2, base + j]),   # k=2: pos tail
            (ent_ref, neg_ref[0, base + j]),   # k=3: neg head
            (rel_ref, neg_ref[1, base + j]),   # k=4: neg relation
            (ent_ref, neg_ref[2, base + j]),   # k=5: neg tail
        )
        for k, (tbl, row) in enumerate(rows):
            flat = off + k * b_tile + j
            pltpu.make_async_copy(
                tbl.at[pl.ds(row, 1)],          # (1, 2D) row in HBM
                gbuf.at[pl.ds(flat, 1)],        # (1, 2D) row in VMEM
                sems.at[flat],
            ).start()


def _wait_gather(ent_ref, rel_ref, gbuf, sems, slot, b_tile):
    """Wait for all row DMAs of slot `slot` (dummy src index, same shapes)."""
    stride = 6 * b_tile
    off = slot * stride
    for j in range(b_tile):
        for k in range(6):
            tbl = rel_ref if k in (1, 4) else ent_ref
            flat = off + k * b_tile + j
            pltpu.make_async_copy(
                tbl.at[pl.ds(0, 1)],
                gbuf.at[pl.ds(flat, 1)],
                sems.at[flat],
            ).wait()


def _complex_loss_kernel(pos_ref, neg_ref,        # scalar-prefetch (SMEM), (3, Bp) int32
                         ent_ref, rel_ref,        # HBM tables (pl.ANY), (N, 2D) f32
                         out_ref,                 # (1, 1) SMEM f32 loss
                         gbuf, sems, acc_pos, acc_neg,
                         *, true_b, b_tile, dim):
    i = pl.program_id(0)
    n = pl.num_programs(0)
    slot = i % 2
    stride = 6 * b_tile

    @pl.when(i == 0)
    def _init():
        acc_pos[...] = jnp.zeros_like(acc_pos)
        acc_neg[...] = jnp.zeros_like(acc_neg)
        # Prime the pipeline: fetch tile 0 into slot 0.
        _start_gather(pos_ref, neg_ref, ent_ref, rel_ref, gbuf, sems,
                      0, 0, b_tile)

    @pl.when(i + 1 < n)
    def _prefetch_next():
        # Overlap: gather tile i+1 while we compute tile i.
        _start_gather(pos_ref, neg_ref, ent_ref, rel_ref, gbuf, sems,
                      i + 1, 1 - slot, b_tile)

    _wait_gather(ent_ref, rel_ref, gbuf, sems, slot, b_tile)

    off = slot * stride
    if stride % 8 == 0:
        off = pl.multiple_of(off, 8)
    chunk = gbuf[pl.ds(off, stride)]              # (6*b_tile, 2D) f32

    def role(k):
        return chunk[k * b_tile:(k + 1) * b_tile]  # (b_tile, 2D)

    def score(h, r, t):
        h_re, h_im = h[:, :dim], h[:, dim:]
        r_re, r_im = r[:, :dim], r[:, dim:]
        t_re, t_im = t[:, :dim], t[:, dim:]
        # Factored ComplEx trilinear form: 6 mul + 3 add per element.
        s = r_re * (h_re * t_re + h_im * t_im) + r_im * (h_re * t_im - h_im * t_re)
        return jnp.sum(s, axis=1, keepdims=True)   # (b_tile, 1)

    pos_s = score(role(0), role(1), role(2))
    neg_s = score(role(3), role(4), role(5))

    # Mask rows that are pure batch padding; means divide by the true B.
    row_id = jax.lax.broadcasted_iota(jnp.int32, (b_tile, 1), 0) + i * b_tile
    valid = row_id < true_b

    acc_pos[...] += jnp.where(valid, _softplus(-pos_s), 0.0)
    acc_neg[...] += jnp.where(valid, _softplus(neg_s), 0.0)

    @pl.when(i == n - 1)
    def _finalize():
        total = jnp.sum(acc_pos[...]) + jnp.sum(acc_neg[...])
        out_ref[0, 0] = total * (0.5 / float(true_b))


def complex_forward(params, positive_triples, negative_triples, *, b_tile=8):
    """JAX wrapper: pads/transposes the triple indices (glue) and launches the
    Pallas kernel, which performs the embedding gather, score and loss."""
    ent = params["ent"]      # (num_entities, 2*D), [re | im] stacked on lanes
    rel = params["rel"]      # (num_relations, 2*D)
    assert positive_triples.shape == negative_triples.shape
    b = positive_triples.shape[0]
    two_d = ent.shape[1]
    dim = two_d // 2

    num_tiles = int(pl.cdiv(b, b_tile))
    pad = num_tiles * b_tile - b

    def prep(tr):
        tr = jnp.asarray(tr, jnp.int32)
        tr = jnp.pad(tr, ((0, pad), (0, 0)))       # padded rows -> index 0 (masked later)
        return jnp.transpose(tr)                   # (3, Bp): long axis last (SMEM-friendly)

    pos_sm = prep(positive_triples)
    neg_sm = prep(negative_triples)

    kernel = functools.partial(_complex_loss_kernel,
                               true_b=b, b_tile=b_tile, dim=dim)

    out = pl.pallas_call(
        kernel,
        out_shape=jax.ShapeDtypeStruct((1, 1), jnp.float32),
        grid_spec=pltpu.PrefetchScalarGridSpec(
            num_scalar_prefetch=2,                 # pos / neg triple indices -> SMEM
            grid=(num_tiles,),
            in_specs=[pl.BlockSpec(memory_space=pl.ANY),    # entity table stays in HBM
                      pl.BlockSpec(memory_space=pl.ANY)],   # relation table stays in HBM
            out_specs=pl.BlockSpec(memory_space=pltpu.MemorySpace.SMEM),
            scratch_shapes=[
                pltpu.VMEM((2 * 6 * b_tile, two_d), jnp.float32),  # double-buffered gather
                pltpu.SemaphoreType.DMA((2 * 6 * b_tile,)),        # one sem per row copy
                pltpu.VMEM((b_tile, 1), jnp.float32),              # pos softplus partials
                pltpu.VMEM((b_tile, 1), jnp.float32),              # neg softplus partials
            ]),
        compiler_params=pltpu.CompilerParams(
            dimension_semantics=("arbitrary",)),   # carries accumulator + DMA slot state
    )(pos_sm, neg_sm, ent, rel)
    return out[0, 0]


def init_params(key, num_entities, num_relations, embedding_dim):
    """Deterministic xavier_uniform init (gain=1), matching the PyTorch init,
    stored with re/im stacked along the lane axis for lane-dense gathers."""
    k1, k2, k3, k4 = jax.random.split(key, 4)

    def xavier(k, n_rows, n_cols):
        bound = (6.0 / (n_rows + n_cols)) ** 0.5
        return jax.random.uniform(k, (n_rows, n_cols), jnp.float32,
                                  minval=-bound, maxval=bound)

    ent_re = xavier(k1, num_entities, embedding_dim)
    ent_im = xavier(k2, num_entities, embedding_dim)
    rel_re = xavier(k3, num_relations, embedding_dim)
    rel_im = xavier(k4, num_relations, embedding_dim)
    return {"ent": jnp.concatenate([ent_re, ent_im], axis=1),
            "rel": jnp.concatenate([rel_re, rel_im], axis=1)}


def _reference(params, pos, neg):
    """Pure-JAX reference for a quick sanity check."""
    d = params["ent"].shape[1] // 2
    ent_re, ent_im = params["ent"][:, :d], params["ent"][:, d:]
    rel_re, rel_im = params["rel"][:, :d], params["rel"][:, d:]

    def score(tr):
        h, r, t = tr[:, 0], tr[:, 1], tr[:, 2]
        h_re, h_im = ent_re[h], ent_im[h]
        t_re, t_im = ent_re[t], ent_im[t]
        r_re, r_im = rel_re[r], rel_im[r]
        return jnp.sum(h_re * t_re * r_re + h_im * t_im * r_re
                       + h_re * t_im * r_im - h_im * t_re * r_im, axis=1)

    sp = jax.nn.softplus
    return (jnp.mean(sp(-score(pos))) + jnp.mean(sp(score(neg)))) / 2.0


if __name__ == "__main__":
    num_entities = 50
    num_relations = 12
    embedding_dim = 32
    batch = 10          # not a multiple of the tile -> exercises padding/masking

    key = jax.random.PRNGKey(0)
    kp, kpos_e, kpos_r, kneg_e, kneg_r = jax.random.split(key, 5)

    params = init_params(kp, num_entities, num_relations, embedding_dim)

    # triples are (batch, 3) int32: [head_entity, relation, tail_entity]
    pos_ent = jax.random.randint(kpos_e, (batch, 2), 0, num_entities, jnp.int32)
    pos_rel = jax.random.randint(kpos_r, (batch, 1), 0, num_relations, jnp.int32)
    positive_triples = jnp.concatenate(
        [pos_ent[:, :1], pos_rel, pos_ent[:, 1:]], axis=1)

    neg_ent = jax.random.randint(kneg_e, (batch, 2), 0, num_entities, jnp.int32)
    neg_rel = jax.random.randint(kneg_r, (batch, 1), 0, num_relations, jnp.int32)
    negative_triples = jnp.concatenate(
        [neg_ent[:, :1], neg_rel, neg_ent[:, 1:]], axis=1)

    loss = complex_forward(params, positive_triples, negative_triples, b_tile=8)
    loss = jax.block_until_ready(loss)

    ref = jax.block_until_ready(_reference(params, positive_triples,
                                           negative_triples))
    assert jnp.allclose(loss, ref, rtol=1e-5, atol=1e-5), (loss, ref)

    print("KERNEL_OK")
</pallas_src>

<mosaic_0001>
module attributes {stable_mosaic.version = 11 : i64} {
  func.func @_complex_loss_kernel(%arg0: i32, %arg1: memref<3x16xi32, #tpu.memory_space<smem>>, %arg2: memref<3x16xi32, #tpu.memory_space<smem>>, %arg3: memref<50x64xf32, #tpu.memory_space<any>>, %arg4: memref<12x64xf32, #tpu.memory_space<any>>, %arg5: memref<1x1xf32, #tpu.memory_space<smem>>, %arg6: memref<96x64xf32, #tpu.memory_space<vmem>>, %arg7: memref<96x!tpu.dma_semaphore, #tpu.memory_space<semaphore_mem>>, %arg8: memref<8x1xf32, #tpu.memory_space<vmem>>, %arg9: memref<8x1xf32, #tpu.memory_space<vmem>>) attributes {dimension_semantics = [#tpu.dimension_semantics<arbitrary>], iteration_bounds = array<i64: 2>, scalar_prefetch = 2 : i64, scratch_operands = 4 : i64, tpu.core_type = #tpu.core_type<tc>, window_params = [{}, {}, {transform_indices = @transform_2, window_bounds = array<i64: 1, 1>}]} {
    %c2_i32 = arith.constant 2 : i32
    %c0_i32 = arith.constant 0 : i32
    %0 = arith.cmpi eq, %c2_i32, %c0_i32 : i32
    %c1_i32 = arith.constant 1 : i32
    %1 = arith.select %0, %c1_i32, %c2_i32 : i32
    %2 = arith.remsi %arg0, %1 : i32
    %c0_i32_0 = arith.constant 0 : i32
    %3 = arith.cmpi ne, %2, %c0_i32_0 : i32
    %c0_i32_1 = arith.constant 0 : i32
    %4 = arith.cmpi slt, %2, %c0_i32_1 : i32
    %c0_i32_2 = arith.constant 0 : i32
    %5 = arith.cmpi slt, %1, %c0_i32_2 : i32
    %6 = arith.xori %4, %5 : i1
    %7 = arith.andi %6, %3 : i1
    %8 = arith.addi %2, %1 : i32
    %9 = arith.select %7, %8, %2 : i32
    %c0_i32_3 = arith.constant 0 : i32
    %10 = arith.cmpi eq, %arg0, %c0_i32_3 : i32
    %11 = arith.extui %10 : i1 to i32
    %c0_i32_4 = arith.constant 0 : i32
    %12 = arith.cmpi ne, %11, %c0_i32_4 : i32
    scf.if %12 {
      %cst_258 = arith.constant 0.000000e+00 : f32
      %387 = vector.broadcast %cst_258 : f32 to vector<8x1xf32>
      %c0_259 = arith.constant 0 : index
      %c0_260 = arith.constant 0 : index
      %388 = vector.load %arg8[%c0_259, %c0_260] : memref<8x1xf32, #tpu.memory_space<vmem>>, vector<8x1xf32>
      tpu.vector_store %arg8[%c0_259, %c0_260], %387 {strides = array<i32>} : memref<8x1xf32, #tpu.memory_space<vmem>>, vector<8x1xf32>,
      %cst_261 = arith.constant 0.000000e+00 : f32
      %389 = vector.broadcast %cst_261 : f32 to vector<8x1xf32>
      %c0_262 = arith.constant 0 : index
      %c0_263 = arith.constant 0 : index
      %390 = vector.load %arg9[%c0_262, %c0_263] : memref<8x1xf32, #tpu.memory_space<vmem>>, vector<8x1xf32>
      tpu.vector_store %arg9[%c0_262, %c0_263], %389 {strides = array<i32>} : memref<8x1xf32, #tpu.memory_space<vmem>>, vector<8x1xf32>,
      %c0_264 = arith.constant 0 : index
      %c0_265 = arith.constant 0 : index
      %391 = memref.load %arg1[%c0_264, %c0_265] : memref<3x16xi32, #tpu.memory_space<smem>>
      %c1 = arith.constant 1 : index
      %c0_266 = arith.constant 0 : index
      %392 = memref.load %arg1[%c1, %c0_266] : memref<3x16xi32, #tpu.memory_space<smem>>
      %c2 = arith.constant 2 : index
      %c0_267 = arith.constant 0 : index
      %393 = memref.load %arg1[%c2, %c0_267] : memref<3x16xi32, #tpu.memory_space<smem>>
      %c0_268 = arith.constant 0 : index
      %c0_269 = arith.constant 0 : index
      %394 = memref.load %arg2[%c0_268, %c0_269] : memref<3x16xi32, #tpu.memory_space<smem>>
      %c1_270 = arith.constant 1 : index
      %c0_271 = arith.constant 0 : index
      %395 = memref.load %arg2[%c1_270, %c0_271] : memref<3x16xi32, #tpu.memory_space<smem>>
      %c2_272 = arith.constant 2 : index
      %c0_273 = arith.constant 0 : index
      %396 = memref.load %arg2[%c2_272, %c0_273] : memref<3x16xi32, #tpu.memory_space<smem>>
      %c0_i32_274 = arith.constant 0 : i32
      %c0_i32_275 = arith.constant 0 : i32
      %397 = tpu.memref_slice %arg3[%391, %c0_i32_275] : memref<50x64xf32, #tpu.memory_space<any>> -> memref<1x64xf32, #tpu.memory_space<any>>
      %c0_i32_276 = arith.constant 0 : i32
      %c0_i32_277 = arith.constant 0 : i32
      %398 = tpu.memref_slice %arg6[%c0_i32_276, %c0_i32_277] : memref<96x64xf32, #tpu.memory_space<vmem>> -> memref<1x64xf32, #tpu.memory_space<vmem>>
      %399 = tpu.memref_slice %arg7[%c0_i32_274] : memref<96x!tpu.dma_semaphore, #tpu.memory_space<semaphore_mem>> -> memref<1x!tpu.dma_semaphore, #tpu.memory_space<semaphore_mem>>
      %400 = tpu.memref_squeeze %399 : memref<1x!tpu.dma_semaphore, #tpu.memory_space<semaphore_mem>> -> memref<!tpu.dma_semaphore, #tpu.memory_space<semaphore_mem>>
      tpu.enqueue_dma source(%397 : memref<1x64xf32, #tpu.memory_space<any>>) target(%398 : memref<1x64xf32, #tpu.memory_space<vmem>>) target_semaphore(%400 : memref<!tpu.dma_semaphore, #tpu.memory_space<semaphore_mem>>)
      %c8_i32_278 = arith.constant 8 : i32
      %c0_i32_279 = arith.constant 0 : i32
      %401 = tpu.memref_slice %arg4[%392, %c0_i32_279] : memref<12x64xf32, #tpu.memory_space<any>> -> memref<1x64xf32, #tpu.memory_space<any>>
      %c8_i32_280 = arith.constant 8 : i32
      %c0_i32_281 = arith.constant 0 : i32
      %402 = tpu.memref_slice %arg6[%c8_i32_280, %c0_i32_281] : memref<96x64xf32, #tpu.memory_space<vmem>> -> memref<1x64xf32, #tpu.memory_space<vmem>>
      %403 = tpu.memref_slice %arg7[%c8_i32_278] : memref<96x!tpu.dma_semaphore, #tpu.memory_space<semaphore_mem>> -> memref<1x!tpu.dma_semaphore, #tpu.memory_space<semaphore_mem>>
      %404 = tpu.memref_squeeze %403 : memref<1x!tpu.dma_semaphore, #tpu.memory_space<semaphore_mem>> -> memref<!tpu.dma_semaphore, #tpu.memory_space<semaphore_mem>>
      tpu.enqueue_dma source(%401 : memref<1x64xf32, #tpu.memory_space<any>>) target(%402 : memref<1x64xf32, #tpu.memory_space<vmem>>) target_semaphore(%404 : memref<!tpu.dma_semaphore, #tpu.memory_space<semaphore_mem>>)
      %c16_i32_282 = arith.constant 16 : i32
      %c0_i32_283 = arith.constant 0 : i32
      %405 = tpu.memref_slice %arg3[%393, %c0_i32_283] : memref<50x64xf32, #tpu.memory_space<any>> -> memref<1x64xf32, #tpu.memory_space<any>>
      %c16_i32_284 = arith.constant 16 : i32
      %c0_i32_285 = arith.constant 0 : i32
      %406 = tpu.memref_slice %arg6[%c16_i32_284, %c0_i32_285] : memref<96x64xf32, #tpu.memory_space<vmem>> -> memref<1x64xf32, #tpu.memory_space<vmem>>
      %407 = tpu.memref_slice %arg7[%c16_i32_282] : memref<96x!tpu.dma_semaphore, #tpu.memory_space<semaphore_mem>> -> memref<1x!tpu.dma_semaphore, #tpu.memory_space<semaphore_mem>>
      %408 = tpu.memref_squeeze %407 : memref<1x!tpu.dma_semaphore, #tpu.memory_space<semaphore_mem>> -> memref<!tpu.dma_semaphore, #tpu.memory_space<semaphore_mem>>
      tpu.enqueue_dma source(%405 : memref<1x64xf32, #tpu.memory_space<any>>) target(%406 : memref<1x64xf32, #tpu.memory_space<vmem>>) target_semaphore(%408 : memref<!tpu.dma_semaphore, #tpu.memory_space<semaphore_mem>>)
      %c24_i32_286 = arith.constant 24 : i32
      %c0_i32_287 = arith.constant 0 : i32
      %409 = tpu.memref_slice %arg3[%394, %c0_i32_287] : memref<50x64xf32, #tpu.memory_space<any>> -> memref<1x64xf32, #tpu.memory_space<any>>
      %c24_i32_288 = arith.constant 24 : i32
      %c0_i32_289 = arith.constant 0 : i32
      %410 = tpu.memref_slice %arg6[%c24_i32_288, %c0_i32_289] : memref<96x64xf32, #tpu.memory_space<vmem>> -> memref<1x64xf32, #tpu.memory_space<vmem>>
      %411 = tpu.memref_slice %arg7[%c24_i32_286] : memref<96x!tpu.dma_semaphore, #tpu.memory_space<semaphore_mem>> -> memref<1x!tpu.dma_semaphore, #tpu.memory_space<semaphore_mem>>
      %412 = tpu.memref_squeeze %411 : memref<1x!tpu.dma_semaphore, #tpu.memory_space<semaphore_mem>> -> memref<!tpu.dma_semaphore, #tpu.memory_space<semaphore_mem>>
      tpu.enqueue_dma source(%409 : memref<1x64xf32, #tpu.memory_space<any>>) target(%410 : memref<1x64xf32, #tpu.memory_space<vmem>>) target_semaphore(%412 : memref<!tpu.dma_semaphore, #tpu.memory_space<semaphore_mem>>)
      %c32_i32_290 = arith.constant 32 : i32
      %c0_i32_291 = arith.constant 0 : i32
      %413 = tpu.memref_slice %arg4[%395, %c0_i32_291] : memref<12x64xf32, #tpu.memory_space<any>> -> memref<1x64xf32, #tpu.memory_space<any>>
      %c32_i32_292 = arith.constant 32 : i32
      %c0_i32_293 = arith.constant 0 : i32
      %414 = tpu.memref_slice %arg6[%c32_i32_292, %c0_i32_293] : memref<96x64xf32, #tpu.memory_space<vmem>> -> memref<1x64xf32, #tpu.memory_space<vmem>>
      %415 = tpu.memref_slice %arg7[%c32_i32_290] : memref<96x!tpu.dma_semaphore, #tpu.memory_space<semaphore_mem>> -> memref<1x!tpu.dma_semaphore, #tpu.memory_space<semaphore_mem>>
      %416 = tpu.memref_squeeze %415 : memref<1x!tpu.dma_semaphore, #tpu.memory_space<semaphore_mem>> -> memref<!tpu.dma_semaphore, #tpu.memory_space<semaphore_mem>>
      tpu.enqueue_dma source(%413 : memref<1x64xf32, #tpu.memory_space<any>>) target(%414 : memref<1x64xf32, #tpu.memory_space<vmem>>) target_semaphore(%416 : memref<!tpu.dma_semaphore, #tpu.memory_space<semaphore_mem>>)
      %c40_i32_294 = arith.constant 40 : i32
      %c0_i32_295 = arith.constant 0 : i32
      %417 = tpu.memref_slice %arg3[%396, %c0_i32_295] : memref<50x64xf32, #tpu.memory_space<any>> -> memref<1x64xf32, #tpu.memory_space<any>>
      %c40_i32_296 = arith.constant 40 : i32
      %c0_i32_297 = arith.constant 0 : i32
      %418 = tpu.memref_slice %arg6[%c40_i32_296, %c0_i32_297] : memref<96x64xf32, #tpu.memory_space<vmem>> -> memref<1x64xf32, #tpu.memory_space<vmem>>
      %419 = tpu.memref_slice %arg7[%c40_i32_294] : memref<96x!tpu.dma_semaphore, #tpu.memory_space<semaphore_mem>> -> memref<1x!tpu.dma_semaphore, #tpu.memory_space<semaphore_mem>>
      %420 = tpu.memref_squeeze %419 : memref<1x!tpu.dma_semaphore, #tpu.memory_space<semaphore_mem>> -> memref<!tpu.dma_semaphore, #tpu.memory_space<semaphore_mem>>
      tpu.enqueue_dma source(%417 : memref<1x64xf32, #tpu.memory_space<any>>) target(%418 : memref<1x64xf32, #tpu.memory_space<vmem>>) target_semaphore(%420 : memref<!tpu.dma_semaphore, #tpu.memory_space<semaphore_mem>>)
      %c0_298 = arith.constant 0 : index
      %c1_299 = arith.constant 1 : index
      %421 = memref.load %arg1[%c0_298, %c1_299] : memref<3x16xi32, #tpu.memory_space<smem>>
      %c1_300 = arith.constant 1 : index
      %c1_301 = arith.constant 1 : index
      %422 = memref.load %arg1[%c1_300, %c1_301] : memref<3x16xi32, #tpu.memory_space<smem>>
      %c2_302 = arith.constant 2 : index
      %c1_303 = arith.constant 1 : index
      %423 = memref.load %arg1[%c2_302, %c1_303] : memref<3x16xi32, #tpu.memory_space<smem>>
      %c0_304 = arith.constant 0 : index
      %c1_305 = arith.constant 1 : index
      %424 = memref.load %arg2[%c0_304, %c1_305] : memref<3x16xi32, #tpu.memory_space<smem>>
      %c1_306 = arith.constant 1 : index
      %c1_307 = arith.constant 1 : index
      %425 = memref.load %arg2[%c1_306, %c1_307] : memref<3x16xi32, #tpu.memory_space<smem>>
      %c2_308 = arith.constant 2 : index
      %c1_309 = arith.constant 1 : index
      %426 = memref.load %arg2[%c2_308, %c1_309] : memref<3x16xi32, #tpu.memory_space<smem>>
      %c1_i32_310 = arith.constant 1 : i32
      %c0_i32_311 = arith.constant 0 : i32
      %427 = tpu.memref_slice %arg3[%421, %c0_i32_311] : memref<50x64xf32, #tpu.memory_space<any>> -> memref<1x64xf32, #tpu.memory_space<any>>
      %c1_i32_312 = arith.constant 1 : i32
      %c0_i32_313 = arith.constant 0 : i32
      %428 = tpu.memref_slice %arg6[%c1_i32_312, %c0_i32_313] : memref<96x64xf32, #tpu.memory_space<vmem>> -> memref<1x64xf32, #tpu.memory_space<vmem>>
      %429 = tpu.memref_slice %arg7[%c1_i32_310] : memref<96x!tpu.dma_semaphore, #tpu.memory_space<semaphore_mem>> -> memref<1x!tpu.dma_semaphore, #tpu.memory_space<semaphore_mem>>
      %430 = tpu.memref_squeeze %429 : memref<1x!tpu.dma_semaphore, #tpu.memory_space<semaphore_mem>> -> memref<!tpu.dma_semaphore, #tpu.memory_space<semaphore_mem>>
      tpu.enqueue_dma source(%427 : memref<1x64xf32, #tpu.memory_space<any>>) target(%428 : memref<1x64xf32, #tpu.memory_space<vmem>>) target_semaphore(%430 : memref<!tpu.dma_semaphore, #tpu.memory_space<semaphore_mem>>)
      %c9_i32 = arith.constant 9 : i32
      %c0_i32_314 = arith.constant 0 : i32
      %431 = tpu.memref_slice %arg4[%422, %c0_i32_314] : memref<12x64xf32, #tpu.memory_space<any>> -> memref<1x64xf32, #tpu.memory_space<any>>
      %c9_i32_315 = arith.constant 9 : i32
      %c0_i32_316 = arith.constant 0 : i32
      %432 = tpu.memref_slice %arg6[%c9_i32_315, %c0_i32_316] : memref<96x64xf32, #tpu.memory_space<vmem>> -> memref<1x64xf32, #tpu.memory_space<vmem>>
      %433 = tpu.memref_slice %arg7[%c9_i32] : memref<96x!tpu.dma_semaphore, #tpu.memory_space<semaphore_mem>> -> memref<1x!tpu.dma_semaphore, #tpu.memory_space<semaphore_mem>>
      %434 = tpu.memref_squeeze %433 : memref<1x!tpu.dma_semaphore, #tpu.memory_space<semaphore_mem>> -> memref<!tpu.dma_semaphore, #tpu.memory_space<semaphore_mem>>
      tpu.enqueue_dma source(%431 : memref<1x64xf32, #tpu.memory_space<any>>) target(%432 : memref<1x64xf32, #tpu.memory_space<vmem>>) target_semaphore(%434 : memref<!tpu.dma_semaphore, #tpu.memory_space<semaphore_mem>>)
      %c17_i32 = arith.constant 17 : i32
      %c0_i32_317 = arith.constant 0 : i32
      %435 = tpu.memref_slice %arg3[%423, %c0_i32_317] : memref<50x64xf32, #tpu.memory_space<any>> -> memref<1x64xf32, #tpu.memory_space<any>>
      %c17_i32_318 = arith.constant 17 : i32
      %c0_i32_319 = arith.constant 0 : i32
      %436 = tpu.memref_slice %arg6[%c17_i32_318, %c0_i32_319] : memref<96x64xf32, #tpu.memory_space<vmem>> -> memref<1x64xf32, #tpu.memory_space<vmem>>
      %437 = tpu.memref_slice %arg7[%c17_i32] : memref<96x!tpu.dma_semaphore, #tpu.memory_space<semaphore_mem>> -> memref<1x!tpu.dma_semaphore, #tpu.memory_space<semaphore_mem>>
      %438 = tpu.memref_squeeze %437 : memref<1x!tpu.dma_semaphore, #tpu.memory_space<semaphore_mem>> -> memref<!tpu.dma_semaphore, #tpu.memory_space<semaphore_mem>>
      tpu.enqueue_dma source(%435 : memref<1x64xf32, #tpu.memory_space<any>>) target(%436 : memref<1x64xf32, #tpu.memory_space<vmem>>) target_semaphore(%438 : memref<!tpu.dma_semaphore, #tpu.memory_space<semaphore_mem>>)
      %c25_i32 = arith.constant 25 : i32
      %c0_i32_320 = arith.constant 0 : i32
      %439 = tpu.memref_slice %arg3[%424, %c0_i32_320] : memref<50x64xf32, #tpu.memory_space<any>> -> memref<1x64xf32, #tpu.memory_space<any>>
      %c25_i32_321 = arith.constant 25 : i32
      %c0_i32_322 = arith.constant 0 : i32
      %440 = tpu.memref_slice %arg6[%c25_i32_321, %c0_i32_322] : memref<96x64xf32, #tpu.memory_space<vmem>> -> memref<1x64xf32, #tpu.memory_space<vmem>>
      %441 = tpu.memref_slice %arg7[%c25_i32] : memref<96x!tpu.dma_semaphore, #tpu.memory_space<semaphore_mem>> -> memref<1x!tpu.dma_semaphore, #tpu.memory_space<semaphore_mem>>
      %442 = tpu.memref_squeeze %441 : memref<1x!tpu.dma_semaphore, #tpu.memory_space<semaphore_mem>> -> memref<!tpu.dma_semaphore, #tpu.memory_space<semaphore_mem>>
      tpu.enqueue_dma source(%439 : memref<1x64xf32, #tpu.memory_space<any>>) target(%440 : memref<1x64xf32, #tpu.memory_space<vmem>>) target_semaphore(%442 : memref<!tpu.dma_semaphore, #tpu.memory_space<semaphore_mem>>)
      %c33_i32 = arith.constant 33 : i32
      %c0_i32_323 = arith.constant 0 : i32
      %443 = tpu.memref_slice %arg4[%425, %c0_i32_323] : memref<12x64xf32, #tpu.memory_space<any>> -> memref<1x64xf32, #tpu.memory_space<any>>
      %c33_i32_324 = arith.constant 33 : i32
      %c0_i32_325 = arith.constant 0 : i32
      %444 = tpu.memref_slice %arg6[%c33_i32_324, %c0_i32_325] : memref<96x64xf32, #tpu.memory_space<vmem>> -> memref<1x64xf32, #tpu.memory_space<vmem>>
      %445 = tpu.memref_slice %arg7[%c33_i32] : memref<96x!tpu.dma_semaphore, #tpu.memory_space<semaphore_mem>> -> memref<1x!tpu.dma_semaphore, #tpu.memory_space<semaphore_mem>>
      %446 = tpu.memref_squeeze %445 : memref<1x!tpu.dma_semaphore, #tpu.memory_space<semaphore_mem>> -> memref<!tpu.dma_semaphore, #tpu.memory_space<semaphore_mem>>
      tpu.enqueue_dma source(%443 : memref<1x64xf32, #tpu.memory_space<any>>) target(%444 : memref<1x64xf32, #tpu.memory_space<vmem>>) target_semaphore(%446 : memref<!tpu.dma_semaphore, #tpu.memory_space<semaphore_mem>>)
      %c41_i32 = arith.constant 41 : i32
      %c0_i32_326 = arith.constant 0 : i32
      %447 = tpu.memref_slice %arg3[%426, %c0_i32_326] : memref<50x64xf32, #tpu.memory_space<any>> -> memref<1x64xf32, #tpu.memory_space<any>>
      %c41_i32_327 = arith.constant 41 : i32
      %c0_i32_328 = arith.constant 0 : i32
      %448 = tpu.memref_slice %arg6[%c41_i32_327, %c0_i32_328] : memref<96x64xf32, #tpu.memory_space<vmem>> -> memref<1x64xf32, #tpu.memory_space<vmem>>
      %449 = tpu.memref_slice %arg7[%c41_i32] : memref<96x!tpu.dma_semaphore, #tpu.memory_space<semaphore_mem>> -> memref<1x!tpu.dma_semaphore, #tpu.memory_space<semaphore_mem>>
      %450 = tpu.memref_squeeze %449 : memref<1x!tpu.dma_semaphore, #tpu.memory_space<semaphore_mem>> -> memref<!tpu.dma_semaphore, #tpu.memory_space<semaphore_mem>>
      tpu.enqueue_dma source(%447 : memref<1x64xf32, #tpu.memory_space<any>>) target(%448 : memref<1x64xf32, #tpu.memory_space<vmem>>) target_semaphore(%450 : memref<!tpu.dma_semaphore, #tpu.memory_space<semaphore_mem>>)
      %c0_329 = arith.constant 0 : index
      %c2_330 = arith.constant 2 : index
      %451 = memref.load %arg1[%c0_329, %c2_330] : memref<3x16xi32, #tpu.memory_space<smem>>
      %c1_331 = arith.constant 1 : index
      %c2_332 = arith.constant 2 : index
      %452 = memref.load %arg1[%c1_331, %c2_332] : memref<3x16xi32, #tpu.memory_space<smem>>
      %c2_333 = arith.constant 2 : index
      %c2_334 = arith.constant 2 : index
      %453 = memref.load %arg1[%c2_333, %c2_334] : memref<3x16xi32, #tpu.memory_space<smem>>
      %c0_335 = arith.constant 0 : index
      %c2_336 = arith.constant 2 : index
      %454 = memref.load %arg2[%c0_335, %c2_336] : memref<3x16xi32, #tpu.memory_space<smem>>
      %c1_337 = arith.constant 1 : index
      %c2_338 = arith.constant 2 : index
      %455 = memref.load %arg2[%c1_337, %c2_338] : memref<3x16xi32, #tpu.memory_space<smem>>
      %c2_339 = arith.constant 2 : index
      %c2_340 = arith.constant 2 : index
      %456 = memref.load %arg2[%c2_339, %c2_340] : memref<3x16xi32, #tpu.memory_space<smem>>
      %c2_i32_341 = arith.constant 2 : i32
      %c0_i32_342 = arith.constant 0 : i32
      %457 = tpu.memref_slice %arg3[%451, %c0_i32_342] : memref<50x64xf32, #tpu.memory_space<any>> -> memref<1x64xf32, #tpu.memory_space<any>>
      %c2_i32_343 = arith.constant 2 : i32
      %c0_i32_344 = arith.constant 0 : i32
      %458 = tpu.memref_slice %arg6[%c2_i32_343, %c0_i32_344] : memref<96x64xf32, #tpu.memory_space<vmem>> -> memref<1x64xf32, #tpu.memory_space<vmem>>
      %459 = tpu.memref_slice %arg7[%c2_i32_341] : memref<96x!tpu.dma_semaphore, #tpu.memory_space<semaphore_mem>> -> memref<1x!tpu.dma_semaphore, #tpu.memory_space<semaphore_mem>>
      %460 = tpu.memref_squeeze %459 : memref<1x!tpu.dma_semaphore, #tpu.memory_space<semaphore_mem>> -> memref<!tpu.dma_semaphore, #tpu.memory_space<semaphore_mem>>
      tpu.enqueue_dma source(%457 : memref<1x64xf32, #tpu.memory_space<any>>) target(%458 : memref<1x64xf32, #tpu.memory_space<vmem>>) target_semaphore(%460 : memref<!tpu.dma_semaphore, #tpu.memory_space<semaphore_mem>>)
      %c10_i32_345 = arith.constant 10 : i32
      %c0_i32_346 = arith.constant 0 : i32
      %461 = tpu.memref_slice %arg4[%452, %c0_i32_346] : memref<12x64xf32, #tpu.memory_space<any>> -> memref<1x64xf32, #tpu.memory_space<any>>
      %c10_i32_347 = arith.constant 10 : i32
      %c0_i32_348 = arith.constant 0 : i32
      %462 = tpu.memref_slice %arg6[%c10_i32_347, %c0_i32_348] : memref<96x64xf32, #tpu.memory_space<vmem>> -> memref<1x64xf32, #tpu.memory_space<vmem>>
      %463 = tpu.memref_slice %arg7[%c10_i32_345] : memref<96x!tpu.dma_semaphore, #tpu.memory_space<semaphore_mem>> -> memref<1x!tpu.dma_semaphore, #tpu.memory_space<semaphore_mem>>
      %464 = tpu.memref_squeeze %463 : memref<1x!tpu.dma_semaphore, #tpu.memory_space<semaphore_mem>> -> memref<!tpu.dma_semaphore, #tpu.memory_space<semaphore_mem>>
      tpu.enqueue_dma source(%461 : memref<1x64xf32, #tpu.memory_space<any>>) target(%462 : memref<1x64xf32, #tpu.memory_space<vmem>>) target_semaphore(%464 : memref<!tpu.dma_semaphore, #tpu.memory_space<semaphore_mem>>)
      %c18_i32 = arith.constant 18 : i32
      %c0_i32_349 = arith.constant 0 : i32
      %465 = tpu.memref_slice %arg3[%453, %c0_i32_349] : memref<50x64xf32, #tpu.memory_space<any>> -> memref<1x64xf32, #tpu.memory_space<any>>
      %c18_i32_350 = arith.constant 18 : i32
      %c0_i32_351 = arith.constant 0 : i32
      %466 = tpu.memref_slice %arg6[%c18_i32_350, %c0_i32_351] : memref<96x64xf32, #tpu.memory_space<vmem>> -> memref<1x64xf32, #tpu.memory_space<vmem>>
      %467 = tpu.memref_slice %arg7[%c18_i32] : memref<96x!tpu.dma_semaphore, #tpu.memory_space<semaphore_mem>> -> memref<1x!tpu.dma_semaphore, #tpu.memory_space<semaphore_mem>>
      %468 = tpu.memref_squeeze %467 : memref<1x!tpu.dma_semaphore, #tpu.memory_space<semaphore_mem>> -> memref<!tpu.dma_semaphore, #tpu.memory_space<semaphore_mem>>
      tpu.enqueue_dma source(%465 : memref<1x64xf32, #tpu.memory_space<any>>) target(%466 : memref<1x64xf32, #tpu.memory_space<vmem>>) target_semaphore(%468 : memref<!tpu.dma_semaphore, #tpu.memory_space<semaphore_mem>>)
      %c26_i32 = arith.constant 26 : i32
      %c0_i32_352 = arith.constant 0 : i32
      %469 = tpu.memref_slice %arg3[%454, %c0_i32_352] : memref<50x64xf32, #tpu.memory_space<any>> -> memref<1x64xf32, #tpu.memory_space<any>>
      %c26_i32_353 = arith.constant 26 : i32
      %c0_i32_354 = arith.constant 0 : i32
      %470 = tpu.memref_slice %arg6[%c26_i32_353, %c0_i32_354] : memref<96x64xf32, #tpu.memory_space<vmem>> -> memref<1x64xf32, #tpu.memory_space<vmem>>
      %471 = tpu.memref_slice %arg7[%c26_i32] : memref<96x!tpu.dma_semaphore, #tpu.memory_space<semaphore_mem>> -> memref<1x!tpu.dma_semaphore, #tpu.memory_space<semaphore_mem>>
      %472 = tpu.memref_squeeze %471 : memref<1x!tpu.dma_semaphore, #tpu.memory_space<semaphore_mem>> -> memref<!tpu.dma_semaphore, #tpu.memory_space<semaphore_mem>>
      tpu.enqueue_dma source(%469 : memref<1x64xf32, #tpu.memory_space<any>>) target(%470 : memref<1x64xf32, #tpu.memory_space<vmem>>) target_semaphore(%472 : memref<!tpu.dma_semaphore, #tpu.memory_space<semaphore_mem>>)
      %c34_i32 = arith.constant 34 : i32
      %c0_i32_355 = arith.constant 0 : i32
      %473 = tpu.memref_slice %arg4[%455, %c0_i32_355] : memref<12x64xf32, #tpu.memory_space<any>> -> memref<1x64xf32, #tpu.memory_space<any>>
      %c34_i32_356 = arith.constant 34 : i32
      %c0_i32_357 = arith.constant 0 : i32
      %474 = tpu.memref_slice %arg6[%c34_i32_356, %c0_i32_357] : memref<96x64xf32, #tpu.memory_space<vmem>> -> memref<1x64xf32, #tpu.memory_space<vmem>>
      %475 = tpu.memref_slice %arg7[%c34_i32] : memref<96x!tpu.dma_semaphore, #tpu.memory_space<semaphore_mem>> -> memref<1x!tpu.dma_semaphore, #tpu.memory_space<semaphore_mem>>
      %476 = tpu.memref_squeeze %475 : memref<1x!tpu.dma_semaphore, #tpu.memory_space<semaphore_mem>> -> memref<!tpu.dma_semaphore, #tpu.memory_space<semaphore_mem>>
      tpu.enqueue_dma source(%473 : memref<1x64xf32, #tpu.memory_space<any>>) target(%474 : memref<1x64xf32, #tpu.memory_space<vmem>>) target_semaphore(%476 : memref<!tpu.dma_semaphore, #tpu.memory_space<semaphore_mem>>)
      %c42_i32 = arith.constant 42 : i32
      %c0_i32_358 = arith.constant 0 : i32
      %477 = tpu.memref_slice %arg3[%456, %c0_i32_358] : memref<50x64xf32, #tpu.memory_space<any>> -> memref<1x64xf32, #tpu.memory_space<any>>
      %c42_i32_359 = arith.constant 42 : i32
      %c0_i32_360 = arith.constant 0 : i32
      %478 = tpu.memref_slice %arg6[%c42_i32_359, %c0_i32_360] : memref<96x64xf32, #tpu.memory_space<vmem>> -> memref<1x64xf32, #tpu.memory_space<vmem>>
      %479 = tpu.memref_slice %arg7[%c42_i32] : memref<96x!tpu.dma_semaphore, #tpu.memory_space<semaphore_mem>> -> memref<1x!tpu.dma_semaphore, #tpu.memory_space<semaphore_mem>>
      %480 = tpu.memref_squeeze %479 : memref<1x!tpu.dma_semaphore, #tpu.memory_space<semaphore_mem>> -> memref<!tpu.dma_semaphore, #tpu.memory_space<semaphore_mem>>
      tpu.enqueue_dma source(%477 : memref<1x64xf32, #tpu.memory_space<any>>) target(%478 : memref<1x64xf32, #tpu.memory_space<vmem>>) target_semaphore(%480 : memref<!tpu.dma_semaphore, #tpu.memory_space<semaphore_mem>>)
      %c0_361 = arith.constant 0 : index
      %c3 = arith.constant 3 : index
      %481 = memref.load %arg1[%c0_361, %c3] : memref<3x16xi32, #tpu.memory_space<smem>>
      %c1_362 = arith.constant 1 : index
      %c3_363 = arith.constant 3 : index
      %482 = memref.load %arg1[%c1_362, %c3_363] : memref<3x16xi32, #tpu.memory_space<smem>>
      %c2_364 = arith.constant 2 : index
      %c3_365 = arith.constant 3 : index
      %483 = memref.load %arg1[%c2_364, %c3_365] : memref<3x16xi32, #tpu.memory_space<smem>>
      %c0_366 = arith.constant 0 : index
      %c3_367 = arith.constant 3 : index
      %484 = memref.load %arg2[%c0_366, %c3_367] : memref<3x16xi32, #tpu.memory_space<smem>>
      %c1_368 = arith.constant 1 : index
      %c3_369 = arith.constant 3 : index
      %485 = memref.load %arg2[%c1_368, %c3_369] : memref<3x16xi32, #tpu.memory_space<smem>>
      %c2_370 = arith.constant 2 : index
      %c3_371 = arith.constant 3 : index
      %486 = memref.load %arg2[%c2_370, %c3_371] : memref<3x16xi32, #tpu.memory_space<smem>>
      %c3_i32_372 = arith.constant 3 : i32
      %c0_i32_373 = arith.constant 0 : i32
      %487 = tpu.memref_slice %arg3[%481, %c0_i32_373] : memref<50x64xf32, #tpu.memory_space<any>> -> memref<1x64xf32, #tpu.memory_space<any>>
      %c3_i32_374 = arith.constant 3 : i32
      %c0_i32_375 = arith.constant 0 : i32
      %488 = tpu.memref_slice %arg6[%c3_i32_374, %c0_i32_375] : memref<96x64xf32, #tpu.memory_space<vmem>> -> memref<1x64xf32, #tpu.memory_space<vmem>>
      %489 = tpu.memref_slice %arg7[%c3_i32_372] : memref<96x!tpu.dma_semaphore, #tpu.memory_space<semaphore_mem>> -> memref<1x!tpu.dma_semaphore, #tpu.memory_space<semaphore_mem>>
      %490 = tpu.memref_squeeze %489 : memref<1x!tpu.dma_semaphore, #tpu.memory_space<semaphore_mem>> -> memref<!tpu.dma_semaphore, #tpu.memory_space<semaphore_mem>>
      tpu.enqueue_dma source(%487 : memref<1x64xf32, #tpu.memory_space<any>>) target(%488 : memref<1x64xf32, #tpu.memory_space<vmem>>) target_semaphore(%490 : memref<!tpu.dma_semaphore, #tpu.memory_space<semaphore_mem>>)
      %c11_i32 = arith.constant 11 : i32
      %c0_i32_376 = arith.constant 0 : i32
      %491 = tpu.memref_slice %arg4[%482, %c0_i32_376] : memref<12x64xf32, #tpu.memory_space<any>> -> memref<1x64xf32, #tpu.memory_space<any>>
      %c11_i32_377 = arith.constant 11 : i32
      %c0_i32_378 = arith.constant 0 : i32
      %492 = tpu.memref_slice %arg6[%c11_i32_377, %c0_i32_378] : memref<96x64xf32, #tpu.memory_space<vmem>> -> memref<1x64xf32, #tpu.memory_space<vmem>>
      %493 = tpu.memref_slice %arg7[%c11_i32] : memref<96x!tpu.dma_semaphore, #tpu.memory_space<semaphore_mem>> -> memref<1x!tpu.dma_semaphore, #tpu.memory_space<semaphore_mem>>
      %494 = tpu.memref_squeeze %493 : memref<1x!tpu.dma_semaphore, #tpu.memory_space<semaphore_mem>> -> memref<!tpu.dma_semaphore, #tpu.memory_space<semaphore_mem>>
      tpu.enqueue_dma source(%491 : memref<1x64xf32, #tpu.memory_space<any>>) target(%492 : memref<1x64xf32, #tpu.memory_space<vmem>>) target_semaphore(%494 : memref<!tpu.dma_semaphore, #tpu.memory_space<semaphore_mem>>)
      %c19_i32 = arith.constant 19 : i32
      %c0_i32_379 = arith.constant 0 : i32
      %495 = tpu.memref_slice %arg3[%483, %c0_i32_379] : memref<50x64xf32, #tpu.memory_space<any>> -> memref<1x64xf32, #tpu.memory_space<any>>
      %c19_i32_380 = arith.constant 19 : i32
      %c0_i32_381 = arith.constant 0 : i32
      %496 = tpu.memref_slice %arg6[%c19_i32_380, %c0_i32_381] : memref<96x64xf32, #tpu.memory_space<vmem>> -> memref<1x64xf32, #tpu.memory_space<vmem>>
      %497 = tpu.memref_slice %arg7[%c19_i32] : memref<96x!tpu.dma_semaphore, #tpu.memory_space<semaphore_mem>> -> memref<1x!tpu.dma_semaphore, #tpu.memory_space<semaphore_mem>>
      %498 = tpu.memref_squeeze %497 : memref<1x!tpu.dma_semaphore, #tpu.memory_space<semaphore_mem>> -> memref<!tpu.dma_semaphore, #tpu.memory_space<semaphore_mem>>
      tpu.enqueue_dma source(%495 : memref<1x64xf32, #tpu.memory_space<any>>) target(%496 : memref<1x64xf32, #tpu.memory_space<vmem>>) target_semaphore(%498 : memref<!tpu.dma_semaphore, #tpu.memory_space<semaphore_mem>>)
      %c27_i32 = arith.constant 27 : i32
      %c0_i32_382 = arith.constant 0 : i32
      %499 = tpu.memref_slice %arg3[%484, %c0_i32_382] : memref<50x64xf32, #tpu.memory_space<any>> -> memref<1x64xf32, #tpu.memory_space<any>>
      %c27_i32_383 = arith.constant 27 : i32
      %c0_i32_384 = arith.constant 0 : i32
      %500 = tpu.memref_slice %arg6[%c27_i32_383, %c0_i32_384] : memref<96x64xf32, #tpu.memory_space<vmem>> -> memref<1x64xf32, #tpu.memory_space<vmem>>
      %501 = tpu.memref_slice %arg7[%c27_i32] : memref<96x!tpu.dma_semaphore, #tpu.memory_space<semaphore_mem>> -> memref<1x!tpu.dma_semaphore, #tpu.memory_space<semaphore_mem>>
      %502 = tpu.memref_squeeze %501 : memref<1x!tpu.dma_semaphore, #tpu.memory_space<semaphore_mem>> -> memref<!tpu.dma_semaphore, #tpu.memory_space<semaphore_mem>>
      tpu.enqueue_dma source(%499 : memref<1x64xf32, #tpu.memory_space<any>>) target(%500 : memref<1x64xf32, #tpu.memory_space<vmem>>) target_semaphore(%502 : memref<!tpu.dma_semaphore, #tpu.memory_space<semaphore_mem>>)
      %c35_i32 = arith.constant 35 : i32
      %c0_i32_385 = arith.constant 0 : i32
      %503 = tpu.memref_slice %arg4[%485, %c0_i32_385] : memref<12x64xf32, #tpu.memory_space<any>> -> memref<1x64xf32, #tpu.memory_space<any>>
      %c35_i32_386 = arith.constant 35 : i32
      %c0_i32_387 = arith.constant 0 : i32
      %504 = tpu.memref_slice %arg6[%c35_i32_386, %c0_i32_387] : memref<96x64xf32, #tpu.memory_space<vmem>> -> memref<1x64xf32, #tpu.memory_space<vmem>>
      %505 = tpu.memref_slice %arg7[%c35_i32] : memref<96x!tpu.dma_semaphore, #tpu.memory_space<semaphore_mem>> -> memref<1x!tpu.dma_semaphore, #tpu.memory_space<semaphore_mem>>
      %506 = tpu.memref_squeeze %505 : memref<1x!tpu.dma_semaphore, #tpu.memory_space<semaphore_mem>> -> memref<!tpu.dma_semaphore, #tpu.memory_space<semaphore_mem>>
      tpu.enqueue_dma source(%503 : memref<1x64xf32, #tpu.memory_space<any>>) target(%504 : memref<1x64xf32, #tpu.memory_space<vmem>>) target_semaphore(%506 : memref<!tpu.dma_semaphore, #tpu.memory_space<semaphore_mem>>)
      %c43_i32 = arith.constant 43 : i32
      %c0_i32_388 = arith.constant 0 : i32
      %507 = tpu.memref_slice %arg3[%486, %c0_i32_388] : memref<50x64xf32, #tpu.memory_space<any>> -> memref<1x64xf32, #tpu.memory_space<any>>
      %c43_i32_389 = arith.constant 43 : i32
      %c0_i32_390 = arith.constant 0 : i32
      %508 = tpu.memref_slice %arg6[%c43_i32_389, %c0_i32_390] : memref<96x64xf32, #tpu.memory_space<vmem>> -> memref<1x64xf32, #tpu.memory_space<vmem>>
      %509 = tpu.memref_slice %arg7[%c43_i32] : memref<96x!tpu.dma_semaphore, #tpu.memory_space<semaphore_mem>> -> memref<1x!tpu.dma_semaphore, #tpu.memory_space<semaphore_mem>>
      %510 = tpu.memref_squeeze %509 : memref<1x!tpu.dma_semaphore, #tpu.memory_space<semaphore_mem>> -> memref<!tpu.dma_semaphore, #tpu.memory_space<semaphore_mem>>
      tpu.enqueue_dma source(%507 : memref<1x64xf32, #tpu.memory_space<any>>) target(%508 : memref<1x64xf32, #tpu.memory_space<vmem>>) target_semaphore(%510 : memref<!tpu.dma_semaphore, #tpu.memory_space<semaphore_mem>>)
      %c0_391 = arith.constant 0 : index
      %c4 = arith.constant 4 : index
      %511 = memref.load %arg1[%c0_391, %c4] : memref<3x16xi32, #tpu.memory_space<smem>>
      %c1_392 = arith.constant 1 : index
      %c4_393 = arith.constant 4 : index
      %512 = memref.load %arg1[%c1_392, %c4_393] : memref<3x16xi32, #tpu.memory_space<smem>>
      %c2_394 = arith.constant 2 : index
      %c4_395 = arith.constant 4 : index
      %513 = memref.load %arg1[%c2_394, %c4_395] : memref<3x16xi32, #tpu.memory_space<smem>>
      %c0_396 = arith.constant 0 : index
      %c4_397 = arith.constant 4 : index
      %514 = memref.load %arg2[%c0_396, %c4_397] : memref<3x16xi32, #tpu.memory_space<smem>>
      %c1_398 = arith.constant 1 : index
      %c4_399 = arith.constant 4 : index
      %515 = memref.load %arg2[%c1_398, %c4_399] : memref<3x16xi32, #tpu.memory_space<smem>>
      %c2_400 = arith.constant 2 : index
      %c4_401 = arith.constant 4 : index
      %516 = memref.load %arg2[%c2_400, %c4_401] : memref<3x16xi32, #tpu.memory_space<smem>>
      %c4_i32_402 = arith.constant 4 : i32
      %c0_i32_403 = arith.constant 0 : i32
      %517 = tpu.memref_slice %arg3[%511, %c0_i32_403] : memref<50x64xf32, #tpu.memory_space<any>> -> memref<1x64xf32, #tpu.memory_space<any>>
      %c4_i32_404 = arith.constant 4 : i32
      %c0_i32_405 = arith.constant 0 : i32
      %518 = tpu.memref_slice %arg6[%c4_i32_404, %c0_i32_405] : memref<96x64xf32, #tpu.memory_space<vmem>> -> memref<1x64xf32, #tpu.memory_space<vmem>>
      %519 = tpu.memref_slice %arg7[%c4_i32_402] : memref<96x!tpu.dma_semaphore, #tpu.memory_space<semaphore_mem>> -> memref<1x!tpu.dma_semaphore, #tpu.memory_space<semaphore_mem>>
      %520 = tpu.memref_squeeze %519 : memref<1x!tpu.dma_semaphore, #tpu.memory_space<semaphore_mem>> -> memref<!tpu.dma_semaphore, #tpu.memory_space<semaphore_mem>>
      tpu.enqueue_dma source(%517 : memref<1x64xf32, #tpu.memory_space<any>>) target(%518 : memref<1x64xf32, #tpu.memory_space<vmem>>) target_semaphore(%520 : memref<!tpu.dma_semaphore, #tpu.memory_space<semaphore_mem>>)
      %c12_i32 = arith.constant 12 : i32
      %c0_i32_406 = arith.constant 0 : i32
      %521 = tpu.memref_slice %arg4[%512, %c0_i32_406] : memref<12x64xf32, #tpu.memory_space<any>> -> memref<1x64xf32, #tpu.memory_space<any>>
      %c12_i32_407 = arith.constant 12 : i32
      %c0_i32_408 = arith.constant 0 : i32
      %522 = tpu.memref_slice %arg6[%c12_i32_407, %c0_i32_408] : memref<96x64xf32, #tpu.memory_space<vmem>> -> memref<1x64xf32, #tpu.memory_space<vmem>>
      %523 = tpu.memref_slice %arg7[%c12_i32] : memref<96x!tpu.dma_semaphore, #tpu.memory_space<semaphore_mem>> -> memref<1x!tpu.dma_semaphore, #tpu.memory_space<semaphore_mem>>
      %524 = tpu.memref_squeeze %523 : memref<1x!tpu.dma_semaphore, #tpu.memory_space<semaphore_mem>> -> memref<!tpu.dma_semaphore, #tpu.memory_space<semaphore_mem>>
      tpu.enqueue_dma source(%521 : memref<1x64xf32, #tpu.memory_space<any>>) target(%522 : memref<1x64xf32, #tpu.memory_space<vmem>>) target_semaphore(%524 : memref<!tpu.dma_semaphore, #tpu.memory_space<semaphore_mem>>)
      %c20_i32 = arith.constant 20 : i32
      %c0_i32_409 = arith.constant 0 : i32
      %525 = tpu.memref_slice %arg3[%513, %c0_i32_409] : memref<50x64xf32, #tpu.memory_space<any>> -> memref<1x64xf32, #tpu.memory_space<any>>
      %c20_i32_410 = arith.constant 20 : i32
      %c0_i32_411 = arith.constant 0 : i32
      %526 = tpu.memref_slice %arg6[%c20_i32_410, %c0_i32_411] : memref<96x64xf32, #tpu.memory_space<vmem>> -> memref<1x64xf32, #tpu.memory_space<vmem>>
      %527 = tpu.memref_slice %arg7[%c20_i32] : memref<96x!tpu.dma_semaphore, #tpu.memory_space<semaphore_mem>> -> memref<1x!tpu.dma_semaphore, #tpu.memory_space<semaphore_mem>>
      %528 = tpu.memref_squeeze %527 : memref<1x!tpu.dma_semaphore, #tpu.memory_space<semaphore_mem>> -> memref<!tpu.dma_semaphore, #tpu.memory_space<semaphore_mem>>
      tpu.enqueue_dma source(%525 : memref<1x64xf32, #tpu.memory_space<any>>) target(%526 : memref<1x64xf32, #tpu.memory_space<vmem>>) target_semaphore(%528 : memref<!tpu.dma_semaphore, #tpu.memory_space<semaphore_mem>>)
      %c28_i32 = arith.constant 28 : i32
      %c0_i32_412 = arith.constant 0 : i32
      %529 = tpu.memref_slice %arg3[%514, %c0_i32_412] : memref<50x64xf32, #tpu.memory_space<any>> -> memref<1x64xf32, #tpu.memory_space<any>>
      %c28_i32_413 = arith.constant 28 : i32
      %c0_i32_414 = arith.constant 0 : i32
      %530 = tpu.memref_slice %arg6[%c28_i32_413, %c0_i32_414] : memref<96x64xf32, #tpu.memory_space<vmem>> -> memref<1x64xf32, #tpu.memory_space<vmem>>
      %531 = tpu.memref_slice %arg7[%c28_i32] : memref<96x!tpu.dma_semaphore, #tpu.memory_space<semaphore_mem>> -> memref<1x!tpu.dma_semaphore, #tpu.memory_space<semaphore_mem>>
      %532 = tpu.memref_squeeze %531 : memref<1x!tpu.dma_semaphore, #tpu.memory_space<semaphore_mem>> -> memref<!tpu.dma_semaphore, #tpu.memory_space<semaphore_mem>>
      tpu.enqueue_dma source(%529 : memref<1x64xf32, #tpu.memory_space<any>>) target(%530 : memref<1x64xf32, #tpu.memory_space<vmem>>) target_semaphore(%532 : memref<!tpu.dma_semaphore, #tpu.memory_space<semaphore_mem>>)
      %c36_i32 = arith.constant 36 : i32
      %c0_i32_415 = arith.constant 0 : i32
      %533 = tpu.memref_slice %arg4[%515, %c0_i32_415] : memref<12x64xf32, #tpu.memory_space<any>> -> memref<1x64xf32, #tpu.memory_space<any>>
      %c36_i32_416 = arith.constant 36 : i32
      %c0_i32_417 = arith.constant 0 : i32
      %534 = tpu.memref_slice %arg6[%c36_i32_416, %c0_i32_417] : memref<96x64xf32, #tpu.memory_space<vmem>> -> memref<1x64xf32, #tpu.memory_space<vmem>>
      %535 = tpu.memref_slice %arg7[%c36_i32] : memref<96x!tpu.dma_semaphore, #tpu.memory_space<semaphore_mem>> -> memref<1x!tpu.dma_semaphore, #tpu.memory_space<semaphore_mem>>
      %536 = tpu.memref_squeeze %535 : memref<1x!tpu.dma_semaphore, #tpu.memory_space<semaphore_mem>> -> memref<!tpu.dma_semaphore, #tpu.memory_space<semaphore_mem>>
      tpu.enqueue_dma source(%533 : memref<1x64xf32, #tpu.memory_space<any>>) target(%534 : memref<1x64xf32, #tpu.memory_space<vmem>>) target_semaphore(%536 : memref<!tpu.dma_semaphore, #tpu.memory_space<semaphore_mem>>)
      %c44_i32 = arith.constant 44 : i32
      %c0_i32_418 = arith.constant 0 : i32
      %537 = tpu.memref_slice %arg3[%516, %c0_i32_418] : memref<50x64xf32, #tpu.memory_space<any>> -> memref<1x64xf32, #tpu.memory_space<any>>
      %c44_i32_419 = arith.constant 44 : i32
      %c0_i32_420 = arith.constant 0 : i32
      %538 = tpu.memref_slice %arg6[%c44_i32_419, %c0_i32_420] : memref<96x64xf32, #tpu.memory_space<vmem>> -> memref<1x64xf32, #tpu.memory_space<vmem>>
      %539 = tpu.memref_slice %arg7[%c44_i32] : memref<96x!tpu.dma_semaphore, #tpu.memory_space<semaphore_mem>> -> memref<1x!tpu.dma_semaphore, #tpu.memory_space<semaphore_mem>>
      %540 = tpu.memref_squeeze %539 : memref<1x!tpu.dma_semaphore, #tpu.memory_space<semaphore_mem>> -> memref<!tpu.dma_semaphore, #tpu.memory_space<semaphore_mem>>
      tpu.enqueue_dma source(%537 : memref<1x64xf32, #tpu.memory_space<any>>) target(%538 : memref<1x64xf32, #tpu.memory_space<vmem>>) target_semaphore(%540 : memref<!tpu.dma_semaphore, #tpu.memory_space<semaphore_mem>>)
      %c0_421 = arith.constant 0 : index
      %c5 = arith.constant 5 : index
      %541 = memref.load %arg1[%c0_421, %c5] : memref<3x16xi32, #tpu.memory_space<smem>>
      %c1_422 = arith.constant 1 : index
      %c5_423 = arith.constant 5 : index
      %542 = memref.load %arg1[%c1_422, %c5_423] : memref<3x16xi32, #tpu.memory_space<smem>>
      %c2_424 = arith.constant 2 : index
      %c5_425 = arith.constant 5 : index
      %543 = memref.load %arg1[%c2_424, %c5_425] : memref<3x16xi32, #tpu.memory_space<smem>>
      %c0_426 = arith.constant 0 : index
      %c5_427 = arith.constant 5 : index
      %544 = memref.load %arg2[%c0_426, %c5_427] : memref<3x16xi32, #tpu.memory_space<smem>>
      %c1_428 = arith.constant 1 : index
      %c5_429 = arith.constant 5 : index
      %545 = memref.load %arg2[%c1_428, %c5_429] : memref<3x16xi32, #tpu.memory_space<smem>>
      %c2_430 = arith.constant 2 : index
      %c5_431 = arith.constant 5 : index
      %546 = memref.load %arg2[%c2_430, %c5_431] : memref<3x16xi32, #tpu.memory_space<smem>>
      %c5_i32_432 = arith.constant 5 : i32
      %c0_i32_433 = arith.constant 0 : i32
      %547 = tpu.memref_slice %arg3[%541, %c0_i32_433] : memref<50x64xf32, #tpu.memory_space<any>> -> memref<1x64xf32, #tpu.memory_space<any>>
      %c5_i32_434 = arith.constant 5 : i32
      %c0_i32_435 = arith.constant 0 : i32
      %548 = tpu.memref_slice %arg6[%c5_i32_434, %c0_i32_435] : memref<96x64xf32, #tpu.memory_space<vmem>> -> memref<1x64xf32, #tpu.memory_space<vmem>>
      %549 = tpu.memref_slice %arg7[%c5_i32_432] : memref<96x!tpu.dma_semaphore, #tpu.memory_space<semaphore_mem>> -> memref<1x!tpu.dma_semaphore, #tpu.memory_space<semaphore_mem>>
      %550 = tpu.memref_squeeze %549 : memref<1x!tpu.dma_semaphore, #tpu.memory_space<semaphore_mem>> -> memref<!tpu.dma_semaphore, #tpu.memory_space<semaphore_mem>>
      tpu.enqueue_dma source(%547 : memref<1x64xf32, #tpu.memory_space<any>>) target(%548 : memref<1x64xf32, #tpu.memory_space<vmem>>) target_semaphore(%550 : memref<!tpu.dma_semaphore, #tpu.memory_space<semaphore_mem>>)
      %c13_i32 = arith.constant 13 : i32
      %c0_i32_436 = arith.constant 0 : i32
      %551 = tpu.memref_slice %arg4[%542, %c0_i32_436] : memref<12x64xf32, #tpu.memory_space<any>> -> memref<1x64xf32, #tpu.memory_space<any>>
      %c13_i32_437 = arith.constant 13 : i32
      %c0_i32_438 = arith.constant 0 : i32
      %552 = tpu.memref_slice %arg6[%c13_i32_437, %c0_i32_438] : memref<96x64xf32, #tpu.memory_space<vmem>> -> memref<1x64xf32, #tpu.memory_space<vmem>>
      %553 = tpu.memref_slice %arg7[%c13_i32] : memref<96x!tpu.dma_semaphore, #tpu.memory_space<semaphore_mem>> -> memref<1x!tpu.dma_semaphore, #tpu.memory_space<semaphore_mem>>
      %554 = tpu.memref_squeeze %553 : memref<1x!tpu.dma_semaphore, #tpu.memory_space<semaphore_mem>> -> memref<!tpu.dma_semaphore, #tpu.memory_space<semaphore_mem>>
      tpu.enqueue_dma source(%551 : memref<1x64xf32, #tpu.memory_space<any>>) target(%552 : memref<1x64xf32, #tpu.memory_space<vmem>>) target_semaphore(%554 : memref<!tpu.dma_semaphore, #tpu.memory_space<semaphore_mem>>)
      %c21_i32 = arith.constant 21 : i32
      %c0_i32_439 = arith.constant 0 : i32
      %555 = tpu.memref_slice %arg3[%543, %c0_i32_439] : memref<50x64xf32, #tpu.memory_space<any>> -> memref<1x64xf32, #tpu.memory_space<any>>
      %c21_i32_440 = arith.constant 21 : i32
      %c0_i32_441 = arith.constant 0 : i32
      %556 = tpu.memref_slice %arg6[%c21_i32_440, %c0_i32_441] : memref<96x64xf32, #tpu.memory_space<vmem>> -> memref<1x64xf32, #tpu.memory_space<vmem>>
      %557 = tpu.memref_slice %arg7[%c21_i32] : memref<96x!tpu.dma_semaphore, #tpu.memory_space<semaphore_mem>> -> memref<1x!tpu.dma_semaphore, #tpu.memory_space<semaphore_mem>>
      %558 = tpu.memref_squeeze %557 : memref<1x!tpu.dma_semaphore, #tpu.memory_space<semaphore_mem>> -> memref<!tpu.dma_semaphore, #tpu.memory_space<semaphore_mem>>
      tpu.enqueue_dma source(%555 : memref<1x64xf32, #tpu.memory_space<any>>) target(%556 : memref<1x64xf32, #tpu.memory_space<vmem>>) target_semaphore(%558 : memref<!tpu.dma_semaphore, #tpu.memory_space<semaphore_mem>>)
      %c29_i32 = arith.constant 29 : i32
      %c0_i32_442 = arith.constant 0 : i32
      %559 = tpu.memref_slice %arg3[%544, %c0_i32_442] : memref<50x64xf32, #tpu.memory_space<any>> -> memref<1x64xf32, #tpu.memory_space<any>>
      %c29_i32_443 = arith.constant 29 : i32
      %c0_i32_444 = arith.constant 0 : i32
      %560 = tpu.memref_slice %arg6[%c29_i32_443, %c0_i32_444] : memref<96x64xf32, #tpu.memory_space<vmem>> -> memref<1x64xf32, #tpu.memory_space<vmem>>
      %561 = tpu.memref_slice %arg7[%c29_i32] : memref<96x!tpu.dma_semaphore, #tpu.memory_space<semaphore_mem>> -> memref<1x!tpu.dma_semaphore, #tpu.memory_space<semaphore_mem>>
      %562 = tpu.memref_squeeze %561 : memref<1x!tpu.dma_semaphore, #tpu.memory_space<semaphore_mem>> -> memref<!tpu.dma_semaphore, #tpu.memory_space<semaphore_mem>>
      tpu.enqueue_dma source(%559 : memref<1x64xf32, #tpu.memory_space<any>>) target(%560 : memref<1x64xf32, #tpu.memory_space<vmem>>) target_semaphore(%562 : memref<!tpu.dma_semaphore, #tpu.memory_space<semaphore_mem>>)
      %c37_i32 = arith.constant 37 : i32
      %c0_i32_445 = arith.constant 0 : i32
      %563 = tpu.memref_slice %arg4[%545, %c0_i32_445] : memref<12x64xf32, #tpu.memory_space<any>> -> memref<1x64xf32, #tpu.memory_space<any>>
      %c37_i32_446 = arith.constant 37 : i32
      %c0_i32_447 = arith.constant 0 : i32
      %564 = tpu.memref_slice %arg6[%c37_i32_446, %c0_i32_447] : memref<96x64xf32, #tpu.memory_space<vmem>> -> memref<1x64xf32, #tpu.memory_space<vmem>>
      %565 = tpu.memref_slice %arg7[%c37_i32] : memref<96x!tpu.dma_semaphore, #tpu.memory_space<semaphore_mem>> -> memref<1x!tpu.dma_semaphore, #tpu.memory_space<semaphore_mem>>
      %566 = tpu.memref_squeeze %565 : memref<1x!tpu.dma_semaphore, #tpu.memory_space<semaphore_mem>> -> memref<!tpu.dma_semaphore, #tpu.memory_space<semaphore_mem>>
      tpu.enqueue_dma source(%563 : memref<1x64xf32, #tpu.memory_space<any>>) target(%564 : memref<1x64xf32, #tpu.memory_space<vmem>>) target_semaphore(%566 : memref<!tpu.dma_semaphore, #tpu.memory_space<semaphore_mem>>)
      %c45_i32 = arith.constant 45 : i32
      %c0_i32_448 = arith.constant 0 : i32
      %567 = tpu.memref_slice %arg3[%546, %c0_i32_448] : memref<50x64xf32, #tpu.memory_space<any>> -> memref<1x64xf32, #tpu.memory_space<any>>
      %c45_i32_449 = arith.constant 45 : i32
      %c0_i32_450 = arith.constant 0 : i32
      %568 = tpu.memref_slice %arg6[%c45_i32_449, %c0_i32_450] : memref<96x64xf32, #tpu.memory_space<vmem>> -> memref<1x64xf32, #tpu.memory_space<vmem>>
      %569 = tpu.memref_slice %arg7[%c45_i32] : memref<96x!tpu.dma_semaphore, #tpu.memory_space<semaphore_mem>> -> memref<1x!tpu.dma_semaphore, #tpu.memory_space<semaphore_mem>>
      %570 = tpu.memref_squeeze %569 : memref<1x!tpu.dma_semaphore, #tpu.memory_space<semaphore_mem>> -> memref<!tpu.dma_semaphore, #tpu.memory_space<semaphore_mem>>
      tpu.enqueue_dma source(%567 : memref<1x64xf32, #tpu.memory_space<any>>) target(%568 : memref<1x64xf32, #tpu.memory_space<vmem>>) target_semaphore(%570 : memref<!tpu.dma_semaphore, #tpu.memory_space<semaphore_mem>>)
      %c0_451 = arith.constant 0 : index
      %c6 = arith.constant 6 : index
      %571 = memref.load %arg1[%c0_451, %c6] : memref<3x16xi32, #tpu.memory_space<smem>>
      %c1_452 = arith.constant 1 : index
      %c6_453 = arith.constant 6 : index
      %572 = memref.load %arg1[%c1_452, %c6_453] : memref<3x16xi32, #tpu.memory_space<smem>>
      %c2_454 = arith.constant 2 : index
      %c6_455 = arith.constant 6 : index
      %573 = memref.load %arg1[%c2_454, %c6_455] : memref<3x16xi32, #tpu.memory_space<smem>>
      %c0_456 = arith.constant 0 : index
      %c6_457 = arith.constant 6 : index
      %574 = memref.load %arg2[%c0_456, %c6_457] : memref<3x16xi32, #tpu.memory_space<smem>>
      %c1_458 = arith.constant 1 : index
      %c6_459 = arith.constant 6 : index
      %575 = memref.load %arg2[%c1_458, %c6_459] : memref<3x16xi32, #tpu.memory_space<smem>>
      %c2_460 = arith.constant 2 : index
      %c6_461 = arith.constant 6 : index
      %576 = memref.load %arg2[%c2_460, %c6_461] : memref<3x16xi32, #tpu.memory_space<smem>>
      %c6_i32_462 = arith.constant 6 : i32
      %c0_i32_463 = arith.constant 0 : i32
      %577 = tpu.memref_slice %arg3[%571, %c0_i32_463] : memref<50x64xf32, #tpu.memory_space<any>> -> memref<1x64xf32, #tpu.memory_space<any>>
      %c6_i32_464 = arith.constant 6 : i32
      %c0_i32_465 = arith.constant 0 : i32
      %578 = tpu.memref_slice %arg6[%c6_i32_464, %c0_i32_465] : memref<96x64xf32, #tpu.memory_space<vmem>> -> memref<1x64xf32, #tpu.memory_space<vmem>>
      %579 = tpu.memref_slice %arg7[%c6_i32_462] : memref<96x!tpu.dma_semaphore, #tpu.memory_space<semaphore_mem>> -> memref<1x!tpu.dma_semaphore, #tpu.memory_space<semaphore_mem>>
      %580 = tpu.memref_squeeze %579 : memref<1x!tpu.dma_semaphore, #tpu.memory_space<semaphore_mem>> -> memref<!tpu.dma_semaphore, #tpu.memory_space<semaphore_mem>>
      tpu.enqueue_dma source(%577 : memref<1x64xf32, #tpu.memory_space<any>>) target(%578 : memref<1x64xf32, #tpu.memory_space<vmem>>) target_semaphore(%580 : memref<!tpu.dma_semaphore, #tpu.memory_space<semaphore_mem>>)
      %c14_i32 = arith.constant 14 : i32
      %c0_i32_466 = arith.constant 0 : i32
      %581 = tpu.memref_slice %arg4[%572, %c0_i32_466] : memref<12x64xf32, #tpu.memory_space<any>> -> memref<1x64xf32, #tpu.memory_space<any>>
      %c14_i32_467 = arith.constant 14 : i32
      %c0_i32_468 = arith.constant 0 : i32
      %582 = tpu.memref_slice %arg6[%c14_i32_467, %c0_i32_468] : memref<96x64xf32, #tpu.memory_space<vmem>> -> memref<1x64xf32, #tpu.memory_space<vmem>>
      %583 = tpu.memref_slice %arg7[%c14_i32] : memref<96x!tpu.dma_semaphore, #tpu.memory_space<semaphore_mem>> -> memref<1x!tpu.dma_semaphore, #tpu.memory_space<semaphore_mem>>
      %584 = tpu.memref_squeeze %583 : memref<1x!tpu.dma_semaphore, #tpu.memory_space<semaphore_mem>> -> memref<!tpu.dma_semaphore, #tpu.memory_space<semaphore_mem>>
      tpu.enqueue_dma source(%581 : memref<1x64xf32, #tpu.memory_space<any>>) target(%582 : memref<1x64xf32, #tpu.memory_space<vmem>>) target_semaphore(%584 : memref<!tpu.dma_semaphore, #tpu.memory_space<semaphore_mem>>)
      %c22_i32 = arith.constant 22 : i32
      %c0_i32_469 = arith.constant 0 : i32
      %585 = tpu.memref_slice %arg3[%573, %c0_i32_469] : memref<50x64xf32, #tpu.memory_space<any>> -> memref<1x64xf32, #tpu.memory_space<any>>
      %c22_i32_470 = arith.constant 22 : i32
      %c0_i32_471 = arith.constant 0 : i32
      %586 = tpu.memref_slice %arg6[%c22_i32_470, %c0_i32_471] : memref<96x64xf32, #tpu.memory_space<vmem>> -> memref<1x64xf32, #tpu.memory_space<vmem>>
      %587 = tpu.memref_slice %arg7[%c22_i32] : memref<96x!tpu.dma_semaphore, #tpu.memory_space<semaphore_mem>> -> memref<1x!tpu.dma_semaphore, #tpu.memory_space<semaphore_mem>>
      %588 = tpu.memref_squeeze %587 : memref<1x!tpu.dma_semaphore, #tpu.memory_space<semaphore_mem>> -> memref<!tpu.dma_semaphore, #tpu.memory_space<semaphore_mem>>
      tpu.enqueue_dma source(%585 : memref<1x64xf32, #tpu.memory_space<any>>) target(%586 : memref<1x64xf32, #tpu.memory_space<vmem>>) target_semaphore(%588 : memref<!tpu.dma_semaphore, #tpu.memory_space<semaphore_mem>>)
      %c30_i32 = arith.constant 30 : i32
      %c0_i32_472 = arith.constant 0 : i32
      %589 = tpu.memref_slice %arg3[%574, %c0_i32_472] : memref<50x64xf32, #tpu.memory_space<any>> -> memref<1x64xf32, #tpu.memory_space<any>>
      %c30_i32_473 = arith.constant 30 : i32
      %c0_i32_474 = arith.constant 0 : i32
      %590 = tpu.memref_slice %arg6[%c30_i32_473, %c0_i32_474] : memref<96x64xf32, #tpu.memory_space<vmem>> -> memref<1x64xf32, #tpu.memory_space<vmem>>
      %591 = tpu.memref_slice %arg7[%c30_i32] : memref<96x!tpu.dma_semaphore, #tpu.memory_space<semaphore_mem>> -> memref<1x!tpu.dma_semaphore, #tpu.memory_space<semaphore_mem>>
      %592 = tpu.memref_squeeze %591 : memref<1x!tpu.dma_semaphore, #tpu.memory_space<semaphore_mem>> -> memref<!tpu.dma_semaphore, #tpu.memory_space<semaphore_mem>>
      tpu.enqueue_dma source(%589 : memref<1x64xf32, #tpu.memory_space<any>>) target(%590 : memref<1x64xf32, #tpu.memory_space<vmem>>) target_semaphore(%592 : memref<!tpu.dma_semaphore, #tpu.memory_space<semaphore_mem>>)
      %c38_i32 = arith.constant 38 : i32
      %c0_i32_475 = arith.constant 0 : i32
      %593 = tpu.memref_slice %arg4[%575, %c0_i32_475] : memref<12x64xf32, #tpu.memory_space<any>> -> memref<1x64xf32, #tpu.memory_space<any>>
      %c38_i32_476 = arith.constant 38 : i32
      %c0_i32_477 = arith.constant 0 : i32
      %594 = tpu.memref_slice %arg6[%c38_i32_476, %c0_i32_477] : memref<96x64xf32, #tpu.memory_space<vmem>> -> memref<1x64xf32, #tpu.memory_space<vmem>>
      %595 = tpu.memref_slice %arg7[%c38_i32] : memref<96x!tpu.dma_semaphore, #tpu.memory_space<semaphore_mem>> -> memref<1x!tpu.dma_semaphore, #tpu.memory_space<semaphore_mem>>
      %596 = tpu.memref_squeeze %595 : memref<1x!tpu.dma_semaphore, #tpu.memory_space<semaphore_mem>> -> memref<!tpu.dma_semaphore, #tpu.memory_space<semaphore_mem>>
      tpu.enqueue_dma source(%593 : memref<1x64xf32, #tpu.memory_space<any>>) target(%594 : memref<1x64xf32, #tpu.memory_space<vmem>>) target_semaphore(%596 : memref<!tpu.dma_semaphore, #tpu.memory_space<semaphore_mem>>)
      %c46_i32 = arith.constant 46 : i32
      %c0_i32_478 = arith.constant 0 : i32
      %597 = tpu.memref_slice %arg3[%576, %c0_i32_478] : memref<50x64xf32, #tpu.memory_space<any>> -> memref<1x64xf32, #tpu.memory_space<any>>
      %c46_i32_479 = arith.constant 46 : i32
      %c0_i32_480 = arith.constant 0 : i32
      %598 = tpu.memref_slice %arg6[%c46_i32_479, %c0_i32_480] : memref<96x64xf32, #tpu.memory_space<vmem>> -> memref<1x64xf32, #tpu.memory_space<vmem>>
      %599 = tpu.memref_slice %arg7[%c46_i32] : memref<96x!tpu.dma_semaphore, #tpu.memory_space<semaphore_mem>> -> memref<1x!tpu.dma_semaphore, #tpu.memory_space<semaphore_mem>>
      %600 = tpu.memref_squeeze %599 : memref<1x!tpu.dma_semaphore, #tpu.memory_space<semaphore_mem>> -> memref<!tpu.dma_semaphore, #tpu.memory_space<semaphore_mem>>
      tpu.enqueue_dma source(%597 : memref<1x64xf32, #tpu.memory_space<any>>) target(%598 : memref<1x64xf32, #tpu.memory_space<vmem>>) target_semaphore(%600 : memref<!tpu.dma_semaphore, #tpu.memory_space<semaphore_mem>>)
      %c0_481 = arith.constant 0 : index
      %c7 = arith.constant 7 : index
      %601 = memref.load %arg1[%c0_481, %c7] : memref<3x16xi32, #tpu.memory_space<smem>>
      %c1_482 = arith.constant 1 : index
      %c7_483 = arith.constant 7 : index
      %602 = memref.load %arg1[%c1_482, %c7_483] : memref<3x16xi32, #tpu.memory_space<smem>>
      %c2_484 = arith.constant 2 : index
      %c7_485 = arith.constant 7 : index
      %603 = memref.load %arg1[%c2_484, %c7_485] : memref<3x16xi32, #tpu.memory_space<smem>>
      %c0_486 = arith.constant 0 : index
      %c7_487 = arith.constant 7 : index
      %604 = memref.load %arg2[%c0_486, %c7_487] : memref<3x16xi32, #tpu.memory_space<smem>>
      %c1_488 = arith.constant 1 : index
      %c7_489 = arith.constant 7 : index
      %605 = memref.load %arg2[%c1_488, %c7_489] : memref<3x16xi32, #tpu.memory_space<smem>>
      %c2_490 = arith.constant 2 : index
      %c7_491 = arith.constant 7 : index
      %606 = memref.load %arg2[%c2_490, %c7_491] : memref<3x16xi32, #tpu.memory_space<smem>>
      %c7_i32_492 = arith.constant 7 : i32
      %c0_i32_493 = arith.constant 0 : i32
      %607 = tpu.memref_slice %arg3[%601, %c0_i32_493] : memref<50x64xf32, #tpu.memory_space<any>> -> memref<1x64xf32, #tpu.memory_space<any>>
      %c7_i32_494 = arith.constant 7 : i32
      %c0_i32_495 = arith.constant 0 : i32
      %608 = tpu.memref_slice %arg6[%c7_i32_494, %c0_i32_495] : memref<96x64xf32, #tpu.memory_space<vmem>> -> memref<1x64xf32, #tpu.memory_space<vmem>>
      %609 = tpu.memref_slice %arg7[%c7_i32_492] : memref<96x!tpu.dma_semaphore, #tpu.memory_space<semaphore_mem>> -> memref<1x!tpu.dma_semaphore, #tpu.memory_space<semaphore_mem>>
      %610 = tpu.memref_squeeze %609 : memref<1x!tpu.dma_semaphore, #tpu.memory_space<semaphore_mem>> -> memref<!tpu.dma_semaphore, #tpu.memory_space<semaphore_mem>>
      tpu.enqueue_dma source(%607 : memref<1x64xf32, #tpu.memory_space<any>>) target(%608 : memref<1x64xf32, #tpu.memory_space<vmem>>) target_semaphore(%610 : memref<!tpu.dma_semaphore, #tpu.memory_space<semaphore_mem>>)
      %c15_i32 = arith.constant 15 : i32
      %c0_i32_496 = arith.constant 0 : i32
      %611 = tpu.memref_slice %arg4[%602, %c0_i32_496] : memref<12x64xf32, #tpu.memory_space<any>> -> memref<1x64xf32, #tpu.memory_space<any>>
      %c15_i32_497 = arith.constant 15 : i32
      %c0_i32_498 = arith.constant 0 : i32
      %612 = tpu.memref_slice %arg6[%c15_i32_497, %c0_i32_498] : memref<96x64xf32, #tpu.memory_space<vmem>> -> memref<1x64xf32, #tpu.memory_space<vmem>>
      %613 = tpu.memref_slice %arg7[%c15_i32] : memref<96x!tpu.dma_semaphore, #tpu.memory_space<semaphore_mem>> -> memref<1x!tpu.dma_semaphore, #tpu.memory_space<semaphore_mem>>
      %614 = tpu.memref_squeeze %613 : memref<1x!tpu.dma_semaphore, #tpu.memory_space<semaphore_mem>> -> memref<!tpu.dma_semaphore, #tpu.memory_space<semaphore_mem>>
      tpu.enqueue_dma source(%611 : memref<1x64xf32, #tpu.memory_space<any>>) target(%612 : memref<1x64xf32, #tpu.memory_space<vmem>>) target_semaphore(%614 : memref<!tpu.dma_semaphore, #tpu.memory_space<semaphore_mem>>)
      %c23_i32 = arith.constant 23 : i32
      %c0_i32_499 = arith.constant 0 : i32
      %615 = tpu.memref_slice %arg3[%603, %c0_i32_499] : memref<50x64xf32, #tpu.memory_space<any>> -> memref<1x64xf32, #tpu.memory_space<any>>
      %c23_i32_500 = arith.constant 23 : i32
      %c0_i32_501 = arith.constant 0 : i32
      %616 = tpu.memref_slice %arg6[%c23_i32_500, %c0_i32_501] : memref<96x64xf32, #tpu.memory_space<vmem>> -> memref<1x64xf32, #tpu.memory_space<vmem>>
      %617 = tpu.memref_slice %arg7[%c23_i32] : memref<96x!tpu.dma_semaphore, #tpu.memory_space<semaphore_mem>> -> memref<1x!tpu.dma_semaphore, #tpu.memory_space<semaphore_mem>>
      %618 = tpu.memref_squeeze %617 : memref<1x!tpu.dma_semaphore, #tpu.memory_space<semaphore_mem>> -> memref<!tpu.dma_semaphore, #tpu.memory_space<semaphore_mem>>
      tpu.enqueue_dma source(%615 : memref<1x64xf32, #tpu.memory_space<any>>) target(%616 : memref<1x64xf32, #tpu.memory_space<vmem>>) target_semaphore(%618 : memref<!tpu.dma_semaphore, #tpu.memory_space<semaphore_mem>>)
      %c31_i32 = arith.constant 31 : i32
      %c0_i32_502 = arith.constant 0 : i32
      %619 = tpu.memref_slice %arg3[%604, %c0_i32_502] : memref<50x64xf32, #tpu.memory_space<any>> -> memref<1x64xf32, #tpu.memory_space<any>>
      %c31_i32_503 = arith.constant 31 : i32
      %c0_i32_504 = arith.constant 0 : i32
      %620 = tpu.memref_slice %arg6[%c31_i32_503, %c0_i32_504] : memref<96x64xf32, #tpu.memory_space<vmem>> -> memref<1x64xf32, #tpu.memory_space<vmem>>
      %621 = tpu.memref_slice %arg7[%c31_i32] : memref<96x!tpu.dma_semaphore, #tpu.memory_space<semaphore_mem>> -> memref<1x!tpu.dma_semaphore, #tpu.memory_space<semaphore_mem>>
      %622 = tpu.memref_squeeze %621 : memref<1x!tpu.dma_semaphore, #tpu.memory_space<semaphore_mem>> -> memref<!tpu.dma_semaphore, #tpu.memory_space<semaphore_mem>>
      tpu.enqueue_dma source(%619 : memref<1x64xf32, #tpu.memory_space<any>>) target(%620 : memref<1x64xf32, #tpu.memory_space<vmem>>) target_semaphore(%622 : memref<!tpu.dma_semaphore, #tpu.memory_space<semaphore_mem>>)
      %c39_i32 = arith.constant 39 : i32
      %c0_i32_505 = arith.constant 0 : i32
      %623 = tpu.memref_slice %arg4[%605, %c0_i32_505] : memref<12x64xf32, #tpu.memory_space<any>> -> memref<1x64xf32, #tpu.memory_space<any>>
      %c39_i32_506 = arith.constant 39 : i32
      %c0_i32_507 = arith.constant 0 : i32
      %624 = tpu.memref_slice %arg6[%c39_i32_506, %c0_i32_507] : memref<96x64xf32, #tpu.memory_space<vmem>> -> memref<1x64xf32, #tpu.memory_space<vmem>>
      %625 = tpu.memref_slice %arg7[%c39_i32] : memref<96x!tpu.dma_semaphore, #tpu.memory_space<semaphore_mem>> -> memref<1x!tpu.dma_semaphore, #tpu.memory_space<semaphore_mem>>
      %626 = tpu.memref_squeeze %625 : memref<1x!tpu.dma_semaphore, #tpu.memory_space<semaphore_mem>> -> memref<!tpu.dma_semaphore, #tpu.memory_space<semaphore_mem>>
      tpu.enqueue_dma source(%623 : memref<1x64xf32, #tpu.memory_space<any>>) target(%624 : memref<1x64xf32, #tpu.memory_space<vmem>>) target_semaphore(%626 : memref<!tpu.dma_semaphore, #tpu.memory_space<semaphore_mem>>)
      %c47_i32 = arith.constant 47 : i32
      %c0_i32_508 = arith.constant 0 : i32
      %627 = tpu.memref_slice %arg3[%606, %c0_i32_508] : memref<50x64xf32, #tpu.memory_space<any>> -> memref<1x64xf32, #tpu.memory_space<any>>
      %c47_i32_509 = arith.constant 47 : i32
      %c0_i32_510 = arith.constant 0 : i32
      %628 = tpu.memref_slice %arg6[%c47_i32_509, %c0_i32_510] : memref<96x64xf32, #tpu.memory_space<vmem>> -> memref<1x64xf32, #tpu.memory_space<vmem>>
      %629 = tpu.memref_slice %arg7[%c47_i32] : memref<96x!tpu.dma_semaphore, #tpu.memory_space<semaphore_mem>> -> memref<1x!tpu.dma_semaphore, #tpu.memory_space<semaphore_mem>>
      %630 = tpu.memref_squeeze %629 : memref<1x!tpu.dma_semaphore, #tpu.memory_space<semaphore_mem>> -> memref<!tpu.dma_semaphore, #tpu.memory_space<semaphore_mem>>
      tpu.enqueue_dma source(%627 : memref<1x64xf32, #tpu.memory_space<any>>) target(%628 : memref<1x64xf32, #tpu.memory_space<vmem>>) target_semaphore(%630 : memref<!tpu.dma_semaphore, #tpu.memory_space<semaphore_mem>>)
    } else {
    }
    %c1_i32_5 = arith.constant 1 : i32
    %13 = arith.addi %arg0, %c1_i32_5 : i32
    %c2_i32_6 = arith.constant 2 : i32
    %14 = arith.cmpi slt, %13, %c2_i32_6 : i32
    %15 = arith.extui %14 : i1 to i32
    %c0_i32_7 = arith.constant 0 : i32
    %16 = arith.cmpi ne, %15, %c0_i32_7 : i32
    scf.if %16 {
      %c1_i32_258 = arith.constant 1 : i32
      %387 = arith.addi %arg0, %c1_i32_258 : i32
      %c1_i32_259 = arith.constant 1 : i32
      %388 = arith.subi %c1_i32_259, %9 : i32
      %c8_i32_260 = arith.constant 8 : i32
      %389 = arith.muli %387, %c8_i32_260 : i32
      %c48_i32_261 = arith.constant 48 : i32
      %390 = arith.muli %388, %c48_i32_261 : i32
      %c0_i32_262 = arith.constant 0 : i32
      %391 = arith.addi %389, %c0_i32_262 : i32
      %c0_263 = arith.constant 0 : index
      %392 = arith.index_cast %391 : i32 to index
      %393 = memref.load %arg1[%c0_263, %392] : memref<3x16xi32, #tpu.memory_space<smem>>
      %c0_i32_264 = arith.constant 0 : i32
      %394 = arith.addi %389, %c0_i32_264 : i32
      %c1 = arith.constant 1 : index
      %395 = arith.index_cast %394 : i32 to index
      %396 = memref.load %arg1[%c1, %395] : memref<3x16xi32, #tpu.memory_space<smem>>
      %c0_i32_265 = arith.constant 0 : i32
      %397 = arith.addi %389, %c0_i32_265 : i32
      %c2 = arith.constant 2 : index
      %398 = arith.index_cast %397 : i32 to index
      %399 = memref.load %arg1[%c2, %398] : memref<3x16xi32, #tpu.memory_space<smem>>
      %c0_i32_266 = arith.constant 0 : i32
      %400 = arith.addi %389, %c0_i32_266 : i32
      %c0_267 = arith.constant 0 : index
      %401 = arith.index_cast %400 : i32 to index
      %402 = memref.load %arg2[%c0_267, %401] : memref<3x16xi32, #tpu.memory_space<smem>>
      %c0_i32_268 = arith.constant 0 : i32
      %403 = arith.addi %389, %c0_i32_268 : i32
      %c1_269 = arith.constant 1 : index
      %404 = arith.index_cast %403 : i32 to index
      %405 = memref.load %arg2[%c1_269, %404] : memref<3x16xi32, #tpu.memory_space<smem>>
      %c0_i32_270 = arith.constant 0 : i32
      %406 = arith.addi %389, %c0_i32_270 : i32
      %c2_271 = arith.constant 2 : index
      %407 = arith.index_cast %406 : i32 to index
      %408 = memref.load %arg2[%c2_271, %407] : memref<3x16xi32, #tpu.memory_space<smem>>
      %c0_i32_272 = arith.constant 0 : i32
      %409 = arith.addi %390, %c0_i32_272 : i32
      %c0_i32_273 = arith.constant 0 : i32
      %410 = arith.addi %409, %c0_i32_273 : i32
      %c0_i32_274 = arith.constant 0 : i32
      %411 = tpu.memref_slice %arg3[%393, %c0_i32_274] : memref<50x64xf32, #tpu.memory_space<any>> -> memref<1x64xf32, #tpu.memory_space<any>>
      %c0_i32_275 = arith.constant 0 : i32
      %412 = tpu.memref_slice %arg6[%410, %c0_i32_275] : memref<96x64xf32, #tpu.memory_space<vmem>> -> memref<1x64xf32, #tpu.memory_space<vmem>>
      %413 = tpu.memref_slice %arg7[%410] : memref<96x!tpu.dma_semaphore, #tpu.memory_space<semaphore_mem>> -> memref<1x!tpu.dma_semaphore, #tpu.memory_space<semaphore_mem>>
      %414 = tpu.memref_squeeze %413 : memref<1x!tpu.dma_semaphore, #tpu.memory_space<semaphore_mem>> -> memref<!tpu.dma_semaphore, #tpu.memory_space<semaphore_mem>>
      tpu.enqueue_dma source(%411 : memref<1x64xf32, #tpu.memory_space<any>>) target(%412 : memref<1x64xf32, #tpu.memory_space<vmem>>) target_semaphore(%414 : memref<!tpu.dma_semaphore, #tpu.memory_space<semaphore_mem>>)
      %c8_i32_276 = arith.constant 8 : i32
      %415 = arith.addi %390, %c8_i32_276 : i32
      %c0_i32_277 = arith.constant 0 : i32
      %416 = arith.addi %415, %c0_i32_277 : i32
      %c0_i32_278 = arith.constant 0 : i32
      %417 = tpu.memref_slice %arg4[%396, %c0_i32_278] : memref<12x64xf32, #tpu.memory_space<any>> -> memref<1x64xf32, #tpu.memory_space<any>>
      %c0_i32_279 = arith.constant 0 : i32
      %418 = tpu.memref_slice %arg6[%416, %c0_i32_279] : memref<96x64xf32, #tpu.memory_space<vmem>> -> memref<1x64xf32, #tpu.memory_space<vmem>>
      %419 = tpu.memref_slice %arg7[%416] : memref<96x!tpu.dma_semaphore, #tpu.memory_space<semaphore_mem>> -> memref<1x!tpu.dma_semaphore, #tpu.memory_space<semaphore_mem>>
      %420 = tpu.memref_squeeze %419 : memref<1x!tpu.dma_semaphore, #tpu.memory_space<semaphore_mem>> -> memref<!tpu.dma_semaphore, #tpu.memory_space<semaphore_mem>>
      tpu.enqueue_dma source(%417 : memref<1x64xf32, #tpu.memory_space<any>>) target(%418 : memref<1x64xf32, #tpu.memory_space<vmem>>) target_semaphore(%420 : memref<!tpu.dma_semaphore, #tpu.memory_space<semaphore_mem>>)
      %c16_i32_280 = arith.constant 16 : i32
      %421 = arith.addi %390, %c16_i32_280 : i32
      %c0_i32_281 = arith.constant 0 : i32
      %422 = arith.addi %421, %c0_i32_281 : i32
      %c0_i32_282 = arith.constant 0 : i32
      %423 = tpu.memref_slice %arg3[%399, %c0_i32_282] : memref<50x64xf32, #tpu.memory_space<any>> -> memref<1x64xf32, #tpu.memory_space<any>>
      %c0_i32_283 = arith.constant 0 : i32
      %424 = tpu.memref_slice %arg6[%422, %c0_i32_283] : memref<96x64xf32, #tpu.memory_space<vmem>> -> memref<1x64xf32, #tpu.memory_space<vmem>>
      %425 = tpu.memref_slice %arg7[%422] : memref<96x!tpu.dma_semaphore, #tpu.memory_space<semaphore_mem>> -> memref<1x!tpu.dma_semaphore, #tpu.memory_space<semaphore_mem>>
      %426 = tpu.memref_squeeze %425 : memref<1x!tpu.dma_semaphore, #tpu.memory_space<semaphore_mem>> -> memref<!tpu.dma_semaphore, #tpu.memory_space<semaphore_mem>>
      tpu.enqueue_dma source(%423 : memref<1x64xf32, #tpu.memory_space<any>>) target(%424 : memref<1x64xf32, #tpu.memory_space<vmem>>) target_semaphore(%426 : memref<!tpu.dma_semaphore, #tpu.memory_space<semaphore_mem>>)
      %c24_i32_284 = arith.constant 24 : i32
      %427 = arith.addi %390, %c24_i32_284 : i32
      %c0_i32_285 = arith.constant 0 : i32
      %428 = arith.addi %427, %c0_i32_285 : i32
      %c0_i32_286 = arith.constant 0 : i32
      %429 = tpu.memref_slice %arg3[%402, %c0_i32_286] : memref<50x64xf32, #tpu.memory_space<any>> -> memref<1x64xf32, #tpu.memory_space<any>>
      %c0_i32_287 = arith.constant 0 : i32
      %430 = tpu.memref_slice %arg6[%428, %c0_i32_287] : memref<96x64xf32, #tpu.memory_space<vmem>> -> memref<1x64xf32, #tpu.memory_space<vmem>>
      %431 = tpu.memref_slice %arg7[%428] : memref<96x!tpu.dma_semaphore, #tpu.memory_space<semaphore_mem>> -> memref<1x!tpu.dma_semaphore, #tpu.memory_space<semaphore_mem>>
      %432 = tpu.memref_squeeze %431 : memref<1x!tpu.dma_semaphore, #tpu.memory_space<semaphore_mem>> -> memref<!tpu.dma_semaphore, #tpu.memory_space<semaphore_mem>>
      tpu.enqueue_dma source(%429 : memref<1x64xf32, #tpu.memory_space<any>>) target(%430 : memref<1x64xf32, #tpu.memory_space<vmem>>) target_semaphore(%432 : memref<!tpu.dma_semaphore, #tpu.memory_space<semaphore_mem>>)
      %c32_i32_288 = arith.constant 32 : i32
      %433 = arith.addi %390, %c32_i32_288 : i32
      %c0_i32_289 = arith.constant 0 : i32
      %434 = arith.addi %433, %c0_i32_289 : i32
      %c0_i32_290 = arith.constant 0 : i32
      %435 = tpu.memref_slice %arg4[%405, %c0_i32_290] : memref<12x64xf32, #tpu.memory_space<any>> -> memref<1x64xf32, #tpu.memory_space<any>>
      %c0_i32_291 = arith.constant 0 : i32
      %436 = tpu.memref_slice %arg6[%434, %c0_i32_291] : memref<96x64xf32, #tpu.memory_space<vmem>> -> memref<1x64xf32, #tpu.memory_space<vmem>>
      %437 = tpu.memref_slice %arg7[%434] : memref<96x!tpu.dma_semaphore, #tpu.memory_space<semaphore_mem>> -> memref<1x!tpu.dma_semaphore, #tpu.memory_space<semaphore_mem>>
      %438 = tpu.memref_squeeze %437 : memref<1x!tpu.dma_semaphore, #tpu.memory_space<semaphore_mem>> -> memref<!tpu.dma_semaphore, #tpu.memory_space<semaphore_mem>>
      tpu.enqueue_dma source(%435 : memref<1x64xf32, #tpu.memory_space<any>>) target(%436 : memref<1x64xf32, #tpu.memory_space<vmem>>) target_semaphore(%438 : memref<!tpu.dma_semaphore, #tpu.memory_space<semaphore_mem>>)
      %c40_i32_292 = arith.constant 40 : i32
      %439 = arith.addi %390, %c40_i32_292 : i32
      %c0_i32_293 = arith.constant 0 : i32
      %440 = arith.addi %439, %c0_i32_293 : i32
      %c0_i32_294 = arith.constant 0 : i32
      %441 = tpu.memref_slice %arg3[%408, %c0_i32_294] : memref<50x64xf32, #tpu.memory_space<any>> -> memref<1x64xf32, #tpu.memory_space<any>>
      %c0_i32_295 = arith.constant 0 : i32
      %442 = tpu.memref_slice %arg6[%440, %c0_i32_295] : memref<96x64xf32, #tpu.memory_space<vmem>> -> memref<1x64xf32, #tpu.memory_space<vmem>>
      %443 = tpu.memref_slice %arg7[%440] : memref<96x!tpu.dma_semaphore, #tpu.memory_space<semaphore_mem>> -> memref<1x!tpu.dma_semaphore, #tpu.memory_space<semaphore_mem>>
      %444 = tpu.memref_squeeze %443 : memref<1x!tpu.dma_semaphore, #tpu.memory_space<semaphore_mem>> -> memref<!tpu.dma_semaphore, #tpu.memory_space<semaphore_mem>>
      tpu.enqueue_dma source(%441 : memref<1x64xf32, #tpu.memory_space<any>>) target(%442 : memref<1x64xf32, #tpu.memory_space<vmem>>) target_semaphore(%444 : memref<!tpu.dma_semaphore, #tpu.memory_space<semaphore_mem>>)
      %c1_i32_296 = arith.constant 1 : i32
      %445 = arith.addi %389, %c1_i32_296 : i32
      %c0_297 = arith.constant 0 : index
      %446 = arith.index_cast %445 : i32 to index
      %447 = memref.load %arg1[%c0_297, %446] : memref<3x16xi32, #tpu.memory_space<smem>>
      %c1_i32_298 = arith.constant 1 : i32
      %448 = arith.addi %389, %c1_i32_298 : i32
      %c1_299 = arith.constant 1 : index
      %449 = arith.index_cast %448 : i32 to index
      %450 = memref.load %arg1[%c1_299, %449] : memref<3x16xi32, #tpu.memory_space<smem>>
      %c1_i32_300 = arith.constant 1 : i32
      %451 = arith.addi %389, %c1_i32_300 : i32
      %c2_301 = arith.constant 2 : index
      %452 = arith.index_cast %451 : i32 to index
      %453 = memref.load %arg1[%c2_301, %452] : memref<3x16xi32, #tpu.memory_space<smem>>
      %c1_i32_302 = arith.constant 1 : i32
      %454 = arith.addi %389, %c1_i32_302 : i32
      %c0_303 = arith.constant 0 : index
      %455 = arith.index_cast %454 : i32 to index
      %456 = memref.load %arg2[%c0_303, %455] : memref<3x16xi32, #tpu.memory_space<smem>>
      %c1_i32_304 = arith.constant 1 : i32
      %457 = arith.addi %389, %c1_i32_304 : i32
      %c1_305 = arith.constant 1 : index
      %458 = arith.index_cast %457 : i32 to index
      %459 = memref.load %arg2[%c1_305, %458] : memref<3x16xi32, #tpu.memory_space<smem>>
      %c1_i32_306 = arith.constant 1 : i32
      %460 = arith.addi %389, %c1_i32_306 : i32
      %c2_307 = arith.constant 2 : index
      %461 = arith.index_cast %460 : i32 to index
      %462 = memref.load %arg2[%c2_307, %461] : memref<3x16xi32, #tpu.memory_space<smem>>
      %c0_i32_308 = arith.constant 0 : i32
      %463 = arith.addi %390, %c0_i32_308 : i32
      %c1_i32_309 = arith.constant 1 : i32
      %464 = arith.addi %463, %c1_i32_309 : i32
      %c0_i32_310 = arith.constant 0 : i32
      %465 = tpu.memref_slice %arg3[%447, %c0_i32_310] : memref<50x64xf32, #tpu.memory_space<any>> -> memref<1x64xf32, #tpu.memory_space<any>>
      %c0_i32_311 = arith.constant 0 : i32
      %466 = tpu.memref_slice %arg6[%464, %c0_i32_311] : memref<96x64xf32, #tpu.memory_space<vmem>> -> memref<1x64xf32, #tpu.memory_space<vmem>>
      %467 = tpu.memref_slice %arg7[%464] : memref<96x!tpu.dma_semaphore, #tpu.memory_space<semaphore_mem>> -> memref<1x!tpu.dma_semaphore, #tpu.memory_space<semaphore_mem>>
      %468 = tpu.memref_squeeze %467 : memref<1x!tpu.dma_semaphore, #tpu.memory_space<semaphore_mem>> -> memref<!tpu.dma_semaphore, #tpu.memory_space<semaphore_mem>>
      tpu.enqueue_dma source(%465 : memref<1x64xf32, #tpu.memory_space<any>>) target(%466 : memref<1x64xf32, #tpu.memory_space<vmem>>) target_semaphore(%468 : memref<!tpu.dma_semaphore, #tpu.memory_space<semaphore_mem>>)
      %c8_i32_312 = arith.constant 8 : i32
      %469 = arith.addi %390, %c8_i32_312 : i32
      %c1_i32_313 = arith.constant 1 : i32
      %470 = arith.addi %469, %c1_i32_313 : i32
      %c0_i32_314 = arith.constant 0 : i32
      %471 = tpu.memref_slice %arg4[%450, %c0_i32_314] : memref<12x64xf32, #tpu.memory_space<any>> -> memref<1x64xf32, #tpu.memory_space<any>>
      %c0_i32_315 = arith.constant 0 : i32
      %472 = tpu.memref_slice %arg6[%470, %c0_i32_315] : memref<96x64xf32, #tpu.memory_space<vmem>> -> memref<1x64xf32, #tpu.memory_space<vmem>>
      %473 = tpu.memref_slice %arg7[%470] : memref<96x!tpu.dma_semaphore, #tpu.memory_space<semaphore_mem>> -> memref<1x!tpu.dma_semaphore, #tpu.memory_space<semaphore_mem>>
      %474 = tpu.memref_squeeze %473 : memref<1x!tpu.dma_semaphore, #tpu.memory_space<semaphore_mem>> -> memref<!tpu.dma_semaphore, #tpu.memory_space<semaphore_mem>>
      tpu.enqueue_dma source(%471 : memref<1x64xf32, #tpu.memory_space<any>>) target(%472 : memref<1x64xf32, #tpu.memory_space<vmem>>) target_semaphore(%474 : memref<!tpu.dma_semaphore, #tpu.memory_space<semaphore_mem>>)
      %c16_i32_316 = arith.constant 16 : i32
      %475 = arith.addi %390, %c16_i32_316 : i32
      %c1_i32_317 = arith.constant 1 : i32
      %476 = arith.addi %475, %c1_i32_317 : i32
      %c0_i32_318 = arith.constant 0 : i32
      %477 = tpu.memref_slice %arg3[%453, %c0_i32_318] : memref<50x64xf32, #tpu.memory_space<any>> -> memref<1x64xf32, #tpu.memory_space<any>>
      %c0_i32_319 = arith.constant 0 : i32
      %478 = tpu.memref_slice %arg6[%476, %c0_i32_319] : memref<96x64xf32, #tpu.memory_space<vmem>> -> memref<1x64xf32, #tpu.memory_space<vmem>>
      %479 = tpu.memref_slice %arg7[%476] : memref<96x!tpu.dma_semaphore, #tpu.memory_space<semaphore_mem>> -> memref<1x!tpu.dma_semaphore, #tpu.memory_space<semaphore_mem>>
      %480 = tpu.memref_squeeze %479 : memref<1x!tpu.dma_semaphore, #tpu.memory_space<semaphore_mem>> -> memref<!tpu.dma_semaphore, #tpu.memory_space<semaphore_mem>>
      tpu.enqueue_dma source(%477 : memref<1x64xf32, #tpu.memory_space<any>>) target(%478 : memref<1x64xf32, #tpu.memory_space<vmem>>) target_semaphore(%480 : memref<!tpu.dma_semaphore, #tpu.memory_space<semaphore_mem>>)
      %c24_i32_320 = arith.constant 24 : i32
      %481 = arith.addi %390, %c24_i32_320 : i32
      %c1_i32_321 = arith.constant 1 : i32
      %482 = arith.addi %481, %c1_i32_321 : i32
      %c0_i32_322 = arith.constant 0 : i32
      %483 = tpu.memref_slice %arg3[%456, %c0_i32_322] : memref<50x64xf32, #tpu.memory_space<any>> -> memref<1x64xf32, #tpu.memory_space<any>>
      %c0_i32_323 = arith.constant 0 : i32
      %484 = tpu.memref_slice %arg6[%482, %c0_i32_323] : memref<96x64xf32, #tpu.memory_space<vmem>> -> memref<1x64xf32, #tpu.memory_space<vmem>>
      %485 = tpu.memref_slice %arg7[%482] : memref<96x!tpu.dma_semaphore, #tpu.memory_space<semaphore_mem>> -> memref<1x!tpu.dma_semaphore, #tpu.memory_space<semaphore_mem>>
      %486 = tpu.memref_squeeze %485 : memref<1x!tpu.dma_semaphore, #tpu.memory_space<semaphore_mem>> -> memref<!tpu.dma_semaphore, #tpu.memory_space<semaphore_mem>>
      tpu.enqueue_dma source(%483 : memref<1x64xf32, #tpu.memory_space<any>>) target(%484 : memref<1x64xf32, #tpu.memory_space<vmem>>) target_semaphore(%486 : memref<!tpu.dma_semaphore, #tpu.memory_space<semaphore_mem>>)
      %c32_i32_324 = arith.constant 32 : i32
      %487 = arith.addi %390, %c32_i32_324 : i32
      %c1_i32_325 = arith.constant 1 : i32
      %488 = arith.addi %487, %c1_i32_325 : i32
      %c0_i32_326 = arith.constant 0 : i32
      %489 = tpu.memref_slice %arg4[%459, %c0_i32_326] : memref<12x64xf32, #tpu.memory_space<any>> -> memref<1x64xf32, #tpu.memory_space<any>>
      %c0_i32_327 = arith.constant 0 : i32
      %490 = tpu.memref_slice %arg6[%488, %c0_i32_327] : memref<96x64xf32, #tpu.memory_space<vmem>> -> memref<1x64xf32, #tpu.memory_space<vmem>>
      %491 = tpu.memref_slice %arg7[%488] : memref<96x!tpu.dma_semaphore, #tpu.memory_space<semaphore_mem>> -> memref<1x!tpu.dma_semaphore, #tpu.memory_space<semaphore_mem>>
      %492 = tpu.memref_squeeze %491 : memref<1x!tpu.dma_semaphore, #tpu.memory_space<semaphore_mem>> -> memref<!tpu.dma_semaphore, #tpu.memory_space<semaphore_mem>>
      tpu.enqueue_dma source(%489 : memref<1x64xf32, #tpu.memory_space<any>>) target(%490 : memref<1x64xf32, #tpu.memory_space<vmem>>) target_semaphore(%492 : memref<!tpu.dma_semaphore, #tpu.memory_space<semaphore_mem>>)
      %c40_i32_328 = arith.constant 40 : i32
      %493 = arith.addi %390, %c40_i32_328 : i32
      %c1_i32_329 = arith.constant 1 : i32
      %494 = arith.addi %493, %c1_i32_329 : i32
      %c0_i32_330 = arith.constant 0 : i32
      %495 = tpu.memref_slice %arg3[%462, %c0_i32_330] : memref<50x64xf32, #tpu.memory_space<any>> -> memref<1x64xf32, #tpu.memory_space<any>>
      %c0_i32_331 = arith.constant 0 : i32
      %496 = tpu.memref_slice %arg6[%494, %c0_i32_331] : memref<96x64xf32, #tpu.memory_space<vmem>> -> memref<1x64xf32, #tpu.memory_space<vmem>>
      %497 = tpu.memref_slice %arg7[%494] : memref<96x!tpu.dma_semaphore, #tpu.memory_space<semaphore_mem>> -> memref<1x!tpu.dma_semaphore, #tpu.memory_space<semaphore_mem>>
      %498 = tpu.memref_squeeze %497 : memref<1x!tpu.dma_semaphore, #tpu.memory_space<semaphore_mem>> -> memref<!tpu.dma_semaphore, #tpu.memory_space<semaphore_mem>>
      tpu.enqueue_dma source(%495 : memref<1x64xf32, #tpu.memory_space<any>>) target(%496 : memref<1x64xf32, #tpu.memory_space<vmem>>) target_semaphore(%498 : memref<!tpu.dma_semaphore, #tpu.memory_space<semaphore_mem>>)
      %c2_i32_332 = arith.constant 2 : i32
      %499 = arith.addi %389, %c2_i32_332 : i32
      %c0_333 = arith.constant 0 : index
      %500 = arith.index_cast %499 : i32 to index
      %501 = memref.load %arg1[%c0_333, %500] : memref<3x16xi32, #tpu.memory_space<smem>>
      %c2_i32_334 = arith.constant 2 : i32
      %502 = arith.addi %389, %c2_i32_334 : i32
      %c1_335 = arith.constant 1 : index
      %503 = arith.index_cast %502 : i32 to index
      %504 = memref.load %arg1[%c1_335, %503] : memref<3x16xi32, #tpu.memory_space<smem>>
      %c2_i32_336 = arith.constant 2 : i32
      %505 = arith.addi %389, %c2_i32_336 : i32
      %c2_337 = arith.constant 2 : index
      %506 = arith.index_cast %505 : i32 to index
      %507 = memref.load %arg1[%c2_337, %506] : memref<3x16xi32, #tpu.memory_space<smem>>
      %c2_i32_338 = arith.constant 2 : i32
      %508 = arith.addi %389, %c2_i32_338 : i32
      %c0_339 = arith.constant 0 : index
      %509 = arith.index_cast %508 : i32 to index
      %510 = memref.load %arg2[%c0_339, %509] : memref<3x16xi32, #tpu.memory_space<smem>>
      %c2_i32_340 = arith.constant 2 : i32
      %511 = arith.addi %389, %c2_i32_340 : i32
      %c1_341 = arith.constant 1 : index
      %512 = arith.index_cast %511 : i32 to index
      %513 = memref.load %arg2[%c1_341, %512] : memref<3x16xi32, #tpu.memory_space<smem>>
      %c2_i32_342 = arith.constant 2 : i32
      %514 = arith.addi %389, %c2_i32_342 : i32
      %c2_343 = arith.constant 2 : index
      %515 = arith.index_cast %514 : i32 to index
      %516 = memref.load %arg2[%c2_343, %515] : memref<3x16xi32, #tpu.memory_space<smem>>
      %c0_i32_344 = arith.constant 0 : i32
      %517 = arith.addi %390, %c0_i32_344 : i32
      %c2_i32_345 = arith.constant 2 : i32
      %518 = arith.addi %517, %c2_i32_345 : i32
      %c0_i32_346 = arith.constant 0 : i32
      %519 = tpu.memref_slice %arg3[%501, %c0_i32_346] : memref<50x64xf32, #tpu.memory_space<any>> -> memref<1x64xf32, #tpu.memory_space<any>>
      %c0_i32_347 = arith.constant 0 : i32
      %520 = tpu.memref_slice %arg6[%518, %c0_i32_347] : memref<96x64xf32, #tpu.memory_space<vmem>> -> memref<1x64xf32, #tpu.memory_space<vmem>>
      %521 = tpu.memref_slice %arg7[%518] : memref<96x!tpu.dma_semaphore, #tpu.memory_space<semaphore_mem>> -> memref<1x!tpu.dma_semaphore, #tpu.memory_space<semaphore_mem>>
      %522 = tpu.memref_squeeze %521 : memref<1x!tpu.dma_semaphore, #tpu.memory_space<semaphore_mem>> -> memref<!tpu.dma_semaphore, #tpu.memory_space<semaphore_mem>>
      tpu.enqueue_dma source(%519 : memref<1x64xf32, #tpu.memory_space<any>>) target(%520 : memref<1x64xf32, #tpu.memory_space<vmem>>) target_semaphore(%522 : memref<!tpu.dma_semaphore, #tpu.memory_space<semaphore_mem>>)
      %c8_i32_348 = arith.constant 8 : i32
      %523 = arith.addi %390, %c8_i32_348 : i32
      %c2_i32_349 = arith.constant 2 : i32
      %524 = arith.addi %523, %c2_i32_349 : i32
      %c0_i32_350 = arith.constant 0 : i32
      %525 = tpu.memref_slice %arg4[%504, %c0_i32_350] : memref<12x64xf32, #tpu.memory_space<any>> -> memref<1x64xf32, #tpu.memory_space<any>>
      %c0_i32_351 = arith.constant 0 : i32
      %526 = tpu.memref_slice %arg6[%524, %c0_i32_351] : memref<96x64xf32, #tpu.memory_space<vmem>> -> memref<1x64xf32, #tpu.memory_space<vmem>>
      %527 = tpu.memref_slice %arg7[%524] : memref<96x!tpu.dma_semaphore, #tpu.memory_space<semaphore_mem>> -> memref<1x!tpu.dma_semaphore, #tpu.memory_space<semaphore_mem>>
      %528 = tpu.memref_squeeze %527 : memref<1x!tpu.dma_semaphore, #tpu.memory_space<semaphore_mem>> -> memref<!tpu.dma_semaphore, #tpu.memory_space<semaphore_mem>>
      tpu.enqueue_dma source(%525 : memref<1x64xf32, #tpu.memory_space<any>>) target(%526 : memref<1x64xf32, #tpu.memory_space<vmem>>) target_semaphore(%528 : memref<!tpu.dma_semaphore, #tpu.memory_space<semaphore_mem>>)
      %c16_i32_352 = arith.constant 16 : i32
      %529 = arith.addi %390, %c16_i32_352 : i32
      %c2_i32_353 = arith.constant 2 : i32
      %530 = arith.addi %529, %c2_i32_353 : i32
      %c0_i32_354 = arith.constant 0 : i32
      %531 = tpu.memref_slice %arg3[%507, %c0_i32_354] : memref<50x64xf32, #tpu.memory_space<any>> -> memref<1x64xf32, #tpu.memory_space<any>>
      %c0_i32_355 = arith.constant 0 : i32
      %532 = tpu.memref_slice %arg6[%530, %c0_i32_355] : memref<96x64xf32, #tpu.memory_space<vmem>> -> memref<1x64xf32, #tpu.memory_space<vmem>>
      %533 = tpu.memref_slice %arg7[%530] : memref<96x!tpu.dma_semaphore, #tpu.memory_space<semaphore_mem>> -> memref<1x!tpu.dma_semaphore, #tpu.memory_space<semaphore_mem>>
      %534 = tpu.memref_squeeze %533 : memref<1x!tpu.dma_semaphore, #tpu.memory_space<semaphore_mem>> -> memref<!tpu.dma_semaphore, #tpu.memory_space<semaphore_mem>>
      tpu.enqueue_dma source(%531 : memref<1x64xf32, #tpu.memory_space<any>>) target(%532 : memref<1x64xf32, #tpu.memory_space<vmem>>) target_semaphore(%534 : memref<!tpu.dma_semaphore, #tpu.memory_space<semaphore_mem>>)
      %c24_i32_356 = arith.constant 24 : i32
      %535 = arith.addi %390, %c24_i32_356 : i32
      %c2_i32_357 = arith.constant 2 : i32
      %536 = arith.addi %535, %c2_i32_357 : i32
      %c0_i32_358 = arith.constant 0 : i32
      %537 = tpu.memref_slice %arg3[%510, %c0_i32_358] : memref<50x64xf32, #tpu.memory_space<any>> -> memref<1x64xf32, #tpu.memory_space<any>>
      %c0_i32_359 = arith.constant 0 : i32
      %538 = tpu.memref_slice %arg6[%536, %c0_i32_359] : memref<96x64xf32, #tpu.memory_space<vmem>> -> memref<1x64xf32, #tpu.memory_space<vmem>>
      %539 = tpu.memref_slice %arg7[%536] : memref<96x!tpu.dma_semaphore, #tpu.memory_space<semaphore_mem>> -> memref<1x!tpu.dma_semaphore, #tpu.memory_space<semaphore_mem>>
      %540 = tpu.memref_squeeze %539 : memref<1x!tpu.dma_semaphore, #tpu.memory_space<semaphore_mem>> -> memref<!tpu.dma_semaphore, #tpu.memory_space<semaphore_mem>>
      tpu.enqueue_dma source(%537 : memref<1x64xf32, #tpu.memory_space<any>>) target(%538 : memref<1x64xf32, #tpu.memory_space<vmem>>) target_semaphore(%540 : memref<!tpu.dma_semaphore, #tpu.memory_space<semaphore_mem>>)
      %c32_i32_360 = arith.constant 32 : i32
      %541 = arith.addi %390, %c32_i32_360 : i32
      %c2_i32_361 = arith.constant 2 : i32
      %542 = arith.addi %541, %c2_i32_361 : i32
      %c0_i32_362 = arith.constant 0 : i32
      %543 = tpu.memref_slice %arg4[%513, %c0_i32_362] : memref<12x64xf32, #tpu.memory_space<any>> -> memref<1x64xf32, #tpu.memory_space<any>>
      %c0_i32_363 = arith.constant 0 : i32
      %544 = tpu.memref_slice %arg6[%542, %c0_i32_363] : memref<96x64xf32, #tpu.memory_space<vmem>> -> memref<1x64xf32, #tpu.memory_space<vmem>>
      %545 = tpu.memref_slice %arg7[%542] : memref<96x!tpu.dma_semaphore, #tpu.memory_space<semaphore_mem>> -> memref<1x!tpu.dma_semaphore, #tpu.memory_space<semaphore_mem>>
      %546 = tpu.memref_squeeze %545 : memref<1x!tpu.dma_semaphore, #tpu.memory_space<semaphore_mem>> -> memref<!tpu.dma_semaphore, #tpu.memory_space<semaphore_mem>>
      tpu.enqueue_dma source(%543 : memref<1x64xf32, #tpu.memory_space<any>>) target(%544 : memref<1x64xf32, #tpu.memory_space<vmem>>) target_semaphore(%546 : memref<!tpu.dma_semaphore, #tpu.memory_space<semaphore_mem>>)
      %c40_i32_364 = arith.constant 40 : i32
      %547 = arith.addi %390, %c40_i32_364 : i32
      %c2_i32_365 = arith.constant 2 : i32
      %548 = arith.addi %547, %c2_i32_365 : i32
      %c0_i32_366 = arith.constant 0 : i32
      %549 = tpu.memref_slice %arg3[%516, %c0_i32_366] : memref<50x64xf32, #tpu.memory_space<any>> -> memref<1x64xf32, #tpu.memory_space<any>>
      %c0_i32_367 = arith.constant 0 : i32
      %550 = tpu.memref_slice %arg6[%548, %c0_i32_367] : memref<96x64xf32, #tpu.memory_space<vmem>> -> memref<1x64xf32, #tpu.memory_space<vmem>>
      %551 = tpu.memref_slice %arg7[%548] : memref<96x!tpu.dma_semaphore, #tpu.memory_space<semaphore_mem>> -> memref<1x!tpu.dma_semaphore, #tpu.memory_space<semaphore_mem>>
      %552 = tpu.memref_squeeze %551 : memref<1x!tpu.dma_semaphore, #tpu.memory_space<semaphore_mem>> -> memref<!tpu.dma_semaphore, #tpu.memory_space<semaphore_mem>>
      tpu.enqueue_dma source(%549 : memref<1x64xf32, #tpu.memory_space<any>>) target(%550 : memref<1x64xf32, #tpu.memory_space<vmem>>) target_semaphore(%552 : memref<!tpu.dma_semaphore, #tpu.memory_space<semaphore_mem>>)
      %c3_i32_368 = arith.constant 3 : i32
      %553 = arith.addi %389, %c3_i32_368 : i32
      %c0_369 = arith.constant 0 : index
      %554 = arith.index_cast %553 : i32 to index
      %555 = memref.load %arg1[%c0_369, %554] : memref<3x16xi32, #tpu.memory_space<smem>>
      %c3_i32_370 = arith.constant 3 : i32
      %556 = arith.addi %389, %c3_i32_370 : i32
      %c1_371 = arith.constant 1 : index
      %557 = arith.index_cast %556 : i32 to index
      %558 = memref.load %arg1[%c1_371, %557] : memref<3x16xi32, #tpu.memory_space<smem>>
      %c3_i32_372 = arith.constant 3 : i32
      %559 = arith.addi %389, %c3_i32_372 : i32
      %c2_373 = arith.constant 2 : index
      %560 = arith.index_cast %559 : i32 to index
      %561 = memref.load %arg1[%c2_373, %560] : memref<3x16xi32, #tpu.memory_space<smem>>
      %c3_i32_374 = arith.constant 3 : i32
      %562 = arith.addi %389, %c3_i32_374 : i32
      %c0_375 = arith.constant 0 : index
      %563 = arith.index_cast %562 : i32 to index
      %564 = memref.load %arg2[%c0_375, %563] : memref<3x16xi32, #tpu.memory_space<smem>>
      %c3_i32_376 = arith.constant 3 : i32
      %565 = arith.addi %389, %c3_i32_376 : i32
      %c1_377 = arith.constant 1 : index
      %566 = arith.index_cast %565 : i32 to index
      %567 = memref.load %arg2[%c1_377, %566] : memref<3x16xi32, #tpu.memory_space<smem>>
      %c3_i32_378 = arith.constant 3 : i32
      %568 = arith.addi %389, %c3_i32_378 : i32
      %c2_379 = arith.constant 2 : index
      %569 = arith.index_cast %568 : i32 to index
      %570 = memref.load %arg2[%c2_379, %569] : memref<3x16xi32, #tpu.memory_space<smem>>
      %c0_i32_380 = arith.constant 0 : i32
      %571 = arith.addi %390, %c0_i32_380 : i32
      %c3_i32_381 = arith.constant 3 : i32
      %572 = arith.addi %571, %c3_i32_381 : i32
      %c0_i32_382 = arith.constant 0 : i32
      %573 = tpu.memref_slice %arg3[%555, %c0_i32_382] : memref<50x64xf32, #tpu.memory_space<any>> -> memref<1x64xf32, #tpu.memory_space<any>>
      %c0_i32_383 = arith.constant 0 : i32
      %574 = tpu.memref_slice %arg6[%572, %c0_i32_383] : memref<96x64xf32, #tpu.memory_space<vmem>> -> memref<1x64xf32, #tpu.memory_space<vmem>>
      %575 = tpu.memref_slice %arg7[%572] : memref<96x!tpu.dma_semaphore, #tpu.memory_space<semaphore_mem>> -> memref<1x!tpu.dma_semaphore, #tpu.memory_space<semaphore_mem>>
      %576 = tpu.memref_squeeze %575 : memref<1x!tpu.dma_semaphore, #tpu.memory_space<semaphore_mem>> -> memref<!tpu.dma_semaphore, #tpu.memory_space<semaphore_mem>>
      tpu.enqueue_dma source(%573 : memref<1x64xf32, #tpu.memory_space<any>>) target(%574 : memref<1x64xf32, #tpu.memory_space<vmem>>) target_semaphore(%576 : memref<!tpu.dma_semaphore, #tpu.memory_space<semaphore_mem>>)
      %c8_i32_384 = arith.constant 8 : i32
      %577 = arith.addi %390, %c8_i32_384 : i32
      %c3_i32_385 = arith.constant 3 : i32
      %578 = arith.addi %577, %c3_i32_385 : i32
      %c0_i32_386 = arith.constant 0 : i32
      %579 = tpu.memref_slice %arg4[%558, %c0_i32_386] : memref<12x64xf32, #tpu.memory_space<any>> -> memref<1x64xf32, #tpu.memory_space<any>>
      %c0_i32_387 = arith.constant 0 : i32
      %580 = tpu.memref_slice %arg6[%578, %c0_i32_387] : memref<96x64xf32, #tpu.memory_space<vmem>> -> memref<1x64xf32, #tpu.memory_space<vmem>>
      %581 = tpu.memref_slice %arg7[%578] : memref<96x!tpu.dma_semaphore, #tpu.memory_space<semaphore_mem>> -> memref<1x!tpu.dma_semaphore, #tpu.memory_space<semaphore_mem>>
      %582 = tpu.memref_squeeze %581 : memref<1x!tpu.dma_semaphore, #tpu.memory_space<semaphore_mem>> -> memref<!tpu.dma_semaphore, #tpu.memory_space<semaphore_mem>>
      tpu.enqueue_dma source(%579 : memref<1x64xf32, #tpu.memory_space<any>>) target(%580 : memref<1x64xf32, #tpu.memory_space<vmem>>) target_semaphore(%582 : memref<!tpu.dma_semaphore, #tpu.memory_space<semaphore_mem>>)
      %c16_i32_388 = arith.constant 16 : i32
      %583 = arith.addi %390, %c16_i32_388 : i32
      %c3_i32_389 = arith.constant 3 : i32
      %584 = arith.addi %583, %c3_i32_389 : i32
      %c0_i32_390 = arith.constant 0 : i32
      %585 = tpu.memref_slice %arg3[%561, %c0_i32_390] : memref<50x64xf32, #tpu.memory_space<any>> -> memref<1x64xf32, #tpu.memory_space<any>>
      %c0_i32_391 = arith.constant 0 : i32
      %586 = tpu.memref_slice %arg6[%584, %c0_i32_391] : memref<96x64xf32, #tpu.memory_space<vmem>> -> memref<1x64xf32, #tpu.memory_space<vmem>>
      %587 = tpu.memref_slice %arg7[%584] : memref<96x!tpu.dma_semaphore, #tpu.memory_space<semaphore_mem>> -> memref<1x!tpu.dma_semaphore, #tpu.memory_space<semaphore_mem>>
      %588 = tpu.memref_squeeze %587 : memref<1x!tpu.dma_semaphore, #tpu.memory_space<semaphore_mem>> -> memref<!tpu.dma_semaphore, #tpu.memory_space<semaphore_mem>>
      tpu.enqueue_dma source(%585 : memref<1x64xf32, #tpu.memory_space<any>>) target(%586 : memref<1x64xf32, #tpu.memory_space<vmem>>) target_semaphore(%588 : memref<!tpu.dma_semaphore, #tpu.memory_space<semaphore_mem>>)
      %c24_i32_392 = arith.constant 24 : i32
      %589 = arith.addi %390, %c24_i32_392 : i32
      %c3_i32_393 = arith.constant 3 : i32
      %590 = arith.addi %589, %c3_i32_393 : i32
      %c0_i32_394 = arith.constant 0 : i32
      %591 = tpu.memref_slice %arg3[%564, %c0_i32_394] : memref<50x64xf32, #tpu.memory_space<any>> -> memref<1x64xf32, #tpu.memory_space<any>>
      %c0_i32_395 = arith.constant 0 : i32
      %592 = tpu.memref_slice %arg6[%590, %c0_i32_395] : memref<96x64xf32, #tpu.memory_space<vmem>> -> memref<1x64xf32, #tpu.memory_space<vmem>>
      %593 = tpu.memref_slice %arg7[%590] : memref<96x!tpu.dma_semaphore, #tpu.memory_space<semaphore_mem>> -> memref<1x!tpu.dma_semaphore, #tpu.memory_space<semaphore_mem>>
      %594 = tpu.memref_squeeze %593 : memref<1x!tpu.dma_semaphore, #tpu.memory_space<semaphore_mem>> -> memref<!tpu.dma_semaphore, #tpu.memory_space<semaphore_mem>>
      tpu.enqueue_dma source(%591 : memref<1x64xf32, #tpu.memory_space<any>>) target(%592 : memref<1x64xf32, #tpu.memory_space<vmem>>) target_semaphore(%594 : memref<!tpu.dma_semaphore, #tpu.memory_space<semaphore_mem>>)
      %c32_i32_396 = arith.constant 32 : i32
      %595 = arith.addi %390, %c32_i32_396 : i32
      %c3_i32_397 = arith.constant 3 : i32
      %596 = arith.addi %595, %c3_i32_397 : i32
      %c0_i32_398 = arith.constant 0 : i32
      %597 = tpu.memref_slice %arg4[%567, %c0_i32_398] : memref<12x64xf32, #tpu.memory_space<any>> -> memref<1x64xf32, #tpu.memory_space<any>>
      %c0_i32_399 = arith.constant 0 : i32
      %598 = tpu.memref_slice %arg6[%596, %c0_i32_399] : memref<96x64xf32, #tpu.memory_space<vmem>> -> memref<1x64xf32, #tpu.memory_space<vmem>>
      %599 = tpu.memref_slice %arg7[%596] : memref<96x!tpu.dma_semaphore, #tpu.memory_space<semaphore_mem>> -> memref<1x!tpu.dma_semaphore, #tpu.memory_space<semaphore_mem>>
      %600 = tpu.memref_squeeze %599 : memref<1x!tpu.dma_semaphore, #tpu.memory_space<semaphore_mem>> -> memref<!tpu.dma_semaphore, #tpu.memory_space<semaphore_mem>>
      tpu.enqueue_dma source(%597 : memref<1x64xf32, #tpu.memory_space<any>>) target(%598 : memref<1x64xf32, #tpu.memory_space<vmem>>) target_semaphore(%600 : memref<!tpu.dma_semaphore, #tpu.memory_space<semaphore_mem>>)
      %c40_i32_400 = arith.constant 40 : i32
      %601 = arith.addi %390, %c40_i32_400 : i32
      %c3_i32_401 = arith.constant 3 : i32
      %602 = arith.addi %601, %c3_i32_401 : i32
      %c0_i32_402 = arith.constant 0 : i32
      %603 = tpu.memref_slice %arg3[%570, %c0_i32_402] : memref<50x64xf32, #tpu.memory_space<any>> -> memref<1x64xf32, #tpu.memory_space<any>>
      %c0_i32_403 = arith.constant 0 : i32
      %604 = tpu.memref_slice %arg6[%602, %c0_i32_403] : memref<96x64xf32, #tpu.memory_space<vmem>> -> memref<1x64xf32, #tpu.memory_space<vmem>>
      %605 = tpu.memref_slice %arg7[%602] : memref<96x!tpu.dma_semaphore, #tpu.memory_space<semaphore_mem>> -> memref<1x!tpu.dma_semaphore, #tpu.memory_space<semaphore_mem>>
      %606 = tpu.memref_squeeze %605 : memref<1x!tpu.dma_semaphore, #tpu.memory_space<semaphore_mem>> -> memref<!tpu.dma_semaphore, #tpu.memory_space<semaphore_mem>>
      tpu.enqueue_dma source(%603 : memref<1x64xf32, #tpu.memory_space<any>>) target(%604 : memref<1x64xf32, #tpu.memory_space<vmem>>) target_semaphore(%606 : memref<!tpu.dma_semaphore, #tpu.memory_space<semaphore_mem>>)
      %c4_i32_404 = arith.constant 4 : i32
      %607 = arith.addi %389, %c4_i32_404 : i32
      %c0_405 = arith.constant 0 : index
      %608 = arith.index_cast %607 : i32 to index
      %609 = memref.load %arg1[%c0_405, %608] : memref<3x16xi32, #tpu.memory_space<smem>>
      %c4_i32_406 = arith.constant 4 : i32
      %610 = arith.addi %389, %c4_i32_406 : i32
      %c1_407 = arith.constant 1 : index
      %611 = arith.index_cast %610 : i32 to index
      %612 = memref.load %arg1[%c1_407, %611] : memref<3x16xi32, #tpu.memory_space<smem>>
      %c4_i32_408 = arith.constant 4 : i32
      %613 = arith.addi %389, %c4_i32_408 : i32
      %c2_409 = arith.constant 2 : index
      %614 = arith.index_cast %613 : i32 to index
      %615 = memref.load %arg1[%c2_409, %614] : memref<3x16xi32, #tpu.memory_space<smem>>
      %c4_i32_410 = arith.constant 4 : i32
      %616 = arith.addi %389, %c4_i32_410 : i32
      %c0_411 = arith.constant 0 : index
      %617 = arith.index_cast %616 : i32 to index
      %618 = memref.load %arg2[%c0_411, %617] : memref<3x16xi32, #tpu.memory_space<smem>>
      %c4_i32_412 = arith.constant 4 : i32
      %619 = arith.addi %389, %c4_i32_412 : i32
      %c1_413 = arith.constant 1 : index
      %620 = arith.index_cast %619 : i32 to index
      %621 = memref.load %arg2[%c1_413, %620] : memref<3x16xi32, #tpu.memory_space<smem>>
      %c4_i32_414 = arith.constant 4 : i32
      %622 = arith.addi %389, %c4_i32_414 : i32
      %c2_415 = arith.constant 2 : index
      %623 = arith.index_cast %622 : i32 to index
      %624 = memref.load %arg2[%c2_415, %623] : memref<3x16xi32, #tpu.memory_space<smem>>
      %c0_i32_416 = arith.constant 0 : i32
      %625 = arith.addi %390, %c0_i32_416 : i32
      %c4_i32_417 = arith.constant 4 : i32
      %626 = arith.addi %625, %c4_i32_417 : i32
      %c0_i32_418 = arith.constant 0 : i32
      %627 = tpu.memref_slice %arg3[%609, %c0_i32_418] : memref<50x64xf32, #tpu.memory_space<any>> -> memref<1x64xf32, #tpu.memory_space<any>>
      %c0_i32_419 = arith.constant 0 : i32
      %628 = tpu.memref_slice %arg6[%626, %c0_i32_419] : memref<96x64xf32, #tpu.memory_space<vmem>> -> memref<1x64xf32, #tpu.memory_space<vmem>>
      %629 = tpu.memref_slice %arg7[%626] : memref<96x!tpu.dma_semaphore, #tpu.memory_space<semaphore_mem>> -> memref<1x!tpu.dma_semaphore, #tpu.memory_space<semaphore_mem>>
      %630 = tpu.memref_squeeze %629 : memref<1x!tpu.dma_semaphore, #tpu.memory_space<semaphore_mem>> -> memref<!tpu.dma_semaphore, #tpu.memory_space<semaphore_mem>>
      tpu.enqueue_dma source(%627 : memref<1x64xf32, #tpu.memory_space<any>>) target(%628 : memref<1x64xf32, #tpu.memory_space<vmem>>) target_semaphore(%630 : memref<!tpu.dma_semaphore, #tpu.memory_space<semaphore_mem>>)
      %c8_i32_420 = arith.constant 8 : i32
      %631 = arith.addi %390, %c8_i32_420 : i32
      %c4_i32_421 = arith.constant 4 : i32
      %632 = arith.addi %631, %c4_i32_421 : i32
      %c0_i32_422 = arith.constant 0 : i32
      %633 = tpu.memref_slice %arg4[%612, %c0_i32_422] : memref<12x64xf32, #tpu.memory_space<any>> -> memref<1x64xf32, #tpu.memory_space<any>>
      %c0_i32_423 = arith.constant 0 : i32
      %634 = tpu.memref_slice %arg6[%632, %c0_i32_423] : memref<96x64xf32, #tpu.memory_space<vmem>> -> memref<1x64xf32, #tpu.memory_space<vmem>>
      %635 = tpu.memref_slice %arg7[%632] : memref<96x!tpu.dma_semaphore, #tpu.memory_space<semaphore_mem>> -> memref<1x!tpu.dma_semaphore, #tpu.memory_space<semaphore_mem>>
      %636 = tpu.memref_squeeze %635 : memref<1x!tpu.dma_semaphore, #tpu.memory_space<semaphore_mem>> -> memref<!tpu.dma_semaphore, #tpu.memory_space<semaphore_mem>>
      tpu.enqueue_dma source(%633 : memref<1x64xf32, #tpu.memory_space<any>>) target(%634 : memref<1x64xf32, #tpu.memory_space<vmem>>) target_semaphore(%636 : memref<!tpu.dma_semaphore, #tpu.memory_space<semaphore_mem>>)
      %c16_i32_424 = arith.constant 16 : i32
      %637 = arith.addi %390, %c16_i32_424 : i32
      %c4_i32_425 = arith.constant 4 : i32
      %638 = arith.addi %637, %c4_i32_425 : i32
      %c0_i32_426 = arith.constant 0 : i32
      %639 = tpu.memref_slice %arg3[%615, %c0_i32_426] : memref<50x64xf32, #tpu.memory_space<any>> -> memref<1x64xf32, #tpu.memory_space<any>>
      %c0_i32_427 = arith.constant 0 : i32
      %640 = tpu.memref_slice %arg6[%638, %c0_i32_427] : memref<96x64xf32, #tpu.memory_space<vmem>> -> memref<1x64xf32, #tpu.memory_space<vmem>>
      %641 = tpu.memref_slice %arg7[%638] : memref<96x!tpu.dma_semaphore, #tpu.memory_space<semaphore_mem>> -> memref<1x!tpu.dma_semaphore, #tpu.memory_space<semaphore_mem>>
      %642 = tpu.memref_squeeze %641 : memref<1x!tpu.dma_semaphore, #tpu.memory_space<semaphore_mem>> -> memref<!tpu.dma_semaphore, #tpu.memory_space<semaphore_mem>>
      tpu.enqueue_dma source(%639 : memref<1x64xf32, #tpu.memory_space<any>>) target(%640 : memref<1x64xf32, #tpu.memory_space<vmem>>) target_semaphore(%642 : memref<!tpu.dma_semaphore, #tpu.memory_space<semaphore_mem>>)
      %c24_i32_428 = arith.constant 24 : i32
      %643 = arith.addi %390, %c24_i32_428 : i32
      %c4_i32_429 = arith.constant 4 : i32
      %644 = arith.addi %643, %c4_i32_429 : i32
      %c0_i32_430 = arith.constant 0 : i32
      %645 = tpu.memref_slice %arg3[%618, %c0_i32_430] : memref<50x64xf32, #tpu.memory_space<any>> -> memref<1x64xf32, #tpu.memory_space<any>>
      %c0_i32_431 = arith.constant 0 : i32
      %646 = tpu.memref_slice %arg6[%644, %c0_i32_431] : memref<96x64xf32, #tpu.memory_space<vmem>> -> memref<1x64xf32, #tpu.memory_space<vmem>>
      %647 = tpu.memref_slice %arg7[%644] : memref<96x!tpu.dma_semaphore, #tpu.memory_space<semaphore_mem>> -> memref<1x!tpu.dma_semaphore, #tpu.memory_space<semaphore_mem>>
      %648 = tpu.memref_squeeze %647 : memref<1x!tpu.dma_semaphore, #tpu.memory_space<semaphore_mem>> -> memref<!tpu.dma_semaphore, #tpu.memory_space<semaphore_mem>>
      tpu.enqueue_dma source(%645 : memref<1x64xf32, #tpu.memory_space<any>>) target(%646 : memref<1x64xf32, #tpu.memory_space<vmem>>) target_semaphore(%648 : memref<!tpu.dma_semaphore, #tpu.memory_space<semaphore_mem>>)
      %c32_i32_432 = arith.constant 32 : i32
      %649 = arith.addi %390, %c32_i32_432 : i32
      %c4_i32_433 = arith.constant 4 : i32
      %650 = arith.addi %649, %c4_i32_433 : i32
      %c0_i32_434 = arith.constant 0 : i32
      %651 = tpu.memref_slice %arg4[%621, %c0_i32_434] : memref<12x64xf32, #tpu.memory_space<any>> -> memref<1x64xf32, #tpu.memory_space<any>>
      %c0_i32_435 = arith.constant 0 : i32
      %652 = tpu.memref_slice %arg6[%650, %c0_i32_435] : memref<96x64xf32, #tpu.memory_space<vmem>> -> memref<1x64xf32, #tpu.memory_space<vmem>>
      %653 = tpu.memref_slice %arg7[%650] : memref<96x!tpu.dma_semaphore, #tpu.memory_space<semaphore_mem>> -> memref<1x!tpu.dma_semaphore, #tpu.memory_space<semaphore_mem>>
      %654 = tpu.memref_squeeze %653 : memref<1x!tpu.dma_semaphore, #tpu.memory_space<semaphore_mem>> -> memref<!tpu.dma_semaphore, #tpu.memory_space<semaphore_mem>>
      tpu.enqueue_dma source(%651 : memref<1x64xf32, #tpu.memory_space<any>>) target(%652 : memref<1x64xf32, #tpu.memory_space<vmem>>) target_semaphore(%654 : memref<!tpu.dma_semaphore, #tpu.memory_space<semaphore_mem>>)
      %c40_i32_436 = arith.constant 40 : i32
      %655 = arith.addi %390, %c40_i32_436 : i32
      %c4_i32_437 = arith.constant 4 : i32
      %656 = arith.addi %655, %c4_i32_437 : i32
      %c0_i32_438 = arith.constant 0 : i32
      %657 = tpu.memref_slice %arg3[%624, %c0_i32_438] : memref<50x64xf32, #tpu.memory_space<any>> -> memref<1x64xf32, #tpu.memory_space<any>>
      %c0_i32_439 = arith.constant 0 : i32
      %658 = tpu.memref_slice %arg6[%656, %c0_i32_439] : memref<96x64xf32, #tpu.memory_space<vmem>> -> memref<1x64xf32, #tpu.memory_space<vmem>>
      %659 = tpu.memref_slice %arg7[%656] : memref<96x!tpu.dma_semaphore, #tpu.memory_space<semaphore_mem>> -> memref<1x!tpu.dma_semaphore, #tpu.memory_space<semaphore_mem>>
      %660 = tpu.memref_squeeze %659 : memref<1x!tpu.dma_semaphore, #tpu.memory_space<semaphore_mem>> -> memref<!tpu.dma_semaphore, #tpu.memory_space<semaphore_mem>>
      tpu.enqueue_dma source(%657 : memref<1x64xf32, #tpu.memory_space<any>>) target(%658 : memref<1x64xf32, #tpu.memory_space<vmem>>) target_semaphore(%660 : memref<!tpu.dma_semaphore, #tpu.memory_space<semaphore_mem>>)
      %c5_i32_440 = arith.constant 5 : i32
      %661 = arith.addi %389, %c5_i32_440 : i32
      %c0_441 = arith.constant 0 : index
      %662 = arith.index_cast %661 : i32 to index
      %663 = memref.load %arg1[%c0_441, %662] : memref<3x16xi32, #tpu.memory_space<smem>>
      %c5_i32_442 = arith.constant 5 : i32
      %664 = arith.addi %389, %c5_i32_442 : i32
      %c1_443 = arith.constant 1 : index
      %665 = arith.index_cast %664 : i32 to index
      %666 = memref.load %arg1[%c1_443, %665] : memref<3x16xi32, #tpu.memory_space<smem>>
      %c5_i32_444 = arith.constant 5 : i32
      %667 = arith.addi %389, %c5_i32_444 : i32
      %c2_445 = arith.constant 2 : index
      %668 = arith.index_cast %667 : i32 to index
      %669 = memref.load %arg1[%c2_445, %668] : memref<3x16xi32, #tpu.memory_space<smem>>
      %c5_i32_446 = arith.constant 5 : i32
      %670 = arith.addi %389, %c5_i32_446 : i32
      %c0_447 = arith.constant 0 : index
      %671 = arith.index_cast %670 : i32 to index
      %672 = memref.load %arg2[%c0_447, %671] : memref<3x16xi32, #tpu.memory_space<smem>>
      %c5_i32_448 = arith.constant 5 : i32
      %673 = arith.addi %389, %c5_i32_448 : i32
      %c1_449 = arith.constant 1 : index
      %674 = arith.index_cast %673 : i32 to index
      %675 = memref.load %arg2[%c1_449, %674] : memref<3x16xi32, #tpu.memory_space<smem>>
      %c5_i32_450 = arith.constant 5 : i32
      %676 = arith.addi %389, %c5_i32_450 : i32
      %c2_451 = arith.constant 2 : index
      %677 = arith.index_cast %676 : i32 to index
      %678 = memref.load %arg2[%c2_451, %677] : memref<3x16xi32, #tpu.memory_space<smem>>
      %c0_i32_452 = arith.constant 0 : i32
      %679 = arith.addi %390, %c0_i32_452 : i32
      %c5_i32_453 = arith.constant 5 : i32
      %680 = arith.addi %679, %c5_i32_453 : i32
      %c0_i32_454 = arith.constant 0 : i32
      %681 = tpu.memref_slice %arg3[%663, %c0_i32_454] : memref<50x64xf32, #tpu.memory_space<any>> -> memref<1x64xf32, #tpu.memory_space<any>>
      %c0_i32_455 = arith.constant 0 : i32
      %682 = tpu.memref_slice %arg6[%680, %c0_i32_455] : memref<96x64xf32, #tpu.memory_space<vmem>> -> memref<1x64xf32, #tpu.memory_space<vmem>>
      %683 = tpu.memref_slice %arg7[%680] : memref<96x!tpu.dma_semaphore, #tpu.memory_space<semaphore_mem>> -> memref<1x!tpu.dma_semaphore, #tpu.memory_space<semaphore_mem>>
      %684 = tpu.memref_squeeze %683 : memref<1x!tpu.dma_semaphore, #tpu.memory_space<semaphore_mem>> -> memref<!tpu.dma_semaphore, #tpu.memory_space<semaphore_mem>>
      tpu.enqueue_dma source(%681 : memref<1x64xf32, #tpu.memory_space<any>>) target(%682 : memref<1x64xf32, #tpu.memory_space<vmem>>) target_semaphore(%684 : memref<!tpu.dma_semaphore, #tpu.memory_space<semaphore_mem>>)
      %c8_i32_456 = arith.constant 8 : i32
      %685 = arith.addi %390, %c8_i32_456 : i32
      %c5_i32_457 = arith.constant 5 : i32
      %686 = arith.addi %685, %c5_i32_457 : i32
      %c0_i32_458 = arith.constant 0 : i32
      %687 = tpu.memref_slice %arg4[%666, %c0_i32_458] : memref<12x64xf32, #tpu.memory_space<any>> -> memref<1x64xf32, #tpu.memory_space<any>>
      %c0_i32_459 = arith.constant 0 : i32
      %688 = tpu.memref_slice %arg6[%686, %c0_i32_459] : memref<96x64xf32, #tpu.memory_space<vmem>> -> memref<1x64xf32, #tpu.memory_space<vmem>>
      %689 = tpu.memref_slice %arg7[%686] : memref<96x!tpu.dma_semaphore, #tpu.memory_space<semaphore_mem>> -> memref<1x!tpu.dma_semaphore, #tpu.memory_space<semaphore_mem>>
      %690 = tpu.memref_squeeze %689 : memref<1x!tpu.dma_semaphore, #tpu.memory_space<semaphore_mem>> -> memref<!tpu.dma_semaphore, #tpu.memory_space<semaphore_mem>>
      tpu.enqueue_dma source(%687 : memref<1x64xf32, #tpu.memory_space<any>>) target(%688 : memref<1x64xf32, #tpu.memory_space<vmem>>) target_semaphore(%690 : memref<!tpu.dma_semaphore, #tpu.memory_space<semaphore_mem>>)
      %c16_i32_460 = arith.constant 16 : i32
      %691 = arith.addi %390, %c16_i32_460 : i32
      %c5_i32_461 = arith.constant 5 : i32
      %692 = arith.addi %691, %c5_i32_461 : i32
      %c0_i32_462 = arith.constant 0 : i32
      %693 = tpu.memref_slice %arg3[%669, %c0_i32_462] : memref<50x64xf32, #tpu.memory_space<any>> -> memref<1x64xf32, #tpu.memory_space<any>>
      %c0_i32_463 = arith.constant 0 : i32
      %694 = tpu.memref_slice %arg6[%692, %c0_i32_463] : memref<96x64xf32, #tpu.memory_space<vmem>> -> memref<1x64xf32, #tpu.memory_space<vmem>>
      %695 = tpu.memref_slice %arg7[%692] : memref<96x!tpu.dma_semaphore, #tpu.memory_space<semaphore_mem>> -> memref<1x!tpu.dma_semaphore, #tpu.memory_space<semaphore_mem>>
      %696 = tpu.memref_squeeze %695 : memref<1x!tpu.dma_semaphore, #tpu.memory_space<semaphore_mem>> -> memref<!tpu.dma_semaphore, #tpu.memory_space<semaphore_mem>>
      tpu.enqueue_dma source(%693 : memref<1x64xf32, #tpu.memory_space<any>>) target(%694 : memref<1x64xf32, #tpu.memory_space<vmem>>) target_semaphore(%696 : memref<!tpu.dma_semaphore, #tpu.memory_space<semaphore_mem>>)
      %c24_i32_464 = arith.constant 24 : i32
      %697 = arith.addi %390, %c24_i32_464 : i32
      %c5_i32_465 = arith.constant 5 : i32
      %698 = arith.addi %697, %c5_i32_465 : i32
      %c0_i32_466 = arith.constant 0 : i32
      %699 = tpu.memref_slice %arg3[%672, %c0_i32_466] : memref<50x64xf32, #tpu.memory_space<any>> -> memref<1x64xf32, #tpu.memory_space<any>>
      %c0_i32_467 = arith.constant 0 : i32
      %700 = tpu.memref_slice %arg6[%698, %c0_i32_467] : memref<96x64xf32, #tpu.memory_space<vmem>> -> memref<1x64xf32, #tpu.memory_space<vmem>>
      %701 = tpu.memref_slice %arg7[%698] : memref<96x!tpu.dma_semaphore, #tpu.memory_space<semaphore_mem>> -> memref<1x!tpu.dma_semaphore, #tpu.memory_space<semaphore_mem>>
      %702 = tpu.memref_squeeze %701 : memref<1x!tpu.dma_semaphore, #tpu.memory_space<semaphore_mem>> -> memref<!tpu.dma_semaphore, #tpu.memory_space<semaphore_mem>>
      tpu.enqueue_dma source(%699 : memref<1x64xf32, #tpu.memory_space<any>>) target(%700 : memref<1x64xf32, #tpu.memory_space<vmem>>) target_semaphore(%702 : memref<!tpu.dma_semaphore, #tpu.memory_space<semaphore_mem>>)
      %c32_i32_468 = arith.constant 32 : i32
      %703 = arith.addi %390, %c32_i32_468 : i32
      %c5_i32_469 = arith.constant 5 : i32
      %704 = arith.addi %703, %c5_i32_469 : i32
      %c0_i32_470 = arith.constant 0 : i32
      %705 = tpu.memref_slice %arg4[%675, %c0_i32_470] : memref<12x64xf32, #tpu.memory_space<any>> -> memref<1x64xf32, #tpu.memory_space<any>>
      %c0_i32_471 = arith.constant 0 : i32
      %706 = tpu.memref_slice %arg6[%704, %c0_i32_471] : memref<96x64xf32, #tpu.memory_space<vmem>> -> memref<1x64xf32, #tpu.memory_space<vmem>>
      %707 = tpu.memref_slice %arg7[%704] : memref<96x!tpu.dma_semaphore, #tpu.memory_space<semaphore_mem>> -> memref<1x!tpu.dma_semaphore, #tpu.memory_space<semaphore_mem>>
      %708 = tpu.memref_squeeze %707 : memref<1x!tpu.dma_semaphore, #tpu.memory_space<semaphore_mem>> -> memref<!tpu.dma_semaphore, #tpu.memory_space<semaphore_mem>>
      tpu.enqueue_dma source(%705 : memref<1x64xf32, #tpu.memory_space<any>>) target(%706 : memref<1x64xf32, #tpu.memory_space<vmem>>) target_semaphore(%708 : memref<!tpu.dma_semaphore, #tpu.memory_space<semaphore_mem>>)
      %c40_i32_472 = arith.constant 40 : i32
      %709 = arith.addi %390, %c40_i32_472 : i32
      %c5_i32_473 = arith.constant 5 : i32
      %710 = arith.addi %709, %c5_i32_473 : i32
      %c0_i32_474 = arith.constant 0 : i32
      %711 = tpu.memref_slice %arg3[%678, %c0_i32_474] : memref<50x64xf32, #tpu.memory_space<any>> -> memref<1x64xf32, #tpu.memory_space<any>>
      %c0_i32_475 = arith.constant 0 : i32
      %712 = tpu.memref_slice %arg6[%710, %c0_i32_475] : memref<96x64xf32, #tpu.memory_space<vmem>> -> memref<1x64xf32, #tpu.memory_space<vmem>>
      %713 = tpu.memref_slice %arg7[%710] : memref<96x!tpu.dma_semaphore, #tpu.memory_space<semaphore_mem>> -> memref<1x!tpu.dma_semaphore, #tpu.memory_space<semaphore_mem>>
      %714 = tpu.memref_squeeze %713 : memref<1x!tpu.dma_semaphore, #tpu.memory_space<semaphore_mem>> -> memref<!tpu.dma_semaphore, #tpu.memory_space<semaphore_mem>>
      tpu.enqueue_dma source(%711 : memref<1x64xf32, #tpu.memory_space<any>>) target(%712 : memref<1x64xf32, #tpu.memory_space<vmem>>) target_semaphore(%714 : memref<!tpu.dma_semaphore, #tpu.memory_space<semaphore_mem>>)
      %c6_i32_476 = arith.constant 6 : i32
      %715 = arith.addi %389, %c6_i32_476 : i32
      %c0_477 = arith.constant 0 : index
      %716 = arith.index_cast %715 : i32 to index
      %717 = memref.load %arg1[%c0_477, %716] : memref<3x16xi32, #tpu.memory_space<smem>>
      %c6_i32_478 = arith.constant 6 : i32
      %718 = arith.addi %389, %c6_i32_478 : i32
      %c1_479 = arith.constant 1 : index
      %719 = arith.index_cast %718 : i32 to index
      %720 = memref.load %arg1[%c1_479, %719] : memref<3x16xi32, #tpu.memory_space<smem>>
      %c6_i32_480 = arith.constant 6 : i32
      %721 = arith.addi %389, %c6_i32_480 : i32
      %c2_481 = arith.constant 2 : index
      %722 = arith.index_cast %721 : i32 to index
      %723 = memref.load %arg1[%c2_481, %722] : memref<3x16xi32, #tpu.memory_space<smem>>
      %c6_i32_482 = arith.constant 6 : i32
      %724 = arith.addi %389, %c6_i32_482 : i32
      %c0_483 = arith.constant 0 : index
      %725 = arith.index_cast %724 : i32 to index
      %726 = memref.load %arg2[%c0_483, %725] : memref<3x16xi32, #tpu.memory_space<smem>>
      %c6_i32_484 = arith.constant 6 : i32
      %727 = arith.addi %389, %c6_i32_484 : i32
      %c1_485 = arith.constant 1 : index
      %728 = arith.index_cast %727 : i32 to index
      %729 = memref.load %arg2[%c1_485, %728] : memref<3x16xi32, #tpu.memory_space<smem>>
      %c6_i32_486 = arith.constant 6 : i32
      %730 = arith.addi %389, %c6_i32_486 : i32
      %c2_487 = arith.constant 2 : index
      %731 = arith.index_cast %730 : i32 to index
      %732 = memref.load %arg2[%c2_487, %731] : memref<3x16xi32, #tpu.memory_space<smem>>
      %c0_i32_488 = arith.constant 0 : i32
      %733 = arith.addi %390, %c0_i32_488 : i32
      %c6_i32_489 = arith.constant 6 : i32
      %734 = arith.addi %733, %c6_i32_489 : i32
      %c0_i32_490 = arith.constant 0 : i32
      %735 = tpu.memref_slice %arg3[%717, %c0_i32_490] : memref<50x64xf32, #tpu.memory_space<any>> -> memref<1x64xf32, #tpu.memory_space<any>>
      %c0_i32_491 = arith.constant 0 : i32
      %736 = tpu.memref_slice %arg6[%734, %c0_i32_491] : memref<96x64xf32, #tpu.memory_space<vmem>> -> memref<1x64xf32, #tpu.memory_space<vmem>>
      %737 = tpu.memref_slice %arg7[%734] : memref<96x!tpu.dma_semaphore, #tpu.memory_space<semaphore_mem>> -> memref<1x!tpu.dma_semaphore, #tpu.memory_space<semaphore_mem>>
      %738 = tpu.memref_squeeze %737 : memref<1x!tpu.dma_semaphore, #tpu.memory_space<semaphore_mem>> -> memref<!tpu.dma_semaphore, #tpu.memory_space<semaphore_mem>>
      tpu.enqueue_dma source(%735 : memref<1x64xf32, #tpu.memory_space<any>>) target(%736 : memref<1x64xf32, #tpu.memory_space<vmem>>) target_semaphore(%738 : memref<!tpu.dma_semaphore, #tpu.memory_space<semaphore_mem>>)
      %c8_i32_492 = arith.constant 8 : i32
      %739 = arith.addi %390, %c8_i32_492 : i32
      %c6_i32_493 = arith.constant 6 : i32
      %740 = arith.addi %739, %c6_i32_493 : i32
      %c0_i32_494 = arith.constant 0 : i32
      %741 = tpu.memref_slice %arg4[%720, %c0_i32_494] : memref<12x64xf32, #tpu.memory_space<any>> -> memref<1x64xf32, #tpu.memory_space<any>>
      %c0_i32_495 = arith.constant 0 : i32
      %742 = tpu.memref_slice %arg6[%740, %c0_i32_495] : memref<96x64xf32, #tpu.memory_space<vmem>> -> memref<1x64xf32, #tpu.memory_space<vmem>>
      %743 = tpu.memref_slice %arg7[%740] : memref<96x!tpu.dma_semaphore, #tpu.memory_space<semaphore_mem>> -> memref<1x!tpu.dma_semaphore, #tpu.memory_space<semaphore_mem>>
      %744 = tpu.memref_squeeze %743 : memref<1x!tpu.dma_semaphore, #tpu.memory_space<semaphore_mem>> -> memref<!tpu.dma_semaphore, #tpu.memory_space<semaphore_mem>>
      tpu.enqueue_dma source(%741 : memref<1x64xf32, #tpu.memory_space<any>>) target(%742 : memref<1x64xf32, #tpu.memory_space<vmem>>) target_semaphore(%744 : memref<!tpu.dma_semaphore, #tpu.memory_space<semaphore_mem>>)
      %c16_i32_496 = arith.constant 16 : i32
      %745 = arith.addi %390, %c16_i32_496 : i32
      %c6_i32_497 = arith.constant 6 : i32
      %746 = arith.addi %745, %c6_i32_497 : i32
      %c0_i32_498 = arith.constant 0 : i32
      %747 = tpu.memref_slice %arg3[%723, %c0_i32_498] : memref<50x64xf32, #tpu.memory_space<any>> -> memref<1x64xf32, #tpu.memory_space<any>>
      %c0_i32_499 = arith.constant 0 : i32
      %748 = tpu.memref_slice %arg6[%746, %c0_i32_499] : memref<96x64xf32, #tpu.memory_space<vmem>> -> memref<1x64xf32, #tpu.memory_space<vmem>>
      %749 = tpu.memref_slice %arg7[%746] : memref<96x!tpu.dma_semaphore, #tpu.memory_space<semaphore_mem>> -> memref<1x!tpu.dma_semaphore, #tpu.memory_space<semaphore_mem>>
      %750 = tpu.memref_squeeze %749 : memref<1x!tpu.dma_semaphore, #tpu.memory_space<semaphore_mem>> -> memref<!tpu.dma_semaphore, #tpu.memory_space<semaphore_mem>>
      tpu.enqueue_dma source(%747 : memref<1x64xf32, #tpu.memory_space<any>>) target(%748 : memref<1x64xf32, #tpu.memory_space<vmem>>) target_semaphore(%750 : memref<!tpu.dma_semaphore, #tpu.memory_space<semaphore_mem>>)
      %c24_i32_500 = arith.constant 24 : i32
      %751 = arith.addi %390, %c24_i32_500 : i32
      %c6_i32_501 = arith.constant 6 : i32
      %752 = arith.addi %751, %c6_i32_501 : i32
      %c0_i32_502 = arith.constant 0 : i32
      %753 = tpu.memref_slice %arg3[%726, %c0_i32_502] : memref<50x64xf32, #tpu.memory_space<any>> -> memref<1x64xf32, #tpu.memory_space<any>>
      %c0_i32_503 = arith.constant 0 : i32
      %754 = tpu.memref_slice %arg6[%752, %c0_i32_503] : memref<96x64xf32, #tpu.memory_space<vmem>> -> memref<1x64xf32, #tpu.memory_space<vmem>>
      %755 = tpu.memref_slice %arg7[%752] : memref<96x!tpu.dma_semaphore, #tpu.memory_space<semaphore_mem>> -> memref<1x!tpu.dma_semaphore, #tpu.memory_space<semaphore_mem>>
      %756 = tpu.memref_squeeze %755 : memref<1x!tpu.dma_semaphore, #tpu.memory_space<semaphore_mem>> -> memref<!tpu.dma_semaphore, #tpu.memory_space<semaphore_mem>>
      tpu.enqueue_dma source(%753 : memref<1x64xf32, #tpu.memory_space<any>>) target(%754 : memref<1x64xf32, #tpu.memory_space<vmem>>) target_semaphore(%756 : memref<!tpu.dma_semaphore, #tpu.memory_space<semaphore_mem>>)
      %c32_i32_504 = arith.constant 32 : i32
      %757 = arith.addi %390, %c32_i32_504 : i32
      %c6_i32_505 = arith.constant 6 : i32
      %758 = arith.addi %757, %c6_i32_505 : i32
      %c0_i32_506 = arith.constant 0 : i32
      %759 = tpu.memref_slice %arg4[%729, %c0_i32_506] : memref<12x64xf32, #tpu.memory_space<any>> -> memref<1x64xf32, #tpu.memory_space<any>>
      %c0_i32_507 = arith.constant 0 : i32
      %760 = tpu.memref_slice %arg6[%758, %c0_i32_507] : memref<96x64xf32, #tpu.memory_space<vmem>> -> memref<1x64xf32, #tpu.memory_space<vmem>>
      %761 = tpu.memref_slice %arg7[%758] : memref<96x!tpu.dma_semaphore, #tpu.memory_space<semaphore_mem>> -> memref<1x!tpu.dma_semaphore, #tpu.memory_space<semaphore_mem>>
      %762 = tpu.memref_squeeze %761 : memref<1x!tpu.dma_semaphore, #tpu.memory_space<semaphore_mem>> -> memref<!tpu.dma_semaphore, #tpu.memory_space<semaphore_mem>>
      tpu.enqueue_dma source(%759 : memref<1x64xf32, #tpu.memory_space<any>>) target(%760 : memref<1x64xf32, #tpu.memory_space<vmem>>) target_semaphore(%762 : memref<!tpu.dma_semaphore, #tpu.memory_space<semaphore_mem>>)
      %c40_i32_508 = arith.constant 40 : i32
      %763 = arith.addi %390, %c40_i32_508 : i32
      %c6_i32_509 = arith.constant 6 : i32
      %764 = arith.addi %763, %c6_i32_509 : i32
      %c0_i32_510 = arith.constant 0 : i32
      %765 = tpu.memref_slice %arg3[%732, %c0_i32_510] : memref<50x64xf32, #tpu.memory_space<any>> -> memref<1x64xf32, #tpu.memory_space<any>>
      %c0_i32_511 = arith.constant 0 : i32
      %766 = tpu.memref_slice %arg6[%764, %c0_i32_511] : memref<96x64xf32, #tpu.memory_space<vmem>> -> memref<1x64xf32, #tpu.memory_space<vmem>>
      %767 = tpu.memref_slice %arg7[%764] : memref<96x!tpu.dma_semaphore, #tpu.memory_space<semaphore_mem>> -> memref<1x!tpu.dma_semaphore, #tpu.memory_space<semaphore_mem>>
      %768 = tpu.memref_squeeze %767 : memref<1x!tpu.dma_semaphore, #tpu.memory_space<semaphore_mem>> -> memref<!tpu.dma_semaphore, #tpu.memory_space<semaphore_mem>>
      tpu.enqueue_dma source(%765 : memref<1x64xf32, #tpu.memory_space<any>>) target(%766 : memref<1x64xf32, #tpu.memory_space<vmem>>) target_semaphore(%768 : memref<!tpu.dma_semaphore, #tpu.memory_space<semaphore_mem>>)
      %c7_i32_512 = arith.constant 7 : i32
      %769 = arith.addi %389, %c7_i32_512 : i32
      %c0_513 = arith.constant 0 : index
      %770 = arith.index_cast %769 : i32 to index
      %771 = memref.load %arg1[%c0_513, %770] : memref<3x16xi32, #tpu.memory_space<smem>>
      %c7_i32_514 = arith.constant 7 : i32
      %772 = arith.addi %389, %c7_i32_514 : i32
      %c1_515 = arith.constant 1 : index
      %773 = arith.index_cast %772 : i32 to index
      %774 = memref.load %arg1[%c1_515, %773] : memref<3x16xi32, #tpu.memory_space<smem>>
      %c7_i32_516 = arith.constant 7 : i32
      %775 = arith.addi %389, %c7_i32_516 : i32
      %c2_517 = arith.constant 2 : index
      %776 = arith.index_cast %775 : i32 to index
      %777 = memref.load %arg1[%c2_517, %776] : memref<3x16xi32, #tpu.memory_space<smem>>
      %c7_i32_518 = arith.constant 7 : i32
      %778 = arith.addi %389, %c7_i32_518 : i32
      %c0_519 = arith.constant 0 : index
      %779 = arith.index_cast %778 : i32 to index
      %780 = memref.load %arg2[%c0_519, %779] : memref<3x16xi32, #tpu.memory_space<smem>>
      %c7_i32_520 = arith.constant 7 : i32
      %781 = arith.addi %389, %c7_i32_520 : i32
      %c1_521 = arith.constant 1 : index
      %782 = arith.index_cast %781 : i32 to index
      %783 = memref.load %arg2[%c1_521, %782] : memref<3x16xi32, #tpu.memory_space<smem>>
      %c7_i32_522 = arith.constant 7 : i32
      %784 = arith.addi %389, %c7_i32_522 : i32
      %c2_523 = arith.constant 2 : index
      %785 = arith.index_cast %784 : i32 to index
      %786 = memref.load %arg2[%c2_523, %785] : memref<3x16xi32, #tpu.memory_space<smem>>
      %c0_i32_524 = arith.constant 0 : i32
      %787 = arith.addi %390, %c0_i32_524 : i32
      %c7_i32_525 = arith.constant 7 : i32
      %788 = arith.addi %787, %c7_i32_525 : i32
      %c0_i32_526 = arith.constant 0 : i32
      %789 = tpu.memref_slice %arg3[%771, %c0_i32_526] : memref<50x64xf32, #tpu.memory_space<any>> -> memref<1x64xf32, #tpu.memory_space<any>>
      %c0_i32_527 = arith.constant 0 : i32
      %790 = tpu.memref_slice %arg6[%788, %c0_i32_527] : memref<96x64xf32, #tpu.memory_space<vmem>> -> memref<1x64xf32, #tpu.memory_space<vmem>>
      %791 = tpu.memref_slice %arg7[%788] : memref<96x!tpu.dma_semaphore, #tpu.memory_space<semaphore_mem>> -> memref<1x!tpu.dma_semaphore, #tpu.memory_space<semaphore_mem>>
      %792 = tpu.memref_squeeze %791 : memref<1x!tpu.dma_semaphore, #tpu.memory_space<semaphore_mem>> -> memref<!tpu.dma_semaphore, #tpu.memory_space<semaphore_mem>>
      tpu.enqueue_dma source(%789 : memref<1x64xf32, #tpu.memory_space<any>>) target(%790 : memref<1x64xf32, #tpu.memory_space<vmem>>) target_semaphore(%792 : memref<!tpu.dma_semaphore, #tpu.memory_space<semaphore_mem>>)
      %c8_i32_528 = arith.constant 8 : i32
      %793 = arith.addi %390, %c8_i32_528 : i32
      %c7_i32_529 = arith.constant 7 : i32
      %794 = arith.addi %793, %c7_i32_529 : i32
      %c0_i32_530 = arith.constant 0 : i32
      %795 = tpu.memref_slice %arg4[%774, %c0_i32_530] : memref<12x64xf32, #tpu.memory_space<any>> -> memref<1x64xf32, #tpu.memory_space<any>>
      %c0_i32_531 = arith.constant 0 : i32
      %796 = tpu.memref_slice %arg6[%794, %c0_i32_531] : memref<96x64xf32, #tpu.memory_space<vmem>> -> memref<1x64xf32, #tpu.memory_space<vmem>>
      %797 = tpu.memref_slice %arg7[%794] : memref<96x!tpu.dma_semaphore, #tpu.memory_space<semaphore_mem>> -> memref<1x!tpu.dma_semaphore, #tpu.memory_space<semaphore_mem>>
      %798 = tpu.memref_squeeze %797 : memref<1x!tpu.dma_semaphore, #tpu.memory_space<semaphore_mem>> -> memref<!tpu.dma_semaphore, #tpu.memory_space<semaphore_mem>>
      tpu.enqueue_dma source(%795 : memref<1x64xf32, #tpu.memory_space<any>>) target(%796 : memref<1x64xf32, #tpu.memory_space<vmem>>) target_semaphore(%798 : memref<!tpu.dma_semaphore, #tpu.memory_space<semaphore_mem>>)
      %c16_i32_532 = arith.constant 16 : i32
      %799 = arith.addi %390, %c16_i32_532 : i32
      %c7_i32_533 = arith.constant 7 : i32
      %800 = arith.addi %799, %c7_i32_533 : i32
      %c0_i32_534 = arith.constant 0 : i32
      %801 = tpu.memref_slice %arg3[%777, %c0_i32_534] : memref<50x64xf32, #tpu.memory_space<any>> -> memref<1x64xf32, #tpu.memory_space<any>>
      %c0_i32_535 = arith.constant 0 : i32
      %802 = tpu.memref_slice %arg6[%800, %c0_i32_535] : memref<96x64xf32, #tpu.memory_space<vmem>> -> memref<1x64xf32, #tpu.memory_space<vmem>>
      %803 = tpu.memref_slice %arg7[%800] : memref<96x!tpu.dma_semaphore, #tpu.memory_space<semaphore_mem>> -> memref<1x!tpu.dma_semaphore, #tpu.memory_space<semaphore_mem>>
      %804 = tpu.memref_squeeze %803 : memref<1x!tpu.dma_semaphore, #tpu.memory_space<semaphore_mem>> -> memref<!tpu.dma_semaphore, #tpu.memory_space<semaphore_mem>>
      tpu.enqueue_dma source(%801 : memref<1x64xf32, #tpu.memory_space<any>>) target(%802 : memref<1x64xf32, #tpu.memory_space<vmem>>) target_semaphore(%804 : memref<!tpu.dma_semaphore, #tpu.memory_space<semaphore_mem>>)
      %c24_i32_536 = arith.constant 24 : i32
      %805 = arith.addi %390, %c24_i32_536 : i32
      %c7_i32_537 = arith.constant 7 : i32
      %806 = arith.addi %805, %c7_i32_537 : i32
      %c0_i32_538 = arith.constant 0 : i32
      %807 = tpu.memref_slice %arg3[%780, %c0_i32_538] : memref<50x64xf32, #tpu.memory_space<any>> -> memref<1x64xf32, #tpu.memory_space<any>>
      %c0_i32_539 = arith.constant 0 : i32
      %808 = tpu.memref_slice %arg6[%806, %c0_i32_539] : memref<96x64xf32, #tpu.memory_space<vmem>> -> memref<1x64xf32, #tpu.memory_space<vmem>>
      %809 = tpu.memref_slice %arg7[%806] : memref<96x!tpu.dma_semaphore, #tpu.memory_space<semaphore_mem>> -> memref<1x!tpu.dma_semaphore, #tpu.memory_space<semaphore_mem>>
      %810 = tpu.memref_squeeze %809 : memref<1x!tpu.dma_semaphore, #tpu.memory_space<semaphore_mem>> -> memref<!tpu.dma_semaphore, #tpu.memory_space<semaphore_mem>>
      tpu.enqueue_dma source(%807 : memref<1x64xf32, #tpu.memory_space<any>>) target(%808 : memref<1x64xf32, #tpu.memory_space<vmem>>) target_semaphore(%810 : memref<!tpu.dma_semaphore, #tpu.memory_space<semaphore_mem>>)
      %c32_i32_540 = arith.constant 32 : i32
      %811 = arith.addi %390, %c32_i32_540 : i32
      %c7_i32_541 = arith.constant 7 : i32
      %812 = arith.addi %811, %c7_i32_541 : i32
      %c0_i32_542 = arith.constant 0 : i32
      %813 = tpu.memref_slice %arg4[%783, %c0_i32_542] : memref<12x64xf32, #tpu.memory_space<any>> -> memref<1x64xf32, #tpu.memory_space<any>>
      %c0_i32_543 = arith.constant 0 : i32
      %814 = tpu.memref_slice %arg6[%812, %c0_i32_543] : memref<96x64xf32, #tpu.memory_space<vmem>> -> memref<1x64xf32, #tpu.memory_space<vmem>>
      %815 = tpu.memref_slice %arg7[%812] : memref<96x!tpu.dma_semaphore, #tpu.memory_space<semaphore_mem>> -> memref<1x!tpu.dma_semaphore, #tpu.memory_space<semaphore_mem>>
      %816 = tpu.memref_squeeze %815 : memref<1x!tpu.dma_semaphore, #tpu.memory_space<semaphore_mem>> -> memref<!tpu.dma_semaphore, #tpu.memory_space<semaphore_mem>>
      tpu.enqueue_dma source(%813 : memref<1x64xf32, #tpu.memory_space<any>>) target(%814 : memref<1x64xf32, #tpu.memory_space<vmem>>) target_semaphore(%816 : memref<!tpu.dma_semaphore, #tpu.memory_space<semaphore_mem>>)
      %c40_i32_544 = arith.constant 40 : i32
      %817 = arith.addi %390, %c40_i32_544 : i32
      %c7_i32_545 = arith.constant 7 : i32
      %818 = arith.addi %817, %c7_i32_545 : i32
      %c0_i32_546 = arith.constant 0 : i32
      %819 = tpu.memref_slice %arg3[%786, %c0_i32_546] : memref<50x64xf32, #tpu.memory_space<any>> -> memref<1x64xf32, #tpu.memory_space<any>>
      %c0_i32_547 = arith.constant 0 : i32
      %820 = tpu.memref_slice %arg6[%818, %c0_i32_547] : memref<96x64xf32, #tpu.memory_space<vmem>> -> memref<1x64xf32, #tpu.memory_space<vmem>>
      %821 = tpu.memref_slice %arg7[%818] : memref<96x!tpu.dma_semaphore, #tpu.memory_space<semaphore_mem>> -> memref<1x!tpu.dma_semaphore, #tpu.memory_space<semaphore_mem>>
      %822 = tpu.memref_squeeze %821 : memref<1x!tpu.dma_semaphore, #tpu.memory_space<semaphore_mem>> -> memref<!tpu.dma_semaphore, #tpu.memory_space<semaphore_mem>>
      tpu.enqueue_dma source(%819 : memref<1x64xf32, #tpu.memory_space<any>>) target(%820 : memref<1x64xf32, #tpu.memory_space<vmem>>) target_semaphore(%822 : memref<!tpu.dma_semaphore, #tpu.memory_space<semaphore_mem>>)
    } else {
    }
    %c48_i32 = arith.constant 48 : i32
    %17 = arith.muli %9, %c48_i32 : i32
    %c0_i32_8 = arith.constant 0 : i32
    %18 = arith.addi %17, %c0_i32_8 : i32
    %c0_i32_9 = arith.constant 0 : i32
    %19 = arith.addi %18, %c0_i32_9 : i32
    %c0_i32_10 = arith.constant 0 : i32
    %c0_i32_11 = arith.constant 0 : i32
    %20 = tpu.memref_slice %arg3[%c0_i32_10, %c0_i32_11] : memref<50x64xf32, #tpu.memory_space<any>> -> memref<1x64xf32, #tpu.memory_space<any>>
    %c0_i32_12 = arith.constant 0 : i32
    %21 = tpu.memref_slice %arg6[%19, %c0_i32_12] : memref<96x64xf32, #tpu.memory_space<vmem>> -> memref<1x64xf32, #tpu.memory_space<vmem>>
    %22 = tpu.memref_slice %arg7[%19] : memref<96x!tpu.dma_semaphore, #tpu.memory_space<semaphore_mem>> -> memref<1x!tpu.dma_semaphore, #tpu.memory_space<semaphore_mem>>
    %23 = tpu.memref_squeeze %22 : memref<1x!tpu.dma_semaphore, #tpu.memory_space<semaphore_mem>> -> memref<!tpu.dma_semaphore, #tpu.memory_space<semaphore_mem>>
    tpu.wait_dma2 semaphore(%23 : memref<!tpu.dma_semaphore, #tpu.memory_space<semaphore_mem>>) src(%20 : memref<1x64xf32, #tpu.memory_space<any>>) dst(%21 : memref<1x64xf32, #tpu.memory_space<vmem>>)
    %c8_i32 = arith.constant 8 : i32
    %24 = arith.addi %17, %c8_i32 : i32
    %c0_i32_13 = arith.constant 0 : i32
    %25 = arith.addi %24, %c0_i32_13 : i32
    %c0_i32_14 = arith.constant 0 : i32
    %c0_i32_15 = arith.constant 0 : i32
    %26 = tpu.memref_slice %arg4[%c0_i32_14, %c0_i32_15] : memref<12x64xf32, #tpu.memory_space<any>> -> memref<1x64xf32, #tpu.memory_space<any>>
    %c0_i32_16 = arith.constant 0 : i32
    %27 = tpu.memref_slice %arg6[%25, %c0_i32_16] : memref<96x64xf32, #tpu.memory_space<vmem>> -> memref<1x64xf32, #tpu.memory_space<vmem>>
    %28 = tpu.memref_slice %arg7[%25] : memref<96x!tpu.dma_semaphore, #tpu.memory_space<semaphore_mem>> -> memref<1x!tpu.dma_semaphore, #tpu.memory_space<semaphore_mem>>
    %29 = tpu.memref_squeeze %28 : memref<1x!tpu.dma_semaphore, #tpu.memory_space<semaphore_mem>> -> memref<!tpu.dma_semaphore, #tpu.memory_space<semaphore_mem>>
    tpu.wait_dma2 semaphore(%29 : memref<!tpu.dma_semaphore, #tpu.memory_space<semaphore_mem>>) src(%26 : memref<1x64xf32, #tpu.memory_space<any>>) dst(%27 : memref<1x64xf32, #tpu.memory_space<vmem>>)
    %c16_i32 = arith.constant 16 : i32
    %30 = arith.addi %17, %c16_i32 : i32
    %c0_i32_17 = arith.constant 0 : i32
    %31 = arith.addi %30, %c0_i32_17 : i32
    %c0_i32_18 = arith.constant 0 : i32
    %c0_i32_19 = arith.constant 0 : i32
    %32 = tpu.memref_slice %arg3[%c0_i32_18, %c0_i32_19] : memref<50x64xf32, #tpu.memory_space<any>> -> memref<1x64xf32, #tpu.memory_space<any>>
    %c0_i32_20 = arith.constant 0 : i32
    %33 = tpu.memref_slice %arg6[%31, %c0_i32_20] : memref<96x64xf32, #tpu.memory_space<vmem>> -> memref<1x64xf32, #tpu.memory_space<vmem>>
    %34 = tpu.memref_slice %arg7[%31] : memref<96x!tpu.dma_semaphore, #tpu.memory_space<semaphore_mem>> -> memref<1x!tpu.dma_semaphore, #tpu.memory_space<semaphore_mem>>
    %35 = tpu.memref_squeeze %34 : memref<1x!tpu.dma_semaphore, #tpu.memory_space<semaphore_mem>> -> memref<!tpu.dma_semaphore, #tpu.memory_space<semaphore_mem>>
    tpu.wait_dma2 semaphore(%35 : memref<!tpu.dma_semaphore, #tpu.memory_space<semaphore_mem>>) src(%32 : memref<1x64xf32, #tpu.memory_space<any>>) dst(%33 : memref<1x64xf32, #tpu.memory_space<vmem>>)
    %c24_i32 = arith.constant 24 : i32
    %36 = arith.addi %17, %c24_i32 : i32
    %c0_i32_21 = arith.constant 0 : i32
    %37 = arith.addi %36, %c0_i32_21 : i32
    %c0_i32_22 = arith.constant 0 : i32
    %c0_i32_23 = arith.constant 0 : i32
    %38 = tpu.memref_slice %arg3[%c0_i32_22, %c0_i32_23] : memref<50x64xf32, #tpu.memory_space<any>> -> memref<1x64xf32, #tpu.memory_space<any>>
    %c0_i32_24 = arith.constant 0 : i32
    %39 = tpu.memref_slice %arg6[%37, %c0_i32_24] : memref<96x64xf32, #tpu.memory_space<vmem>> -> memref<1x64xf32, #tpu.memory_space<vmem>>
    %40 = tpu.memref_slice %arg7[%37] : memref<96x!tpu.dma_semaphore, #tpu.memory_space<semaphore_mem>> -> memref<1x!tpu.dma_semaphore, #tpu.memory_space<semaphore_mem>>
    %41 = tpu.memref_squeeze %40 : memref<1x!tpu.dma_semaphore, #tpu.memory_space<semaphore_mem>> -> memref<!tpu.dma_semaphore, #tpu.memory_space<semaphore_mem>>
    tpu.wait_dma2 semaphore(%41 : memref<!tpu.dma_semaphore, #tpu.memory_space<semaphore_mem>>) src(%38 : memref<1x64xf32, #tpu.memory_space<any>>) dst(%39 : memref<1x64xf32, #tpu.memory_space<vmem>>)
    %c32_i32 = arith.constant 32 : i32
    %42 = arith.addi %17, %c32_i32 : i32
    %c0_i32_25 = arith.constant 0 : i32
    %43 = arith.addi %42, %c0_i32_25 : i32
    %c0_i32_26 = arith.constant 0 : i32
    %c0_i32_27 = arith.constant 0 : i32
    %44 = tpu.memref_slice %arg4[%c0_i32_26, %c0_i32_27] : memref<12x64xf32, #tpu.memory_space<any>> -> memref<1x64xf32, #tpu.memory_space<any>>
    %c0_i32_28 = arith.constant 0 : i32
    %45 = tpu.memref_slice %arg6[%43, %c0_i32_28] : memref<96x64xf32, #tpu.memory_space<vmem>> -> memref<1x64xf32, #tpu.memory_space<vmem>>
    %46 = tpu.memref_slice %arg7[%43] : memref<96x!tpu.dma_semaphore, #tpu.memory_space<semaphore_mem>> -> memref<1x!tpu.dma_semaphore, #tpu.memory_space<semaphore_mem>>
    %47 = tpu.memref_squeeze %46 : memref<1x!tpu.dma_semaphore, #tpu.memory_space<semaphore_mem>> -> memref<!tpu.dma_semaphore, #tpu.memory_space<semaphore_mem>>
    tpu.wait_dma2 semaphore(%47 : memref<!tpu.dma_semaphore, #tpu.memory_space<semaphore_mem>>) src(%44 : memref<1x64xf32, #tpu.memory_space<any>>) dst(%45 : memref<1x64xf32, #tpu.memory_space<vmem>>)
    %c40_i32 = arith.constant 40 : i32
    %48 = arith.addi %17, %c40_i32 : i32
    %c0_i32_29 = arith.constant 0 : i32
    %49 = arith.addi %48, %c0_i32_29 : i32
    %c0_i32_30 = arith.constant 0 : i32
    %c0_i32_31 = arith.constant 0 : i32
    %50 = tpu.memref_slice %arg3[%c0_i32_30, %c0_i32_31] : memref<50x64xf32, #tpu.memory_space<any>> -> memref<1x64xf32, #tpu.memory_space<any>>
    %c0_i32_32 = arith.constant 0 : i32
    %51 = tpu.memref_slice %arg6[%49, %c0_i32_32] : memref<96x64xf32, #tpu.memory_space<vmem>> -> memref<1x64xf32, #tpu.memory_space<vmem>>
    %52 = tpu.memref_slice %arg7[%49] : memref<96x!tpu.dma_semaphore, #tpu.memory_space<semaphore_mem>> -> memref<1x!tpu.dma_semaphore, #tpu.memory_space<semaphore_mem>>
    %53 = tpu.memref_squeeze %52 : memref<1x!tpu.dma_semaphore, #tpu.memory_space<semaphore_mem>> -> memref<!tpu.dma_semaphore, #tpu.memory_space<semaphore_mem>>
    tpu.wait_dma2 semaphore(%53 : memref<!tpu.dma_semaphore, #tpu.memory_space<semaphore_mem>>) src(%50 : memref<1x64xf32, #tpu.memory_space<any>>) dst(%51 : memref<1x64xf32, #tpu.memory_space<vmem>>)
    %c0_i32_33 = arith.constant 0 : i32
    %54 = arith.addi %17, %c0_i32_33 : i32
    %c1_i32_34 = arith.constant 1 : i32
    %55 = arith.addi %54, %c1_i32_34 : i32
    %c0_i32_35 = arith.constant 0 : i32
    %c0_i32_36 = arith.constant 0 : i32
    %56 = tpu.memref_slice %arg3[%c0_i32_35, %c0_i32_36] : memref<50x64xf32, #tpu.memory_space<any>> -> memref<1x64xf32, #tpu.memory_space<any>>
    %c0_i32_37 = arith.constant 0 : i32
    %57 = tpu.memref_slice %arg6[%55, %c0_i32_37] : memref<96x64xf32, #tpu.memory_space<vmem>> -> memref<1x64xf32, #tpu.memory_space<vmem>>
    %58 = tpu.memref_slice %arg7[%55] : memref<96x!tpu.dma_semaphore, #tpu.memory_space<semaphore_mem>> -> memref<1x!tpu.dma_semaphore, #tpu.memory_space<semaphore_mem>>
    %59 = tpu.memref_squeeze %58 : memref<1x!tpu.dma_semaphore, #tpu.memory_space<semaphore_mem>> -> memref<!tpu.dma_semaphore, #tpu.memory_space<semaphore_mem>>
    tpu.wait_dma2 semaphore(%59 : memref<!tpu.dma_semaphore, #tpu.memory_space<semaphore_mem>>) src(%56 : memref<1x64xf32, #tpu.memory_space<any>>) dst(%57 : memref<1x64xf32, #tpu.memory_space<vmem>>)
    %c8_i32_38 = arith.constant 8 : i32
    %60 = arith.addi %17, %c8_i32_38 : i32
    %c1_i32_39 = arith.constant 1 : i32
    %61 = arith.addi %60, %c1_i32_39 : i32
    %c0_i32_40 = arith.constant 0 : i32
    %c0_i32_41 = arith.constant 0 : i32
    %62 = tpu.memref_slice %arg4[%c0_i32_40, %c0_i32_41] : memref<12x64xf32, #tpu.memory_space<any>> -> memref<1x64xf32, #tpu.memory_space<any>>
    %c0_i32_42 = arith.constant 0 : i32
    %63 = tpu.memref_slice %arg6[%61, %c0_i32_42] : memref<96x64xf32, #tpu.memory_space<vmem>> -> memref<1x64xf32, #tpu.memory_space<vmem>>
    %64 = tpu.memref_slice %arg7[%61] : memref<96x!tpu.dma_semaphore, #tpu.memory_space<semaphore_mem>> -> memref<1x!tpu.dma_semaphore, #tpu.memory_space<semaphore_mem>>
    %65 = tpu.memref_squeeze %64 : memref<1x!tpu.dma_semaphore, #tpu.memory_space<semaphore_mem>> -> memref<!tpu.dma_semaphore, #tpu.memory_space<semaphore_mem>>
    tpu.wait_dma2 semaphore(%65 : memref<!tpu.dma_semaphore, #tpu.memory_space<semaphore_mem>>) src(%62 : memref<1x64xf32, #tpu.memory_space<any>>) dst(%63 : memref<1x64xf32, #tpu.memory_space<vmem>>)
    %c16_i32_43 = arith.constant 16 : i32
    %66 = arith.addi %17, %c16_i32_43 : i32
    %c1_i32_44 = arith.constant 1 : i32
    %67 = arith.addi %66, %c1_i32_44 : i32
    %c0_i32_45 = arith.constant 0 : i32
    %c0_i32_46 = arith.constant 0 : i32
    %68 = tpu.memref_slice %arg3[%c0_i32_45, %c0_i32_46] : memref<50x64xf32, #tpu.memory_space<any>> -> memref<1x64xf32, #tpu.memory_space<any>>
    %c0_i32_47 = arith.constant 0 : i32
    %69 = tpu.memref_slice %arg6[%67, %c0_i32_47] : memref<96x64xf32, #tpu.memory_space<vmem>> -> memref<1x64xf32, #tpu.memory_space<vmem>>
    %70 = tpu.memref_slice %arg7[%67] : memref<96x!tpu.dma_semaphore, #tpu.memory_space<semaphore_mem>> -> memref<1x!tpu.dma_semaphore, #tpu.memory_space<semaphore_mem>>
    %71 = tpu.memref_squeeze %70 : memref<1x!tpu.dma_semaphore, #tpu.memory_space<semaphore_mem>> -> memref<!tpu.dma_semaphore, #tpu.memory_space<semaphore_mem>>
    tpu.wait_dma2 semaphore(%71 : memref<!tpu.dma_semaphore, #tpu.memory_space<semaphore_mem>>) src(%68 : memref<1x64xf32, #tpu.memory_space<any>>) dst(%69 : memref<1x64xf32, #tpu.memory_space<vmem>>)
    %c24_i32_48 = arith.constant 24 : i32
    %72 = arith.addi %17, %c24_i32_48 : i32
    %c1_i32_49 = arith.constant 1 : i32
    %73 = arith.addi %72, %c1_i32_49 : i32
    %c0_i32_50 = arith.constant 0 : i32
    %c0_i32_51 = arith.constant 0 : i32
    %74 = tpu.memref_slice %arg3[%c0_i32_50, %c0_i32_51] : memref<50x64xf32, #tpu.memory_space<any>> -> memref<1x64xf32, #tpu.memory_space<any>>
    %c0_i32_52 = arith.constant 0 : i32
    %75 = tpu.memref_slice %arg6[%73, %c0_i32_52] : memref<96x64xf32, #tpu.memory_space<vmem>> -> memref<1x64xf32, #tpu.memory_space<vmem>>
    %76 = tpu.memref_slice %arg7[%73] : memref<96x!tpu.dma_semaphore, #tpu.memory_space<semaphore_mem>> -> memref<1x!tpu.dma_semaphore, #tpu.memory_space<semaphore_mem>>
    %77 = tpu.memref_squeeze %76 : memref<1x!tpu.dma_semaphore, #tpu.memory_space<semaphore_mem>> -> memref<!tpu.dma_semaphore, #tpu.memory_space<semaphore_mem>>
    tpu.wait_dma2 semaphore(%77 : memref<!tpu.dma_semaphore, #tpu.memory_space<semaphore_mem>>) src(%74 : memref<1x64xf32, #tpu.memory_space<any>>) dst(%75 : memref<1x64xf32, #tpu.memory_space<vmem>>)
    %c32_i32_53 = arith.constant 32 : i32
    %78 = arith.addi %17, %c32_i32_53 : i32
    %c1_i32_54 = arith.constant 1 : i32
    %79 = arith.addi %78, %c1_i32_54 : i32
    %c0_i32_55 = arith.constant 0 : i32
    %c0_i32_56 = arith.constant 0 : i32
    %80 = tpu.memref_slice %arg4[%c0_i32_55, %c0_i32_56] : memref<12x64xf32, #tpu.memory_space<any>> -> memref<1x64xf32, #tpu.memory_space<any>>
    %c0_i32_57 = arith.constant 0 : i32
    %81 = tpu.memref_slice %arg6[%79, %c0_i32_57] : memref<96x64xf32, #tpu.memory_space<vmem>> -> memref<1x64xf32, #tpu.memory_space<vmem>>
    %82 = tpu.memref_slice %arg7[%79] : memref<96x!tpu.dma_semaphore, #tpu.memory_space<semaphore_mem>> -> memref<1x!tpu.dma_semaphore, #tpu.memory_space<semaphore_mem>>
    %83 = tpu.memref_squeeze %82 : memref<1x!tpu.dma_semaphore, #tpu.memory_space<semaphore_mem>> -> memref<!tpu.dma_semaphore, #tpu.memory_space<semaphore_mem>>
    tpu.wait_dma2 semaphore(%83 : memref<!tpu.dma_semaphore, #tpu.memory_space<semaphore_mem>>) src(%80 : memref<1x64xf32, #tpu.memory_space<any>>) dst(%81 : memref<1x64xf32, #tpu.memory_space<vmem>>)
    %c40_i32_58 = arith.constant 40 : i32
    %84 = arith.addi %17, %c40_i32_58 : i32
    %c1_i32_59 = arith.constant 1 : i32
    %85 = arith.addi %84, %c1_i32_59 : i32
    %c0_i32_60 = arith.constant 0 : i32
    %c0_i32_61 = arith.constant 0 : i32
    %86 = tpu.memref_slice %arg3[%c0_i32_60, %c0_i32_61] : memref<50x64xf32, #tpu.memory_space<any>> -> memref<1x64xf32, #tpu.memory_space<any>>
    %c0_i32_62 = arith.constant 0 : i32
    %87 = tpu.memref_slice %arg6[%85, %c0_i32_62] : memref<96x64xf32, #tpu.memory_space<vmem>> -> memref<1x64xf32, #tpu.memory_space<vmem>>
    %88 = tpu.memref_slice %arg7[%85] : memref<96x!tpu.dma_semaphore, #tpu.memory_space<semaphore_mem>> -> memref<1x!tpu.dma_semaphore, #tpu.memory_space<semaphore_mem>>
    %89 = tpu.memref_squeeze %88 : memref<1x!tpu.dma_semaphore, #tpu.memory_space<semaphore_mem>> -> memref<!tpu.dma_semaphore, #tpu.memory_space<semaphore_mem>>
    tpu.wait_dma2 semaphore(%89 : memref<!tpu.dma_semaphore, #tpu.memory_space<semaphore_mem>>) src(%86 : memref<1x64xf32, #tpu.memory_space<any>>) dst(%87 : memref<1x64xf32, #tpu.memory_space<vmem>>)
    %c0_i32_63 = arith.constant 0 : i32
    %90 = arith.addi %17, %c0_i32_63 : i32
    %c2_i32_64 = arith.constant 2 : i32
    %91 = arith.addi %90, %c2_i32_64 : i32
    %c0_i32_65 = arith.constant 0 : i32
    %c0_i32_66 = arith.constant 0 : i32
    %92 = tpu.memref_slice %arg3[%c0_i32_65, %c0_i32_66] : memref<50x64xf32, #tpu.memory_space<any>> -> memref<1x64xf32, #tpu.memory_space<any>>
    %c0_i32_67 = arith.constant 0 : i32
    %93 = tpu.memref_slice %arg6[%91, %c0_i32_67] : memref<96x64xf32, #tpu.memory_space<vmem>> -> memref<1x64xf32, #tpu.memory_space<vmem>>
    %94 = tpu.memref_slice %arg7[%91] : memref<96x!tpu.dma_semaphore, #tpu.memory_space<semaphore_mem>> -> memref<1x!tpu.dma_semaphore, #tpu.memory_space<semaphore_mem>>
    %95 = tpu.memref_squeeze %94 : memref<1x!tpu.dma_semaphore, #tpu.memory_space<semaphore_mem>> -> memref<!tpu.dma_semaphore, #tpu.memory_space<semaphore_mem>>
    tpu.wait_dma2 semaphore(%95 : memref<!tpu.dma_semaphore, #tpu.memory_space<semaphore_mem>>) src(%92 : memref<1x64xf32, #tpu.memory_space<any>>) dst(%93 : memref<1x64xf32, #tpu.memory_space<vmem>>)
    %c8_i32_68 = arith.constant 8 : i32
    %96 = arith.addi %17, %c8_i32_68 : i32
    %c2_i32_69 = arith.constant 2 : i32
    %97 = arith.addi %96, %c2_i32_69 : i32
    %c0_i32_70 = arith.constant 0 : i32
    %c0_i32_71 = arith.constant 0 : i32
    %98 = tpu.memref_slice %arg4[%c0_i32_70, %c0_i32_71] : memref<12x64xf32, #tpu.memory_space<any>> -> memref<1x64xf32, #tpu.memory_space<any>>
    %c0_i32_72 = arith.constant 0 : i32
    %99 = tpu.memref_slice %arg6[%97, %c0_i32_72] : memref<96x64xf32, #tpu.memory_space<vmem>> -> memref<1x64xf32, #tpu.memory_space<vmem>>
    %100 = tpu.memref_slice %arg7[%97] : memref<96x!tpu.dma_semaphore, #tpu.memory_space<semaphore_mem>> -> memref<1x!tpu.dma_semaphore, #tpu.memory_space<semaphore_mem>>
    %101 = tpu.memref_squeeze %100 : memref<1x!tpu.dma_semaphore, #tpu.memory_space<semaphore_mem>> -> memref<!tpu.dma_semaphore, #tpu.memory_space<semaphore_mem>>
    tpu.wait_dma2 semaphore(%101 : memref<!tpu.dma_semaphore, #tpu.memory_space<semaphore_mem>>) src(%98 : memref<1x64xf32, #tpu.memory_space<any>>) dst(%99 : memref<1x64xf32, #tpu.memory_space<vmem>>)
    %c16_i32_73 = arith.constant 16 : i32
    %102 = arith.addi %17, %c16_i32_73 : i32
    %c2_i32_74 = arith.constant 2 : i32
    %103 = arith.addi %102, %c2_i32_74 : i32
    %c0_i32_75 = arith.constant 0 : i32
    %c0_i32_76 = arith.constant 0 : i32
    %104 = tpu.memref_slice %arg3[%c0_i32_75, %c0_i32_76] : memref<50x64xf32, #tpu.memory_space<any>> -> memref<1x64xf32, #tpu.memory_space<any>>
    %c0_i32_77 = arith.constant 0 : i32
    %105 = tpu.memref_slice %arg6[%103, %c0_i32_77] : memref<96x64xf32, #tpu.memory_space<vmem>> -> memref<1x64xf32, #tpu.memory_space<vmem>>
    %106 = tpu.memref_slice %arg7[%103] : memref<96x!tpu.dma_semaphore, #tpu.memory_space<semaphore_mem>> -> memref<1x!tpu.dma_semaphore, #tpu.memory_space<semaphore_mem>>
    %107 = tpu.memref_squeeze %106 : memref<1x!tpu.dma_semaphore, #tpu.memory_space<semaphore_mem>> -> memref<!tpu.dma_semaphore, #tpu.memory_space<semaphore_mem>>
    tpu.wait_dma2 semaphore(%107 : memref<!tpu.dma_semaphore, #tpu.memory_space<semaphore_mem>>) src(%104 : memref<1x64xf32, #tpu.memory_space<any>>) dst(%105 : memref<1x64xf32, #tpu.memory_space<vmem>>)
    %c24_i32_78 = arith.constant 24 : i32
    %108 = arith.addi %17, %c24_i32_78 : i32
    %c2_i32_79 = arith.constant 2 : i32
    %109 = arith.addi %108, %c2_i32_79 : i32
    %c0_i32_80 = arith.constant 0 : i32
    %c0_i32_81 = arith.constant 0 : i32
    %110 = tpu.memref_slice %arg3[%c0_i32_80, %c0_i32_81] : memref<50x64xf32, #tpu.memory_space<any>> -> memref<1x64xf32, #tpu.memory_space<any>>
    %c0_i32_82 = arith.constant 0 : i32
    %111 = tpu.memref_slice %arg6[%109, %c0_i32_82] : memref<96x64xf32, #tpu.memory_space<vmem>> -> memref<1x64xf32, #tpu.memory_space<vmem>>
    %112 = tpu.memref_slice %arg7[%109] : memref<96x!tpu.dma_semaphore, #tpu.memory_space<semaphore_mem>> -> memref<1x!tpu.dma_semaphore, #tpu.memory_space<semaphore_mem>>
    %113 = tpu.memref_squeeze %112 : memref<1x!tpu.dma_semaphore, #tpu.memory_space<semaphore_mem>> -> memref<!tpu.dma_semaphore, #tpu.memory_space<semaphore_mem>>
    tpu.wait_dma2 semaphore(%113 : memref<!tpu.dma_semaphore, #tpu.memory_space<semaphore_mem>>) src(%110 : memref<1x64xf32, #tpu.memory_space<any>>) dst(%111 : memref<1x64xf32, #tpu.memory_space<vmem>>)
    %c32_i32_83 = arith.constant 32 : i32
    %114 = arith.addi %17, %c32_i32_83 : i32
    %c2_i32_84 = arith.constant 2 : i32
    %115 = arith.addi %114, %c2_i32_84 : i32
    %c0_i32_85 = arith.constant 0 : i32
    %c0_i32_86 = arith.constant 0 : i32
    %116 = tpu.memref_slice %arg4[%c0_i32_85, %c0_i32_86] : memref<12x64xf32, #tpu.memory_space<any>> -> memref<1x64xf32, #tpu.memory_space<any>>
    %c0_i32_87 = arith.constant 0 : i32
    %117 = tpu.memref_slice %arg6[%115, %c0_i32_87] : memref<96x64xf32, #tpu.memory_space<vmem>> -> memref<1x64xf32, #tpu.memory_space<vmem>>
    %118 = tpu.memref_slice %arg7[%115] : memref<96x!tpu.dma_semaphore, #tpu.memory_space<semaphore_mem>> -> memref<1x!tpu.dma_semaphore, #tpu.memory_space<semaphore_mem>>
    %119 = tpu.memref_squeeze %118 : memref<1x!tpu.dma_semaphore, #tpu.memory_space<semaphore_mem>> -> memref<!tpu.dma_semaphore, #tpu.memory_space<semaphore_mem>>
    tpu.wait_dma2 semaphore(%119 : memref<!tpu.dma_semaphore, #tpu.memory_space<semaphore_mem>>) src(%116 : memref<1x64xf32, #tpu.memory_space<any>>) dst(%117 : memref<1x64xf32, #tpu.memory_space<vmem>>)
    %c40_i32_88 = arith.constant 40 : i32
    %120 = arith.addi %17, %c40_i32_88 : i32
    %c2_i32_89 = arith.constant 2 : i32
    %121 = arith.addi %120, %c2_i32_89 : i32
    %c0_i32_90 = arith.constant 0 : i32
    %c0_i32_91 = arith.constant 0 : i32
    %122 = tpu.memref_slice %arg3[%c0_i32_90, %c0_i32_91] : memref<50x64xf32, #tpu.memory_space<any>> -> memref<1x64xf32, #tpu.memory_space<any>>
    %c0_i32_92 = arith.constant 0 : i32
    %123 = tpu.memref_slice %arg6[%121, %c0_i32_92] : memref<96x64xf32, #tpu.memory_space<vmem>> -> memref<1x64xf32, #tpu.memory_space<vmem>>
    %124 = tpu.memref_slice %arg7[%121] : memref<96x!tpu.dma_semaphore, #tpu.memory_space<semaphore_mem>> -> memref<1x!tpu.dma_semaphore, #tpu.memory_space<semaphore_mem>>
    %125 = tpu.memref_squeeze %124 : memref<1x!tpu.dma_semaphore, #tpu.memory_space<semaphore_mem>> -> memref<!tpu.dma_semaphore, #tpu.memory_space<semaphore_mem>>
    tpu.wait_dma2 semaphore(%125 : memref<!tpu.dma_semaphore, #tpu.memory_space<semaphore_mem>>) src(%122 : memref<1x64xf32, #tpu.memory_space<any>>) dst(%123 : memref<1x64xf32, #tpu.memory_space<vmem>>)
    %c0_i32_93 = arith.constant 0 : i32
    %126 = arith.addi %17, %c0_i32_93 : i32
    %c3_i32 = arith.constant 3 : i32
    %127 = arith.addi %126, %c3_i32 : i32
    %c0_i32_94 = arith.constant 0 : i32
    %c0_i32_95 = arith.constant 0 : i32
    %128 = tpu.memref_slice %arg3[%c0_i32_94, %c0_i32_95] : memref<50x64xf32, #tpu.memory_space<any>> -> memref<1x64xf32, #tpu.memory_space<any>>
    %c0_i32_96 = arith.constant 0 : i32
    %129 = tpu.memref_slice %arg6[%127, %c0_i32_96] : memref<96x64xf32, #tpu.memory_space<vmem>> -> memref<1x64xf32, #tpu.memory_space<vmem>>
    %130 = tpu.memref_slice %arg7[%127] : memref<96x!tpu.dma_semaphore, #tpu.memory_space<semaphore_mem>> -> memref<1x!tpu.dma_semaphore, #tpu.memory_space<semaphore_mem>>
    %131 = tpu.memref_squeeze %130 : memref<1x!tpu.dma_semaphore, #tpu.memory_space<semaphore_mem>> -> memref<!tpu.dma_semaphore, #tpu.memory_space<semaphore_mem>>
    tpu.wait_dma2 semaphore(%131 : memref<!tpu.dma_semaphore, #tpu.memory_space<semaphore_mem>>) src(%128 : memref<1x64xf32, #tpu.memory_space<any>>) dst(%129 : memref<1x64xf32, #tpu.memory_space<vmem>>)
    %c8_i32_97 = arith.constant 8 : i32
    %132 = arith.addi %17, %c8_i32_97 : i32
    %c3_i32_98 = arith.constant 3 : i32
    %133 = arith.addi %132, %c3_i32_98 : i32
    %c0_i32_99 = arith.constant 0 : i32
    %c0_i32_100 = arith.constant 0 : i32
    %134 = tpu.memref_slice %arg4[%c0_i32_99, %c0_i32_100] : memref<12x64xf32, #tpu.memory_space<any>> -> memref<1x64xf32, #tpu.memory_space<any>>
    %c0_i32_101 = arith.constant 0 : i32
    %135 = tpu.memref_slice %arg6[%133, %c0_i32_101] : memref<96x64xf32, #tpu.memory_space<vmem>> -> memref<1x64xf32, #tpu.memory_space<vmem>>
    %136 = tpu.memref_slice %arg7[%133] : memref<96x!tpu.dma_semaphore, #tpu.memory_space<semaphore_mem>> -> memref<1x!tpu.dma_semaphore, #tpu.memory_space<semaphore_mem>>
    %137 = tpu.memref_squeeze %136 : memref<1x!tpu.dma_semaphore, #tpu.memory_space<semaphore_mem>> -> memref<!tpu.dma_semaphore, #tpu.memory_space<semaphore_mem>>
    tpu.wait_dma2 semaphore(%137 : memref<!tpu.dma_semaphore, #tpu.memory_space<semaphore_mem>>) src(%134 : memref<1x64xf32, #tpu.memory_space<any>>) dst(%135 : memref<1x64xf32, #tpu.memory_space<vmem>>)
    %c16_i32_102 = arith.constant 16 : i32
    %138 = arith.addi %17, %c16_i32_102 : i32
    %c3_i32_103 = arith.constant 3 : i32
    %139 = arith.addi %138, %c3_i32_103 : i32
    %c0_i32_104 = arith.constant 0 : i32
    %c0_i32_105 = arith.constant 0 : i32
    %140 = tpu.memref_slice %arg3[%c0_i32_104, %c0_i32_105] : memref<50x64xf32, #tpu.memory_space<any>> -> memref<1x64xf32, #tpu.memory_space<any>>
    %c0_i32_106 = arith.constant 0 : i32
    %141 = tpu.memref_slice %arg6[%139, %c0_i32_106] : memref<96x64xf32, #tpu.memory_space<vmem>> -> memref<1x64xf32, #tpu.memory_space<vmem>>
    %142 = tpu.memref_slice %arg7[%139] : memref<96x!tpu.dma_semaphore, #tpu.memory_space<semaphore_mem>> -> memref<1x!tpu.dma_semaphore, #tpu.memory_space<semaphore_mem>>
    %143 = tpu.memref_squeeze %142 : memref<1x!tpu.dma_semaphore, #tpu.memory_space<semaphore_mem>> -> memref<!tpu.dma_semaphore, #tpu.memory_space<semaphore_mem>>
    tpu.wait_dma2 semaphore(%143 : memref<!tpu.dma_semaphore, #tpu.memory_space<semaphore_mem>>) src(%140 : memref<1x64xf32, #tpu.memory_space<any>>) dst(%141 : memref<1x64xf32, #tpu.memory_space<vmem>>)
    %c24_i32_107 = arith.constant 24 : i32
    %144 = arith.addi %17, %c24_i32_107 : i32
    %c3_i32_108 = arith.constant 3 : i32
    %145 = arith.addi %144, %c3_i32_108 : i32
    %c0_i32_109 = arith.constant 0 : i32
    %c0_i32_110 = arith.constant 0 : i32
    %146 = tpu.memref_slice %arg3[%c0_i32_109, %c0_i32_110] : memref<50x64xf32, #tpu.memory_space<any>> -> memref<1x64xf32, #tpu.memory_space<any>>
    %c0_i32_111 = arith.constant 0 : i32
    %147 = tpu.memref_slice %arg6[%145, %c0_i32_111] : memref<96x64xf32, #tpu.memory_space<vmem>> -> memref<1x64xf32, #tpu.memory_space<vmem>>
    %148 = tpu.memref_slice %arg7[%145] : memref<96x!tpu.dma_semaphore, #tpu.memory_space<semaphore_mem>> -> memref<1x!tpu.dma_semaphore, #tpu.memory_space<semaphore_mem>>
    %149 = tpu.memref_squeeze %148 : memref<1x!tpu.dma_semaphore, #tpu.memory_space<semaphore_mem>> -> memref<!tpu.dma_semaphore, #tpu.memory_space<semaphore_mem>>
    tpu.wait_dma2 semaphore(%149 : memref<!tpu.dma_semaphore, #tpu.memory_space<semaphore_mem>>) src(%146 : memref<1x64xf32, #tpu.memory_space<any>>) dst(%147 : memref<1x64xf32, #tpu.memory_space<vmem>>)
    %c32_i32_112 = arith.constant 32 : i32
    %150 = arith.addi %17, %c32_i32_112 : i32
    %c3_i32_113 = arith.constant 3 : i32
    %151 = arith.addi %150, %c3_i32_113 : i32
    %c0_i32_114 = arith.constant 0 : i32
    %c0_i32_115 = arith.constant 0 : i32
    %152 = tpu.memref_slice %arg4[%c0_i32_114, %c0_i32_115] : memref<12x64xf32, #tpu.memory_space<any>> -> memref<1x64xf32, #tpu.memory_space<any>>
    %c0_i32_116 = arith.constant 0 : i32
    %153 = tpu.memref_slice %arg6[%151, %c0_i32_116] : memref<96x64xf32, #tpu.memory_space<vmem>> -> memref<1x64xf32, #tpu.memory_space<vmem>>
    %154 = tpu.memref_slice %arg7[%151] : memref<96x!tpu.dma_semaphore, #tpu.memory_space<semaphore_mem>> -> memref<1x!tpu.dma_semaphore, #tpu.memory_space<semaphore_mem>>
    %155 = tpu.memref_squeeze %154 : memref<1x!tpu.dma_semaphore, #tpu.memory_space<semaphore_mem>> -> memref<!tpu.dma_semaphore, #tpu.memory_space<semaphore_mem>>
    tpu.wait_dma2 semaphore(%155 : memref<!tpu.dma_semaphore, #tpu.memory_space<semaphore_mem>>) src(%152 : memref<1x64xf32, #tpu.memory_space<any>>) dst(%153 : memref<1x64xf32, #tpu.memory_space<vmem>>)
    %c40_i32_117 = arith.constant 40 : i32
    %156 = arith.addi %17, %c40_i32_117 : i32
    %c3_i32_118 = arith.constant 3 : i32
    %157 = arith.addi %156, %c3_i32_118 : i32
    %c0_i32_119 = arith.constant 0 : i32
    %c0_i32_120 = arith.constant 0 : i32
    %158 = tpu.memref_slice %arg3[%c0_i32_119, %c0_i32_120] : memref<50x64xf32, #tpu.memory_space<any>> -> memref<1x64xf32, #tpu.memory_space<any>>
    %c0_i32_121 = arith.constant 0 : i32
    %159 = tpu.memref_slice %arg6[%157, %c0_i32_121] : memref<96x64xf32, #tpu.memory_space<vmem>> -> memref<1x64xf32, #tpu.memory_space<vmem>>
    %160 = tpu.memref_slice %arg7[%157] : memref<96x!tpu.dma_semaphore, #tpu.memory_space<semaphore_mem>> -> memref<1x!tpu.dma_semaphore, #tpu.memory_space<semaphore_mem>>
    %161 = tpu.memref_squeeze %160 : memref<1x!tpu.dma_semaphore, #tpu.memory_space<semaphore_mem>> -> memref<!tpu.dma_semaphore, #tpu.memory_space<semaphore_mem>>
    tpu.wait_dma2 semaphore(%161 : memref<!tpu.dma_semaphore, #tpu.memory_space<semaphore_mem>>) src(%158 : memref<1x64xf32, #tpu.memory_space<any>>) dst(%159 : memref<1x64xf32, #tpu.memory_space<vmem>>)
    %c0_i32_122 = arith.constant 0 : i32
    %162 = arith.addi %17, %c0_i32_122 : i32
    %c4_i32 = arith.constant 4 : i32
    %163 = arith.addi %162, %c4_i32 : i32
    %c0_i32_123 = arith.constant 0 : i32
    %c0_i32_124 = arith.constant 0 : i32
    %164 = tpu.memref_slice %arg3[%c0_i32_123, %c0_i32_124] : memref<50x64xf32, #tpu.memory_space<any>> -> memref<1x64xf32, #tpu.memory_space<any>>
    %c0_i32_125 = arith.constant 0 : i32
    %165 = tpu.memref_slice %arg6[%163, %c0_i32_125] : memref<96x64xf32, #tpu.memory_space<vmem>> -> memref<1x64xf32, #tpu.memory_space<vmem>>
    %166 = tpu.memref_slice %arg7[%163] : memref<96x!tpu.dma_semaphore, #tpu.memory_space<semaphore_mem>> -> memref<1x!tpu.dma_semaphore, #tpu.memory_space<semaphore_mem>>
    %167 = tpu.memref_squeeze %166 : memref<1x!tpu.dma_semaphore, #tpu.memory_space<semaphore_mem>> -> memref<!tpu.dma_semaphore, #tpu.memory_space<semaphore_mem>>
    tpu.wait_dma2 semaphore(%167 : memref<!tpu.dma_semaphore, #tpu.memory_space<semaphore_mem>>) src(%164 : memref<1x64xf32, #tpu.memory_space<any>>) dst(%165 : memref<1x64xf32, #tpu.memory_space<vmem>>)
    %c8_i32_126 = arith.constant 8 : i32
    %168 = arith.addi %17, %c8_i32_126 : i32
    %c4_i32_127 = arith.constant 4 : i32
    %169 = arith.addi %168, %c4_i32_127 : i32
    %c0_i32_128 = arith.constant 0 : i32
    %c0_i32_129 = arith.constant 0 : i32
    %170 = tpu.memref_slice %arg4[%c0_i32_128, %c0_i32_129] : memref<12x64xf32, #tpu.memory_space<any>> -> memref<1x64xf32, #tpu.memory_space<any>>
    %c0_i32_130 = arith.constant 0 : i32
    %171 = tpu.memref_slice %arg6[%169, %c0_i32_130] : memref<96x64xf32, #tpu.memory_space<vmem>> -> memref<1x64xf32, #tpu.memory_space<vmem>>
    %172 = tpu.memref_slice %arg7[%169] : memref<96x!tpu.dma_semaphore, #tpu.memory_space<semaphore_mem>> -> memref<1x!tpu.dma_semaphore, #tpu.memory_space<semaphore_mem>>
    %173 = tpu.memref_squeeze %172 : memref<1x!tpu.dma_semaphore, #tpu.memory_space<semaphore_mem>> -> memref<!tpu.dma_semaphore, #tpu.memory_space<semaphore_mem>>
    tpu.wait_dma2 semaphore(%173 : memref<!tpu.dma_semaphore, #tpu.memory_space<semaphore_mem>>) src(%170 : memref<1x64xf32, #tpu.memory_space<any>>) dst(%171 : memref<1x64xf32, #tpu.memory_space<vmem>>)
    %c16_i32_131 = arith.constant 16 : i32
    %174 = arith.addi %17, %c16_i32_131 : i32
    %c4_i32_132 = arith.constant 4 : i32
    %175 = arith.addi %174, %c4_i32_132 : i32
    %c0_i32_133 = arith.constant 0 : i32
    %c0_i32_134 = arith.constant 0 : i32
    %176 = tpu.memref_slice %arg3[%c0_i32_133, %c0_i32_134] : memref<50x64xf32, #tpu.memory_space<any>> -> memref<1x64xf32, #tpu.memory_space<any>>
    %c0_i32_135 = arith.constant 0 : i32
    %177 = tpu.memref_slice %arg6[%175, %c0_i32_135] : memref<96x64xf32, #tpu.memory_space<vmem>> -> memref<1x64xf32, #tpu.memory_space<vmem>>
    %178 = tpu.memref_slice %arg7[%175] : memref<96x!tpu.dma_semaphore, #tpu.memory_space<semaphore_mem>> -> memref<1x!tpu.dma_semaphore, #tpu.memory_space<semaphore_mem>>
    %179 = tpu.memref_squeeze %178 : memref<1x!tpu.dma_semaphore, #tpu.memory_space<semaphore_mem>> -> memref<!tpu.dma_semaphore, #tpu.memory_space<semaphore_mem>>
    tpu.wait_dma2 semaphore(%179 : memref<!tpu.dma_semaphore, #tpu.memory_space<semaphore_mem>>) src(%176 : memref<1x64xf32, #tpu.memory_space<any>>) dst(%177 : memref<1x64xf32, #tpu.memory_space<vmem>>)
    %c24_i32_136 = arith.constant 24 : i32
    %180 = arith.addi %17, %c24_i32_136 : i32
    %c4_i32_137 = arith.constant 4 : i32
    %181 = arith.addi %180, %c4_i32_137 : i32
    %c0_i32_138 = arith.constant 0 : i32
    %c0_i32_139 = arith.constant 0 : i32
    %182 = tpu.memref_slice %arg3[%c0_i32_138, %c0_i32_139] : memref<50x64xf32, #tpu.memory_space<any>> -> memref<1x64xf32, #tpu.memory_space<any>>
    %c0_i32_140 = arith.constant 0 : i32
    %183 = tpu.memref_slice %arg6[%181, %c0_i32_140] : memref<96x64xf32, #tpu.memory_space<vmem>> -> memref<1x64xf32, #tpu.memory_space<vmem>>
    %184 = tpu.memref_slice %arg7[%181] : memref<96x!tpu.dma_semaphore, #tpu.memory_space<semaphore_mem>> -> memref<1x!tpu.dma_semaphore, #tpu.memory_space<semaphore_mem>>
    %185 = tpu.memref_squeeze %184 : memref<1x!tpu.dma_semaphore, #tpu.memory_space<semaphore_mem>> -> memref<!tpu.dma_semaphore, #tpu.memory_space<semaphore_mem>>
    tpu.wait_dma2 semaphore(%185 : memref<!tpu.dma_semaphore, #tpu.memory_space<semaphore_mem>>) src(%182 : memref<1x64xf32, #tpu.memory_space<any>>) dst(%183 : memref<1x64xf32, #tpu.memory_space<vmem>>)
    %c32_i32_141 = arith.constant 32 : i32
    %186 = arith.addi %17, %c32_i32_141 : i32
    %c4_i32_142 = arith.constant 4 : i32
    %187 = arith.addi %186, %c4_i32_142 : i32
    %c0_i32_143 = arith.constant 0 : i32
    %c0_i32_144 = arith.constant 0 : i32
    %188 = tpu.memref_slice %arg4[%c0_i32_143, %c0_i32_144] : memref<12x64xf32, #tpu.memory_space<any>> -> memref<1x64xf32, #tpu.memory_space<any>>
    %c0_i32_145 = arith.constant 0 : i32
    %189 = tpu.memref_slice %arg6[%187, %c0_i32_145] : memref<96x64xf32, #tpu.memory_space<vmem>> -> memref<1x64xf32, #tpu.memory_space<vmem>>
    %190 = tpu.memref_slice %arg7[%187] : memref<96x!tpu.dma_semaphore, #tpu.memory_space<semaphore_mem>> -> memref<1x!tpu.dma_semaphore, #tpu.memory_space<semaphore_mem>>
    %191 = tpu.memref_squeeze %190 : memref<1x!tpu.dma_semaphore, #tpu.memory_space<semaphore_mem>> -> memref<!tpu.dma_semaphore, #tpu.memory_space<semaphore_mem>>
    tpu.wait_dma2 semaphore(%191 : memref<!tpu.dma_semaphore, #tpu.memory_space<semaphore_mem>>) src(%188 : memref<1x64xf32, #tpu.memory_space<any>>) dst(%189 : memref<1x64xf32, #tpu.memory_space<vmem>>)
    %c40_i32_146 = arith.constant 40 : i32
    %192 = arith.addi %17, %c40_i32_146 : i32
    %c4_i32_147 = arith.constant 4 : i32
    %193 = arith.addi %192, %c4_i32_147 : i32
    %c0_i32_148 = arith.constant 0 : i32
    %c0_i32_149 = arith.constant 0 : i32
    %194 = tpu.memref_slice %arg3[%c0_i32_148, %c0_i32_149] : memref<50x64xf32, #tpu.memory_space<any>> -> memref<1x64xf32, #tpu.memory_space<any>>
    %c0_i32_150 = arith.constant 0 : i32
    %195 = tpu.memref_slice %arg6[%193, %c0_i32_150] : memref<96x64xf32, #tpu.memory_space<vmem>> -> memref<1x64xf32, #tpu.memory_space<vmem>>
    %196 = tpu.memref_slice %arg7[%193] : memref<96x!tpu.dma_semaphore, #tpu.memory_space<semaphore_mem>> -> memref<1x!tpu.dma_semaphore, #tpu.memory_space<semaphore_mem>>
    %197 = tpu.memref_squeeze %196 : memref<1x!tpu.dma_semaphore, #tpu.memory_space<semaphore_mem>> -> memref<!tpu.dma_semaphore, #tpu.memory_space<semaphore_mem>>
    tpu.wait_dma2 semaphore(%197 : memref<!tpu.dma_semaphore, #tpu.memory_space<semaphore_mem>>) src(%194 : memref<1x64xf32, #tpu.memory_space<any>>) dst(%195 : memref<1x64xf32, #tpu.memory_space<vmem>>)
    %c0_i32_151 = arith.constant 0 : i32
    %198 = arith.addi %17, %c0_i32_151 : i32
    %c5_i32 = arith.constant 5 : i32
    %199 = arith.addi %198, %c5_i32 : i32
    %c0_i32_152 = arith.constant 0 : i32
    %c0_i32_153 = arith.constant 0 : i32
    %200 = tpu.memref_slice %arg3[%c0_i32_152, %c0_i32_153] : memref<50x64xf32, #tpu.memory_space<any>> -> memref<1x64xf32, #tpu.memory_space<any>>
    %c0_i32_154 = arith.constant 0 : i32
    %201 = tpu.memref_slice %arg6[%199, %c0_i32_154] : memref<96x64xf32, #tpu.memory_space<vmem>> -> memref<1x64xf32, #tpu.memory_space<vmem>>
    %202 = tpu.memref_slice %arg7[%199] : memref<96x!tpu.dma_semaphore, #tpu.memory_space<semaphore_mem>> -> memref<1x!tpu.dma_semaphore, #tpu.memory_space<semaphore_mem>>
    %203 = tpu.memref_squeeze %202 : memref<1x!tpu.dma_semaphore, #tpu.memory_space<semaphore_mem>> -> memref<!tpu.dma_semaphore, #tpu.memory_space<semaphore_mem>>
    tpu.wait_dma2 semaphore(%203 : memref<!tpu.dma_semaphore, #tpu.memory_space<semaphore_mem>>) src(%200 : memref<1x64xf32, #tpu.memory_space<any>>) dst(%201 : memref<1x64xf32, #tpu.memory_space<vmem>>)
    %c8_i32_155 = arith.constant 8 : i32
    %204 = arith.addi %17, %c8_i32_155 : i32
    %c5_i32_156 = arith.constant 5 : i32
    %205 = arith.addi %204, %c5_i32_156 : i32
    %c0_i32_157 = arith.constant 0 : i32
    %c0_i32_158 = arith.constant 0 : i32
    %206 = tpu.memref_slice %arg4[%c0_i32_157, %c0_i32_158] : memref<12x64xf32, #tpu.memory_space<any>> -> memref<1x64xf32, #tpu.memory_space<any>>
    %c0_i32_159 = arith.constant 0 : i32
    %207 = tpu.memref_slice %arg6[%205, %c0_i32_159] : memref<96x64xf32, #tpu.memory_space<vmem>> -> memref<1x64xf32, #tpu.memory_space<vmem>>
    %208 = tpu.memref_slice %arg7[%205] : memref<96x!tpu.dma_semaphore, #tpu.memory_space<semaphore_mem>> -> memref<1x!tpu.dma_semaphore, #tpu.memory_space<semaphore_mem>>
    %209 = tpu.memref_squeeze %208 : memref<1x!tpu.dma_semaphore, #tpu.memory_space<semaphore_mem>> -> memref<!tpu.dma_semaphore, #tpu.memory_space<semaphore_mem>>
    tpu.wait_dma2 semaphore(%209 : memref<!tpu.dma_semaphore, #tpu.memory_space<semaphore_mem>>) src(%206 : memref<1x64xf32, #tpu.memory_space<any>>) dst(%207 : memref<1x64xf32, #tpu.memory_space<vmem>>)
    %c16_i32_160 = arith.constant 16 : i32
    %210 = arith.addi %17, %c16_i32_160 : i32
    %c5_i32_161 = arith.constant 5 : i32
    %211 = arith.addi %210, %c5_i32_161 : i32
    %c0_i32_162 = arith.constant 0 : i32
    %c0_i32_163 = arith.constant 0 : i32
    %212 = tpu.memref_slice %arg3[%c0_i32_162, %c0_i32_163] : memref<50x64xf32, #tpu.memory_space<any>> -> memref<1x64xf32, #tpu.memory_space<any>>
    %c0_i32_164 = arith.constant 0 : i32
    %213 = tpu.memref_slice %arg6[%211, %c0_i32_164] : memref<96x64xf32, #tpu.memory_space<vmem>> -> memref<1x64xf32, #tpu.memory_space<vmem>>
    %214 = tpu.memref_slice %arg7[%211] : memref<96x!tpu.dma_semaphore, #tpu.memory_space<semaphore_mem>> -> memref<1x!tpu.dma_semaphore, #tpu.memory_space<semaphore_mem>>
    %215 = tpu.memref_squeeze %214 : memref<1x!tpu.dma_semaphore, #tpu.memory_space<semaphore_mem>> -> memref<!tpu.dma_semaphore, #tpu.memory_space<semaphore_mem>>
    tpu.wait_dma2 semaphore(%215 : memref<!tpu.dma_semaphore, #tpu.memory_space<semaphore_mem>>) src(%212 : memref<1x64xf32, #tpu.memory_space<any>>) dst(%213 : memref<1x64xf32, #tpu.memory_space<vmem>>)
    %c24_i32_165 = arith.constant 24 : i32
    %216 = arith.addi %17, %c24_i32_165 : i32
    %c5_i32_166 = arith.constant 5 : i32
    %217 = arith.addi %216, %c5_i32_166 : i32
    %c0_i32_167 = arith.constant 0 : i32
    %c0_i32_168 = arith.constant 0 : i32
    %218 = tpu.memref_slice %arg3[%c0_i32_167, %c0_i32_168] : memref<50x64xf32, #tpu.memory_space<any>> -> memref<1x64xf32, #tpu.memory_space<any>>
    %c0_i32_169 = arith.constant 0 : i32
    %219 = tpu.memref_slice %arg6[%217, %c0_i32_169] : memref<96x64xf32, #tpu.memory_space<vmem>> -> memref<1x64xf32, #tpu.memory_space<vmem>>
    %220 = tpu.memref_slice %arg7[%217] : memref<96x!tpu.dma_semaphore, #tpu.memory_space<semaphore_mem>> -> memref<1x!tpu.dma_semaphore, #tpu.memory_space<semaphore_mem>>
    %221 = tpu.memref_squeeze %220 : memref<1x!tpu.dma_semaphore, #tpu.memory_space<semaphore_mem>> -> memref<!tpu.dma_semaphore, #tpu.memory_space<semaphore_mem>>
    tpu.wait_dma2 semaphore(%221 : memref<!tpu.dma_semaphore, #tpu.memory_space<semaphore_mem>>) src(%218 : memref<1x64xf32, #tpu.memory_space<any>>) dst(%219 : memref<1x64xf32, #tpu.memory_space<vmem>>)
    %c32_i32_170 = arith.constant 32 : i32
    %222 = arith.addi %17, %c32_i32_170 : i32
    %c5_i32_171 = arith.constant 5 : i32
    %223 = arith.addi %222, %c5_i32_171 : i32
    %c0_i32_172 = arith.constant 0 : i32
    %c0_i32_173 = arith.constant 0 : i32
    %224 = tpu.memref_slice %arg4[%c0_i32_172, %c0_i32_173] : memref<12x64xf32, #tpu.memory_space<any>> -> memref<1x64xf32, #tpu.memory_space<any>>
    %c0_i32_174 = arith.constant 0 : i32
    %225 = tpu.memref_slice %arg6[%223, %c0_i32_174] : memref<96x64xf32, #tpu.memory_space<vmem>> -> memref<1x64xf32, #tpu.memory_space<vmem>>
    %226 = tpu.memref_slice %arg7[%223] : memref<96x!tpu.dma_semaphore, #tpu.memory_space<semaphore_mem>> -> memref<1x!tpu.dma_semaphore, #tpu.memory_space<semaphore_mem>>
    %227 = tpu.memref_squeeze %226 : memref<1x!tpu.dma_semaphore, #tpu.memory_space<semaphore_mem>> -> memref<!tpu.dma_semaphore, #tpu.memory_space<semaphore_mem>>
    tpu.wait_dma2 semaphore(%227 : memref<!tpu.dma_semaphore, #tpu.memory_space<semaphore_mem>>) src(%224 : memref<1x64xf32, #tpu.memory_space<any>>) dst(%225 : memref<1x64xf32, #tpu.memory_space<vmem>>)
    %c40_i32_175 = arith.constant 40 : i32
    %228 = arith.addi %17, %c40_i32_175 : i32
    %c5_i32_176 = arith.constant 5 : i32
    %229 = arith.addi %228, %c5_i32_176 : i32
    %c0_i32_177 = arith.constant 0 : i32
    %c0_i32_178 = arith.constant 0 : i32
    %230 = tpu.memref_slice %arg3[%c0_i32_177, %c0_i32_178] : memref<50x64xf32, #tpu.memory_space<any>> -> memref<1x64xf32, #tpu.memory_space<any>>
    %c0_i32_179 = arith.constant 0 : i32
    %231 = tpu.memref_slice %arg6[%229, %c0_i32_179] : memref<96x64xf32, #tpu.memory_space<vmem>> -> memref<1x64xf32, #tpu.memory_space<vmem>>
    %232 = tpu.memref_slice %arg7[%229] : memref<96x!tpu.dma_semaphore, #tpu.memory_space<semaphore_mem>> -> memref<1x!tpu.dma_semaphore, #tpu.memory_space<semaphore_mem>>
    %233 = tpu.memref_squeeze %232 : memref<1x!tpu.dma_semaphore, #tpu.memory_space<semaphore_mem>> -> memref<!tpu.dma_semaphore, #tpu.memory_space<semaphore_mem>>
    tpu.wait_dma2 semaphore(%233 : memref<!tpu.dma_semaphore, #tpu.memory_space<semaphore_mem>>) src(%230 : memref<1x64xf32, #tpu.memory_space<any>>) dst(%231 : memref<1x64xf32, #tpu.memory_space<vmem>>)
    %c0_i32_180 = arith.constant 0 : i32
    %234 = arith.addi %17, %c0_i32_180 : i32
    %c6_i32 = arith.constant 6 : i32
    %235 = arith.addi %234, %c6_i32 : i32
    %c0_i32_181 = arith.constant 0 : i32
    %c0_i32_182 = arith.constant 0 : i32
    %236 = tpu.memref_slice %arg3[%c0_i32_181, %c0_i32_182] : memref<50x64xf32, #tpu.memory_space<any>> -> memref<1x64xf32, #tpu.memory_space<any>>
    %c0_i32_183 = arith.constant 0 : i32
    %237 = tpu.memref_slice %arg6[%235, %c0_i32_183] : memref<96x64xf32, #tpu.memory_space<vmem>> -> memref<1x64xf32, #tpu.memory_space<vmem>>
    %238 = tpu.memref_slice %arg7[%235] : memref<96x!tpu.dma_semaphore, #tpu.memory_space<semaphore_mem>> -> memref<1x!tpu.dma_semaphore, #tpu.memory_space<semaphore_mem>>
    %239 = tpu.memref_squeeze %238 : memref<1x!tpu.dma_semaphore, #tpu.memory_space<semaphore_mem>> -> memref<!tpu.dma_semaphore, #tpu.memory_space<semaphore_mem>>
    tpu.wait_dma2 semaphore(%239 : memref<!tpu.dma_semaphore, #tpu.memory_space<semaphore_mem>>) src(%236 : memref<1x64xf32, #tpu.memory_space<any>>) dst(%237 : memref<1x64xf32, #tpu.memory_space<vmem>>)
    %c8_i32_184 = arith.constant 8 : i32
    %240 = arith.addi %17, %c8_i32_184 : i32
    %c6_i32_185 = arith.constant 6 : i32
    %241 = arith.addi %240, %c6_i32_185 : i32
    %c0_i32_186 = arith.constant 0 : i32
    %c0_i32_187 = arith.constant 0 : i32
    %242 = tpu.memref_slice %arg4[%c0_i32_186, %c0_i32_187] : memref<12x64xf32, #tpu.memory_space<any>> -> memref<1x64xf32, #tpu.memory_space<any>>
    %c0_i32_188 = arith.constant 0 : i32
    %243 = tpu.memref_slice %arg6[%241, %c0_i32_188] : memref<96x64xf32, #tpu.memory_space<vmem>> -> memref<1x64xf32, #tpu.memory_space<vmem>>
    %244 = tpu.memref_slice %arg7[%241] : memref<96x!tpu.dma_semaphore, #tpu.memory_space<semaphore_mem>> -> memref<1x!tpu.dma_semaphore, #tpu.memory_space<semaphore_mem>>
    %245 = tpu.memref_squeeze %244 : memref<1x!tpu.dma_semaphore, #tpu.memory_space<semaphore_mem>> -> memref<!tpu.dma_semaphore, #tpu.memory_space<semaphore_mem>>
    tpu.wait_dma2 semaphore(%245 : memref<!tpu.dma_semaphore, #tpu.memory_space<semaphore_mem>>) src(%242 : memref<1x64xf32, #tpu.memory_space<any>>) dst(%243 : memref<1x64xf32, #tpu.memory_space<vmem>>)
    %c16_i32_189 = arith.constant 16 : i32
    %246 = arith.addi %17, %c16_i32_189 : i32
    %c6_i32_190 = arith.constant 6 : i32
    %247 = arith.addi %246, %c6_i32_190 : i32
    %c0_i32_191 = arith.constant 0 : i32
    %c0_i32_192 = arith.constant 0 : i32
    %248 = tpu.memref_slice %arg3[%c0_i32_191, %c0_i32_192] : memref<50x64xf32, #tpu.memory_space<any>> -> memref<1x64xf32, #tpu.memory_space<any>>
    %c0_i32_193 = arith.constant 0 : i32
    %249 = tpu.memref_slice %arg6[%247, %c0_i32_193] : memref<96x64xf32, #tpu.memory_space<vmem>> -> memref<1x64xf32, #tpu.memory_space<vmem>>
    %250 = tpu.memref_slice %arg7[%247] : memref<96x!tpu.dma_semaphore, #tpu.memory_space<semaphore_mem>> -> memref<1x!tpu.dma_semaphore, #tpu.memory_space<semaphore_mem>>
    %251 = tpu.memref_squeeze %250 : memref<1x!tpu.dma_semaphore, #tpu.memory_space<semaphore_mem>> -> memref<!tpu.dma_semaphore, #tpu.memory_space<semaphore_mem>>
    tpu.wait_dma2 semaphore(%251 : memref<!tpu.dma_semaphore, #tpu.memory_space<semaphore_mem>>) src(%248 : memref<1x64xf32, #tpu.memory_space<any>>) dst(%249 : memref<1x64xf32, #tpu.memory_space<vmem>>)
    %c24_i32_194 = arith.constant 24 : i32
    %252 = arith.addi %17, %c24_i32_194 : i32
    %c6_i32_195 = arith.constant 6 : i32
    %253 = arith.addi %252, %c6_i32_195 : i32
    %c0_i32_196 = arith.constant 0 : i32
    %c0_i32_197 = arith.constant 0 : i32
    %254 = tpu.memref_slice %arg3[%c0_i32_196, %c0_i32_197] : memref<50x64xf32, #tpu.memory_space<any>> -> memref<1x64xf32, #tpu.memory_space<any>>
    %c0_i32_198 = arith.constant 0 : i32
    %255 = tpu.memref_slice %arg6[%253, %c0_i32_198] : memref<96x64xf32, #tpu.memory_space<vmem>> -> memref<1x64xf32, #tpu.memory_space<vmem>>
    %256 = tpu.memref_slice %arg7[%253] : memref<96x!tpu.dma_semaphore, #tpu.memory_space<semaphore_mem>> -> memref<1x!tpu.dma_semaphore, #tpu.memory_space<semaphore_mem>>
    %257 = tpu.memref_squeeze %256 : memref<1x!tpu.dma_semaphore, #tpu.memory_space<semaphore_mem>> -> memref<!tpu.dma_semaphore, #tpu.memory_space<semaphore_mem>>
    tpu.wait_dma2 semaphore(%257 : memref<!tpu.dma_semaphore, #tpu.memory_space<semaphore_mem>>) src(%254 : memref<1x64xf32, #tpu.memory_space<any>>) dst(%255 : memref<1x64xf32, #tpu.memory_space<vmem>>)
    %c32_i32_199 = arith.constant 32 : i32
    %258 = arith.addi %17, %c32_i32_199 : i32
    %c6_i32_200 = arith.constant 6 : i32
    %259 = arith.addi %258, %c6_i32_200 : i32
    %c0_i32_201 = arith.constant 0 : i32
    %c0_i32_202 = arith.constant 0 : i32
    %260 = tpu.memref_slice %arg4[%c0_i32_201, %c0_i32_202] : memref<12x64xf32, #tpu.memory_space<any>> -> memref<1x64xf32, #tpu.memory_space<any>>
    %c0_i32_203 = arith.constant 0 : i32
    %261 = tpu.memref_slice %arg6[%259, %c0_i32_203] : memref<96x64xf32, #tpu.memory_space<vmem>> -> memref<1x64xf32, #tpu.memory_space<vmem>>
    %262 = tpu.memref_slice %arg7[%259] : memref<96x!tpu.dma_semaphore, #tpu.memory_space<semaphore_mem>> -> memref<1x!tpu.dma_semaphore, #tpu.memory_space<semaphore_mem>>
    %263 = tpu.memref_squeeze %262 : memref<1x!tpu.dma_semaphore, #tpu.memory_space<semaphore_mem>> -> memref<!tpu.dma_semaphore, #tpu.memory_space<semaphore_mem>>
    tpu.wait_dma2 semaphore(%263 : memref<!tpu.dma_semaphore, #tpu.memory_space<semaphore_mem>>) src(%260 : memref<1x64xf32, #tpu.memory_space<any>>) dst(%261 : memref<1x64xf32, #tpu.memory_space<vmem>>)
    %c40_i32_204 = arith.constant 40 : i32
    %264 = arith.addi %17, %c40_i32_204 : i32
    %c6_i32_205 = arith.constant 6 : i32
    %265 = arith.addi %264, %c6_i32_205 : i32
    %c0_i32_206 = arith.constant 0 : i32
    %c0_i32_207 = arith.constant 0 : i32
    %266 = tpu.memref_slice %arg3[%c0_i32_206, %c0_i32_207] : memref<50x64xf32, #tpu.memory_space<any>> -> memref<1x64xf32, #tpu.memory_space<any>>
    %c0_i32_208 = arith.constant 0 : i32
    %267 = tpu.memref_slice %arg6[%265, %c0_i32_208] : memref<96x64xf32, #tpu.memory_space<vmem>> -> memref<1x64xf32, #tpu.memory_space<vmem>>
    %268 = tpu.memref_slice %arg7[%265] : memref<96x!tpu.dma_semaphore, #tpu.memory_space<semaphore_mem>> -> memref<1x!tpu.dma_semaphore, #tpu.memory_space<semaphore_mem>>
    %269 = tpu.memref_squeeze %268 : memref<1x!tpu.dma_semaphore, #tpu.memory_space<semaphore_mem>> -> memref<!tpu.dma_semaphore, #tpu.memory_space<semaphore_mem>>
    tpu.wait_dma2 semaphore(%269 : memref<!tpu.dma_semaphore, #tpu.memory_space<semaphore_mem>>) src(%266 : memref<1x64xf32, #tpu.memory_space<any>>) dst(%267 : memref<1x64xf32, #tpu.memory_space<vmem>>)
    %c0_i32_209 = arith.constant 0 : i32
    %270 = arith.addi %17, %c0_i32_209 : i32
    %c7_i32 = arith.constant 7 : i32
    %271 = arith.addi %270, %c7_i32 : i32
    %c0_i32_210 = arith.constant 0 : i32
    %c0_i32_211 = arith.constant 0 : i32
    %272 = tpu.memref_slice %arg3[%c0_i32_210, %c0_i32_211] : memref<50x64xf32, #tpu.memory_space<any>> -> memref<1x64xf32, #tpu.memory_space<any>>
    %c0_i32_212 = arith.constant 0 : i32
    %273 = tpu.memref_slice %arg6[%271, %c0_i32_212] : memref<96x64xf32, #tpu.memory_space<vmem>> -> memref<1x64xf32, #tpu.memory_space<vmem>>
    %274 = tpu.memref_slice %arg7[%271] : memref<96x!tpu.dma_semaphore, #tpu.memory_space<semaphore_mem>> -> memref<1x!tpu.dma_semaphore, #tpu.memory_space<semaphore_mem>>
    %275 = tpu.memref_squeeze %274 : memref<1x!tpu.dma_semaphore, #tpu.memory_space<semaphore_mem>> -> memref<!tpu.dma_semaphore, #tpu.memory_space<semaphore_mem>>
    tpu.wait_dma2 semaphore(%275 : memref<!tpu.dma_semaphore, #tpu.memory_space<semaphore_mem>>) src(%272 : memref<1x64xf32, #tpu.memory_space<any>>) dst(%273 : memref<1x64xf32, #tpu.memory_space<vmem>>)
    %c8_i32_213 = arith.constant 8 : i32
    %276 = arith.addi %17, %c8_i32_213 : i32
    %c7_i32_214 = arith.constant 7 : i32
    %277 = arith.addi %276, %c7_i32_214 : i32
    %c0_i32_215 = arith.constant 0 : i32
    %c0_i32_216 = arith.constant 0 : i32
    %278 = tpu.memref_slice %arg4[%c0_i32_215, %c0_i32_216] : memref<12x64xf32, #tpu.memory_space<any>> -> memref<1x64xf32, #tpu.memory_space<any>>
    %c0_i32_217 = arith.constant 0 : i32
    %279 = tpu.memref_slice %arg6[%277, %c0_i32_217] : memref<96x64xf32, #tpu.memory_space<vmem>> -> memref<1x64xf32, #tpu.memory_space<vmem>>
    %280 = tpu.memref_slice %arg7[%277] : memref<96x!tpu.dma_semaphore, #tpu.memory_space<semaphore_mem>> -> memref<1x!tpu.dma_semaphore, #tpu.memory_space<semaphore_mem>>
    %281 = tpu.memref_squeeze %280 : memref<1x!tpu.dma_semaphore, #tpu.memory_space<semaphore_mem>> -> memref<!tpu.dma_semaphore, #tpu.memory_space<semaphore_mem>>
    tpu.wait_dma2 semaphore(%281 : memref<!tpu.dma_semaphore, #tpu.memory_space<semaphore_mem>>) src(%278 : memref<1x64xf32, #tpu.memory_space<any>>) dst(%279 : memref<1x64xf32, #tpu.memory_space<vmem>>)
    %c16_i32_218 = arith.constant 16 : i32
    %282 = arith.addi %17, %c16_i32_218 : i32
    %c7_i32_219 = arith.constant 7 : i32
    %283 = arith.addi %282, %c7_i32_219 : i32
    %c0_i32_220 = arith.constant 0 : i32
    %c0_i32_221 = arith.constant 0 : i32
    %284 = tpu.memref_slice %arg3[%c0_i32_220, %c0_i32_221] : memref<50x64xf32, #tpu.memory_space<any>> -> memref<1x64xf32, #tpu.memory_space<any>>
    %c0_i32_222 = arith.constant 0 : i32
    %285 = tpu.memref_slice %arg6[%283, %c0_i32_222] : memref<96x64xf32, #tpu.memory_space<vmem>> -> memref<1x64xf32, #tpu.memory_space<vmem>>
    %286 = tpu.memref_slice %arg7[%283] : memref<96x!tpu.dma_semaphore, #tpu.memory_space<semaphore_mem>> -> memref<1x!tpu.dma_semaphore, #tpu.memory_space<semaphore_mem>>
    %287 = tpu.memref_squeeze %286 : memref<1x!tpu.dma_semaphore, #tpu.memory_space<semaphore_mem>> -> memref<!tpu.dma_semaphore, #tpu.memory_space<semaphore_mem>>
    tpu.wait_dma2 semaphore(%287 : memref<!tpu.dma_semaphore, #tpu.memory_space<semaphore_mem>>) src(%284 : memref<1x64xf32, #tpu.memory_space<any>>) dst(%285 : memref<1x64xf32, #tpu.memory_space<vmem>>)
    %c24_i32_223 = arith.constant 24 : i32
    %288 = arith.addi %17, %c24_i32_223 : i32
    %c7_i32_224 = arith.constant 7 : i32
    %289 = arith.addi %288, %c7_i32_224 : i32
    %c0_i32_225 = arith.constant 0 : i32
    %c0_i32_226 = arith.constant 0 : i32
    %290 = tpu.memref_slice %arg3[%c0_i32_225, %c0_i32_226] : memref<50x64xf32, #tpu.memory_space<any>> -> memref<1x64xf32, #tpu.memory_space<any>>
    %c0_i32_227 = arith.constant 0 : i32
    %291 = tpu.memref_slice %arg6[%289, %c0_i32_227] : memref<96x64xf32, #tpu.memory_space<vmem>> -> memref<1x64xf32, #tpu.memory_space<vmem>>
    %292 = tpu.memref_slice %arg7[%289] : memref<96x!tpu.dma_semaphore, #tpu.memory_space<semaphore_mem>> -> memref<1x!tpu.dma_semaphore, #tpu.memory_space<semaphore_mem>>
    %293 = tpu.memref_squeeze %292 : memref<1x!tpu.dma_semaphore, #tpu.memory_space<semaphore_mem>> -> memref<!tpu.dma_semaphore, #tpu.memory_space<semaphore_mem>>
    tpu.wait_dma2 semaphore(%293 : memref<!tpu.dma_semaphore, #tpu.memory_space<semaphore_mem>>) src(%290 : memref<1x64xf32, #tpu.memory_space<any>>) dst(%291 : memref<1x64xf32, #tpu.memory_space<vmem>>)
    %c32_i32_228 = arith.constant 32 : i32
    %294 = arith.addi %17, %c32_i32_228 : i32
    %c7_i32_229 = arith.constant 7 : i32
    %295 = arith.addi %294, %c7_i32_229 : i32
    %c0_i32_230 = arith.constant 0 : i32
    %c0_i32_231 = arith.constant 0 : i32
    %296 = tpu.memref_slice %arg4[%c0_i32_230, %c0_i32_231] : memref<12x64xf32, #tpu.memory_space<any>> -> memref<1x64xf32, #tpu.memory_space<any>>
    %c0_i32_232 = arith.constant 0 : i32
    %297 = tpu.memref_slice %arg6[%295, %c0_i32_232] : memref<96x64xf32, #tpu.memory_space<vmem>> -> memref<1x64xf32, #tpu.memory_space<vmem>>
    %298 = tpu.memref_slice %arg7[%295] : memref<96x!tpu.dma_semaphore, #tpu.memory_space<semaphore_mem>> -> memref<1x!tpu.dma_semaphore, #tpu.memory_space<semaphore_mem>>
    %299 = tpu.memref_squeeze %298 : memref<1x!tpu.dma_semaphore, #tpu.memory_space<semaphore_mem>> -> memref<!tpu.dma_semaphore, #tpu.memory_space<semaphore_mem>>
    tpu.wait_dma2 semaphore(%299 : memref<!tpu.dma_semaphore, #tpu.memory_space<semaphore_mem>>) src(%296 : memref<1x64xf32, #tpu.memory_space<any>>) dst(%297 : memref<1x64xf32, #tpu.memory_space<vmem>>)
    %c40_i32_233 = arith.constant 40 : i32
    %300 = arith.addi %17, %c40_i32_233 : i32
    %c7_i32_234 = arith.constant 7 : i32
    %301 = arith.addi %300, %c7_i32_234 : i32
    %c0_i32_235 = arith.constant 0 : i32
    %c0_i32_236 = arith.constant 0 : i32
    %302 = tpu.memref_slice %arg3[%c0_i32_235, %c0_i32_236] : memref<50x64xf32, #tpu.memory_space<any>> -> memref<1x64xf32, #tpu.memory_space<any>>
    %c0_i32_237 = arith.constant 0 : i32
    %303 = tpu.memref_slice %arg6[%301, %c0_i32_237] : memref<96x64xf32, #tpu.memory_space<vmem>> -> memref<1x64xf32, #tpu.memory_space<vmem>>
    %304 = tpu.memref_slice %arg7[%301] : memref<96x!tpu.dma_semaphore, #tpu.memory_space<semaphore_mem>> -> memref<1x!tpu.dma_semaphore, #tpu.memory_space<semaphore_mem>>
    %305 = tpu.memref_squeeze %304 : memref<1x!tpu.dma_semaphore, #tpu.memory_space<semaphore_mem>> -> memref<!tpu.dma_semaphore, #tpu.memory_space<semaphore_mem>>
    tpu.wait_dma2 semaphore(%305 : memref<!tpu.dma_semaphore, #tpu.memory_space<semaphore_mem>>) src(%302 : memref<1x64xf32, #tpu.memory_space<any>>) dst(%303 : memref<1x64xf32, #tpu.memory_space<vmem>>)
    %c48_i32_238 = arith.constant 48 : i32
    %306 = arith.muli %9, %c48_i32_238 : i32
    %307 = tpu.assume_multiple %306, 8 : i32
    %308 = arith.index_cast %307 : i32 to index
    %c0 = arith.constant 0 : index
    %309 = vector.load %arg6[%308, %c0] : memref<96x64xf32, #tpu.memory_space<vmem>>, vector<48x64xf32>
    %310 = vector.extract_strided_slice %309 {offsets = [0, 0], sizes = [8, 64], strides = [1, 1]} : vector<48x64xf32> to vector<8x64xf32>
    %311 = vector.extract_strided_slice %309 {offsets = [8, 0], sizes = [8, 64], strides = [1, 1]} : vector<48x64xf32> to vector<8x64xf32>
    %312 = vector.extract_strided_slice %309 {offsets = [16, 0], sizes = [8, 64], strides = [1, 1]} : vector<48x64xf32> to vector<8x64xf32>
    %313 = vector.extract_strided_slice %310 {offsets = [0, 0], sizes = [8, 32], strides = [1, 1]} : vector<8x64xf32> to vector<8x32xf32>
    %314 = vector.extract_strided_slice %310 {offsets = [0, 32], sizes = [8, 32], strides = [1, 1]} : vector<8x64xf32> to vector<8x32xf32>
    %315 = vector.extract_strided_slice %311 {offsets = [0, 0], sizes = [8, 32], strides = [1, 1]} : vector<8x64xf32> to vector<8x32xf32>
    %316 = vector.extract_strided_slice %311 {offsets = [0, 32], sizes = [8, 32], strides = [1, 1]} : vector<8x64xf32> to vector<8x32xf32>
    %317 = vector.extract_strided_slice %312 {offsets = [0, 0], sizes = [8, 32], strides = [1, 1]} : vector<8x64xf32> to vector<8x32xf32>
    %318 = vector.extract_strided_slice %312 {offsets = [0, 32], sizes = [8, 32], strides = [1, 1]} : vector<8x64xf32> to vector<8x32xf32>
    %319 = arith.mulf %313, %317 : vector<8x32xf32>
    %320 = arith.mulf %314, %318 : vector<8x32xf32>
    %321 = arith.addf %319, %320 : vector<8x32xf32>
    %322 = arith.mulf %315, %321 : vector<8x32xf32>
    %323 = arith.mulf %313, %318 : vector<8x32xf32>
    %324 = arith.mulf %314, %317 : vector<8x32xf32>
    %325 = arith.subf %323, %324 : vector<8x32xf32>
    %326 = arith.mulf %316, %325 : vector<8x32xf32>
    %327 = arith.addf %322, %326 : vector<8x32xf32>
    %cst = arith.constant dense<0.000000e+00> : vector<8xf32>
    %328 = vector.multi_reduction <add>, %327, %cst [1] : vector<8x32xf32> to vector<8xf32>
    %329 = vector.shape_cast %328 : vector<8xf32> to vector<8x1xf32>
    %330 = vector.extract_strided_slice %309 {offsets = [24, 0], sizes = [8, 64], strides = [1, 1]} : vector<48x64xf32> to vector<8x64xf32>
    %331 = vector.extract_strided_slice %309 {offsets = [32, 0], sizes = [8, 64], strides = [1, 1]} : vector<48x64xf32> to vector<8x64xf32>
    %332 = vector.extract_strided_slice %309 {offsets = [40, 0], sizes = [8, 64], strides = [1, 1]} : vector<48x64xf32> to vector<8x64xf32>
    %333 = vector.extract_strided_slice %330 {offsets = [0, 0], sizes = [8, 32], strides = [1, 1]} : vector<8x64xf32> to vector<8x32xf32>
    %334 = vector.extract_strided_slice %330 {offsets = [0, 32], sizes = [8, 32], strides = [1, 1]} : vector<8x64xf32> to vector<8x32xf32>
    %335 = vector.extract_strided_slice %331 {offsets = [0, 0], sizes = [8, 32], strides = [1, 1]} : vector<8x64xf32> to vector<8x32xf32>
    %336 = vector.extract_strided_slice %331 {offsets = [0, 32], sizes = [8, 32], strides = [1, 1]} : vector<8x64xf32> to vector<8x32xf32>
    %337 = vector.extract_strided_slice %332 {offsets = [0, 0], sizes = [8, 32], strides = [1, 1]} : vector<8x64xf32> to vector<8x32xf32>
    %338 = vector.extract_strided_slice %332 {offsets = [0, 32], sizes = [8, 32], strides = [1, 1]} : vector<8x64xf32> to vector<8x32xf32>
    %339 = arith.mulf %333, %337 : vector<8x32xf32>
    %340 = arith.mulf %334, %338 : vector<8x32xf32>
    %341 = arith.addf %339, %340 : vector<8x32xf32>
    %342 = arith.mulf %335, %341 : vector<8x32xf32>
    %343 = arith.mulf %333, %338 : vector<8x32xf32>
    %344 = arith.mulf %334, %337 : vector<8x32xf32>
    %345 = arith.subf %343, %344 : vector<8x32xf32>
    %346 = arith.mulf %336, %345 : vector<8x32xf32>
    %347 = arith.addf %342, %346 : vector<8x32xf32>
    %cst_239 = arith.constant dense<0.000000e+00> : vector<8xf32>
    %348 = vector.multi_reduction <add>, %347, %cst_239 [1] : vector<8x32xf32> to vector<8xf32>
    %349 = vector.shape_cast %348 : vector<8xf32> to vector<8x1xf32>
    %350 = tpu.iota {dimensions = array<i32: 0>} : vector<8x1xi32>
    %c8_i32_240 = arith.constant 8 : i32
    %351 = arith.muli %arg0, %c8_i32_240 : i32
    %352 = vector.broadcast %351 : i32 to vector<8x1xi32>
    %353 = arith.addi %350, %352 : vector<8x1xi32>
    %c10_i32 = arith.constant 10 : i32
    %354 = vector.broadcast %c10_i32 : i32 to vector<8x1xi32>
    %355 = arith.cmpi slt, %353, %354 : vector<8x1xi32>
    %c0_241 = arith.constant 0 : index
    %c0_242 = arith.constant 0 : index
    %356 = vector.load %arg8[%c0_241, %c0_242] : memref<8x1xf32, #tpu.memory_space<vmem>>, vector<8x1xf32>
    %cst_243 = arith.constant 0.000000e+00 : f32
    %357 = vector.broadcast %cst_243 : f32 to vector<8x1xf32>
    %358 = arith.subf %357, %329 : vector<8x1xf32>
    %cst_244 = arith.constant 0.000000e+00 : f32
    %359 = vector.broadcast %cst_244 : f32 to vector<8x1xf32>
    %360 = arith.maximumf %358, %359 : vector<8x1xf32>
    %361 = math.absf %358 : vector<8x1xf32>
    %cst_245 = arith.constant 0.000000e+00 : f32
    %362 = vector.broadcast %cst_245 : f32 to vector<8x1xf32>
    %363 = arith.subf %362, %361 : vector<8x1xf32>
    %364 = math.exp %363 : vector<8x1xf32>
    %365 = math.log1p %364 : vector<8x1xf32>
    %366 = arith.addf %360, %365 : vector<8x1xf32>
    %cst_246 = arith.constant 0.000000e+00 : f32
    %367 = vector.broadcast %cst_246 : f32 to vector<8x1xf32>
    %368 = arith.select %355, %366, %367 : vector<8x1xi1>, vector<8x1xf32>
    %369 = arith.addf %356, %368 : vector<8x1xf32>
    %c0_247 = arith.constant 0 : index
    %c0_248 = arith.constant 0 : index
    %370 = vector.load %arg8[%c0_247, %c0_248] : memref<8x1xf32, #tpu.memory_space<vmem>>, vector<8x1xf32>
    tpu.vector_store %arg8[%c0_247, %c0_248], %369 {strides = array<i32>} : memref<8x1xf32, #tpu.memory_space<vmem>>, vector<8x1xf32>,
    %c0_249 = arith.constant 0 : index
    %c0_250 = arith.constant 0 : index
    %371 = vector.load %arg9[%c0_249, %c0_250] : memref<8x1xf32, #tpu.memory_space<vmem>>, vector<8x1xf32>
    %cst_251 = arith.constant 0.000000e+00 : f32
    %372 = vector.broadcast %cst_251 : f32 to vector<8x1xf32>
    %373 = arith.maximumf %349, %372 : vector<8x1xf32>
    %374 = math.absf %349 : vector<8x1xf32>
    %cst_252 = arith.constant 0.000000e+00 : f32
    %375 = vector.broadcast %cst_252 : f32 to vector<8x1xf32>
    %376 = arith.subf %375, %374 : vector<8x1xf32>
    %377 = math.exp %376 : vector<8x1xf32>
    %378 = math.log1p %377 : vector<8x1xf32>
    %379 = arith.addf %373, %378 : vector<8x1xf32>
    %cst_253 = arith.constant 0.000000e+00 : f32
    %380 = vector.broadcast %cst_253 : f32 to vector<8x1xf32>
    %381 = arith.select %355, %379, %380 : vector<8x1xi1>, vector<8x1xf32>
    %382 = arith.addf %371, %381 : vector<8x1xf32>
    %c0_254 = arith.constant 0 : index
    %c0_255 = arith.constant 0 : index
    %383 = vector.load %arg9[%c0_254, %c0_255] : memref<8x1xf32, #tpu.memory_space<vmem>>, vector<8x1xf32>
    tpu.vector_store %arg9[%c0_254, %c0_255], %382 {strides = array<i32>} : memref<8x1xf32, #tpu.memory_space<vmem>>, vector<8x1xf32>,
    %c1_i32_256 = arith.constant 1 : i32
    %384 = arith.cmpi eq, %arg0, %c1_i32_256 : i32
    %385 = arith.extui %384 : i1 to i32
    %c0_i32_257 = arith.constant 0 : i32
    %386 = arith.cmpi ne, %385, %c0_i32_257 : i32
    scf.if %386 {
      %c0_258 = arith.constant 0 : index
      %c0_259 = arith.constant 0 : index
      %387 = vector.load %arg8[%c0_258, %c0_259] : memref<8x1xf32, #tpu.memory_space<vmem>>, vector<8x1xf32>
      %388 = vector.shape_cast %387 : vector<8x1xf32> to vector<1x8x1xf32>
      %cst_260 = arith.constant dense<0.000000e+00> : vector<1xf32>
      %389 = vector.multi_reduction <add>, %388, %cst_260 [1, 2] : vector<1x8x1xf32> to vector<1xf32>
      %390 = vector.shape_cast %389 : vector<1xf32> to vector<1x1x1xf32>
      %391 = vector.extract %390[0, 0, 0] : f32 from vector<1x1x1xf32>
      %c0_261 = arith.constant 0 : index
      %c0_262 = arith.constant 0 : index
      %392 = vector.load %arg9[%c0_261, %c0_262] : memref<8x1xf32, #tpu.memory_space<vmem>>, vector<8x1xf32>
      %393 = vector.shape_cast %392 : vector<8x1xf32> to vector<1x8x1xf32>
      %cst_263 = arith.constant dense<0.000000e+00> : vector<1xf32>
      %394 = vector.multi_reduction <add>, %393, %cst_263 [1, 2] : vector<1x8x1xf32> to vector<1xf32>
      %395 = vector.shape_cast %394 : vector<1xf32> to vector<1x1x1xf32>
      %396 = vector.extract %395[0, 0, 0] : f32 from vector<1x1x1xf32>
      %397 = arith.addf %391, %396 : f32
      %cst_264 = arith.constant 5.000000e-02 : f32
      %398 = arith.mulf %397, %cst_264 : f32
      %c0_265 = arith.constant 0 : index
      %c0_266 = arith.constant 0 : index
      %399 = memref.load %arg5[%c0_265, %c0_266] : memref<1x1xf32, #tpu.memory_space<smem>>
      memref.store %398, %arg5[%c0_265, %c0_266] : memref<1x1xf32, #tpu.memory_space<smem>>
    } else {
    }
    return
  }
  func.func @transform_2(%arg0: i32, %arg1: memref<3x16xi32, #tpu.memory_space<smem>>, %arg2: memref<3x16xi32, #tpu.memory_space<smem>>) -> (i32, i32) {
    %c0_i32 = arith.constant 0 : i32
    %c0_i32_0 = arith.constant 0 : i32
    %c0_i32_1 = arith.constant 0 : i32
    return %c0_i32, %c0_i32_0 : i32, i32
  }
}

</mosaic_0001>

<llo_original>
// kernel: tpu_custom_call.1
$region0: #{tpu_custom_call.1}
  #allocation0 [shape = 'u32[]', space=smem, size = 0x4, offset = 0x4, fixed_abs, tag = 'smem constant byte address 0x4 - core index']
  #allocation1 [shape = 'u32[144,128]{1,0:T(1,128)}', space=vmem, size = 0x12000, scoped, tag = 'internal scratch']
  #allocation2 [shape = 'f32[96,64]{1,0:T(8,128)}', space=vmem, size = 0xc000, scoped, tag = 'scratch operand']
  #allocation3 [shape = 's32[96]{0}', space=sflag, size = 0x180, scoped, tag = 'scratch operand']
  #allocation4 [shape = 'f32[8,1]{1,0:T(8,128)}', space=vmem, size = 0x1000, scoped, tag = 'scratch operand']
  #allocation5 [shape = 'f32[8,1]{1,0:T(8,128)}', space=vmem, size = 0x1000, scoped, tag = 'scratch operand']
  #allocation6 [shape = 's32[1]{0}', space=sflag, size = 0x4, scoped, tag = 'scoped memory for tpu_custom_call.1']
  #allocation7 [shape = 'u8[2048]{0}', space=smem, size = 0x800, scoped, tag = 'prefetched SMEM operand 0']
  #allocation8 [shape = 'u8[2048]{0}', space=smem, size = 0x800, scoped, tag = 'prefetched SMEM operand 1']
  #allocation11 [shape = 's32[]', space=sflag, size = 0x4, offset = 0, fixed_abs, tag = 'sflag constant byte address 0x0 - dummy sync flag']
  #allocation12 [shape = 's32[]', space=sflag, size = 0x4, offset = 0, fixed_abs, tag = 'sflag constant byte address 0x0 - dummy sync flag']
  #allocation13 [shape = 'u32[]', space=smem, size = 0x4, offset = 0x44, fixed_abs, tag = 'smem constant byte address 0x44 - assertion arg 0']
  #allocation14 [shape = 'u32[]', space=smem, size = 0x4, offset = 0x48, fixed_abs, tag = 'smem constant byte address 0x48 - assertion arg 1']
  #allocation15 [shape = 's32[]', space=sflag, size = 0x4, offset = 0, fixed_abs, tag = 'sflag constant byte address 0x0 - dummy sync flag']
  #allocation16 [shape = 's32[]', space=sflag, size = 0x4, offset = 0, fixed_abs, tag = 'sflag constant byte address 0x0 - dummy sync flag']
  #allocation17 [shape = 's32[]', space=sflag, size = 0x4, offset = 0, fixed_abs, tag = 'sflag constant byte address 0x0 - dummy sync flag']
  #allocation18 [shape = 's32[]', space=sflag, size = 0x4, offset = 0, fixed_abs, tag = 'sflag constant byte address 0x0 - dummy sync flag']
  #allocation19 [shape = 's32[]', space=sflag, size = 0x4, offset = 0, fixed_abs, tag = 'sflag constant byte address 0x0 - dummy sync flag']
  #allocation20 [shape = 's32[]', space=sflag, size = 0x4, offset = 0, fixed_abs, tag = 'sflag constant byte address 0x0 - dummy sync flag']
  #allocation21 [shape = 's32[]', space=sflag, size = 0x4, offset = 0, fixed_abs, tag = 'sflag constant byte address 0x0 - dummy sync flag']
  #allocation22 [shape = 's32[]', space=sflag, size = 0x4, offset = 0, fixed_abs, tag = 'sflag constant byte address 0x0 - dummy sync flag']
  #allocation23 [shape = 's32[]', space=sflag, size = 0x4, offset = 0, fixed_abs, tag = 'sflag constant byte address 0x0 - dummy sync flag']
  #allocation24 [shape = 's32[]', space=sflag, size = 0x4, offset = 0, fixed_abs, tag = 'sflag constant byte address 0x0 - dummy sync flag']
  #allocation25 [shape = 's32[]', space=sflag, size = 0x4, offset = 0, fixed_abs, tag = 'sflag constant byte address 0x0 - dummy sync flag']
  #allocation26 [shape = 's32[]', space=sflag, size = 0x4, offset = 0, fixed_abs, tag = 'sflag constant byte address 0x0 - dummy sync flag']
  #allocation27 [shape = 's32[]', space=sflag, size = 0x4, offset = 0, fixed_abs, tag = 'sflag constant byte address 0x0 - dummy sync flag']
  #allocation28 [shape = 's32[]', space=sflag, size = 0x4, offset = 0, fixed_abs, tag = 'sflag constant byte address 0x0 - dummy sync flag']
  #allocation29 [shape = 's32[]', space=sflag, size = 0x4, offset = 0, fixed_abs, tag = 'sflag constant byte address 0x0 - dummy sync flag']
  #allocation30 [shape = 's32[]', space=sflag, size = 0x4, offset = 0, fixed_abs, tag = 'sflag constant byte address 0x0 - dummy sync flag']
  #allocation31 [shape = 's32[]', space=sflag, size = 0x4, offset = 0, fixed_abs, tag = 'sflag constant byte address 0x0 - dummy sync flag']
  #allocation32 [shape = 's32[]', space=sflag, size = 0x4, offset = 0, fixed_abs, tag = 'sflag constant byte address 0x0 - dummy sync flag']
  #allocation33 [shape = 's32[]', space=sflag, size = 0x4, offset = 0, fixed_abs, tag = 'sflag constant byte address 0x0 - dummy sync flag']
  #allocation34 [shape = 's32[]', space=sflag, size = 0x4, offset = 0, fixed_abs, tag = 'sflag constant byte address 0x0 - dummy sync flag']
  #allocation35 [shape = 's32[]', space=sflag, size = 0x4, offset = 0, fixed_abs, tag = 'sflag constant byte address 0x0 - dummy sync flag']
  #allocation36 [shape = 's32[]', space=sflag, size = 0x4, offset = 0, fixed_abs, tag = 'sflag constant byte address 0x0 - dummy sync flag']
  #allocation37 [shape = 's32[]', space=sflag, size = 0x4, offset = 0, fixed_abs, tag = 'sflag constant byte address 0x0 - dummy sync flag']
  #allocation38 [shape = 's32[]', space=sflag, size = 0x4, offset = 0, fixed_abs, tag = 'sflag constant byte address 0x0 - dummy sync flag']
  #allocation39 [shape = 's32[]', space=sflag, size = 0x4, offset = 0, fixed_abs, tag = 'sflag constant byte address 0x0 - dummy sync flag']
  #allocation40 [shape = 's32[]', space=sflag, size = 0x4, offset = 0, fixed_abs, tag = 'sflag constant byte address 0x0 - dummy sync flag']
  #allocation41 [shape = 's32[]', space=sflag, size = 0x4, offset = 0, fixed_abs, tag = 'sflag constant byte address 0x0 - dummy sync flag']
  #allocation42 [shape = 's32[]', space=sflag, size = 0x4, offset = 0, fixed_abs, tag = 'sflag constant byte address 0x0 - dummy sync flag']
  #allocation43 [shape = 's32[]', space=sflag, size = 0x4, offset = 0, fixed_abs, tag = 'sflag constant byte address 0x0 - dummy sync flag']
  #allocation44 [shape = 's32[]', space=sflag, size = 0x4, offset = 0, fixed_abs, tag = 'sflag constant byte address 0x0 - dummy sync flag']
  #allocation45 [shape = 's32[]', space=sflag, size = 0x4, offset = 0, fixed_abs, tag = 'sflag constant byte address 0x0 - dummy sync flag']
  #allocation46 [shape = 's32[]', space=sflag, size = 0x4, offset = 0, fixed_abs, tag = 'sflag constant byte address 0x0 - dummy sync flag']
  #allocation47 [shape = 's32[]', space=sflag, size = 0x4, offset = 0, fixed_abs, tag = 'sflag constant byte address 0x0 - dummy sync flag']
  #allocation48 [shape = 's32[]', space=sflag, size = 0x4, offset = 0, fixed_abs, tag = 'sflag constant byte address 0x0 - dummy sync flag']
  #allocation49 [shape = 's32[]', space=sflag, size = 0x4, offset = 0, fixed_abs, tag = 'sflag constant byte address 0x0 - dummy sync flag']
  #allocation50 [shape = 's32[]', space=sflag, size = 0x4, offset = 0, fixed_abs, tag = 'sflag constant byte address 0x0 - dummy sync flag']
  #allocation51 [shape = 's32[]', space=sflag, size = 0x4, offset = 0, fixed_abs, tag = 'sflag constant byte address 0x0 - dummy sync flag']
  #allocation52 [shape = 's32[]', space=sflag, size = 0x4, offset = 0, fixed_abs, tag = 'sflag constant byte address 0x0 - dummy sync flag']
  #allocation53 [shape = 's32[]', space=sflag, size = 0x4, offset = 0, fixed_abs, tag = 'sflag constant byte address 0x0 - dummy sync flag']
  #allocation54 [shape = 's32[]', space=sflag, size = 0x4, offset = 0, fixed_abs, tag = 'sflag constant byte address 0x0 - dummy sync flag']
  #allocation55 [shape = 's32[]', space=sflag, size = 0x4, offset = 0, fixed_abs, tag = 'sflag constant byte address 0x0 - dummy sync flag']
  #allocation56 [shape = 's32[]', space=sflag, size = 0x4, offset = 0, fixed_abs, tag = 'sflag constant byte address 0x0 - dummy sync flag']
  #allocation57 [shape = 's32[]', space=sflag, size = 0x4, offset = 0, fixed_abs, tag = 'sflag constant byte address 0x0 - dummy sync flag']
  #allocation58 [shape = 's32[]', space=sflag, size = 0x4, offset = 0, fixed_abs, tag = 'sflag constant byte address 0x0 - dummy sync flag']
  #allocation59 [shape = 's32[]', space=sflag, size = 0x4, offset = 0, fixed_abs, tag = 'sflag constant byte address 0x0 - dummy sync flag']
  #allocation60 [shape = 's32[]', space=sflag, size = 0x4, offset = 0, fixed_abs, tag = 'sflag constant byte address 0x0 - dummy sync flag']
  #allocation61 [shape = 's32[]', space=sflag, size = 0x4, offset = 0, fixed_abs, tag = 'sflag constant byte address 0x0 - dummy sync flag']
  #allocation62 [shape = 's32[]', space=sflag, size = 0x4, offset = 0, fixed_abs, tag = 'sflag constant byte address 0x0 - dummy sync flag']
  #allocation63 [shape = 's32[]', space=sflag, size = 0x4, offset = 0, fixed_abs, tag = 'sflag constant byte address 0x0 - dummy sync flag']
  #allocation64 [shape = 's32[]', space=sflag, size = 0x4, offset = 0, fixed_abs, tag = 'sflag constant byte address 0x0 - dummy sync flag']
  #allocation65 [shape = 's32[]', space=sflag, size = 0x4, offset = 0, fixed_abs, tag = 'sflag constant byte address 0x0 - dummy sync flag']
  #allocation66 [shape = 's32[]', space=sflag, size = 0x4, offset = 0, fixed_abs, tag = 'sflag constant byte address 0x0 - dummy sync flag']
  #allocation67 [shape = 's32[]', space=sflag, size = 0x4, offset = 0, fixed_abs, tag = 'sflag constant byte address 0x0 - dummy sync flag']
  #allocation68 [shape = 's32[]', space=sflag, size = 0x4, offset = 0, fixed_abs, tag = 'sflag constant byte address 0x0 - dummy sync flag']
  #allocation69 [shape = 's32[]', space=sflag, size = 0x4, offset = 0, fixed_abs, tag = 'sflag constant byte address 0x0 - dummy sync flag']
  #allocation70 [shape = 's32[]', space=sflag, size = 0x4, offset = 0, fixed_abs, tag = 'sflag constant byte address 0x0 - dummy sync flag']
  #allocation71 [shape = 's32[]', space=sflag, size = 0x4, offset = 0, fixed_abs, tag = 'sflag constant byte address 0x0 - dummy sync flag']
  #allocation72 [shape = 's32[]', space=sflag, size = 0x4, offset = 0, fixed_abs, tag = 'sflag constant byte address 0x0 - dummy sync flag']
  #allocation73 [shape = 's32[]', space=sflag, size = 0x4, offset = 0, fixed_abs, tag = 'sflag constant byte address 0x0 - dummy sync flag']
  #allocation74 [shape = 's32[]', space=sflag, size = 0x4, offset = 0, fixed_abs, tag = 'sflag constant byte address 0x0 - dummy sync flag']
  #allocation75 [shape = 's32[]', space=sflag, size = 0x4, offset = 0, fixed_abs, tag = 'sflag constant byte address 0x0 - dummy sync flag']
  #allocation76 [shape = 's32[]', space=sflag, size = 0x4, offset = 0, fixed_abs, tag = 'sflag constant byte address 0x0 - dummy sync flag']
  #allocation77 [shape = 's32[]', space=sflag, size = 0x4, offset = 0, fixed_abs, tag = 'sflag constant byte address 0x0 - dummy sync flag']
  #allocation78 [shape = 's32[]', space=sflag, size = 0x4, offset = 0, fixed_abs, tag = 'sflag constant byte address 0x0 - dummy sync flag']
  #allocation79 [shape = 's32[]', space=sflag, size = 0x4, offset = 0, fixed_abs, tag = 'sflag constant byte address 0x0 - dummy sync flag']
  #allocation80 [shape = 's32[]', space=sflag, size = 0x4, offset = 0, fixed_abs, tag = 'sflag constant byte address 0x0 - dummy sync flag']
  #allocation81 [shape = 's32[]', space=sflag, size = 0x4, offset = 0, fixed_abs, tag = 'sflag constant byte address 0x0 - dummy sync flag']
  #allocation82 [shape = 's32[]', space=sflag, size = 0x4, offset = 0, fixed_abs, tag = 'sflag constant byte address 0x0 - dummy sync flag']
  #allocation83 [shape = 's32[]', space=sflag, size = 0x4, offset = 0, fixed_abs, tag = 'sflag constant byte address 0x0 - dummy sync flag']
  #allocation84 [shape = 's32[]', space=sflag, size = 0x4, offset = 0, fixed_abs, tag = 'sflag constant byte address 0x0 - dummy sync flag']
  #allocation85 [shape = 's32[]', space=sflag, size = 0x4, offset = 0, fixed_abs, tag = 'sflag constant byte address 0x0 - dummy sync flag']
  #allocation86 [shape = 's32[]', space=sflag, size = 0x4, offset = 0, fixed_abs, tag = 'sflag constant byte address 0x0 - dummy sync flag']
  #allocation87 [shape = 's32[]', space=sflag, size = 0x4, offset = 0, fixed_abs, tag = 'sflag constant byte address 0x0 - dummy sync flag']
  #allocation88 [shape = 's32[]', space=sflag, size = 0x4, offset = 0, fixed_abs, tag = 'sflag constant byte address 0x0 - dummy sync flag']
  #allocation89 [shape = 's32[]', space=sflag, size = 0x4, offset = 0, fixed_abs, tag = 'sflag constant byte address 0x0 - dummy sync flag']
  #allocation90 [shape = 's32[]', space=sflag, size = 0x4, offset = 0, fixed_abs, tag = 'sflag constant byte address 0x0 - dummy sync flag']
  #allocation91 [shape = 's32[]', space=sflag, size = 0x4, offset = 0, fixed_abs, tag = 'sflag constant byte address 0x0 - dummy sync flag']
  #allocation92 [shape = 's32[]', space=sflag, size = 0x4, offset = 0, fixed_abs, tag = 'sflag constant byte address 0x0 - dummy sync flag']
  #allocation93 [shape = 's32[]', space=sflag, size = 0x4, offset = 0, fixed_abs, tag = 'sflag constant byte address 0x0 - dummy sync flag']
  #allocation94 [shape = 's32[]', space=sflag, size = 0x4, offset = 0, fixed_abs, tag = 'sflag constant byte address 0x0 - dummy sync flag']
  #allocation95 [shape = 's32[]', space=sflag, size = 0x4, offset = 0, fixed_abs, tag = 'sflag constant byte address 0x0 - dummy sync flag']
  #allocation96 [shape = 's32[]', space=sflag, size = 0x4, offset = 0, fixed_abs, tag = 'sflag constant byte address 0x0 - dummy sync flag']
  #allocation97 [shape = 's32[]', space=sflag, size = 0x4, offset = 0, fixed_abs, tag = 'sflag constant byte address 0x0 - dummy sync flag']
  #allocation98 [shape = 's32[]', space=sflag, size = 0x4, offset = 0, fixed_abs, tag = 'sflag constant byte address 0x0 - dummy sync flag']
  #allocation99 [shape = 's32[]', space=sflag, size = 0x4, offset = 0, fixed_abs, tag = 'sflag constant byte address 0x0 - dummy sync flag']
  #allocation100 [shape = 's32[]', space=sflag, size = 0x4, offset = 0, fixed_abs, tag = 'sflag constant byte address 0x0 - dummy sync flag']
  #allocation101 [shape = 's32[]', space=sflag, size = 0x4, offset = 0, fixed_abs, tag = 'sflag constant byte address 0x0 - dummy sync flag']
  #allocation102 [shape = 's32[]', space=sflag, size = 0x4, offset = 0, fixed_abs, tag = 'sflag constant byte address 0x0 - dummy sync flag']
  #allocation103 [shape = 's32[]', space=sflag, size = 0x4, offset = 0, fixed_abs, tag = 'sflag constant byte address 0x0 - dummy sync flag']
  #allocation104 [shape = 's32[]', space=sflag, size = 0x4, offset = 0, fixed_abs, tag = 'sflag constant byte address 0x0 - dummy sync flag']
  #allocation105 [shape = 's32[]', space=sflag, size = 0x4, offset = 0, fixed_abs, tag = 'sflag constant byte address 0x0 - dummy sync flag']
  #allocation106 [shape = 's32[]', space=sflag, size = 0x4, offset = 0, fixed_abs, tag = 'sflag constant byte address 0x0 - dummy sync flag']
  #allocation107 [shape = 's32[]', space=sflag, size = 0x4, offset = 0, fixed_abs, tag = 'sflag constant byte address 0x0 - dummy sync flag']
  #allocation108 [shape = 's32[]', space=sflag, size = 0x4, offset = 0, fixed_abs, tag = 'sflag constant byte address 0x0 - dummy sync flag']
  #allocation109 [shape = 's32[]', space=sflag, size = 0x4, offset = 0, fixed_abs, tag = 'sflag constant byte address 0x0 - dummy sync flag']
  #allocation110 [shape = 's32[]', space=sflag, size = 0x4, offset = 0, fixed_abs, tag = 'sflag constant byte address 0x0 - dummy sync flag']
  #allocation111 [shape = 's32[]', space=sflag, size = 0x4, offset = 0, fixed_abs, tag = 'sflag constant byte address 0x0 - dummy sync flag']
  #allocation112 [shape = 's32[]', space=sflag, size = 0x4, offset = 0, fixed_abs, tag = 'sflag constant byte address 0x0 - dummy sync flag']
  #allocation113 [shape = 's32[]', space=sflag, size = 0x4, offset = 0, fixed_abs, tag = 'sflag constant byte address 0x0 - dummy sync flag']
  #allocation114 [shape = 's32[]', space=sflag, size = 0x4, offset = 0, fixed_abs, tag = 'sflag constant byte address 0x0 - dummy sync flag']
  #allocation115 [shape = 's32[]', space=sflag, size = 0x4, offset = 0, fixed_abs, tag = 'sflag constant byte address 0x0 - dummy sync flag']
  #allocation116 [shape = 's32[]', space=sflag, size = 0x4, offset = 0, fixed_abs, tag = 'sflag constant byte address 0x0 - dummy sync flag']
  #allocation117 [shape = 's32[]', space=sflag, size = 0x4, offset = 0, fixed_abs, tag = 'sflag constant byte address 0x0 - dummy sync flag']
  #allocation118 [shape = 's32[]', space=sflag, size = 0x4, offset = 0, fixed_abs, tag = 'sflag constant byte address 0x0 - dummy sync flag']
  #allocation119 [shape = 's32[]', space=sflag, size = 0x4, offset = 0, fixed_abs, tag = 'sflag constant byte address 0x0 - dummy sync flag']
  #allocation120 [shape = 's32[]', space=sflag, size = 0x4, offset = 0, fixed_abs, tag = 'sflag constant byte address 0x0 - dummy sync flag']
  #allocation121 [shape = 's32[]', space=sflag, size = 0x4, offset = 0, fixed_abs, tag = 'sflag constant byte address 0x0 - dummy sync flag']
  #allocation122 [shape = 's32[]', space=sflag, size = 0x4, offset = 0, fixed_abs, tag = 'sflag constant byte address 0x0 - dummy sync flag']
  #allocation123 [shape = 's32[]', space=sflag, size = 0x4, offset = 0, fixed_abs, tag = 'sflag constant byte address 0x0 - dummy sync flag']
  #allocation124 [shape = 's32[]', space=sflag, size = 0x4, offset = 0, fixed_abs, tag = 'sflag constant byte address 0x0 - dummy sync flag']
  #allocation125 [shape = 's32[]', space=sflag, size = 0x4, offset = 0, fixed_abs, tag = 'sflag constant byte address 0x0 - dummy sync flag']
  #allocation126 [shape = 's32[]', space=sflag, size = 0x4, offset = 0, fixed_abs, tag = 'sflag constant byte address 0x0 - dummy sync flag']
  #allocation127 [shape = 's32[]', space=sflag, size = 0x4, offset = 0, fixed_abs, tag = 'sflag constant byte address 0x0 - dummy sync flag']
  #allocation128 [shape = 's32[]', space=sflag, size = 0x4, offset = 0, fixed_abs, tag = 'sflag constant byte address 0x0 - dummy sync flag']
  #allocation129 [shape = 's32[]', space=sflag, size = 0x4, offset = 0, fixed_abs, tag = 'sflag constant byte address 0x0 - dummy sync flag']
  #allocation130 [shape = 's32[]', space=sflag, size = 0x4, offset = 0, fixed_abs, tag = 'sflag constant byte address 0x0 - dummy sync flag']
  #allocation131 [shape = 's32[]', space=sflag, size = 0x4, offset = 0, fixed_abs, tag = 'sflag constant byte address 0x0 - dummy sync flag']
  #allocation132 [shape = 's32[]', space=sflag, size = 0x4, offset = 0, fixed_abs, tag = 'sflag constant byte address 0x0 - dummy sync flag']
  #allocation133 [shape = 's32[]', space=sflag, size = 0x4, offset = 0, fixed_abs, tag = 'sflag constant byte address 0x0 - dummy sync flag']
  #allocation134 [shape = 's32[]', space=sflag, size = 0x4, offset = 0, fixed_abs, tag = 'sflag constant byte address 0x0 - dummy sync flag']
  #allocation135 [shape = 's32[]', space=sflag, size = 0x4, offset = 0, fixed_abs, tag = 'sflag constant byte address 0x0 - dummy sync flag']
  #allocation136 [shape = 's32[]', space=sflag, size = 0x4, offset = 0, fixed_abs, tag = 'sflag constant byte address 0x0 - dummy sync flag']
  #allocation137 [shape = 's32[]', space=sflag, size = 0x4, offset = 0, fixed_abs, tag = 'sflag constant byte address 0x0 - dummy sync flag']
  #allocation138 [shape = 's32[]', space=sflag, size = 0x4, offset = 0, fixed_abs, tag = 'sflag constant byte address 0x0 - dummy sync flag']
  #allocation139 [shape = 's32[]', space=sflag, size = 0x4, offset = 0, fixed_abs, tag = 'sflag constant byte address 0x0 - dummy sync flag']
  #allocation140 [shape = 's32[]', space=sflag, size = 0x4, offset = 0, fixed_abs, tag = 'sflag constant byte address 0x0 - dummy sync flag']
  #allocation141 [shape = 's32[]', space=sflag, size = 0x4, offset = 0, fixed_abs, tag = 'sflag constant byte address 0x0 - dummy sync flag']
  #allocation142 [shape = 's32[]', space=sflag, size = 0x4, offset = 0, fixed_abs, tag = 'sflag constant byte address 0x0 - dummy sync flag']
  #allocation143 [shape = 's32[]', space=sflag, size = 0x4, offset = 0, fixed_abs, tag = 'sflag constant byte address 0x0 - dummy sync flag']
  #allocation144 [shape = 's32[]', space=sflag, size = 0x4, offset = 0, fixed_abs, tag = 'sflag constant byte address 0x0 - dummy sync flag']
  #allocation145 [shape = 's32[]', space=sflag, size = 0x4, offset = 0, fixed_abs, tag = 'sflag constant byte address 0x0 - dummy sync flag']
  #allocation146 [shape = 's32[]', space=sflag, size = 0x4, offset = 0, fixed_abs, tag = 'sflag constant byte address 0x0 - dummy sync flag']
  #allocation147 [shape = 's32[]', space=sflag, size = 0x4, offset = 0, fixed_abs, tag = 'sflag constant byte address 0x0 - dummy sync flag']
  #allocation148 [shape = 's32[]', space=sflag, size = 0x4, offset = 0, fixed_abs, tag = 'sflag constant byte address 0x0 - dummy sync flag']
  #allocation149 [shape = 's32[]', space=sflag, size = 0x4, offset = 0, fixed_abs, tag = 'sflag constant byte address 0x0 - dummy sync flag']
  #allocation150 [shape = 's32[]', space=sflag, size = 0x4, offset = 0, fixed_abs, tag = 'sflag constant byte address 0x0 - dummy sync flag']
  #allocation151 [shape = 's32[]', space=sflag, size = 0x4, offset = 0, fixed_abs, tag = 'sflag constant byte address 0x0 - dummy sync flag']
  #allocation152 [shape = 's32[]', space=sflag, size = 0x4, offset = 0, fixed_abs, tag = 'sflag constant byte address 0x0 - dummy sync flag']
  #allocation153 [shape = 's32[]', space=sflag, size = 0x4, offset = 0, fixed_abs, tag = 'sflag constant byte address 0x0 - dummy sync flag']
  #allocation154 [shape = 's32[]', space=sflag, size = 0x4, offset = 0, fixed_abs, tag = 'sflag constant byte address 0x0 - dummy sync flag']
  #allocation155 [shape = 's32[]', space=sflag, size = 0x4, offset = 0, fixed_abs, tag = 'sflag constant byte address 0x0 - dummy sync flag']
  #allocation156 [shape = 's32[]', space=sflag, size = 0x4, offset = 0, fixed_abs, tag = 'sflag constant byte address 0x0 - dummy sync flag']
  #allocation157 [shape = 's32[]', space=sflag, size = 0x4, offset = 0, fixed_abs, tag = 'sflag constant byte address 0x0 - dummy sync flag']
  #allocation158 [shape = 's32[]', space=sflag, size = 0x4, offset = 0, fixed_abs, tag = 'sflag constant byte address 0x0 - dummy sync flag']
  #allocation159 [shape = 's32[]', space=sflag, size = 0x4, offset = 0, fixed_abs, tag = 'sflag constant byte address 0x0 - dummy sync flag']
  #allocation160 [shape = 's32[]', space=sflag, size = 0x4, offset = 0, fixed_abs, tag = 'sflag constant byte address 0x0 - dummy sync flag']
  #allocation161 [shape = 's32[]', space=sflag, size = 0x4, offset = 0, fixed_abs, tag = 'sflag constant byte address 0x0 - dummy sync flag']
  #allocation162 [shape = 's32[]', space=sflag, size = 0x4, offset = 0, fixed_abs, tag = 'sflag constant byte address 0x0 - dummy sync flag']
  #allocation163 [shape = 's32[]', space=sflag, size = 0x4, offset = 0, fixed_abs, tag = 'sflag constant byte address 0x0 - dummy sync flag']
  #allocation164 [shape = 's32[]', space=sflag, size = 0x4, offset = 0, fixed_abs, tag = 'sflag constant byte address 0x0 - dummy sync flag']
  #allocation165 [shape = 's32[]', space=sflag, size = 0x4, offset = 0, fixed_abs, tag = 'sflag constant byte address 0x0 - dummy sync flag']
  #allocation166 [shape = 's32[]', space=sflag, size = 0x4, offset = 0, fixed_abs, tag = 'sflag constant byte address 0x0 - dummy sync flag']
  #allocation167 [shape = 's32[]', space=sflag, size = 0x4, offset = 0, fixed_abs, tag = 'sflag constant byte address 0x0 - dummy sync flag']
  #allocation168 [shape = 's32[]', space=sflag, size = 0x4, offset = 0, fixed_abs, tag = 'sflag constant byte address 0x0 - dummy sync flag']
  #allocation169 [shape = 's32[]', space=sflag, size = 0x4, offset = 0, fixed_abs, tag = 'sflag constant byte address 0x0 - dummy sync flag']
  #allocation170 [shape = 's32[]', space=sflag, size = 0x4, offset = 0, fixed_abs, tag = 'sflag constant byte address 0x0 - dummy sync flag']
  #allocation171 [shape = 's32[]', space=sflag, size = 0x4, offset = 0, fixed_abs, tag = 'sflag constant byte address 0x0 - dummy sync flag']
  #allocation172 [shape = 's32[]', space=sflag, size = 0x4, offset = 0, fixed_abs, tag = 'sflag constant byte address 0x0 - dummy sync flag']
  #allocation173 [shape = 's32[]', space=sflag, size = 0x4, offset = 0, fixed_abs, tag = 'sflag constant byte address 0x0 - dummy sync flag']
  #allocation174 [shape = 's32[]', space=sflag, size = 0x4, offset = 0, fixed_abs, tag = 'sflag constant byte address 0x0 - dummy sync flag']
  #allocation175 [shape = 's32[]', space=sflag, size = 0x4, offset = 0, fixed_abs, tag = 'sflag constant byte address 0x0 - dummy sync flag']
  #allocation176 [shape = 's32[]', space=sflag, size = 0x4, offset = 0, fixed_abs, tag = 'sflag constant byte address 0x0 - dummy sync flag']
  #allocation177 [shape = 's32[]', space=sflag, size = 0x4, offset = 0, fixed_abs, tag = 'sflag constant byte address 0x0 - dummy sync flag']
  #allocation178 [shape = 's32[]', space=sflag, size = 0x4, offset = 0, fixed_abs, tag = 'sflag constant byte address 0x0 - dummy sync flag']
  #allocation179 [shape = 's32[]', space=sflag, size = 0x4, offset = 0, fixed_abs, tag = 'sflag constant byte address 0x0 - dummy sync flag']
  #allocation180 [shape = 's32[]', space=sflag, size = 0x4, offset = 0, fixed_abs, tag = 'sflag constant byte address 0x0 - dummy sync flag']
  #allocation181 [shape = 's32[]', space=sflag, size = 0x4, offset = 0, fixed_abs, tag = 'sflag constant byte address 0x0 - dummy sync flag']
  #allocation182 [shape = 's32[]', space=sflag, size = 0x4, offset = 0, fixed_abs, tag = 'sflag constant byte address 0x0 - dummy sync flag']
  #allocation183 [shape = 's32[]', space=sflag, size = 0x4, offset = 0, fixed_abs, tag = 'sflag constant byte address 0x0 - dummy sync flag']
  #allocation184 [shape = 's32[]', space=sflag, size = 0x4, offset = 0, fixed_abs, tag = 'sflag constant byte address 0x0 - dummy sync flag']
  #allocation185 [shape = 's32[]', space=sflag, size = 0x4, offset = 0, fixed_abs, tag = 'sflag constant byte address 0x0 - dummy sync flag']
  #allocation186 [shape = 's32[]', space=sflag, size = 0x4, offset = 0, fixed_abs, tag = 'sflag constant byte address 0x0 - dummy sync flag']
  #allocation187 [shape = 's32[]', space=sflag, size = 0x4, offset = 0, fixed_abs, tag = 'sflag constant byte address 0x0 - dummy sync flag']
  #allocation188 [shape = 's32[]', space=sflag, size = 0x4, offset = 0, fixed_abs, tag = 'sflag constant byte address 0x0 - dummy sync flag']
  #allocation189 [shape = 's32[]', space=sflag, size = 0x4, offset = 0, fixed_abs, tag = 'sflag constant byte address 0x0 - dummy sync flag']
  #allocation190 [shape = 's32[]', space=sflag, size = 0x4, offset = 0, fixed_abs, tag = 'sflag constant byte address 0x0 - dummy sync flag']
  #allocation191 [shape = 's32[]', space=sflag, size = 0x4, offset = 0, fixed_abs, tag = 'sflag constant byte address 0x0 - dummy sync flag']
  #allocation192 [shape = 's32[]', space=sflag, size = 0x4, offset = 0, fixed_abs, tag = 'sflag constant byte address 0x0 - dummy sync flag']
  #allocation193 [shape = 's32[]', space=sflag, size = 0x4, offset = 0, fixed_abs, tag = 'sflag constant byte address 0x0 - dummy sync flag']
  #allocation194 [shape = 's32[]', space=sflag, size = 0x4, offset = 0, fixed_abs, tag = 'sflag constant byte address 0x0 - dummy sync flag']
  #allocation195 [shape = 's32[]', space=sflag, size = 0x4, offset = 0, fixed_abs, tag = 'sflag constant byte address 0x0 - dummy sync flag']
  #allocation196 [shape = 's32[]', space=sflag, size = 0x4, offset = 0, fixed_abs, tag = 'sflag constant byte address 0x0 - dummy sync flag']
  #allocation197 [shape = 's32[]', space=sflag, size = 0x4, offset = 0, fixed_abs, tag = 'sflag constant byte address 0x0 - dummy sync flag']
  #allocation198 [shape = 's32[]', space=sflag, size = 0x4, offset = 0, fixed_abs, tag = 'sflag constant byte address 0x0 - dummy sync flag']
  #allocation199 [shape = 's32[]', space=sflag, size = 0x4, offset = 0, fixed_abs, tag = 'sflag constant byte address 0x0 - dummy sync flag']
  #allocation200 [shape = 's32[]', space=sflag, size = 0x4, offset = 0, fixed_abs, tag = 'sflag constant byte address 0x0 - dummy sync flag']
  #allocation201 [shape = 's32[]', space=sflag, size = 0x4, offset = 0, fixed_abs, tag = 'sflag constant byte address 0x0 - dummy sync flag']
  #allocation202 [shape = 's32[]', space=sflag, size = 0x4, offset = 0, fixed_abs, tag = 'sflag constant byte address 0x0 - dummy sync flag']
  #allocation203 [shape = 's32[]', space=sflag, size = 0x4, offset = 0, fixed_abs, tag = 'sflag constant byte address 0x0 - dummy sync flag']
  #allocation204 [shape = 's32[]', space=sflag, size = 0x4, offset = 0, fixed_abs, tag = 'sflag constant byte address 0x0 - dummy sync flag']
  %s0 = inlined_call_operand.hbm [shape: s32[3,16], index: 0, kind: input, shape index: {}]
  %s1 = inlined_call_operand.hbm [shape: s32[3,16], index: 1, kind: input, shape index: {}]
  %s2 = inlined_call_operand.hbm [shape: f32[50,64], index: 2, kind: input, shape index: {}]
  %s3 = inlined_call_operand.hbm [shape: f32[12,64], index: 3, kind: input, shape index: {}]
  %s4 = inlined_call_operand.hbm [shape: f32[1,1], index: 4, kind: output, shape index: {}]
  %s5 = sld [smem:[#allocation0]]
  $region421: #{tpu_custom_call.1} parent=0
    _
  %s7 = ssub.s32 1, %s5
  %s8 = scalar_select 0, %s7, %s5
  %10 = dma.hbm_to_smem %s0, 64, [#allocation7], [#allocation6]
  %12 = dma.hbm_to_smem %s1, 64, [#allocation8], [#allocation6]
  %13 = dma.done [#allocation6], 128
  %14 = sfence
  $region1: #{tpu_custom_call.1} parent=0
    #allocation9 [shape = 'u8[512]{0}', space=smem, size = 0x200, scoped, tag = 'output window, operand 0, single buffered']
    #allocation10 [shape = 's32[2]{0}', space=sflag, size = 0x8, scoped, tag = 'scoped memory for tpu_custom_call.1']
    %15 = vsyncpa [#allocation10], 0
    loop: start=0, step=1, limit=3
    $region2: #{tpu_custom_call.1} parent=1 // loop_pre_header
      _
    $region3: #{tpu_custom_call.1} parent=1 // loop_header
      %s17 = sphi 0, %s21
      %p18 = scmp.ge.s32.totalorder %s17, 3
      %s24 = sphi 0, %s24
      %s26 = sphi 0, %s24
      %s34 = sphi 0, %s26
    $region4: #{tpu_custom_call.1} parent=1 // loop_header_branch
      %20 = sbr.rel (%p18) target = $region8
    $region5: #{tpu_custom_call.1} parent=1 // loop_body
      %s22 = ssub.s32 %s17, 1
      %s23 = sadd.s32 %s17, 1
      %s25 = sadd.s32 %s24, 1
      %p27 = scmp.eq.s32.totalorder %s17, 1
      %p28 = scmp.ne.s32.totalorder %s24, %s26
      %p29 = scmp.eq.s32.totalorder %s17, 0
      %p30 = por %p28, %p29
      %p31 = scmp.ne.s32.totalorder %s24, %s26
      %p32 = scmp.eq.s32.totalorder %s22, 1
      %p33 = por %p31, %p32
      %p35 = scmp.ne.s32.totalorder %s26, %s34
      %p36 = scmp.eq.s32.totalorder %s22, 0
      %p37 = por %p35, %p36
      %p38 = scmp.lt.s32.totalorder %s17, 2
      // Predicated region
      $region9: #{tpu_custom_call.1} parent=5 // pred_check
        %p39 = pneg %p38
      $region10: #{tpu_custom_call.1} parent=5 // pred_check_branch
        %41 = sbr.rel (%p39) target = $region12
      $region11: #{tpu_custom_call.1} parent=5 // pred_region
        %p42 = pneg %p30
        %p43 = pneg %p27
        %p44 = scmp.lt.s32.totalorder %s17, 0
        %s45 = ssub.s32 0, %s17
        %s46 = scalar_select %p44, %s45, %s17
        %s47 = sand.u32 %s46, 1
        %s48 = ssub.s32 0, %s47
        %s49 = scalar_select %p44, %s48, %s47
        %p50 = scmp.ne.s32.totalorder %s49, 0
        %p51 = scmp.lt.s32.totalorder %s49, 0
        %p52 = pnand %p51, %p50
        %p53 = pneg %p52
        %s54 = sadd.s32 %s49, 2
        %s55 = scalar_select %p53, %s54, %s49
        %p56 = scmp.eq.s32.totalorder %s17, 0
        // Predicated region
        $region13: #{tpu_custom_call.1} parent=11 // pred_check
          %p57 = pneg %p56
        $region14: #{tpu_custom_call.1} parent=11 // pred_check_branch
          %59 = sbr.rel (%p57) target = $region16
        $region15: #{tpu_custom_call.1} parent=11 // pred_region
          %vm60 = vcmask 7168
          %61 = vst.msk [vmem:[#allocation4] sm:$0xff] %vm60, 0.0
          %62 = vst.msk [vmem:[#allocation5] sm:$0xff] %vm60, 0.0
          %s63 = sld [smem:[#allocation7]]
          %s64 = sld [smem:[#allocation7 + $0x80]]
          %s65 = sld [smem:[#allocation7 + $0x100]]
          %s66 = sld [smem:[#allocation8]]
          %s67 = sld [smem:[#allocation8 + $0x80]]
          %s68 = sld [smem:[#allocation8 + $0x100]]
          %s69 = smul.addr %s63, 16
          %s70 = scalar_lea.hbm %s2, %s69
          // Predicated region
          $region17: #{tpu_custom_call.1} parent=15 // pred_check
            _
          $region18: #{tpu_custom_call.1} parent=15 // pred_check_branch
            %72 = sbr.rel target = $region20
          $region19: #{tpu_custom_call.1} parent=15 // pred_region
            %73 = sst [smem:[#allocation13]] [#allocation12]
            %74 = sst [smem:[#allocation14]] [#allocation11]
          $region20: #{tpu_custom_call.1} parent=15 // pred_fallthru
            _
          %76 = shalt.err (0)
          %s78 = sshll.u32 [#allocation2], 4
          %s79 = int_to_ptr.vmem [resolvable:$true] %s78
          %81 = dma.hbm_to_vmem [thread:$0]  %s70, 16, %s79, [#allocation3]
          %s82 = smul.addr %s64, 16
          %s83 = scalar_lea.hbm %s3, %s82
          %s84 = scalar_lea.vmem [#allocation2], 8
          %s85 = scalar_lea.sflag [#allocation3], 8
          // Predicated region
          $region21: #{tpu_custom_call.1} parent=15 // pred_check
            _
          $region22: #{tpu_custom_call.1} parent=15 // pred_check_branch
            %87 = sbr.rel target = $region24
          $region23: #{tpu_custom_call.1} parent=15 // pred_region
            %88 = sst [smem:[#allocation13]] [#allocation16]
            %89 = sst [smem:[#allocation14]] [#allocation15]
          $region24: #{tpu_custom_call.1} parent=15 // pred_fallthru
            _
          %91 = shalt.err (0)
          %s93 = sshll.u32 %s84, 4
          %s94 = int_to_ptr.vmem [resolvable:$true] %s93
          %96 = dma.hbm_to_vmem [thread:$0]  %s83, 16, %s94, %s85
          %s97 = smul.addr %s65, 16
          %s98 = scalar_lea.hbm %s2, %s97
          %s99 = scalar_lea.vmem [#allocation2], 16
          %s100 = scalar_lea.sflag [#allocation3], 16
          // Predicated region
          $region25: #{tpu_custom_call.1} parent=15 // pred_check
            _
          $region26: #{tpu_custom_call.1} parent=15 // pred_check_branch
            %102 = sbr.rel target = $region28
          $region27: #{tpu_custom_call.1} parent=15 // pred_region
            %103 = sst [smem:[#allocation13]] [#allocation18]
            %104 = sst [smem:[#allocation14]] [#allocation17]
          $region28: #{tpu_custom_call.1} parent=15 // pred_fallthru
            _
          %106 = shalt.err (0)
          %s108 = sshll.u32 %s99, 4
          %s109 = int_to_ptr.vmem [resolvable:$true] %s108
          %111 = dma.hbm_to_vmem [thread:$0]  %s98, 16, %s109, %s100
          %s112 = smul.addr %s66, 16
          %s113 = scalar_lea.hbm %s2, %s112
          %s114 = scalar_lea.vmem [#allocation2], 24
          %s115 = scalar_lea.sflag [#allocation3], 24
          // Predicated region
          $region29: #{tpu_custom_call.1} parent=15 // pred_check
            _
          $region30: #{tpu_custom_call.1} parent=15 // pred_check_branch
            %117 = sbr.rel target = $region32
          $region31: #{tpu_custom_call.1} parent=15 // pred_region
            %118 = sst [smem:[#allocation13]] [#allocation20]
            %119 = sst [smem:[#allocation14]] [#allocation19]
          $region32: #{tpu_custom_call.1} parent=15 // pred_fallthru
            _
          %121 = shalt.err (0)
          %s123 = sshll.u32 %s114, 4
          %s124 = int_to_ptr.vmem [resolvable:$true] %s123
          %126 = dma.hbm_to_vmem [thread:$0]  %s113, 16, %s124, %s115
          %s127 = smul.addr %s67, 16
          %s128 = scalar_lea.hbm %s3, %s127
          %s129 = scalar_lea.vmem [#allocation2], 32
          %s130 = scalar_lea.sflag [#allocation3], 32
          // Predicated region
          $region33: #{tpu_custom_call.1} parent=15 // pred_check
            _
          $region34: #{tpu_custom_call.1} parent=15 // pred_check_branch
            %132 = sbr.rel target = $region36
          $region35: #{tpu_custom_call.1} parent=15 // pred_region
            %133 = sst [smem:[#allocation13]] [#allocation22]
            %134 = sst [smem:[#allocation14]] [#allocation21]
          $region36: #{tpu_custom_call.1} parent=15 // pred_fallthru
            _
          %136 = shalt.err (0)
          %s138 = sshll.u32 %s129, 4
          %s139 = int_to_ptr.vmem [resolvable:$true] %s138
          %141 = dma.hbm_to_vmem [thread:$0]  %s128, 16, %s139, %s130
          %s142 = smul.addr %s68, 16
          %s143 = scalar_lea.hbm %s2, %s142
          %s144 = scalar_lea.vmem [#allocation2], 40
          %s145 = scalar_lea.sflag [#allocation3], 40
          // Predicated region
          $region37: #{tpu_custom_call.1} parent=15 // pred_check
            _
          $region38: #{tpu_custom_call.1} parent=15 // pred_check_branch
            %147 = sbr.rel target = $region40
          $region39: #{tpu_custom_call.1} parent=15 // pred_region
            %148 = sst [smem:[#allocation13]] [#allocation24]
            %149 = sst [smem:[#allocation14]] [#allocation23]
          $region40: #{tpu_custom_call.1} parent=15 // pred_fallthru
            _
          %151 = shalt.err (0)
          %s153 = sshll.u32 %s144, 4
          %s154 = int_to_ptr.vmem [resolvable:$true] %s153
          %156 = dma.hbm_to_vmem [thread:$0]  %s143, 16, %s154, %s145
          %s157 = sld [smem:[#allocation7 + $0x1]]
          %s158 = sld [smem:[#allocation7 + $0x81]]
          %s159 = sld [smem:[#allocation7 + $0x101]]
          %s160 = sld [smem:[#allocation8 + $0x1]]
          %s161 = sld [smem:[#allocation8 + $0x81]]
          %s162 = sld [smem:[#allocation8 + $0x101]]
          %s163 = smul.addr %s157, 16
          %s164 = scalar_lea.hbm %s2, %s163
          %s165 = scalar_lea.vmem [#allocation2], 1
          %s166 = scalar_lea.sflag [#allocation3], 1
          // Predicated region
          $region41: #{tpu_custom_call.1} parent=15 // pred_check
            _
          $region42: #{tpu_custom_call.1} parent=15 // pred_check_branch
            %168 = sbr.rel target = $region44
          $region43: #{tpu_custom_call.1} parent=15 // pred_region
            %169 = sst [smem:[#allocation13]] [#allocation26]
            %170 = sst [smem:[#allocation14]] [#allocation25]
          $region44: #{tpu_custom_call.1} parent=15 // pred_fallthru
            _
          %172 = shalt.err (0)
          %s174 = sshll.u32 %s165, 4
          %s175 = int_to_ptr.vmem [resolvable:$true] %s174
          %177 = dma.hbm_to_vmem [thread:$0]  %s164, 16, %s175, %s166
          %s178 = smul.addr %s158, 16
          %s179 = scalar_lea.hbm %s3, %s178
          %s180 = scalar_lea.vmem [#allocation2], 9
          %s181 = scalar_lea.sflag [#allocation3], 9
          // Predicated region
          $region45: #{tpu_custom_call.1} parent=15 // pred_check
            _
          $region46: #{tpu_custom_call.1} parent=15 // pred_check_branch
            %183 = sbr.rel target = $region48
          $region47: #{tpu_custom_call.1} parent=15 // pred_region
            %184 = sst [smem:[#allocation13]] [#allocation28]
            %185 = sst [smem:[#allocation14]] [#allocation27]
          $region48: #{tpu_custom_call.1} parent=15 // pred_fallthru
            _
          %187 = shalt.err (0)
          %s189 = sshll.u32 %s180, 4
          %s190 = int_to_ptr.vmem [resolvable:$true] %s189
          %192 = dma.hbm_to_vmem [thread:$0]  %s179, 16, %s190, %s181
          %s193 = smul.addr %s159, 16
          %s194 = scalar_lea.hbm %s2, %s193
          %s195 = scalar_lea.vmem [#allocation2], 17
          %s196 = scalar_lea.sflag [#allocation3], 17
          // Predicated region
          $region49: #{tpu_custom_call.1} parent=15 // pred_check
            _
          $region50: #{tpu_custom_call.1} parent=15 // pred_check_branch
            %198 = sbr.rel target = $region52
          $region51: #{tpu_custom_call.1} parent=15 // pred_region
            %199 = sst [smem:[#allocation13]] [#allocation30]
            %200 = sst [smem:[#allocation14]] [#allocation29]
          $region52: #{tpu_custom_call.1} parent=15 // pred_fallthru
            _
          %202 = shalt.err (0)
          %s204 = sshll.u32 %s195, 4
          %s205 = int_to_ptr.vmem [resolvable:$true] %s204
          %207 = dma.hbm_to_vmem [thread:$0]  %s194, 16, %s205, %s196
          %s208 = smul.addr %s160, 16
          %s209 = scalar_lea.hbm %s2, %s208
          %s210 = scalar_lea.vmem [#allocation2], 25
          %s211 = scalar_lea.sflag [#allocation3], 25
          // Predicated region
          $region53: #{tpu_custom_call.1} parent=15 // pred_check
            _
          $region54: #{tpu_custom_call.1} parent=15 // pred_check_branch
            %213 = sbr.rel target = $region56
          $region55: #{tpu_custom_call.1} parent=15 // pred_region
            %214 = sst [smem:[#allocation13]] [#allocation32]
            %215 = sst [smem:[#allocation14]] [#allocation31]
          $region56: #{tpu_custom_call.1} parent=15 // pred_fallthru
            _
          %217 = shalt.err (0)
          %s219 = sshll.u32 %s210, 4
          %s220 = int_to_ptr.vmem [resolvable:$true] %s219
          %222 = dma.hbm_to_vmem [thread:$0]  %s209, 16, %s220, %s211
          %s223 = smul.addr %s161, 16
          %s224 = scalar_lea.hbm %s3, %s223
          %s225 = scalar_lea.vmem [#allocation2], 33
          %s226 = scalar_lea.sflag [#allocation3], 33
          // Predicated region
          $region57: #{tpu_custom_call.1} parent=15 // pred_check
            _
          $region58: #{tpu_custom_call.1} parent=15 // pred_check_branch
            %228 = sbr.rel target = $region60
          $region59: #{tpu_custom_call.1} parent=15 // pred_region
            %229 = sst [smem:[#allocation13]] [#allocation34]
            %230 = sst [smem:[#allocation14]] [#allocation33]
          $region60: #{tpu_custom_call.1} parent=15 // pred_fallthru
            _
          %232 = shalt.err (0)
          %s234 = sshll.u32 %s225, 4
          %s235 = int_to_ptr.vmem [resolvable:$true] %s234
          %237 = dma.hbm_to_vmem [thread:$0]  %s224, 16, %s235, %s226
          %s238 = smul.addr %s162, 16
          %s239 = scalar_lea.hbm %s2, %s238
          %s240 = scalar_lea.vmem [#allocation2], 41
          %s241 = scalar_lea.sflag [#allocation3], 41
          // Predicated region
          $region61: #{tpu_custom_call.1} parent=15 // pred_check
            _
          $region62: #{tpu_custom_call.1} parent=15 // pred_check_branch
            %243 = sbr.rel target = $region64
          $region63: #{tpu_custom_call.1} parent=15 // pred_region
            %244 = sst [smem:[#allocation13]] [#allocation36]
            %245 = sst [smem:[#allocation14]] [#allocation35]
          $region64: #{tpu_custom_call.1} parent=15 // pred_fallthru
            _
          %247 = shalt.err (0)
          %s249 = sshll.u32 %s240, 4
          %s250 = int_to_ptr.vmem [resolvable:$true] %s249
          %252 = dma.hbm_to_vmem [thread:$0]  %s239, 16, %s250, %s241
          %s253 = sld [smem:[#allocation7 + $0x2]]
          %s254 = sld [smem:[#allocation7 + $0x82]]
          %s255 = sld [smem:[#allocation7 + $0x102]]
          %s256 = sld [smem:[#allocation8 + $0x2]]
          %s257 = sld [smem:[#allocation8 + $0x82]]
          %s258 = sld [smem:[#allocation8 + $0x102]]
          %s259 = smul.addr %s253, 16
          %s260 = scalar_lea.hbm %s2, %s259
          %s261 = scalar_lea.vmem [#allocation2], 2
          %s262 = scalar_lea.sflag [#allocation3], 2
          // Predicated region
          $region65: #{tpu_custom_call.1} parent=15 // pred_check
            _
          $region66: #{tpu_custom_call.1} parent=15 // pred_check_branch
            %264 = sbr.rel target = $region68
          $region67: #{tpu_custom_call.1} parent=15 // pred_region
            %265 = sst [smem:[#allocation13]] [#allocation38]
            %266 = sst [smem:[#allocation14]] [#allocation37]
          $region68: #{tpu_custom_call.1} parent=15 // pred_fallthru
            _
          %268 = shalt.err (0)
          %s270 = sshll.u32 %s261, 4
          %s271 = int_to_ptr.vmem [resolvable:$true] %s270
          %273 = dma.hbm_to_vmem [thread:$0]  %s260, 16, %s271, %s262
          %s274 = smul.addr %s254, 16
          %s275 = scalar_lea.hbm %s3, %s274
          %s276 = scalar_lea.vmem [#allocation2], 10
          %s277 = scalar_lea.sflag [#allocation3], 10
          // Predicated region
          $region69: #{tpu_custom_call.1} parent=15 // pred_check
            _
          $region70: #{tpu_custom_call.1} parent=15 // pred_check_branch
            %279 = sbr.rel target = $region72
          $region71: #{tpu_custom_call.1} parent=15 // pred_region
            %280 = sst [smem:[#allocation13]] [#allocation40]
            %281 = sst [smem:[#allocation14]] [#allocation39]
          $region72: #{tpu_custom_call.1} parent=15 // pred_fallthru
            _
          %283 = shalt.err (0)
          %s285 = sshll.u32 %s276, 4
          %s286 = int_to_ptr.vmem [resolvable:$true] %s285
          %288 = dma.hbm_to_vmem [thread:$0]  %s275, 16, %s286, %s277
          %s289 = smul.addr %s255, 16
          %s290 = scalar_lea.hbm %s2, %s289
          %s291 = scalar_lea.vmem [#allocation2], 18
          %s292 = scalar_lea.sflag [#allocation3], 18
          // Predicated region
          $region73: #{tpu_custom_call.1} parent=15 // pred_check
            _
          $region74: #{tpu_custom_call.1} parent=15 // pred_check_branch
            %294 = sbr.rel target = $region76
          $region75: #{tpu_custom_call.1} parent=15 // pred_region
            %295 = sst [smem:[#allocation13]] [#allocation42]
            %296 = sst [smem:[#allocation14]] [#allocation41]
          $region76: #{tpu_custom_call.1} parent=15 // pred_fallthru
            _
          %298 = shalt.err (0)
          %s300 = sshll.u32 %s291, 4
          %s301 = int_to_ptr.vmem [resolvable:$true] %s300
          %303 = dma.hbm_to_vmem [thread:$0]  %s290, 16, %s301, %s292
          %s304 = smul.addr %s256, 16
          %s305 = scalar_lea.hbm %s2, %s304
          %s306 = scalar_lea.vmem [#allocation2], 26
          %s307 = scalar_lea.sflag [#allocation3], 26
          // Predicated region
          $region77: #{tpu_custom_call.1} parent=15 // pred_check
            _
          $region78: #{tpu_custom_call.1} parent=15 // pred_check_branch
            %309 = sbr.rel target = $region80
          $region79: #{tpu_custom_call.1} parent=15 // pred_region
            %310 = sst [smem:[#allocation13]] [#allocation44]
            %311 = sst [smem:[#allocation14]] [#allocation43]
          $region80: #{tpu_custom_call.1} parent=15 // pred_fallthru
            _
          %313 = shalt.err (0)
          %s315 = sshll.u32 %s306, 4
          %s316 = int_to_ptr.vmem [resolvable:$true] %s315
          %318 = dma.hbm_to_vmem [thread:$0]  %s305, 16, %s316, %s307
          %s319 = smul.addr %s257, 16
          %s320 = scalar_lea.hbm %s3, %s319
          %s321 = scalar_lea.vmem [#allocation2], 34
          %s322 = scalar_lea.sflag [#allocation3], 34
          // Predicated region
          $region81: #{tpu_custom_call.1} parent=15 // pred_check
            _
          $region82: #{tpu_custom_call.1} parent=15 // pred_check_branch
            %324 = sbr.rel target = $region84
          $region83: #{tpu_custom_call.1} parent=15 // pred_region
            %325 = sst [smem:[#allocation13]] [#allocation46]
            %326 = sst [smem:[#allocation14]] [#allocation45]
          $region84: #{tpu_custom_call.1} parent=15 // pred_fallthru
            _
          %328 = shalt.err (0)
          %s330 = sshll.u32 %s321, 4
          %s331 = int_to_ptr.vmem [resolvable:$true] %s330
          %333 = dma.hbm_to_vmem [thread:$0]  %s320, 16, %s331, %s322
          %s334 = smul.addr %s258, 16
          %s335 = scalar_lea.hbm %s2, %s334
          %s336 = scalar_lea.vmem [#allocation2], 42
          %s337 = scalar_lea.sflag [#allocation3], 42
          // Predicated region
          $region85: #{tpu_custom_call.1} parent=15 // pred_check
            _
          $region86: #{tpu_custom_call.1} parent=15 // pred_check_branch
            %339 = sbr.rel target = $region88
          $region87: #{tpu_custom_call.1} parent=15 // pred_region
            %340 = sst [smem:[#allocation13]] [#allocation48]
            %341 = sst [smem:[#allocation14]] [#allocation47]
          $region88: #{tpu_custom_call.1} parent=15 // pred_fallthru
            _
          %343 = shalt.err (0)
          %s345 = sshll.u32 %s336, 4
          %s346 = int_to_ptr.vmem [resolvable:$true] %s345
          %348 = dma.hbm_to_vmem [thread:$0]  %s335, 16, %s346, %s337
          %s349 = sld [smem:[#allocation7 + $0x3]]
          %s350 = sld [smem:[#allocation7 + $0x83]]
          %s351 = sld [smem:[#allocation7 + $0x103]]
          %s352 = sld [smem:[#allocation8 + $0x3]]
          %s353 = sld [smem:[#allocation8 + $0x83]]
          %s354 = sld [smem:[#allocation8 + $0x103]]
          %s355 = smul.addr %s349, 16
          %s356 = scalar_lea.hbm %s2, %s355
          %s357 = scalar_lea.vmem [#allocation2], 3
          %s358 = scalar_lea.sflag [#allocation3], 3
          // Predicated region
          $region89: #{tpu_custom_call.1} parent=15 // pred_check
            _
          $region90: #{tpu_custom_call.1} parent=15 // pred_check_branch
            %360 = sbr.rel target = $region92
          $region91: #{tpu_custom_call.1} parent=15 // pred_region
            %361 = sst [smem:[#allocation13]] [#allocation50]
            %362 = sst [smem:[#allocation14]] [#allocation49]
          $region92: #{tpu_custom_call.1} parent=15 // pred_fallthru
            _
          %364 = shalt.err (0)
          %s366 = sshll.u32 %s357, 4
          %s367 = int_to_ptr.vmem [resolvable:$true] %s366
          %369 = dma.hbm_to_vmem [thread:$0]  %s356, 16, %s367, %s358
          %s370 = smul.addr %s350, 16
          %s371 = scalar_lea.hbm %s3, %s370
          %s372 = scalar_lea.vmem [#allocation2], 11
          %s373 = scalar_lea.sflag [#allocation3], 11
          // Predicated region
          $region93: #{tpu_custom_call.1} parent=15 // pred_check
            _
          $region94: #{tpu_custom_call.1} parent=15 // pred_check_branch
            %375 = sbr.rel target = $region96
          $region95: #{tpu_custom_call.1} parent=15 // pred_region
            %376 = sst [smem:[#allocation13]] [#allocation52]
            %377 = sst [smem:[#allocation14]] [#allocation51]
          $region96: #{tpu_custom_call.1} parent=15 // pred_fallthru
            _
          %379 = shalt.err (0)
          %s381 = sshll.u32 %s372, 4
          %s382 = int_to_ptr.vmem [resolvable:$true] %s381
          %384 = dma.hbm_to_vmem [thread:$0]  %s371, 16, %s382, %s373
          %s385 = smul.addr %s351, 16
          %s386 = scalar_lea.hbm %s2, %s385
          %s387 = scalar_lea.vmem [#allocation2], 19
          %s388 = scalar_lea.sflag [#allocation3], 19
          // Predicated region
          $region97: #{tpu_custom_call.1} parent=15 // pred_check
            _
          $region98: #{tpu_custom_call.1} parent=15 // pred_check_branch
            %390 = sbr.rel target = $region100
          $region99: #{tpu_custom_call.1} parent=15 // pred_region
            %391 = sst [smem:[#allocation13]] [#allocation54]
            %392 = sst [smem:[#allocation14]] [#allocation53]
          $region100: #{tpu_custom_call.1} parent=15 // pred_fallthru
            _
          %394 = shalt.err (0)
          %s396 = sshll.u32 %s387, 4
          %s397 = int_to_ptr.vmem [resolvable:$true] %s396
          %399 = dma.hbm_to_vmem [thread:$0]  %s386, 16, %s397, %s388
          %s400 = smul.addr %s352, 16
          %s401 = scalar_lea.hbm %s2, %s400
          %s402 = scalar_lea.vmem [#allocation2], 27
          %s403 = scalar_lea.sflag [#allocation3], 27
          // Predicated region
          $region101: #{tpu_custom_call.1} parent=15 // pred_check
            _
          $region102: #{tpu_custom_call.1} parent=15 // pred_check_branch
            %405 = sbr.rel target = $region104
          $region103: #{tpu_custom_call.1} parent=15 // pred_region
            %406 = sst [smem:[#allocation13]] [#allocation56]
            %407 = sst [smem:[#allocation14]] [#allocation55]
          $region104: #{tpu_custom_call.1} parent=15 // pred_fallthru
            _
          %409 = shalt.err (0)
          %s411 = sshll.u32 %s402, 4
          %s412 = int_to_ptr.vmem [resolvable:$true] %s411
          %414 = dma.hbm_to_vmem [thread:$0]  %s401, 16, %s412, %s403
          %s415 = smul.addr %s353, 16
          %s416 = scalar_lea.hbm %s3, %s415
          %s417 = scalar_lea.vmem [#allocation2], 35
          %s418 = scalar_lea.sflag [#allocation3], 35
          // Predicated region
          $region105: #{tpu_custom_call.1} parent=15 // pred_check
            _
          $region106: #{tpu_custom_call.1} parent=15 // pred_check_branch
            %420 = sbr.rel target = $region108
          $region107: #{tpu_custom_call.1} parent=15 // pred_region
            %421 = sst [smem:[#allocation13]] [#allocation58]
            %422 = sst [smem:[#allocation14]] [#allocation57]
          $region108: #{tpu_custom_call.1} parent=15 // pred_fallthru
            _
          %424 = shalt.err (0)
          %s426 = sshll.u32 %s417, 4
          %s427 = int_to_ptr.vmem [resolvable:$true] %s426
          %429 = dma.hbm_to_vmem [thread:$0]  %s416, 16, %s427, %s418
          %s430 = smul.addr %s354, 16
          %s431 = scalar_lea.hbm %s2, %s430
          %s432 = scalar_lea.vmem [#allocation2], 43
          %s433 = scalar_lea.sflag [#allocation3], 43
          // Predicated region
          $region109: #{tpu_custom_call.1} parent=15 // pred_check
            _
          $region110: #{tpu_custom_call.1} parent=15 // pred_check_branch
            %435 = sbr.rel target = $region112
          $region111: #{tpu_custom_call.1} parent=15 // pred_region
            %436 = sst [smem:[#allocation13]] [#allocation60]
            %437 = sst [smem:[#allocation14]] [#allocation59]
          $region112: #{tpu_custom_call.1} parent=15 // pred_fallthru
            _
          %439 = shalt.err (0)
          %s441 = sshll.u32 %s432, 4
          %s442 = int_to_ptr.vmem [resolvable:$true] %s441
          %444 = dma.hbm_to_vmem [thread:$0]  %s431, 16, %s442, %s433
          %s445 = sld [smem:[#allocation7 + $0x4]]
          %s446 = sld [smem:[#allocation7 + $0x84]]
          %s447 = sld [smem:[#allocation7 + $0x104]]
          %s448 = sld [smem:[#allocation8 + $0x4]]
          %s449 = sld [smem:[#allocation8 + $0x84]]
          %s450 = sld [smem:[#allocation8 + $0x104]]
          %s451 = smul.addr %s445, 16
          %s452 = scalar_lea.hbm %s2, %s451
          %s453 = scalar_lea.vmem [#allocation2], 4
          %s454 = scalar_lea.sflag [#allocation3], 4
          // Predicated region
          $region113: #{tpu_custom_call.1} parent=15 // pred_check
            _
          $region114: #{tpu_custom_call.1} parent=15 // pred_check_branch
            %456 = sbr.rel target = $region116
          $region115: #{tpu_custom_call.1} parent=15 // pred_region
            %457 = sst [smem:[#allocation13]] [#allocation62]
            %458 = sst [smem:[#allocation14]] [#allocation61]
          $region116: #{tpu_custom_call.1} parent=15 // pred_fallthru
            _
          %460 = shalt.err (0)
          %s462 = sshll.u32 %s453, 4
          %s463 = int_to_ptr.vmem [resolvable:$true] %s462
          %465 = dma.hbm_to_vmem [thread:$0]  %s452, 16, %s463, %s454
          %s466 = smul.addr %s446, 16
          %s467 = scalar_lea.hbm %s3, %s466
          %s468 = scalar_lea.vmem [#allocation2], 12
          %s469 = scalar_lea.sflag [#allocation3], 12
          // Predicated region
          $region117: #{tpu_custom_call.1} parent=15 // pred_check
            _
          $region118: #{tpu_custom_call.1} parent=15 // pred_check_branch
            %471 = sbr.rel target = $region120
          $region119: #{tpu_custom_call.1} parent=15 // pred_region
            %472 = sst [smem:[#allocation13]] [#allocation64]
            %473 = sst [smem:[#allocation14]] [#allocation63]
          $region120: #{tpu_custom_call.1} parent=15 // pred_fallthru
            _
          %475 = shalt.err (0)
          %s477 = sshll.u32 %s468, 4
          %s478 = int_to_ptr.vmem [resolvable:$true] %s477
          %480 = dma.hbm_to_vmem [thread:$0]  %s467, 16, %s478, %s469
          %s481 = smul.addr %s447, 16
          %s482 = scalar_lea.hbm %s2, %s481
          %s483 = scalar_lea.vmem [#allocation2], 20
          %s484 = scalar_lea.sflag [#allocation3], 20
          // Predicated region
          $region121: #{tpu_custom_call.1} parent=15 // pred_check
            _
          $region122: #{tpu_custom_call.1} parent=15 // pred_check_branch
            %486 = sbr.rel target = $region124
          $region123: #{tpu_custom_call.1} parent=15 // pred_region
            %487 = sst [smem:[#allocation13]] [#allocation66]
            %488 = sst [smem:[#allocation14]] [#allocation65]
          $region124: #{tpu_custom_call.1} parent=15 // pred_fallthru
            _
          %490 = shalt.err (0)
          %s492 = sshll.u32 %s483, 4
          %s493 = int_to_ptr.vmem [resolvable:$true] %s492
          %495 = dma.hbm_to_vmem [thread:$0]  %s482, 16, %s493, %s484
          %s496 = smul.addr %s448, 16
          %s497 = scalar_lea.hbm %s2, %s496
          %s498 = scalar_lea.vmem [#allocation2], 28
          %s499 = scalar_lea.sflag [#allocation3], 28
          // Predicated region
          $region125: #{tpu_custom_call.1} parent=15 // pred_check
            _
          $region126: #{tpu_custom_call.1} parent=15 // pred_check_branch
            %501 = sbr.rel target = $region128
          $region127: #{tpu_custom_call.1} parent=15 // pred_region
            %502 = sst [smem:[#allocation13]] [#allocation68]
            %503 = sst [smem:[#allocation14]] [#allocation67]
          $region128: #{tpu_custom_call.1} parent=15 // pred_fallthru
            _
          %505 = shalt.err (0)
          %s507 = sshll.u32 %s498, 4
          %s508 = int_to_ptr.vmem [resolvable:$true] %s507
          %510 = dma.hbm_to_vmem [thread:$0]  %s497, 16, %s508, %s499
          %s511 = smul.addr %s449, 16
          %s512 = scalar_lea.hbm %s3, %s511
          %s513 = scalar_lea.vmem [#allocation2], 36
          %s514 = scalar_lea.sflag [#allocation3], 36
          // Predicated region
          $region129: #{tpu_custom_call.1} parent=15 // pred_check
            _
          $region130: #{tpu_custom_call.1} parent=15 // pred_check_branch
            %516 = sbr.rel target = $region132
          $region131: #{tpu_custom_call.1} parent=15 // pred_region
            %517 = sst [smem:[#allocation13]] [#allocation70]
            %518 = sst [smem:[#allocation14]] [#allocation69]
          $region132: #{tpu_custom_call.1} parent=15 // pred_fallthru
            _
          %520 = shalt.err (0)
          %s522 = sshll.u32 %s513, 4
          %s523 = int_to_ptr.vmem [resolvable:$true] %s522
          %525 = dma.hbm_to_vmem [thread:$0]  %s512, 16, %s523, %s514
          %s526 = smul.addr %s450, 16
          %s527 = scalar_lea.hbm %s2, %s526
          %s528 = scalar_lea.vmem [#allocation2], 44
          %s529 = scalar_lea.sflag [#allocation3], 44
          // Predicated region
          $region133: #{tpu_custom_call.1} parent=15 // pred_check
            _
          $region134: #{tpu_custom_call.1} parent=15 // pred_check_branch
            %531 = sbr.rel target = $region136
          $region135: #{tpu_custom_call.1} parent=15 // pred_region
            %532 = sst [smem:[#allocation13]] [#allocation72]
            %533 = sst [smem:[#allocation14]] [#allocation71]
          $region136: #{tpu_custom_call.1} parent=15 // pred_fallthru
            _
          %535 = shalt.err (0)
          %s537 = sshll.u32 %s528, 4
          %s538 = int_to_ptr.vmem [resolvable:$true] %s537
          %540 = dma.hbm_to_vmem [thread:$0]  %s527, 16, %s538, %s529
          %s541 = sld [smem:[#allocation7 + $0x5]]
          %s542 = sld [smem:[#allocation7 + $0x85]]
          %s543 = sld [smem:[#allocation7 + $0x105]]
          %s544 = sld [smem:[#allocation8 + $0x5]]
          %s545 = sld [smem:[#allocation8 + $0x85]]
          %s546 = sld [smem:[#allocation8 + $0x105]]
          %s547 = smul.addr %s541, 16
          %s548 = scalar_lea.hbm %s2, %s547
          %s549 = scalar_lea.vmem [#allocation2], 5
          %s550 = scalar_lea.sflag [#allocation3], 5
          // Predicated region
          $region137: #{tpu_custom_call.1} parent=15 // pred_check
            _
          $region138: #{tpu_custom_call.1} parent=15 // pred_check_branch
            %552 = sbr.rel target = $region140
          $region139: #{tpu_custom_call.1} parent=15 // pred_region
            %553 = sst [smem:[#allocation13]] [#allocation74]
            %554 = sst [smem:[#allocation14]] [#allocation73]
          $region140: #{tpu_custom_call.1} parent=15 // pred_fallthru
            _
          %556 = shalt.err (0)
          %s558 = sshll.u32 %s549, 4
          %s559 = int_to_ptr.vmem [resolvable:$true] %s558
          %561 = dma.hbm_to_vmem [thread:$0]  %s548, 16, %s559, %s550
          %s562 = smul.addr %s542, 16
          %s563 = scalar_lea.hbm %s3, %s562
          %s564 = scalar_lea.vmem [#allocation2], 13
          %s565 = scalar_lea.sflag [#allocation3], 13
          // Predicated region
          $region141: #{tpu_custom_call.1} parent=15 // pred_check
            _
          $region142: #{tpu_custom_call.1} parent=15 // pred_check_branch
            %567 = sbr.rel target = $region144
          $region143: #{tpu_custom_call.1} parent=15 // pred_region
            %568 = sst [smem:[#allocation13]] [#allocation76]
            %569 = sst [smem:[#allocation14]] [#allocation75]
          $region144: #{tpu_custom_call.1} parent=15 // pred_fallthru
            _
          %571 = shalt.err (0)
          %s573 = sshll.u32 %s564, 4
          %s574 = int_to_ptr.vmem [resolvable:$true] %s573
          %576 = dma.hbm_to_vmem [thread:$0]  %s563, 16, %s574, %s565
          %s577 = smul.addr %s543, 16
          %s578 = scalar_lea.hbm %s2, %s577
          %s579 = scalar_lea.vmem [#allocation2], 21
          %s580 = scalar_lea.sflag [#allocation3], 21
          // Predicated region
          $region145: #{tpu_custom_call.1} parent=15 // pred_check
            _
          $region146: #{tpu_custom_call.1} parent=15 // pred_check_branch
            %582 = sbr.rel target = $region148
          $region147: #{tpu_custom_call.1} parent=15 // pred_region
            %583 = sst [smem:[#allocation13]] [#allocation78]
            %584 = sst [smem:[#allocation14]] [#allocation77]
          $region148: #{tpu_custom_call.1} parent=15 // pred_fallthru
            _
          %586 = shalt.err (0)
          %s588 = sshll.u32 %s579, 4
          %s589 = int_to_ptr.vmem [resolvable:$true] %s588
          %591 = dma.hbm_to_vmem [thread:$0]  %s578, 16, %s589, %s580
          %s592 = smul.addr %s544, 16
          %s593 = scalar_lea.hbm %s2, %s592
          %s594 = scalar_lea.vmem [#allocation2], 29
          %s595 = scalar_lea.sflag [#allocation3], 29
          // Predicated region
          $region149: #{tpu_custom_call.1} parent=15 // pred_check
            _
          $region150: #{tpu_custom_call.1} parent=15 // pred_check_branch
            %597 = sbr.rel target = $region152
          $region151: #{tpu_custom_call.1} parent=15 // pred_region
            %598 = sst [smem:[#allocation13]] [#allocation80]
            %599 = sst [smem:[#allocation14]] [#allocation79]
          $region152: #{tpu_custom_call.1} parent=15 // pred_fallthru
            _
          %601 = shalt.err (0)
          %s603 = sshll.u32 %s594, 4
          %s604 = int_to_ptr.vmem [resolvable:$true] %s603
          %606 = dma.hbm_to_vmem [thread:$0]  %s593, 16, %s604, %s595
          %s607 = smul.addr %s545, 16
          %s608 = scalar_lea.hbm %s3, %s607
          %s609 = scalar_lea.vmem [#allocation2], 37
          %s610 = scalar_lea.sflag [#allocation3], 37
          // Predicated region
          $region153: #{tpu_custom_call.1} parent=15 // pred_check
            _
          $region154: #{tpu_custom_call.1} parent=15 // pred_check_branch
            %612 = sbr.rel target = $region156
          $region155: #{tpu_custom_call.1} parent=15 // pred_region
            %613 = sst [smem:[#allocation13]] [#allocation82]
            %614 = sst [smem:[#allocation14]] [#allocation81]
          $region156: #{tpu_custom_call.1} parent=15 // pred_fallthru
            _
          %616 = shalt.err (0)
          %s618 = sshll.u32 %s609, 4
          %s619 = int_to_ptr.vmem [resolvable:$true] %s618
          %621 = dma.hbm_to_vmem [thread:$0]  %s608, 16, %s619, %s610
          %s622 = smul.addr %s546, 16
          %s623 = scalar_lea.hbm %s2, %s622
          %s624 = scalar_lea.vmem [#allocation2], 45
          %s625 = scalar_lea.sflag [#allocation3], 45
          // Predicated region
          $region157: #{tpu_custom_call.1} parent=15 // pred_check
            _
          $region158: #{tpu_custom_call.1} parent=15 // pred_check_branch
            %627 = sbr.rel target = $region160
          $region159: #{tpu_custom_call.1} parent=15 // pred_region
            %628 = sst [smem:[#allocation13]] [#allocation84]
            %629 = sst [smem:[#allocation14]] [#allocation83]
          $region160: #{tpu_custom_call.1} parent=15 // pred_fallthru
            _
          %631 = shalt.err (0)
          %s633 = sshll.u32 %s624, 4
          %s634 = int_to_ptr.vmem [resolvable:$true] %s633
          %636 = dma.hbm_to_vmem [thread:$0]  %s623, 16, %s634, %s625
          %s637 = sld [smem:[#allocation7 + $0x6]]
          %s638 = sld [smem:[#allocation7 + $0x86]]
          %s639 = sld [smem:[#allocation7 + $0x106]]
          %s640 = sld [smem:[#allocation8 + $0x6]]
          %s641 = sld [smem:[#allocation8 + $0x86]]
          %s642 = sld [smem:[#allocation8 + $0x106]]
          %s643 = smul.addr %s637, 16
          %s644 = scalar_lea.hbm %s2, %s643
          %s645 = scalar_lea.vmem [#allocation2], 6
          %s646 = scalar_lea.sflag [#allocation3], 6
          // Predicated region
          $region161: #{tpu_custom_call.1} parent=15 // pred_check
            _
          $region162: #{tpu_custom_call.1} parent=15 // pred_check_branch
            %648 = sbr.rel target = $region164
          $region163: #{tpu_custom_call.1} parent=15 // pred_region
            %649 = sst [smem:[#allocation13]] [#allocation86]
            %650 = sst [smem:[#allocation14]] [#allocation85]
          $region164: #{tpu_custom_call.1} parent=15 // pred_fallthru
            _
          %652 = shalt.err (0)
          %s654 = sshll.u32 %s645, 4
          %s655 = int_to_ptr.vmem [resolvable:$true] %s654
          %657 = dma.hbm_to_vmem [thread:$0]  %s644, 16, %s655, %s646
          %s658 = smul.addr %s638, 16
          %s659 = scalar_lea.hbm %s3, %s658
          %s660 = scalar_lea.vmem [#allocation2], 14
          %s661 = scalar_lea.sflag [#allocation3], 14
          // Predicated region
          $region165: #{tpu_custom_call.1} parent=15 // pred_check
            _
          $region166: #{tpu_custom_call.1} parent=15 // pred_check_branch
            %663 = sbr.rel target = $region168
          $region167: #{tpu_custom_call.1} parent=15 // pred_region
            %664 = sst [smem:[#allocation13]] [#allocation88]
            %665 = sst [smem:[#allocation14]] [#allocation87]
          $region168: #{tpu_custom_call.1} parent=15 // pred_fallthru
            _
          %667 = shalt.err (0)
          %s669 = sshll.u32 %s660, 4
          %s670 = int_to_ptr.vmem [resolvable:$true] %s669
          %672 = dma.hbm_to_vmem [thread:$0]  %s659, 16, %s670, %s661
          %s673 = smul.addr %s639, 16
          %s674 = scalar_lea.hbm %s2, %s673
          %s675 = scalar_lea.vmem [#allocation2], 22
          %s676 = scalar_lea.sflag [#allocation3], 22
          // Predicated region
          $region169: #{tpu_custom_call.1} parent=15 // pred_check
            _
          $region170: #{tpu_custom_call.1} parent=15 // pred_check_branch
            %678 = sbr.rel target = $region172
          $region171: #{tpu_custom_call.1} parent=15 // pred_region
            %679 = sst [smem:[#allocation13]] [#allocation90]
            %680 = sst [smem:[#allocation14]] [#allocation89]
          $region172: #{tpu_custom_call.1} parent=15 // pred_fallthru
            _
          %682 = shalt.err (0)
          %s684 = sshll.u32 %s675, 4
          %s685 = int_to_ptr.vmem [resolvable:$true] %s684
          %687 = dma.hbm_to_vmem [thread:$0]  %s674, 16, %s685, %s676
          %s688 = smul.addr %s640, 16
          %s689 = scalar_lea.hbm %s2, %s688
          %s690 = scalar_lea.vmem [#allocation2], 30
          %s691 = scalar_lea.sflag [#allocation3], 30
          // Predicated region
          $region173: #{tpu_custom_call.1} parent=15 // pred_check
            _
          $region174: #{tpu_custom_call.1} parent=15 // pred_check_branch
            %693 = sbr.rel target = $region176
          $region175: #{tpu_custom_call.1} parent=15 // pred_region
            %694 = sst [smem:[#allocation13]] [#allocation92]
            %695 = sst [smem:[#allocation14]] [#allocation91]
          $region176: #{tpu_custom_call.1} parent=15 // pred_fallthru
            _
          %697 = shalt.err (0)
          %s699 = sshll.u32 %s690, 4
          %s700 = int_to_ptr.vmem [resolvable:$true] %s699
          %702 = dma.hbm_to_vmem [thread:$0]  %s689, 16, %s700, %s691
          %s703 = smul.addr %s641, 16
          %s704 = scalar_lea.hbm %s3, %s703
          %s705 = scalar_lea.vmem [#allocation2], 38
          %s706 = scalar_lea.sflag [#allocation3], 38
          // Predicated region
          $region177: #{tpu_custom_call.1} parent=15 // pred_check
            _
          $region178: #{tpu_custom_call.1} parent=15 // pred_check_branch
            %708 = sbr.rel target = $region180
          $region179: #{tpu_custom_call.1} parent=15 // pred_region
            %709 = sst [smem:[#allocation13]] [#allocation94]
            %710 = sst [smem:[#allocation14]] [#allocation93]
          $region180: #{tpu_custom_call.1} parent=15 // pred_fallthru
            _
          %712 = shalt.err (0)
          %s714 = sshll.u32 %s705, 4
          %s715 = int_to_ptr.vmem [resolvable:$true] %s714
          %717 = dma.hbm_to_vmem [thread:$0]  %s704, 16, %s715, %s706
          %s718 = smul.addr %s642, 16
          %s719 = scalar_lea.hbm %s2, %s718
          %s720 = scalar_lea.vmem [#allocation2], 46
          %s721 = scalar_lea.sflag [#allocation3], 46
          // Predicated region
          $region181: #{tpu_custom_call.1} parent=15 // pred_check
            _
          $region182: #{tpu_custom_call.1} parent=15 // pred_check_branch
            %723 = sbr.rel target = $region184
          $region183: #{tpu_custom_call.1} parent=15 // pred_region
            %724 = sst [smem:[#allocation13]] [#allocation96]
            %725 = sst [smem:[#allocation14]] [#allocation95]
          $region184: #{tpu_custom_call.1} parent=15 // pred_fallthru
            _
          %727 = shalt.err (0)
          %s729 = sshll.u32 %s720, 4
          %s730 = int_to_ptr.vmem [resolvable:$true] %s729
          %732 = dma.hbm_to_vmem [thread:$0]  %s719, 16, %s730, %s721
          %s733 = sld [smem:[#allocation7 + $0x7]]
          %s734 = sld [smem:[#allocation7 + $0x87]]
          %s735 = sld [smem:[#allocation7 + $0x107]]
          %s736 = sld [smem:[#allocation8 + $0x7]]
          %s737 = sld [smem:[#allocation8 + $0x87]]
          %s738 = sld [smem:[#allocation8 + $0x107]]
          %s739 = smul.addr %s733, 16
          %s740 = scalar_lea.hbm %s2, %s739
          %s741 = scalar_lea.vmem [#allocation2], 7
          %s742 = scalar_lea.sflag [#allocation3], 7
          // Predicated region
          $region185: #{tpu_custom_call.1} parent=15 // pred_check
            _
          $region186: #{tpu_custom_call.1} parent=15 // pred_check_branch
            %744 = sbr.rel target = $region188
          $region187: #{tpu_custom_call.1} parent=15 // pred_region
            %745 = sst [smem:[#allocation13]] [#allocation98]
            %746 = sst [smem:[#allocation14]] [#allocation97]
          $region188: #{tpu_custom_call.1} parent=15 // pred_fallthru
            _
          %748 = shalt.err (0)
          %s750 = sshll.u32 %s741, 4
          %s751 = int_to_ptr.vmem [resolvable:$true] %s750
          %753 = dma.hbm_to_vmem [thread:$0]  %s740, 16, %s751, %s742
          %s754 = smul.addr %s734, 16
          %s755 = scalar_lea.hbm %s3, %s754
          %s756 = scalar_lea.vmem [#allocation2], 15
          %s757 = scalar_lea.sflag [#allocation3], 15
          // Predicated region
          $region189: #{tpu_custom_call.1} parent=15 // pred_check
            _
          $region190: #{tpu_custom_call.1} parent=15 // pred_check_branch
            %759 = sbr.rel target = $region192
          $region191: #{tpu_custom_call.1} parent=15 // pred_region
            %760 = sst [smem:[#allocation13]] [#allocation100]
            %761 = sst [smem:[#allocation14]] [#allocation99]
          $region192: #{tpu_custom_call.1} parent=15 // pred_fallthru
            _
          %763 = shalt.err (0)
          %s765 = sshll.u32 %s756, 4
          %s766 = int_to_ptr.vmem [resolvable:$true] %s765
          %768 = dma.hbm_to_vmem [thread:$0]  %s755, 16, %s766, %s757
          %s769 = smul.addr %s735, 16
          %s770 = scalar_lea.hbm %s2, %s769
          %s771 = scalar_lea.vmem [#allocation2], 23
          %s772 = scalar_lea.sflag [#allocation3], 23
          // Predicated region
          $region193: #{tpu_custom_call.1} parent=15 // pred_check
            _
          $region194: #{tpu_custom_call.1} parent=15 // pred_check_branch
            %774 = sbr.rel target = $region196
          $region195: #{tpu_custom_call.1} parent=15 // pred_region
            %775 = sst [smem:[#allocation13]] [#allocation102]
            %776 = sst [smem:[#allocation14]] [#allocation101]
          $region196: #{tpu_custom_call.1} parent=15 // pred_fallthru
            _
          %778 = shalt.err (0)
          %s780 = sshll.u32 %s771, 4
          %s781 = int_to_ptr.vmem [resolvable:$true] %s780
          %783 = dma.hbm_to_vmem [thread:$0]  %s770, 16, %s781, %s772
          %s784 = smul.addr %s736, 16
          %s785 = scalar_lea.hbm %s2, %s784
          %s786 = scalar_lea.vmem [#allocation2], 31
          %s787 = scalar_lea.sflag [#allocation3], 31
          // Predicated region
          $region197: #{tpu_custom_call.1} parent=15 // pred_check
            _
          $region198: #{tpu_custom_call.1} parent=15 // pred_check_branch
            %789 = sbr.rel target = $region200
          $region199: #{tpu_custom_call.1} parent=15 // pred_region
            %790 = sst [smem:[#allocation13]] [#allocation104]
            %791 = sst [smem:[#allocation14]] [#allocation103]
          $region200: #{tpu_custom_call.1} parent=15 // pred_fallthru
            _
          %793 = shalt.err (0)
          %s795 = sshll.u32 %s786, 4
          %s796 = int_to_ptr.vmem [resolvable:$true] %s795
          %798 = dma.hbm_to_vmem [thread:$0]  %s785, 16, %s796, %s787
          %s799 = smul.addr %s737, 16
          %s800 = scalar_lea.hbm %s3, %s799
          %s801 = scalar_lea.vmem [#allocation2], 39
          %s802 = scalar_lea.sflag [#allocation3], 39
          // Predicated region
          $region201: #{tpu_custom_call.1} parent=15 // pred_check
            _
          $region202: #{tpu_custom_call.1} parent=15 // pred_check_branch
            %804 = sbr.rel target = $region204
          $region203: #{tpu_custom_call.1} parent=15 // pred_region
            %805 = sst [smem:[#allocation13]] [#allocation106]
            %806 = sst [smem:[#allocation14]] [#allocation105]
          $region204: #{tpu_custom_call.1} parent=15 // pred_fallthru
            _
          %808 = shalt.err (0)
          %s810 = sshll.u32 %s801, 4
          %s811 = int_to_ptr.vmem [resolvable:$true] %s810
          %813 = dma.hbm_to_vmem [thread:$0]  %s800, 16, %s811, %s802
          %s814 = smul.addr %s738, 16
          %s815 = scalar_lea.hbm %s2, %s814
          %s816 = scalar_lea.vmem [#allocation2], 47
          %s817 = scalar_lea.sflag [#allocation3], 47
          // Predicated region
          $region205: #{tpu_custom_call.1} parent=15 // pred_check
            _
          $region206: #{tpu_custom_call.1} parent=15 // pred_check_branch
            %819 = sbr.rel target = $region208
          $region207: #{tpu_custom_call.1} parent=15 // pred_region
            %820 = sst [smem:[#allocation13]] [#allocation108]
            %821 = sst [smem:[#allocation14]] [#allocation107]
          $region208: #{tpu_custom_call.1} parent=15 // pred_fallthru
            _
          %823 = shalt.err (0)
          %s825 = sshll.u32 %s816, 4
          %s826 = int_to_ptr.vmem [resolvable:$true] %s825
          %828 = dma.hbm_to_vmem [thread:$0]  %s815, 16, %s826, %s817
        $region16: #{tpu_custom_call.1} parent=11 // pred_fallthru
          _
        %s829 = sadd.s32 %s17, 1
        %p830 = scmp.lt.s32.totalorder %s829, 2
        // Predicated region
        $region209: #{tpu_custom_call.1} parent=11 // pred_check
          %p831 = pneg %p830
        $region210: #{tpu_custom_call.1} parent=11 // pred_check_branch
          %833 = sbr.rel (%p831) target = $region212
        $region211: #{tpu_custom_call.1} parent=11 // pred_region
          %s834 = ssub.s32 1, %s55
          %s835 = smul.u32 %s829, 8
          %s836 = smul.u32 %s834, 48
          %s837 = sld [smem:[#allocation7 + %s835]]
          %s838 = sshra.s32 %s835, 7
          %s839 = sand.u32 %s835, 127
          %s840 = sadd.s32 %s838, 1
          %s841 = smul.u32 %s840, 128
          %s842 = sshra.s32 %s835, 7
          %s843 = sand.u32 %s835, 127
          %s844 = sadd.s32 %s841, %s843
          %s845 = sld [smem:[#allocation7 + %s844]]
          %s846 = sadd.s32 %s838, 2
          %s847 = smul.u32 %s846, 128
          %s848 = sadd.s32 %s847, %s843
          %s849 = sld [smem:[#allocation7 + %s848]]
          %s850 = sld [smem:[#allocation8 + %s835]]
          %s851 = sld [smem:[#allocation8 + %s844]]
          %s852 = sld [smem:[#allocation8 + %s848]]
          %s853 = smul.addr %s837, 16
          %s854 = scalar_lea.hbm %s2, %s853
          %s855 = scalar_lea.vmem [#allocation2], %s836
          %s856 = scalar_lea.sflag [#allocation3], %s836
          // Predicated region
          $region213: #{tpu_custom_call.1} parent=211 // pred_check
            _
          $region214: #{tpu_custom_call.1} parent=211 // pred_check_branch
            %858 = sbr.rel target = $region216
          $region215: #{tpu_custom_call.1} parent=211 // pred_region
            %859 = sst [smem:[#allocation13]] [#allocation110]
            %860 = sst [smem:[#allocation14]] [#allocation109]
          $region216: #{tpu_custom_call.1} parent=211 // pred_fallthru
            _
          %862 = shalt.err (0)
          %s864 = sshll.u32 %s855, 4
          %s865 = int_to_ptr.vmem [resolvable:$true] %s864
          %867 = dma.hbm_to_vmem [thread:$0]  %s854, 16, %s865, %s856
          %s868 = sadd.s32 %s836, 8
          %s869 = smul.addr %s845, 16
          %s870 = scalar_lea.hbm %s3, %s869
          %s871 = scalar_lea.vmem [#allocation2], %s868
          %s872 = scalar_lea.sflag [#allocation3], %s868
          // Predicated region
          $region217: #{tpu_custom_call.1} parent=211 // pred_check
            _
          $region218: #{tpu_custom_call.1} parent=211 // pred_check_branch
            %874 = sbr.rel target = $region220
          $region219: #{tpu_custom_call.1} parent=211 // pred_region
            %875 = sst [smem:[#allocation13]] [#allocation112]
            %876 = sst [smem:[#allocation14]] [#allocation111]
          $region220: #{tpu_custom_call.1} parent=211 // pred_fallthru
            _
          %878 = shalt.err (0)
          %s880 = sshll.u32 %s871, 4
          %s881 = int_to_ptr.vmem [resolvable:$true] %s880
          %883 = dma.hbm_to_vmem [thread:$0]  %s870, 16, %s881, %s872
          %s884 = sadd.s32 %s836, 16
          %s885 = smul.addr %s849, 16
          %s886 = scalar_lea.hbm %s2, %s885
          %s887 = scalar_lea.vmem [#allocation2], %s884
          %s888 = scalar_lea.sflag [#allocation3], %s884
          // Predicated region
          $region221: #{tpu_custom_call.1} parent=211 // pred_check
            _
          $region222: #{tpu_custom_call.1} parent=211 // pred_check_branch
            %890 = sbr.rel target = $region224
          $region223: #{tpu_custom_call.1} parent=211 // pred_region
            %891 = sst [smem:[#allocation13]] [#allocation114]
            %892 = sst [smem:[#allocation14]] [#allocation113]
          $region224: #{tpu_custom_call.1} parent=211 // pred_fallthru
            _
          %894 = shalt.err (0)
          %s896 = sshll.u32 %s887, 4
          %s897 = int_to_ptr.vmem [resolvable:$true] %s896
          %899 = dma.hbm_to_vmem [thread:$0]  %s886, 16, %s897, %s888
          %s900 = sadd.s32 %s836, 24
          %s901 = smul.addr %s850, 16
          %s902 = scalar_lea.hbm %s2, %s901
          %s903 = scalar_lea.vmem [#allocation2], %s900
          %s904 = scalar_lea.sflag [#allocation3], %s900
          // Predicated region
          $region225: #{tpu_custom_call.1} parent=211 // pred_check
            _
          $region226: #{tpu_custom_call.1} parent=211 // pred_check_branch
            %906 = sbr.rel target = $region228
          $region227: #{tpu_custom_call.1} parent=211 // pred_region
            %907 = sst [smem:[#allocation13]] [#allocation116]
            %908 = sst [smem:[#allocation14]] [#allocation115]
          $region228: #{tpu_custom_call.1} parent=211 // pred_fallthru
            _
          %910 = shalt.err (0)
          %s912 = sshll.u32 %s903, 4
          %s913 = int_to_ptr.vmem [resolvable:$true] %s912
          %915 = dma.hbm_to_vmem [thread:$0]  %s902, 16, %s913, %s904
          %s916 = sadd.s32 %s836, 32
          %s917 = smul.addr %s851, 16
          %s918 = scalar_lea.hbm %s3, %s917
          %s919 = scalar_lea.vmem [#allocation2], %s916
          %s920 = scalar_lea.sflag [#allocation3], %s916
          // Predicated region
          $region229: #{tpu_custom_call.1} parent=211 // pred_check
            _
          $region230: #{tpu_custom_call.1} parent=211 // pred_check_branch
            %922 = sbr.rel target = $region232
          $region231: #{tpu_custom_call.1} parent=211 // pred_region
            %923 = sst [smem:[#allocation13]] [#allocation118]
            %924 = sst [smem:[#allocation14]] [#allocation117]
          $region232: #{tpu_custom_call.1} parent=211 // pred_fallthru
            _
          %926 = shalt.err (0)
          %s928 = sshll.u32 %s919, 4
          %s929 = int_to_ptr.vmem [resolvable:$true] %s928
          %931 = dma.hbm_to_vmem [thread:$0]  %s918, 16, %s929, %s920
          %s932 = sadd.s32 %s836, 40
          %s933 = smul.addr %s852, 16
          %s934 = scalar_lea.hbm %s2, %s933
          %s935 = scalar_lea.vmem [#allocation2], %s932
          %s936 = scalar_lea.sflag [#allocation3], %s932
          // Predicated region
          $region233: #{tpu_custom_call.1} parent=211 // pred_check
            _
          $region234: #{tpu_custom_call.1} parent=211 // pred_check_branch
            %938 = sbr.rel target = $region236
          $region235: #{tpu_custom_call.1} parent=211 // pred_region
            %939 = sst [smem:[#allocation13]] [#allocation120]
            %940 = sst [smem:[#allocation14]] [#allocation119]
          $region236: #{tpu_custom_call.1} parent=211 // pred_fallthru
            _
          %942 = shalt.err (0)
          %s944 = sshll.u32 %s935, 4
          %s945 = int_to_ptr.vmem [resolvable:$true] %s944
          %947 = dma.hbm_to_vmem [thread:$0]  %s934, 16, %s945, %s936
          %s948 = sadd.s32 %s835, 1
          %s949 = sld [smem:[#allocation7 + %s948]]
          %s950 = sshra.s32 %s948, 7
          %s951 = sand.u32 %s948, 127
          %s952 = sadd.s32 %s950, 1
          %s953 = smul.u32 %s952, 128
          %s954 = sshra.s32 %s948, 7
          %s955 = sand.u32 %s948, 127
          %s956 = sadd.s32 %s953, %s955
          %s957 = sld [smem:[#allocation7 + %s956]]
          %s958 = sadd.s32 %s950, 2
          %s959 = smul.u32 %s958, 128
          %s960 = sadd.s32 %s959, %s955
          %s961 = sld [smem:[#allocation7 + %s960]]
          %s962 = sld [smem:[#allocation8 + %s948]]
          %s963 = sld [smem:[#allocation8 + %s956]]
          %s964 = sld [smem:[#allocation8 + %s960]]
          %s965 = sadd.s32 %s836, 1
          %s966 = smul.addr %s949, 16
          %s967 = scalar_lea.hbm %s2, %s966
          %s968 = scalar_lea.vmem [#allocation2], %s965
          %s969 = scalar_lea.sflag [#allocation3], %s965
          // Predicated region
          $region237: #{tpu_custom_call.1} parent=211 // pred_check
            _
          $region238: #{tpu_custom_call.1} parent=211 // pred_check_branch
            %971 = sbr.rel target = $region240
          $region239: #{tpu_custom_call.1} parent=211 // pred_region
            %972 = sst [smem:[#allocation13]] [#allocation122]
            %973 = sst [smem:[#allocation14]] [#allocation121]
          $region240: #{tpu_custom_call.1} parent=211 // pred_fallthru
            _
          %975 = shalt.err (0)
          %s977 = sshll.u32 %s968, 4
          %s978 = int_to_ptr.vmem [resolvable:$true] %s977
          %980 = dma.hbm_to_vmem [thread:$0]  %s967, 16, %s978, %s969
          %s981 = sadd.s32 %s836, 9
          %s982 = smul.addr %s957, 16
          %s983 = scalar_lea.hbm %s3, %s982
          %s984 = scalar_lea.vmem [#allocation2], %s981
          %s985 = scalar_lea.sflag [#allocation3], %s981
          // Predicated region
          $region241: #{tpu_custom_call.1} parent=211 // pred_check
            _
          $region242: #{tpu_custom_call.1} parent=211 // pred_check_branch
            %987 = sbr.rel target = $region244
          $region243: #{tpu_custom_call.1} parent=211 // pred_region
            %988 = sst [smem:[#allocation13]] [#allocation124]
            %989 = sst [smem:[#allocation14]] [#allocation123]
          $region244: #{tpu_custom_call.1} parent=211 // pred_fallthru
            _
          %991 = shalt.err (0)
          %s993 = sshll.u32 %s984, 4
          %s994 = int_to_ptr.vmem [resolvable:$true] %s993
          %996 = dma.hbm_to_vmem [thread:$0]  %s983, 16, %s994, %s985
          %s997 = sadd.s32 %s836, 17
          %s998 = smul.addr %s961, 16
          %s999 = scalar_lea.hbm %s2, %s998
          %s1000 = scalar_lea.vmem [#allocation2], %s997
          %s1001 = scalar_lea.sflag [#allocation3], %s997
          // Predicated region
          $region245: #{tpu_custom_call.1} parent=211 // pred_check
            _
          $region246: #{tpu_custom_call.1} parent=211 // pred_check_branch
            %1003 = sbr.rel target = $region248
          $region247: #{tpu_custom_call.1} parent=211 // pred_region
            %1004 = sst [smem:[#allocation13]] [#allocation126]
            %1005 = sst [smem:[#allocation14]] [#allocation125]
          $region248: #{tpu_custom_call.1} parent=211 // pred_fallthru
            _
          %1007 = shalt.err (0)
          %s1009 = sshll.u32 %s1000, 4
          %s1010 = int_to_ptr.vmem [resolvable:$true] %s1009
          %1012 = dma.hbm_to_vmem [thread:$0]  %s999, 16, %s1010, %s1001
          %s1013 = sadd.s32 %s836, 25
          %s1014 = smul.addr %s962, 16
          %s1015 = scalar_lea.hbm %s2, %s1014
          %s1016 = scalar_lea.vmem [#allocation2], %s1013
          %s1017 = scalar_lea.sflag [#allocation3], %s1013
          // Predicated region
          $region249: #{tpu_custom_call.1} parent=211 // pred_check
            _
          $region250: #{tpu_custom_call.1} parent=211 // pred_check_branch
            %1019 = sbr.rel target = $region252
          $region251: #{tpu_custom_call.1} parent=211 // pred_region
            %1020 = sst [smem:[#allocation13]] [#allocation128]
            %1021 = sst [smem:[#allocation14]] [#allocation127]
          $region252: #{tpu_custom_call.1} parent=211 // pred_fallthru
            _
          %1023 = shalt.err (0)
          %s1025 = sshll.u32 %s1016, 4
          %s1026 = int_to_ptr.vmem [resolvable:$true] %s1025
          %1028 = dma.hbm_to_vmem [thread:$0]  %s1015, 16, %s1026, %s1017
          %s1029 = sadd.s32 %s836, 33
          %s1030 = smul.addr %s963, 16
          %s1031 = scalar_lea.hbm %s3, %s1030
          %s1032 = scalar_lea.vmem [#allocation2], %s1029
          %s1033 = scalar_lea.sflag [#allocation3], %s1029
          // Predicated region
          $region253: #{tpu_custom_call.1} parent=211 // pred_check
            _
          $region254: #{tpu_custom_call.1} parent=211 // pred_check_branch
            %1035 = sbr.rel target = $region256
          $region255: #{tpu_custom_call.1} parent=211 // pred_region
            %1036 = sst [smem:[#allocation13]] [#allocation130]
            %1037 = sst [smem:[#allocation14]] [#allocation129]
          $region256: #{tpu_custom_call.1} parent=211 // pred_fallthru
            _
          %1039 = shalt.err (0)
          %s1041 = sshll.u32 %s1032, 4
          %s1042 = int_to_ptr.vmem [resolvable:$true] %s1041
          %1044 = dma.hbm_to_vmem [thread:$0]  %s1031, 16, %s1042, %s1033
          %s1045 = sadd.s32 %s836, 41
          %s1046 = smul.addr %s964, 16
          %s1047 = scalar_lea.hbm %s2, %s1046
          %s1048 = scalar_lea.vmem [#allocation2], %s1045
          %s1049 = scalar_lea.sflag [#allocation3], %s1045
          // Predicated region
          $region257: #{tpu_custom_call.1} parent=211 // pred_check
            _
          $region258: #{tpu_custom_call.1} parent=211 // pred_check_branch
            %1051 = sbr.rel target = $region260
          $region259: #{tpu_custom_call.1} parent=211 // pred_region
            %1052 = sst [smem:[#allocation13]] [#allocation132]
            %1053 = sst [smem:[#allocation14]] [#allocation131]
          $region260: #{tpu_custom_call.1} parent=211 // pred_fallthru
            _
          %1055 = shalt.err (0)
          %s1057 = sshll.u32 %s1048, 4
          %s1058 = int_to_ptr.vmem [resolvable:$true] %s1057
          %1060 = dma.hbm_to_vmem [thread:$0]  %s1047, 16, %s1058, %s1049
          %s1061 = sadd.s32 %s835, 2
          %s1062 = sld [smem:[#allocation7 + %s1061]]
          %s1063 = sshra.s32 %s1061, 7
          %s1064 = sand.u32 %s1061, 127
          %s1065 = sadd.s32 %s1063, 1
          %s1066 = smul.u32 %s1065, 128
          %s1067 = sshra.s32 %s1061, 7
          %s1068 = sand.u32 %s1061, 127
          %s1069 = sadd.s32 %s1066, %s1068
          %s1070 = sld [smem:[#allocation7 + %s1069]]
          %s1071 = sadd.s32 %s1063, 2
          %s1072 = smul.u32 %s1071, 128
          %s1073 = sadd.s32 %s1072, %s1068
          %s1074 = sld [smem:[#allocation7 + %s1073]]
          %s1075 = sld [smem:[#allocation8 + %s1061]]
          %s1076 = sld [smem:[#allocation8 + %s1069]]
          %s1077 = sld [smem:[#allocation8 + %s1073]]
          %s1078 = sadd.s32 %s836, 2
          %s1079 = smul.addr %s1062, 16
          %s1080 = scalar_lea.hbm %s2, %s1079
          %s1081 = scalar_lea.vmem [#allocation2], %s1078
          %s1082 = scalar_lea.sflag [#allocation3], %s1078
          // Predicated region
          $region261: #{tpu_custom_call.1} parent=211 // pred_check
            _
          $region262: #{tpu_custom_call.1} parent=211 // pred_check_branch
            %1084 = sbr.rel target = $region264
          $region263: #{tpu_custom_call.1} parent=211 // pred_region
            %1085 = sst [smem:[#allocation13]] [#allocation134]
            %1086 = sst [smem:[#allocation14]] [#allocation133]
          $region264: #{tpu_custom_call.1} parent=211 // pred_fallthru
            _
          %1088 = shalt.err (0)
          %s1090 = sshll.u32 %s1081, 4
          %s1091 = int_to_ptr.vmem [resolvable:$true] %s1090
          %1093 = dma.hbm_to_vmem [thread:$0]  %s1080, 16, %s1091, %s1082
          %s1094 = sadd.s32 %s836, 10
          %s1095 = smul.addr %s1070, 16
          %s1096 = scalar_lea.hbm %s3, %s1095
          %s1097 = scalar_lea.vmem [#allocation2], %s1094
          %s1098 = scalar_lea.sflag [#allocation3], %s1094
          // Predicated region
          $region265: #{tpu_custom_call.1} parent=211 // pred_check
            _
          $region266: #{tpu_custom_call.1} parent=211 // pred_check_branch
            %1100 = sbr.rel target = $region268
          $region267: #{tpu_custom_call.1} parent=211 // pred_region
            %1101 = sst [smem:[#allocation13]] [#allocation136]
            %1102 = sst [smem:[#allocation14]] [#allocation135]
          $region268: #{tpu_custom_call.1} parent=211 // pred_fallthru
            _
          %1104 = shalt.err (0)
          %s1106 = sshll.u32 %s1097, 4
          %s1107 = int_to_ptr.vmem [resolvable:$true] %s1106
          %1109 = dma.hbm_to_vmem [thread:$0]  %s1096, 16, %s1107, %s1098
          %s1110 = sadd.s32 %s836, 18
          %s1111 = smul.addr %s1074, 16
          %s1112 = scalar_lea.hbm %s2, %s1111
          %s1113 = scalar_lea.vmem [#allocation2], %s1110
          %s1114 = scalar_lea.sflag [#allocation3], %s1110
          // Predicated region
          $region269: #{tpu_custom_call.1} parent=211 // pred_check
            _
          $region270: #{tpu_custom_call.1} parent=211 // pred_check_branch
            %1116 = sbr.rel target = $region272
          $region271: #{tpu_custom_call.1} parent=211 // pred_region
            %1117 = sst [smem:[#allocation13]] [#allocation138]
            %1118 = sst [smem:[#allocation14]] [#allocation137]
          $region272: #{tpu_custom_call.1} parent=211 // pred_fallthru
            _
          %1120 = shalt.err (0)
          %s1122 = sshll.u32 %s1113, 4
          %s1123 = int_to_ptr.vmem [resolvable:$true] %s1122
          %1125 = dma.hbm_to_vmem [thread:$0]  %s1112, 16, %s1123, %s1114
          %s1126 = sadd.s32 %s836, 26
          %s1127 = smul.addr %s1075, 16
          %s1128 = scalar_lea.hbm %s2, %s1127
          %s1129 = scalar_lea.vmem [#allocation2], %s1126
          %s1130 = scalar_lea.sflag [#allocation3], %s1126
          // Predicated region
          $region273: #{tpu_custom_call.1} parent=211 // pred_check
            _
          $region274: #{tpu_custom_call.1} parent=211 // pred_check_branch
            %1132 = sbr.rel target = $region276
          $region275: #{tpu_custom_call.1} parent=211 // pred_region
            %1133 = sst [smem:[#allocation13]] [#allocation140]
            %1134 = sst [smem:[#allocation14]] [#allocation139]
          $region276: #{tpu_custom_call.1} parent=211 // pred_fallthru
            _
          %1136 = shalt.err (0)
          %s1138 = sshll.u32 %s1129, 4
          %s1139 = int_to_ptr.vmem [resolvable:$true] %s1138
          %1141 = dma.hbm_to_vmem [thread:$0]  %s1128, 16, %s1139, %s1130
          %s1142 = sadd.s32 %s836, 34
          %s1143 = smul.addr %s1076, 16
          %s1144 = scalar_lea.hbm %s3, %s1143
          %s1145 = scalar_lea.vmem [#allocation2], %s1142
          %s1146 = scalar_lea.sflag [#allocation3], %s1142
          // Predicated region
          $region277: #{tpu_custom_call.1} parent=211 // pred_check
            _
          $region278: #{tpu_custom_call.1} parent=211 // pred_check_branch
            %1148 = sbr.rel target = $region280
          $region279: #{tpu_custom_call.1} parent=211 // pred_region
            %1149 = sst [smem:[#allocation13]] [#allocation142]
            %1150 = sst [smem:[#allocation14]] [#allocation141]
          $region280: #{tpu_custom_call.1} parent=211 // pred_fallthru
            _
          %1152 = shalt.err (0)
          %s1154 = sshll.u32 %s1145, 4
          %s1155 = int_to_ptr.vmem [resolvable:$true] %s1154
          %1157 = dma.hbm_to_vmem [thread:$0]  %s1144, 16, %s1155, %s1146
          %s1158 = sadd.s32 %s836, 42
          %s1159 = smul.addr %s1077, 16
          %s1160 = scalar_lea.hbm %s2, %s1159
          %s1161 = scalar_lea.vmem [#allocation2], %s1158
          %s1162 = scalar_lea.sflag [#allocation3], %s1158
          // Predicated region
          $region281: #{tpu_custom_call.1} parent=211 // pred_check
            _
          $region282: #{tpu_custom_call.1} parent=211 // pred_check_branch
            %1164 = sbr.rel target = $region284
          $region283: #{tpu_custom_call.1} parent=211 // pred_region
            %1165 = sst [smem:[#allocation13]] [#allocation144]
            %1166 = sst [smem:[#allocation14]] [#allocation143]
          $region284: #{tpu_custom_call.1} parent=211 // pred_fallthru
            _
          %1168 = shalt.err (0)
          %s1170 = sshll.u32 %s1161, 4
          %s1171 = int_to_ptr.vmem [resolvable:$true] %s1170
          %1173 = dma.hbm_to_vmem [thread:$0]  %s1160, 16, %s1171, %s1162
          %s1174 = sadd.s32 %s835, 3
          %s1175 = sld [smem:[#allocation7 + %s1174]]
          %s1176 = sshra.s32 %s1174, 7
          %s1177 = sand.u32 %s1174, 127
          %s1178 = sadd.s32 %s1176, 1
          %s1179 = smul.u32 %s1178, 128
          %s1180 = sshra.s32 %s1174, 7
          %s1181 = sand.u32 %s1174, 127
          %s1182 = sadd.s32 %s1179, %s1181
          %s1183 = sld [smem:[#allocation7 + %s1182]]
          %s1184 = sadd.s32 %s1176, 2
          %s1185 = smul.u32 %s1184, 128
          %s1186 = sadd.s32 %s1185, %s1181
          %s1187 = sld [smem:[#allocation7 + %s1186]]
          %s1188 = sld [smem:[#allocation8 + %s1174]]
          %s1189 = sld [smem:[#allocation8 + %s1182]]
          %s1190 = sld [smem:[#allocation8 + %s1186]]
          %s1191 = sadd.s32 %s836, 3
          %s1192 = smul.addr %s1175, 16
          %s1193 = scalar_lea.hbm %s2, %s1192
          %s1194 = scalar_lea.vmem [#allocation2], %s1191
          %s1195 = scalar_lea.sflag [#allocation3], %s1191
          // Predicated region
          $region285: #{tpu_custom_call.1} parent=211 // pred_check
            _
          $region286: #{tpu_custom_call.1} parent=211 // pred_check_branch
            %1197 = sbr.rel target = $region288
          $region287: #{tpu_custom_call.1} parent=211 // pred_region
            %1198 = sst [smem:[#allocation13]] [#allocation146]
            %1199 = sst [smem:[#allocation14]] [#allocation145]
          $region288: #{tpu_custom_call.1} parent=211 // pred_fallthru
            _
          %1201 = shalt.err (0)
          %s1203 = sshll.u32 %s1194, 4
          %s1204 = int_to_ptr.vmem [resolvable:$true] %s1203
          %1206 = dma.hbm_to_vmem [thread:$0]  %s1193, 16, %s1204, %s1195
          %s1207 = sadd.s32 %s836, 11
          %s1208 = smul.addr %s1183, 16
          %s1209 = scalar_lea.hbm %s3, %s1208
          %s1210 = scalar_lea.vmem [#allocation2], %s1207
          %s1211 = scalar_lea.sflag [#allocation3], %s1207
          // Predicated region
          $region289: #{tpu_custom_call.1} parent=211 // pred_check
            _
          $region290: #{tpu_custom_call.1} parent=211 // pred_check_branch
            %1213 = sbr.rel target = $region292
          $region291: #{tpu_custom_call.1} parent=211 // pred_region
            %1214 = sst [smem:[#allocation13]] [#allocation148]
            %1215 = sst [smem:[#allocation14]] [#allocation147]
          $region292: #{tpu_custom_call.1} parent=211 // pred_fallthru
            _
          %1217 = shalt.err (0)
          %s1219 = sshll.u32 %s1210, 4
          %s1220 = int_to_ptr.vmem [resolvable:$true] %s1219
          %1222 = dma.hbm_to_vmem [thread:$0]  %s1209, 16, %s1220, %s1211
          %s1223 = sadd.s32 %s836, 19
          %s1224 = smul.addr %s1187, 16
          %s1225 = scalar_lea.hbm %s2, %s1224
          %s1226 = scalar_lea.vmem [#allocation2], %s1223
          %s1227 = scalar_lea.sflag [#allocation3], %s1223
          // Predicated region
          $region293: #{tpu_custom_call.1} parent=211 // pred_check
            _
          $region294: #{tpu_custom_call.1} parent=211 // pred_check_branch
            %1229 = sbr.rel target = $region296
          $region295: #{tpu_custom_call.1} parent=211 // pred_region
            %1230 = sst [smem:[#allocation13]] [#allocation150]
            %1231 = sst [smem:[#allocation14]] [#allocation149]
          $region296: #{tpu_custom_call.1} parent=211 // pred_fallthru
            _
          %1233 = shalt.err (0)
          %s1235 = sshll.u32 %s1226, 4
          %s1236 = int_to_ptr.vmem [resolvable:$true] %s1235
          %1238 = dma.hbm_to_vmem [thread:$0]  %s1225, 16, %s1236, %s1227
          %s1239 = sadd.s32 %s836, 27
          %s1240 = smul.addr %s1188, 16
          %s1241 = scalar_lea.hbm %s2, %s1240
          %s1242 = scalar_lea.vmem [#allocation2], %s1239
          %s1243 = scalar_lea.sflag [#allocation3], %s1239
          // Predicated region
          $region297: #{tpu_custom_call.1} parent=211 // pred_check
            _
          $region298: #{tpu_custom_call.1} parent=211 // pred_check_branch
            %1245 = sbr.rel target = $region300
          $region299: #{tpu_custom_call.1} parent=211 // pred_region
            %1246 = sst [smem:[#allocation13]] [#allocation152]
            %1247 = sst [smem:[#allocation14]] [#allocation151]
          $region300: #{tpu_custom_call.1} parent=211 // pred_fallthru
            _
          %1249 = shalt.err (0)
          %s1251 = sshll.u32 %s1242, 4
          %s1252 = int_to_ptr.vmem [resolvable:$true] %s1251
          %1254 = dma.hbm_to_vmem [thread:$0]  %s1241, 16, %s1252, %s1243
          %s1255 = sadd.s32 %s836, 35
          %s1256 = smul.addr %s1189, 16
          %s1257 = scalar_lea.hbm %s3, %s1256
          %s1258 = scalar_lea.vmem [#allocation2], %s1255
          %s1259 = scalar_lea.sflag [#allocation3], %s1255
          // Predicated region
          $region301: #{tpu_custom_call.1} parent=211 // pred_check
            _
          $region302: #{tpu_custom_call.1} parent=211 // pred_check_branch
            %1261 = sbr.rel target = $region304
          $region303: #{tpu_custom_call.1} parent=211 // pred_region
            %1262 = sst [smem:[#allocation13]] [#allocation154]
            %1263 = sst [smem:[#allocation14]] [#allocation153]
          $region304: #{tpu_custom_call.1} parent=211 // pred_fallthru
            _
          %1265 = shalt.err (0)
          %s1267 = sshll.u32 %s1258, 4
          %s1268 = int_to_ptr.vmem [resolvable:$true] %s1267
          %1270 = dma.hbm_to_vmem [thread:$0]  %s1257, 16, %s1268, %s1259
          %s1271 = sadd.s32 %s836, 43
          %s1272 = smul.addr %s1190, 16
          %s1273 = scalar_lea.hbm %s2, %s1272
          %s1274 = scalar_lea.vmem [#allocation2], %s1271
          %s1275 = scalar_lea.sflag [#allocation3], %s1271
          // Predicated region
          $region305: #{tpu_custom_call.1} parent=211 // pred_check
            _
          $region306: #{tpu_custom_call.1} parent=211 // pred_check_branch
            %1277 = sbr.rel target = $region308
          $region307: #{tpu_custom_call.1} parent=211 // pred_region
            %1278 = sst [smem:[#allocation13]] [#allocation156]
            %1279 = sst [smem:[#allocation14]] [#allocation155]
          $region308: #{tpu_custom_call.1} parent=211 // pred_fallthru
            _
          %1281 = shalt.err (0)
          %s1283 = sshll.u32 %s1274, 4
          %s1284 = int_to_ptr.vmem [resolvable:$true] %s1283
          %1286 = dma.hbm_to_vmem [thread:$0]  %s1273, 16, %s1284, %s1275
          %s1287 = sadd.s32 %s835, 4
          %s1288 = sld [smem:[#allocation7 + %s1287]]
          %s1289 = sshra.s32 %s1287, 7
          %s1290 = sand.u32 %s1287, 127
          %s1291 = sadd.s32 %s1289, 1
          %s1292 = smul.u32 %s1291, 128
          %s1293 = sshra.s32 %s1287, 7
          %s1294 = sand.u32 %s1287, 127
          %s1295 = sadd.s32 %s1292, %s1294
          %s1296 = sld [smem:[#allocation7 + %s1295]]
          %s1297 = sadd.s32 %s1289, 2
          %s1298 = smul.u32 %s1297, 128
          %s1299 = sadd.s32 %s1298, %s1294
          %s1300 = sld [smem:[#allocation7 + %s1299]]
          %s1301 = sld [smem:[#allocation8 + %s1287]]
          %s1302 = sld [smem:[#allocation8 + %s1295]]
          %s1303 = sld [smem:[#allocation8 + %s1299]]
          %s1304 = sadd.s32 %s836, 4
          %s1305 = smul.addr %s1288, 16
          %s1306 = scalar_lea.hbm %s2, %s1305
          %s1307 = scalar_lea.vmem [#allocation2], %s1304
          %s1308 = scalar_lea.sflag [#allocation3], %s1304
          // Predicated region
          $region309: #{tpu_custom_call.1} parent=211 // pred_check
            _
          $region310: #{tpu_custom_call.1} parent=211 // pred_check_branch
            %1310 = sbr.rel target = $region312
          $region311: #{tpu_custom_call.1} parent=211 // pred_region
            %1311 = sst [smem:[#allocation13]] [#allocation158]
            %1312 = sst [smem:[#allocation14]] [#allocation157]
          $region312: #{tpu_custom_call.1} parent=211 // pred_fallthru
            _
          %1314 = shalt.err (0)
          %s1316 = sshll.u32 %s1307, 4
          %s1317 = int_to_ptr.vmem [resolvable:$true] %s1316
          %1319 = dma.hbm_to_vmem [thread:$0]  %s1306, 16, %s1317, %s1308
          %s1320 = sadd.s32 %s836, 12
          %s1321 = smul.addr %s1296, 16
          %s1322 = scalar_lea.hbm %s3, %s1321
          %s1323 = scalar_lea.vmem [#allocation2], %s1320
          %s1324 = scalar_lea.sflag [#allocation3], %s1320
          // Predicated region
          $region313: #{tpu_custom_call.1} parent=211 // pred_check
            _
          $region314: #{tpu_custom_call.1} parent=211 // pred_check_branch
            %1326 = sbr.rel target = $region316
          $region315: #{tpu_custom_call.1} parent=211 // pred_region
            %1327 = sst [smem:[#allocation13]] [#allocation160]
            %1328 = sst [smem:[#allocation14]] [#allocation159]
          $region316: #{tpu_custom_call.1} parent=211 // pred_fallthru
            _
          %1330 = shalt.err (0)
          %s1332 = sshll.u32 %s1323, 4
          %s1333 = int_to_ptr.vmem [resolvable:$true] %s1332
          %1335 = dma.hbm_to_vmem [thread:$0]  %s1322, 16, %s1333, %s1324
          %s1336 = sadd.s32 %s836, 20
          %s1337 = smul.addr %s1300, 16
          %s1338 = scalar_lea.hbm %s2, %s1337
          %s1339 = scalar_lea.vmem [#allocation2], %s1336
          %s1340 = scalar_lea.sflag [#allocation3], %s1336
          // Predicated region
          $region317: #{tpu_custom_call.1} parent=211 // pred_check
            _
          $region318: #{tpu_custom_call.1} parent=211 // pred_check_branch
            %1342 = sbr.rel target = $region320
          $region319: #{tpu_custom_call.1} parent=211 // pred_region
            %1343 = sst [smem:[#allocation13]] [#allocation162]
            %1344 = sst [smem:[#allocation14]] [#allocation161]
          $region320: #{tpu_custom_call.1} parent=211 // pred_fallthru
            _
          %1346 = shalt.err (0)
          %s1348 = sshll.u32 %s1339, 4
          %s1349 = int_to_ptr.vmem [resolvable:$true] %s1348
          %1351 = dma.hbm_to_vmem [thread:$0]  %s1338, 16, %s1349, %s1340
          %s1352 = sadd.s32 %s836, 28
          %s1353 = smul.addr %s1301, 16
          %s1354 = scalar_lea.hbm %s2, %s1353
          %s1355 = scalar_lea.vmem [#allocation2], %s1352
          %s1356 = scalar_lea.sflag [#allocation3], %s1352
          // Predicated region
          $region321: #{tpu_custom_call.1} parent=211 // pred_check
            _
          $region322: #{tpu_custom_call.1} parent=211 // pred_check_branch
            %1358 = sbr.rel target = $region324
          $region323: #{tpu_custom_call.1} parent=211 // pred_region
            %1359 = sst [smem:[#allocation13]] [#allocation164]
            %1360 = sst [smem:[#allocation14]] [#allocation163]
          $region324: #{tpu_custom_call.1} parent=211 // pred_fallthru
            _
          %1362 = shalt.err (0)
          %s1364 = sshll.u32 %s1355, 4
          %s1365 = int_to_ptr.vmem [resolvable:$true] %s1364
          %1367 = dma.hbm_to_vmem [thread:$0]  %s1354, 16, %s1365, %s1356
          %s1368 = sadd.s32 %s836, 36
          %s1369 = smul.addr %s1302, 16
          %s1370 = scalar_lea.hbm %s3, %s1369
          %s1371 = scalar_lea.vmem [#allocation2], %s1368
          %s1372 = scalar_lea.sflag [#allocation3], %s1368
          // Predicated region
          $region325: #{tpu_custom_call.1} parent=211 // pred_check
            _
          $region326: #{tpu_custom_call.1} parent=211 // pred_check_branch
            %1374 = sbr.rel target = $region328
          $region327: #{tpu_custom_call.1} parent=211 // pred_region
            %1375 = sst [smem:[#allocation13]] [#allocation166]
            %1376 = sst [smem:[#allocation14]] [#allocation165]
          $region328: #{tpu_custom_call.1} parent=211 // pred_fallthru
            _
          %1378 = shalt.err (0)
          %s1380 = sshll.u32 %s1371, 4
          %s1381 = int_to_ptr.vmem [resolvable:$true] %s1380
          %1383 = dma.hbm_to_vmem [thread:$0]  %s1370, 16, %s1381, %s1372
          %s1384 = sadd.s32 %s836, 44
          %s1385 = smul.addr %s1303, 16
          %s1386 = scalar_lea.hbm %s2, %s1385
          %s1387 = scalar_lea.vmem [#allocation2], %s1384
          %s1388 = scalar_lea.sflag [#allocation3], %s1384
          // Predicated region
          $region329: #{tpu_custom_call.1} parent=211 // pred_check
            _
          $region330: #{tpu_custom_call.1} parent=211 // pred_check_branch
            %1390 = sbr.rel target = $region332
          $region331: #{tpu_custom_call.1} parent=211 // pred_region
            %1391 = sst [smem:[#allocation13]] [#allocation168]
            %1392 = sst [smem:[#allocation14]] [#allocation167]
          $region332: #{tpu_custom_call.1} parent=211 // pred_fallthru
            _
          %1394 = shalt.err (0)
          %s1396 = sshll.u32 %s1387, 4
          %s1397 = int_to_ptr.vmem [resolvable:$true] %s1396
          %1399 = dma.hbm_to_vmem [thread:$0]  %s1386, 16, %s1397, %s1388
          %s1400 = sadd.s32 %s835, 5
          %s1401 = sld [smem:[#allocation7 + %s1400]]
          %s1402 = sshra.s32 %s1400, 7
          %s1403 = sand.u32 %s1400, 127
          %s1404 = sadd.s32 %s1402, 1
          %s1405 = smul.u32 %s1404, 128
          %s1406 = sshra.s32 %s1400, 7
          %s1407 = sand.u32 %s1400, 127
          %s1408 = sadd.s32 %s1405, %s1407
          %s1409 = sld [smem:[#allocation7 + %s1408]]
          %s1410 = sadd.s32 %s1402, 2
          %s1411 = smul.u32 %s1410, 128
          %s1412 = sadd.s32 %s1411, %s1407
          %s1413 = sld [smem:[#allocation7 + %s1412]]
          %s1414 = sld [smem:[#allocation8 + %s1400]]
          %s1415 = sld [smem:[#allocation8 + %s1408]]
          %s1416 = sld [smem:[#allocation8 + %s1412]]
          %s1417 = sadd.s32 %s836, 5
          %s1418 = smul.addr %s1401, 16
          %s1419 = scalar_lea.hbm %s2, %s1418
          %s1420 = scalar_lea.vmem [#allocation2], %s1417
          %s1421 = scalar_lea.sflag [#allocation3], %s1417
          // Predicated region
          $region333: #{tpu_custom_call.1} parent=211 // pred_check
            _
          $region334: #{tpu_custom_call.1} parent=211 // pred_check_branch
            %1423 = sbr.rel target = $region336
          $region335: #{tpu_custom_call.1} parent=211 // pred_region
            %1424 = sst [smem:[#allocation13]] [#allocation170]
            %1425 = sst [smem:[#allocation14]] [#allocation169]
          $region336: #{tpu_custom_call.1} parent=211 // pred_fallthru
            _
          %1427 = shalt.err (0)
          %s1429 = sshll.u32 %s1420, 4
          %s1430 = int_to_ptr.vmem [resolvable:$true] %s1429
          %1432 = dma.hbm_to_vmem [thread:$0]  %s1419, 16, %s1430, %s1421
          %s1433 = sadd.s32 %s836, 13
          %s1434 = smul.addr %s1409, 16
          %s1435 = scalar_lea.hbm %s3, %s1434
          %s1436 = scalar_lea.vmem [#allocation2], %s1433
          %s1437 = scalar_lea.sflag [#allocation3], %s1433
          // Predicated region
          $region337: #{tpu_custom_call.1} parent=211 // pred_check
            _
          $region338: #{tpu_custom_call.1} parent=211 // pred_check_branch
            %1439 = sbr.rel target = $region340
          $region339: #{tpu_custom_call.1} parent=211 // pred_region
            %1440 = sst [smem:[#allocation13]] [#allocation172]
            %1441 = sst [smem:[#allocation14]] [#allocation171]
          $region340: #{tpu_custom_call.1} parent=211 // pred_fallthru
            _
          %1443 = shalt.err (0)
          %s1445 = sshll.u32 %s1436, 4
          %s1446 = int_to_ptr.vmem [resolvable:$true] %s1445
          %1448 = dma.hbm_to_vmem [thread:$0]  %s1435, 16, %s1446, %s1437
          %s1449 = sadd.s32 %s836, 21
          %s1450 = smul.addr %s1413, 16
          %s1451 = scalar_lea.hbm %s2, %s1450
          %s1452 = scalar_lea.vmem [#allocation2], %s1449
          %s1453 = scalar_lea.sflag [#allocation3], %s1449
          // Predicated region
          $region341: #{tpu_custom_call.1} parent=211 // pred_check
            _
          $region342: #{tpu_custom_call.1} parent=211 // pred_check_branch
            %1455 = sbr.rel target = $region344
          $region343: #{tpu_custom_call.1} parent=211 // pred_region
            %1456 = sst [smem:[#allocation13]] [#allocation174]
            %1457 = sst [smem:[#allocation14]] [#allocation173]
          $region344: #{tpu_custom_call.1} parent=211 // pred_fallthru
            _
          %1459 = shalt.err (0)
          %s1461 = sshll.u32 %s1452, 4
          %s1462 = int_to_ptr.vmem [resolvable:$true] %s1461
          %1464 = dma.hbm_to_vmem [thread:$0]  %s1451, 16, %s1462, %s1453
          %s1465 = sadd.s32 %s836, 29
          %s1466 = smul.addr %s1414, 16
          %s1467 = scalar_lea.hbm %s2, %s1466
          %s1468 = scalar_lea.vmem [#allocation2], %s1465
          %s1469 = scalar_lea.sflag [#allocation3], %s1465
          // Predicated region
          $region345: #{tpu_custom_call.1} parent=211 // pred_check
            _
          $region346: #{tpu_custom_call.1} parent=211 // pred_check_branch
            %1471 = sbr.rel target = $region348
          $region347: #{tpu_custom_call.1} parent=211 // pred_region
            %1472 = sst [smem:[#allocation13]] [#allocation176]
            %1473 = sst [smem:[#allocation14]] [#allocation175]
          $region348: #{tpu_custom_call.1} parent=211 // pred_fallthru
            _
          %1475 = shalt.err (0)
          %s1477 = sshll.u32 %s1468, 4
          %s1478 = int_to_ptr.vmem [resolvable:$true] %s1477
          %1480 = dma.hbm_to_vmem [thread:$0]  %s1467, 16, %s1478, %s1469
          %s1481 = sadd.s32 %s836, 37
          %s1482 = smul.addr %s1415, 16
          %s1483 = scalar_lea.hbm %s3, %s1482
          %s1484 = scalar_lea.vmem [#allocation2], %s1481
          %s1485 = scalar_lea.sflag [#allocation3], %s1481
          // Predicated region
          $region349: #{tpu_custom_call.1} parent=211 // pred_check
            _
          $region350: #{tpu_custom_call.1} parent=211 // pred_check_branch
            %1487 = sbr.rel target = $region352
          $region351: #{tpu_custom_call.1} parent=211 // pred_region
            %1488 = sst [smem:[#allocation13]] [#allocation178]
            %1489 = sst [smem:[#allocation14]] [#allocation177]
          $region352: #{tpu_custom_call.1} parent=211 // pred_fallthru
            _
          %1491 = shalt.err (0)
          %s1493 = sshll.u32 %s1484, 4
          %s1494 = int_to_ptr.vmem [resolvable:$true] %s1493
          %1496 = dma.hbm_to_vmem [thread:$0]  %s1483, 16, %s1494, %s1485
          %s1497 = sadd.s32 %s836, 45
          %s1498 = smul.addr %s1416, 16
          %s1499 = scalar_lea.hbm %s2, %s1498
          %s1500 = scalar_lea.vmem [#allocation2], %s1497
          %s1501 = scalar_lea.sflag [#allocation3], %s1497
          // Predicated region
          $region353: #{tpu_custom_call.1} parent=211 // pred_check
            _
          $region354: #{tpu_custom_call.1} parent=211 // pred_check_branch
            %1503 = sbr.rel target = $region356
          $region355: #{tpu_custom_call.1} parent=211 // pred_region
            %1504 = sst [smem:[#allocation13]] [#allocation180]
            %1505 = sst [smem:[#allocation14]] [#allocation179]
          $region356: #{tpu_custom_call.1} parent=211 // pred_fallthru
            _
          %1507 = shalt.err (0)
          %s1509 = sshll.u32 %s1500, 4
          %s1510 = int_to_ptr.vmem [resolvable:$true] %s1509
          %1512 = dma.hbm_to_vmem [thread:$0]  %s1499, 16, %s1510, %s1501
          %s1513 = sadd.s32 %s835, 6
          %s1514 = sld [smem:[#allocation7 + %s1513]]
          %s1515 = sshra.s32 %s1513, 7
          %s1516 = sand.u32 %s1513, 127
          %s1517 = sadd.s32 %s1515, 1
          %s1518 = smul.u32 %s1517, 128
          %s1519 = sshra.s32 %s1513, 7
          %s1520 = sand.u32 %s1513, 127
          %s1521 = sadd.s32 %s1518, %s1520
          %s1522 = sld [smem:[#allocation7 + %s1521]]
          %s1523 = sadd.s32 %s1515, 2
          %s1524 = smul.u32 %s1523, 128
          %s1525 = sadd.s32 %s1524, %s1520
          %s1526 = sld [smem:[#allocation7 + %s1525]]
          %s1527 = sld [smem:[#allocation8 + %s1513]]
          %s1528 = sld [smem:[#allocation8 + %s1521]]
          %s1529 = sld [smem:[#allocation8 + %s1525]]
          %s1530 = sadd.s32 %s836, 6
          %s1531 = smul.addr %s1514, 16
          %s1532 = scalar_lea.hbm %s2, %s1531
          %s1533 = scalar_lea.vmem [#allocation2], %s1530
          %s1534 = scalar_lea.sflag [#allocation3], %s1530
          // Predicated region
          $region357: #{tpu_custom_call.1} parent=211 // pred_check
            _
          $region358: #{tpu_custom_call.1} parent=211 // pred_check_branch
            %1536 = sbr.rel target = $region360
          $region359: #{tpu_custom_call.1} parent=211 // pred_region
            %1537 = sst [smem:[#allocation13]] [#allocation182]
            %1538 = sst [smem:[#allocation14]] [#allocation181]
          $region360: #{tpu_custom_call.1} parent=211 // pred_fallthru
            _
          %1540 = shalt.err (0)
          %s1542 = sshll.u32 %s1533, 4
          %s1543 = int_to_ptr.vmem [resolvable:$true] %s1542
          %1545 = dma.hbm_to_vmem [thread:$0]  %s1532, 16, %s1543, %s1534
          %s1546 = sadd.s32 %s836, 14
          %s1547 = smul.addr %s1522, 16
          %s1548 = scalar_lea.hbm %s3, %s1547
          %s1549 = scalar_lea.vmem [#allocation2], %s1546
          %s1550 = scalar_lea.sflag [#allocation3], %s1546
          // Predicated region
          $region361: #{tpu_custom_call.1} parent=211 // pred_check
            _
          $region362: #{tpu_custom_call.1} parent=211 // pred_check_branch
            %1552 = sbr.rel target = $region364
          $region363: #{tpu_custom_call.1} parent=211 // pred_region
            %1553 = sst [smem:[#allocation13]] [#allocation184]
            %1554 = sst [smem:[#allocation14]] [#allocation183]
          $region364: #{tpu_custom_call.1} parent=211 // pred_fallthru
            _
          %1556 = shalt.err (0)
          %s1558 = sshll.u32 %s1549, 4
          %s1559 = int_to_ptr.vmem [resolvable:$true] %s1558
          %1561 = dma.hbm_to_vmem [thread:$0]  %s1548, 16, %s1559, %s1550
          %s1562 = sadd.s32 %s836, 22
          %s1563 = smul.addr %s1526, 16
          %s1564 = scalar_lea.hbm %s2, %s1563
          %s1565 = scalar_lea.vmem [#allocation2], %s1562
          %s1566 = scalar_lea.sflag [#allocation3], %s1562
          // Predicated region
          $region365: #{tpu_custom_call.1} parent=211 // pred_check
            _
          $region366: #{tpu_custom_call.1} parent=211 // pred_check_branch
            %1568 = sbr.rel target = $region368
          $region367: #{tpu_custom_call.1} parent=211 // pred_region
            %1569 = sst [smem:[#allocation13]] [#allocation186]
            %1570 = sst [smem:[#allocation14]] [#allocation185]
          $region368: #{tpu_custom_call.1} parent=211 // pred_fallthru
            _
          %1572 = shalt.err (0)
          %s1574 = sshll.u32 %s1565, 4
          %s1575 = int_to_ptr.vmem [resolvable:$true] %s1574
          %1577 = dma.hbm_to_vmem [thread:$0]  %s1564, 16, %s1575, %s1566
          %s1578 = sadd.s32 %s836, 30
          %s1579 = smul.addr %s1527, 16
          %s1580 = scalar_lea.hbm %s2, %s1579
          %s1581 = scalar_lea.vmem [#allocation2], %s1578
          %s1582 = scalar_lea.sflag [#allocation3], %s1578
          // Predicated region
          $region369: #{tpu_custom_call.1} parent=211 // pred_check
            _
          $region370: #{tpu_custom_call.1} parent=211 // pred_check_branch
            %1584 = sbr.rel target = $region372
          $region371: #{tpu_custom_call.1} parent=211 // pred_region
            %1585 = sst [smem:[#allocation13]] [#allocation188]
            %1586 = sst [smem:[#allocation14]] [#allocation187]
          $region372: #{tpu_custom_call.1} parent=211 // pred_fallthru
            _
          %1588 = shalt.err (0)
          %s1590 = sshll.u32 %s1581, 4
          %s1591 = int_to_ptr.vmem [resolvable:$true] %s1590
          %1593 = dma.hbm_to_vmem [thread:$0]  %s1580, 16, %s1591, %s1582
          %s1594 = sadd.s32 %s836, 38
          %s1595 = smul.addr %s1528, 16
          %s1596 = scalar_lea.hbm %s3, %s1595
          %s1597 = scalar_lea.vmem [#allocation2], %s1594
          %s1598 = scalar_lea.sflag [#allocation3], %s1594
          // Predicated region
          $region373: #{tpu_custom_call.1} parent=211 // pred_check
            _
          $region374: #{tpu_custom_call.1} parent=211 // pred_check_branch
            %1600 = sbr.rel target = $region376
          $region375: #{tpu_custom_call.1} parent=211 // pred_region
            %1601 = sst [smem:[#allocation13]] [#allocation190]
            %1602 = sst [smem:[#allocation14]] [#allocation189]
          $region376: #{tpu_custom_call.1} parent=211 // pred_fallthru
            _
          %1604 = shalt.err (0)
          %s1606 = sshll.u32 %s1597, 4
          %s1607 = int_to_ptr.vmem [resolvable:$true] %s1606
          %1609 = dma.hbm_to_vmem [thread:$0]  %s1596, 16, %s1607, %s1598
          %s1610 = sadd.s32 %s836, 46
          %s1611 = smul.addr %s1529, 16
          %s1612 = scalar_lea.hbm %s2, %s1611
          %s1613 = scalar_lea.vmem [#allocation2], %s1610
          %s1614 = scalar_lea.sflag [#allocation3], %s1610
          // Predicated region
          $region377: #{tpu_custom_call.1} parent=211 // pred_check
            _
          $region378: #{tpu_custom_call.1} parent=211 // pred_check_branch
            %1616 = sbr.rel target = $region380
          $region379: #{tpu_custom_call.1} parent=211 // pred_region
            %1617 = sst [smem:[#allocation13]] [#allocation192]
            %1618 = sst [smem:[#allocation14]] [#allocation191]
          $region380: #{tpu_custom_call.1} parent=211 // pred_fallthru
            _
          %1620 = shalt.err (0)
          %s1622 = sshll.u32 %s1613, 4
          %s1623 = int_to_ptr.vmem [resolvable:$true] %s1622
          %1625 = dma.hbm_to_vmem [thread:$0]  %s1612, 16, %s1623, %s1614
          %s1626 = sadd.s32 %s835, 7
          %s1627 = sld [smem:[#allocation7 + %s1626]]
          %s1628 = sshra.s32 %s1626, 7
          %s1629 = sand.u32 %s1626, 127
          %s1630 = sadd.s32 %s1628, 1
          %s1631 = smul.u32 %s1630, 128
          %s1632 = sshra.s32 %s1626, 7
          %s1633 = sand.u32 %s1626, 127
          %s1634 = sadd.s32 %s1631, %s1633
          %s1635 = sld [smem:[#allocation7 + %s1634]]
          %s1636 = sadd.s32 %s1628, 2
          %s1637 = smul.u32 %s1636, 128
          %s1638 = sadd.s32 %s1637, %s1633
          %s1639 = sld [smem:[#allocation7 + %s1638]]
          %s1640 = sld [smem:[#allocation8 + %s1626]]
          %s1641 = sld [smem:[#allocation8 + %s1634]]
          %s1642 = sld [smem:[#allocation8 + %s1638]]
          %s1643 = sadd.s32 %s836, 7
          %s1644 = smul.addr %s1627, 16
          %s1645 = scalar_lea.hbm %s2, %s1644
          %s1646 = scalar_lea.vmem [#allocation2], %s1643
          %s1647 = scalar_lea.sflag [#allocation3], %s1643
          // Predicated region
          $region381: #{tpu_custom_call.1} parent=211 // pred_check
            _
          $region382: #{tpu_custom_call.1} parent=211 // pred_check_branch
            %1649 = sbr.rel target = $region384
          $region383: #{tpu_custom_call.1} parent=211 // pred_region
            %1650 = sst [smem:[#allocation13]] [#allocation194]
            %1651 = sst [smem:[#allocation14]] [#allocation193]
          $region384: #{tpu_custom_call.1} parent=211 // pred_fallthru
            _
          %1653 = shalt.err (0)
          %s1655 = sshll.u32 %s1646, 4
          %s1656 = int_to_ptr.vmem [resolvable:$true] %s1655
          %1658 = dma.hbm_to_vmem [thread:$0]  %s1645, 16, %s1656, %s1647
          %s1659 = sadd.s32 %s836, 15
          %s1660 = smul.addr %s1635, 16
          %s1661 = scalar_lea.hbm %s3, %s1660
          %s1662 = scalar_lea.vmem [#allocation2], %s1659
          %s1663 = scalar_lea.sflag [#allocation3], %s1659
          // Predicated region
          $region385: #{tpu_custom_call.1} parent=211 // pred_check
            _
          $region386: #{tpu_custom_call.1} parent=211 // pred_check_branch
            %1665 = sbr.rel target = $region388
          $region387: #{tpu_custom_call.1} parent=211 // pred_region
            %1666 = sst [smem:[#allocation13]] [#allocation196]
            %1667 = sst [smem:[#allocation14]] [#allocation195]
          $region388: #{tpu_custom_call.1} parent=211 // pred_fallthru
            _
          %1669 = shalt.err (0)
          %s1671 = sshll.u32 %s1662, 4
          %s1672 = int_to_ptr.vmem [resolvable:$true] %s1671
          %1674 = dma.hbm_to_vmem [thread:$0]  %s1661, 16, %s1672, %s1663
          %s1675 = sadd.s32 %s836, 23
          %s1676 = smul.addr %s1639, 16
          %s1677 = scalar_lea.hbm %s2, %s1676
          %s1678 = scalar_lea.vmem [#allocation2], %s1675
          %s1679 = scalar_lea.sflag [#allocation3], %s1675
          // Predicated region
          $region389: #{tpu_custom_call.1} parent=211 // pred_check
            _
          $region390: #{tpu_custom_call.1} parent=211 // pred_check_branch
            %1681 = sbr.rel target = $region392
          $region391: #{tpu_custom_call.1} parent=211 // pred_region
            %1682 = sst [smem:[#allocation13]] [#allocation198]
            %1683 = sst [smem:[#allocation14]] [#allocation197]
          $region392: #{tpu_custom_call.1} parent=211 // pred_fallthru
            _
          %1685 = shalt.err (0)
          %s1687 = sshll.u32 %s1678, 4
          %s1688 = int_to_ptr.vmem [resolvable:$true] %s1687
          %1690 = dma.hbm_to_vmem [thread:$0]  %s1677, 16, %s1688, %s1679
          %s1691 = sadd.s32 %s836, 31
          %s1692 = smul.addr %s1640, 16
          %s1693 = scalar_lea.hbm %s2, %s1692
          %s1694 = scalar_lea.vmem [#allocation2], %s1691
          %s1695 = scalar_lea.sflag [#allocation3], %s1691
          // Predicated region
          $region393: #{tpu_custom_call.1} parent=211 // pred_check
            _
          $region394: #{tpu_custom_call.1} parent=211 // pred_check_branch
            %1697 = sbr.rel target = $region396
          $region395: #{tpu_custom_call.1} parent=211 // pred_region
            %1698 = sst [smem:[#allocation13]] [#allocation200]
            %1699 = sst [smem:[#allocation14]] [#allocation199]
          $region396: #{tpu_custom_call.1} parent=211 // pred_fallthru
            _
          %1701 = shalt.err (0)
          %s1703 = sshll.u32 %s1694, 4
          %s1704 = int_to_ptr.vmem [resolvable:$true] %s1703
          %1706 = dma.hbm_to_vmem [thread:$0]  %s1693, 16, %s1704, %s1695
          %s1707 = sadd.s32 %s836, 39
          %s1708 = smul.addr %s1641, 16
          %s1709 = scalar_lea.hbm %s3, %s1708
          %s1710 = scalar_lea.vmem [#allocation2], %s1707
          %s1711 = scalar_lea.sflag [#allocation3], %s1707
          // Predicated region
          $region397: #{tpu_custom_call.1} parent=211 // pred_check
            _
          $region398: #{tpu_custom_call.1} parent=211 // pred_check_branch
            %1713 = sbr.rel target = $region400
          $region399: #{tpu_custom_call.1} parent=211 // pred_region
            %1714 = sst [smem:[#allocation13]] [#allocation202]
            %1715 = sst [smem:[#allocation14]] [#allocation201]
          $region400: #{tpu_custom_call.1} parent=211 // pred_fallthru
            _
          %1717 = shalt.err (0)
          %s1719 = sshll.u32 %s1710, 4
          %s1720 = int_to_ptr.vmem [resolvable:$true] %s1719
          %1722 = dma.hbm_to_vmem [thread:$0]  %s1709, 16, %s1720, %s1711
          %s1723 = sadd.s32 %s836, 47
          %s1724 = smul.addr %s1642, 16
          %s1725 = scalar_lea.hbm %s2, %s1724
          %s1726 = scalar_lea.vmem [#allocation2], %s1723
          %s1727 = scalar_lea.sflag [#allocation3], %s1723
          // Predicated region
          $region401: #{tpu_custom_call.1} parent=211 // pred_check
            _
          $region402: #{tpu_custom_call.1} parent=211 // pred_check_branch
            %1729 = sbr.rel target = $region404
          $region403: #{tpu_custom_call.1} parent=211 // pred_region
            %1730 = sst [smem:[#allocation13]] [#allocation204]
            %1731 = sst [smem:[#allocation14]] [#allocation203]
          $region404: #{tpu_custom_call.1} parent=211 // pred_fallthru
            _
          %1733 = shalt.err (0)
          %s1735 = sshll.u32 %s1726, 4
          %s1736 = int_to_ptr.vmem [resolvable:$true] %s1735
          %1738 = dma.hbm_to_vmem [thread:$0]  %s1725, 16, %s1736, %s1727
        $region212: #{tpu_custom_call.1} parent=11 // pred_fallthru
          _
        %s1739 = smul.u32 %s55, 48
        %s1740 = scalar_lea.sflag [#allocation3], %s1739
        %s1741 = smul.u32 1, 1
        %s1742 = sshll.u32 %s1741, 4
        %1743 = dma.done %s1740, %s1742
        %s1744 = sadd.s32 %s1739, 8
        %s1745 = scalar_lea.sflag [#allocation3], %s1744
        %s1746 = sshll.u32 %s1741, 4
        %1747 = dma.done %s1745, %s1746
        %s1748 = sadd.s32 %s1739, 16
        %s1749 = scalar_lea.sflag [#allocation3], %s1748
        %s1750 = sshll.u32 %s1741, 4
        %1751 = dma.done %s1749, %s1750
        %s1752 = sadd.s32 %s1739, 24
        %s1753 = scalar_lea.sflag [#allocation3], %s1752
        %s1754 = sshll.u32 %s1741, 4
        %1755 = dma.done %s1753, %s1754
        %s1756 = sadd.s32 %s1739, 32
        %s1757 = scalar_lea.sflag [#allocation3], %s1756
        %s1758 = sshll.u32 %s1741, 4
        %1759 = dma.done %s1757, %s1758
        %s1760 = sadd.s32 %s1739, 40
        %s1761 = scalar_lea.sflag [#allocation3], %s1760
        %s1762 = sshll.u32 %s1741, 4
        %1763 = dma.done %s1761, %s1762
        %s1764 = sadd.s32 %s1739, 1
        %s1765 = scalar_lea.sflag [#allocation3], %s1764
        %s1766 = sshll.u32 %s1741, 4
        %1767 = dma.done %s1765, %s1766
        %s1768 = sadd.s32 %s1739, 9
        %s1769 = scalar_lea.sflag [#allocation3], %s1768
        %s1770 = sshll.u32 %s1741, 4
        %1771 = dma.done %s1769, %s1770
        %s1772 = sadd.s32 %s1739, 17
        %s1773 = scalar_lea.sflag [#allocation3], %s1772
        %s1774 = sshll.u32 %s1741, 4
        %1775 = dma.done %s1773, %s1774
        %s1776 = sadd.s32 %s1739, 25
        %s1777 = scalar_lea.sflag [#allocation3], %s1776
        %s1778 = sshll.u32 %s1741, 4
        %1779 = dma.done %s1777, %s1778
        %s1780 = sadd.s32 %s1739, 33
        %s1781 = scalar_lea.sflag [#allocation3], %s1780
        %s1782 = sshll.u32 %s1741, 4
        %1783 = dma.done %s1781, %s1782
        %s1784 = sadd.s32 %s1739, 41
        %s1785 = scalar_lea.sflag [#allocation3], %s1784
        %s1786 = sshll.u32 %s1741, 4
        %1787 = dma.done %s1785, %s1786
        %s1788 = sadd.s32 %s1739, 2
        %s1789 = scalar_lea.sflag [#allocation3], %s1788
        %s1790 = sshll.u32 %s1741, 4
        %1791 = dma.done %s1789, %s1790
        %s1792 = sadd.s32 %s1739, 10
        %s1793 = scalar_lea.sflag [#allocation3], %s1792
        %s1794 = sshll.u32 %s1741, 4
        %1795 = dma.done %s1793, %s1794
        %s1796 = sadd.s32 %s1739, 18
        %s1797 = scalar_lea.sflag [#allocation3], %s1796
        %s1798 = sshll.u32 %s1741, 4
        %1799 = dma.done %s1797, %s1798
        %s1800 = sadd.s32 %s1739, 26
        %s1801 = scalar_lea.sflag [#allocation3], %s1800
        %s1802 = sshll.u32 %s1741, 4
        %1803 = dma.done %s1801, %s1802
        %s1804 = sadd.s32 %s1739, 34
        %s1805 = scalar_lea.sflag [#allocation3], %s1804
        %s1806 = sshll.u32 %s1741, 4
        %1807 = dma.done %s1805, %s1806
        %s1808 = sadd.s32 %s1739, 42
        %s1809 = scalar_lea.sflag [#allocation3], %s1808
        %s1810 = sshll.u32 %s1741, 4
        %1811 = dma.done %s1809, %s1810
        %s1812 = sadd.s32 %s1739, 3
        %s1813 = scalar_lea.sflag [#allocation3], %s1812
        %s1814 = sshll.u32 %s1741, 4
        %1815 = dma.done %s1813, %s1814
        %s1816 = sadd.s32 %s1739, 11
        %s1817 = scalar_lea.sflag [#allocation3], %s1816
        %s1818 = sshll.u32 %s1741, 4
        %1819 = dma.done %s1817, %s1818
        %s1820 = sadd.s32 %s1739, 19
        %s1821 = scalar_lea.sflag [#allocation3], %s1820
        %s1822 = sshll.u32 %s1741, 4
        %1823 = dma.done %s1821, %s1822
        %s1824 = sadd.s32 %s1739, 27
        %s1825 = scalar_lea.sflag [#allocation3], %s1824
        %s1826 = sshll.u32 %s1741, 4
        %1827 = dma.done %s1825, %s1826
        %s1828 = sadd.s32 %s1739, 35
        %s1829 = scalar_lea.sflag [#allocation3], %s1828
        %s1830 = sshll.u32 %s1741, 4
        %1831 = dma.done %s1829, %s1830
        %s1832 = sadd.s32 %s1739, 43
        %s1833 = scalar_lea.sflag [#allocation3], %s1832
        %s1834 = sshll.u32 %s1741, 4
        %1835 = dma.done %s1833, %s1834
        %s1836 = sadd.s32 %s1739, 4
        %s1837 = scalar_lea.sflag [#allocation3], %s1836
        %s1838 = sshll.u32 %s1741, 4
        %1839 = dma.done %s1837, %s1838
        %s1840 = sadd.s32 %s1739, 12
        %s1841 = scalar_lea.sflag [#allocation3], %s1840
        %s1842 = sshll.u32 %s1741, 4
        %1843 = dma.done %s1841, %s1842
        %s1844 = sadd.s32 %s1739, 20
        %s1845 = scalar_lea.sflag [#allocation3], %s1844
        %s1846 = sshll.u32 %s1741, 4
        %1847 = dma.done %s1845, %s1846
        %s1848 = sadd.s32 %s1739, 28
        %s1849 = scalar_lea.sflag [#allocation3], %s1848
        %s1850 = sshll.u32 %s1741, 4
        %1851 = dma.done %s1849, %s1850
        %s1852 = sadd.s32 %s1739, 36
        %s1853 = scalar_lea.sflag [#allocation3], %s1852
        %s1854 = sshll.u32 %s1741, 4
        %1855 = dma.done %s1853, %s1854
        %s1856 = sadd.s32 %s1739, 44
        %s1857 = scalar_lea.sflag [#allocation3], %s1856
        %s1858 = sshll.u32 %s1741, 4
        %1859 = dma.done %s1857, %s1858
        %s1860 = sadd.s32 %s1739, 5
        %s1861 = scalar_lea.sflag [#allocation3], %s1860
        %s1862 = sshll.u32 %s1741, 4
        %1863 = dma.done %s1861, %s1862
        %s1864 = sadd.s32 %s1739, 13
        %s1865 = scalar_lea.sflag [#allocation3], %s1864
        %s1866 = sshll.u32 %s1741, 4
        %1867 = dma.done %s1865, %s1866
        %s1868 = sadd.s32 %s1739, 21
        %s1869 = scalar_lea.sflag [#allocation3], %s1868
        %s1870 = sshll.u32 %s1741, 4
        %1871 = dma.done %s1869, %s1870
        %s1872 = sadd.s32 %s1739, 29
        %s1873 = scalar_lea.sflag [#allocation3], %s1872
        %s1874 = sshll.u32 %s1741, 4
        %1875 = dma.done %s1873, %s1874
        %s1876 = sadd.s32 %s1739, 37
        %s1877 = scalar_lea.sflag [#allocation3], %s1876
        %s1878 = sshll.u32 %s1741, 4
        %1879 = dma.done %s1877, %s1878
        %s1880 = sadd.s32 %s1739, 45
        %s1881 = scalar_lea.sflag [#allocation3], %s1880
        %s1882 = sshll.u32 %s1741, 4
        %1883 = dma.done %s1881, %s1882
        %s1884 = sadd.s32 %s1739, 6
        %s1885 = scalar_lea.sflag [#allocation3], %s1884
        %s1886 = sshll.u32 %s1741, 4
        %1887 = dma.done %s1885, %s1886
        %s1888 = sadd.s32 %s1739, 14
        %s1889 = scalar_lea.sflag [#allocation3], %s1888
        %s1890 = sshll.u32 %s1741, 4
        %1891 = dma.done %s1889, %s1890
        %s1892 = sadd.s32 %s1739, 22
        %s1893 = scalar_lea.sflag [#allocation3], %s1892
        %s1894 = sshll.u32 %s1741, 4
        %1895 = dma.done %s1893, %s1894
        %s1896 = sadd.s32 %s1739, 30
        %s1897 = scalar_lea.sflag [#allocation3], %s1896
        %s1898 = sshll.u32 %s1741, 4
        %1899 = dma.done %s1897, %s1898
        %s1900 = sadd.s32 %s1739, 38
        %s1901 = scalar_lea.sflag [#allocation3], %s1900
        %s1902 = sshll.u32 %s1741, 4
        %1903 = dma.done %s1901, %s1902
        %s1904 = sadd.s32 %s1739, 46
        %s1905 = scalar_lea.sflag [#allocation3], %s1904
        %s1906 = sshll.u32 %s1741, 4
        %1907 = dma.done %s1905, %s1906
        %s1908 = sadd.s32 %s1739, 7
        %s1909 = scalar_lea.sflag [#allocation3], %s1908
        %s1910 = sshll.u32 %s1741, 4
        %1911 = dma.done %s1909, %s1910
        %s1912 = sadd.s32 %s1739, 15
        %s1913 = scalar_lea.sflag [#allocation3], %s1912
        %s1914 = sshll.u32 %s1741, 4
        %1915 = dma.done %s1913, %s1914
        %s1916 = sadd.s32 %s1739, 23
        %s1917 = scalar_lea.sflag [#allocation3], %s1916
        %s1918 = sshll.u32 %s1741, 4
        %1919 = dma.done %s1917, %s1918
        %s1920 = sadd.s32 %s1739, 31
        %s1921 = scalar_lea.sflag [#allocation3], %s1920
        %s1922 = sshll.u32 %s1741, 4
        %1923 = dma.done %s1921, %s1922
        %s1924 = sadd.s32 %s1739, 39
        %s1925 = scalar_lea.sflag [#allocation3], %s1924
        %s1926 = sshll.u32 %s1741, 4
        %1927 = dma.done %s1925, %s1926
        %s1928 = sadd.s32 %s1739, 47
        %s1929 = scalar_lea.sflag [#allocation3], %s1928
        %s1930 = sshll.u32 %s1741, 4
        %1931 = dma.done %s1929, %s1930
        %s1932 = scalar_lea.vmem [#allocation2], %s1739
        %v1933 = vld [vmem:[%s1932] sm:$0xff]
        %v1934 = vld [vmem:[%s1932 + $0x8] sm:$0xff]
        %v1935 = vld [vmem:[%s1932 + $0x10] sm:$0xff]
        %v1936 = vld [vmem:[%s1932 + $0x18] sm:$0xff]
        %v1937 = vld [vmem:[%s1932 + $0x20] sm:$0xff]
        %v1938 = vld [vmem:[%s1932 + $0x28] sm:$0xff]
        %v1939 = vmul.f32 %v1933, %v1935
        %1941 = vrot.lane.b32.xlu0 %v1939, 96
        %v1942 = vpop.permute.xlu0 %1941
        %v1944 = vadd.f32 %v1939, %v1942
        %v1945 = vmul.f32 %v1934, %v1944
        %1947 = vrot.lane.b32.xlu0 %v1935, 96
        %v1948 = vpop.permute.xlu0 %1947
        %v1950 = vmul.f32 %v1933, %v1948
        %1951 = vrot.lane.b32.xlu0 %v1935, 32
        %v1952 = vpop.permute.xlu0 %1951
        %v1954 = vmul.f32 %v1933, %v1952
        %1956 = vrot.lane.b32.xlu0 %v1954, 96
        %v1957 = vpop.permute.xlu0 %1956
        %v1959 = vsub.f32 %v1950, %v1957
        %1961 = vrot.lane.b32.xlu0 %v1959, 32
        %v1962 = vpop.permute.xlu0 %1961
        %v1964 = vmul.f32 %v1934, %v1962
        %1966 = vrot.lane.b32.xlu0 %v1964, 96
        %v1967 = vpop.permute.xlu0 %1966
        %v1969 = vadd.f32 %v1945, %v1967
        %vm1970 = vcmask 261120
        %v1971 = vsel %vm1970, %v1969, 0.0
        %1972 = vadd.xlane.f32.xlu0 %v1971
        %v1973 = vpop.xlane.xlu0 %1972
        %v1974 = vmul.f32 %v1936, %v1938
        %1976 = vrot.lane.b32.xlu0 %v1974, 96
        %v1977 = vpop.permute.xlu0 %1976
        %v1979 = vadd.f32 %v1974, %v1977
        %v1980 = vmul.f32 %v1937, %v1979
        %1982 = vrot.lane.b32.xlu0 %v1938, 96
        %v1983 = vpop.permute.xlu0 %1982
        %v1985 = vmul.f32 %v1936, %v1983
        %1986 = vrot.lane.b32.xlu0 %v1938, 32
        %v1987 = vpop.permute.xlu0 %1986
        %v1989 = vmul.f32 %v1936, %v1987
        %1991 = vrot.lane.b32.xlu0 %v1989, 96
        %v1992 = vpop.permute.xlu0 %1991
        %v1994 = vsub.f32 %v1985, %v1992
        %1996 = vrot.lane.b32.xlu0 %v1994, 32
        %v1997 = vpop.permute.xlu0 %1996
        %v1999 = vmul.f32 %v1937, %v1997
        %2001 = vrot.lane.b32.xlu0 %v1999, 96
        %v2002 = vpop.permute.xlu0 %2001
        %v2004 = vadd.f32 %v1980, %v2002
        %v2005 = vsel %vm1970, %v2004, 0.0
        %2006 = vadd.xlane.f32.xlu0 %v2005
        %v2007 = vpop.xlane.xlu0 %2006
        %v2008 = vlaneseq
        %v2009 = vshrl.u32 %v2008, 7
        %s2010 = smul.u32 %s17, 8
        %v2011 = vstv %s2010
        %v2012 = vadd.s32 %v2009, %v2011
        %vm2013 = vcmp.lt.s32.totalorder %v2012, 10
        %v2014 = vld [vmem:[#allocation4] sm:$0xff]
        %v2015 = vsub.f32 0.0, %v1973
        %v2016 = vmax.f32 %v2015, 0.0
        %v2017 = vand.u32 2147483647, %v2015
        %v2018 = vsub.f32 0.0, %v2017
        %v2019 = vmul.f32 %v2018, 1.442695
        %v2020 = vpow.pop %v2019
        %v2021 = vadd.f32 %v2020, 1.0
        %v2022 = vlog2.pop %v2021
        %v2023 = vmul.f32 %v2022, 0.6931472
        %v2024 = vmul.f32 -0.5, %v2020
        %v2025 = vadd.f32 %v2024, 1.0
        %v2026 = vmul.f32 %v2025, %v2020
        %v2027 = vand.u32 2147483647, %v2020
        %vm2028 = vcmp.lt.f32.partialorder %v2027, 0.0004427343
        %v2029 = vsel %vm2028, %v2026, %v2023
        %v2030 = vadd.f32 %v2016, %v2029
        %v2031 = vsel %vm2013, %v2030, 0.0
        %v2032 = vadd.f32 %v2014, %v2031
        %vm2033 = vcmask 7168
        %2034 = vst.msk [vmem:[#allocation4] sm:$0xff] %vm2033, %v2032
        %v2035 = vld [vmem:[#allocation5] sm:$0xff]
        %v2036 = vmax.f32 %v2007, 0.0
        %v2037 = vand.u32 2147483647, %v2007
        %v2038 = vsub.f32 0.0, %v2037
        %v2039 = vmul.f32 %v2038, 1.442695
        %v2040 = vpow.pop %v2039
        %v2041 = vadd.f32 %v2040, 1.0
        %v2042 = vlog2.pop %v2041
        %v2043 = vmul.f32 %v2042, 0.6931472
        %v2044 = vmul.f32 -0.5, %v2040
        %v2045 = vadd.f32 %v2044, 1.0
        %v2046 = vmul.f32 %v2045, %v2040
        %v2047 = vand.u32 2147483647, %v2040
        %vm2048 = vcmp.lt.f32.partialorder %v2047, 0.0004427343
        %v2049 = vsel %vm2048, %v2046, %v2043
        %v2050 = vadd.f32 %v2036, %v2049
        %v2051 = vsel %vm2013, %v2050, 0.0
        %v2052 = vadd.f32 %v2035, %v2051
        %2053 = vst.msk [vmem:[#allocation5] sm:$0xff] %vm2033, %v2052
        %p2054 = scmp.eq.s32.totalorder %s17, 1
        // Predicated region
        $region405: #{tpu_custom_call.1} parent=11 // pred_check
          %p2055 = pneg %p2054
        $region406: #{tpu_custom_call.1} parent=11 // pred_check_branch
          %2057 = sbr.rel (%p2055) target = $region408
        $region407: #{tpu_custom_call.1} parent=11 // pred_region
          %v2058 = vld [vmem:[#allocation4] sm:$0xff]
          %v2059 = vsel %vm2033, %v2058, 0.0
          %2060 = vadd.xlane.f32.xlu0 %v2059
          %v2061 = vpop.xlane.xlu0 %2060
          %v2062 = vrot.slane %v2061, 4
          %v2063 = vadd.f32 %v2061, %v2062
          %v2064 = vrot.slane %v2063, 2
          %v2065 = vadd.f32 %v2063, %v2064
          %v2066 = vrot.slane %v2065, 1
          %v2067 = vadd.f32 %v2065, %v2066
          %s2068 = vtos %v2067
          %v2069 = vld [vmem:[#allocation5] sm:$0xff]
          %v2070 = vsel %vm2033, %v2069, 0.0
          %2071 = vadd.xlane.f32.xlu0 %v2070
          %v2072 = vpop.xlane.xlu0 %2071
          %v2073 = vrot.slane %v2072, 4
          %v2074 = vadd.f32 %v2072, %v2073
          %v2075 = vrot.slane %v2074, 2
          %v2076 = vadd.f32 %v2074, %v2075
          %v2077 = vrot.slane %v2076, 1
          %v2078 = vadd.f32 %v2076, %v2077
          %s2079 = vtos %v2078
          %s2080 = sadd.f32 %s2068, %s2079
          %s2081 = smul.f32 %s2080, 0.05
          %s2082 = scalar_lea.smem [#allocation9], 0
          %2083 = sst [smem:[%s2082]] %s2081
        $region408: #{tpu_custom_call.1} parent=11 // pred_fallthru
          _
        // Predicated region
        $region409: #{tpu_custom_call.1} parent=11 // pred_check
          %p2084 = pneg %p27
        $region410: #{tpu_custom_call.1} parent=11 // pred_check_branch
          %2086 = sbr.rel (%p2084) target = $region412
        $region411: #{tpu_custom_call.1} parent=11 // pred_region
          %s2088 = ssub.s32 16, 16
          %2089 = vsyncadd [#allocation10], %s2088
          %2092 = dma.smem_to_hbm [#allocation9], 16, %s4, [#allocation10]
        $region412: #{tpu_custom_call.1} parent=11 // pred_fallthru
          _
        // Predicated region
        $region413: #{tpu_custom_call.1} parent=11 // pred_check
          %p2093 = pneg %p27
        $region414: #{tpu_custom_call.1} parent=11 // pred_check_branch
          %2095 = sbr.rel (%p2093) target = $region416
        $region415: #{tpu_custom_call.1} parent=11 // pred_region
          %2096 = dma.done [#allocation10], 16
        $region416: #{tpu_custom_call.1} parent=11 // pred_fallthru
          _
        %2097 = sfence
      $region12: #{tpu_custom_call.1} parent=5 // pred_fallthru
        _
      %p2098 = scmp.le.s32.totalorder 1, %s17
      // Predicated region
      $region417: #{tpu_custom_call.1} parent=5 // pred_check
        %p2099 = pneg %p2098
      $region418: #{tpu_custom_call.1} parent=5 // pred_check_branch
        %2101 = sbr.rel (%p2099) target = $region420
      $region419: #{tpu_custom_call.1} parent=5 // pred_region
        %s2102 = ssub.s32 %s17, 1
      $region420: #{tpu_custom_call.1} parent=5 // pred_fallthru
        _
    $region6: #{tpu_custom_call.1} parent=1 // loop_footer
      %s21 = sadd.s32 1, %s17
    $region7: #{tpu_custom_call.1} parent=1 // loop_footer_branch
      %16 = sbr.rel target = $region3
    $region8: #{tpu_custom_call.1} parent=1 // loop_exit
      _
    %2103 = vsyncpa [#allocation10], 1
    %s2104 = scalar_lea.sflag [#allocation10], 1
    %2105 = vsyncpa %s2104, 1
  %2106 = vsyncmov [#allocation3]
  %s2107 = vpop.sfrf %2106
  %p2108 = scmp.eq.s32.totalorder %s2107, 0
  %p2109 = pneg %p2108
  %2111 = shalt.err (%p2109)
  %s2112 = scalar_lea.sflag [#allocation3], 1
  %2113 = vsyncmov %s2112
  %s2114 = vpop.sfrf %2113
  %p2115 = scmp.eq.s32.totalorder %s2114, 0
  %p2116 = pneg %p2115
  %2118 = shalt.err (%p2116)
  %s2119 = scalar_lea.sflag [#allocation3], 2
  %2120 = vsyncmov %s2119
  %s2121 = vpop.sfrf %2120
  %p2122 = scmp.eq.s32.totalorder %s2121, 0
  %p2123 = pneg %p2122
  %2125 = shalt.err (%p2123)
  %s2126 = scalar_lea.sflag [#allocation3], 3
  %2127 = vsyncmov %s2126
  %s2128 = vpop.sfrf %2127
  %p2129 = scmp.eq.s32.totalorder %s2128, 0
  %p2130 = pneg %p2129
  %2132 = shalt.err (%p2130)
  %s2133 = scalar_lea.sflag [#allocation3], 4
  %2134 = vsyncmov %s2133
  %s2135 = vpop.sfrf %2134
  %p2136 = scmp.eq.s32.totalorder %s2135, 0
  %p2137 = pneg %p2136
  %2139 = shalt.err (%p2137)
  %s2140 = scalar_lea.sflag [#allocation3], 5
  %2141 = vsyncmov %s2140
  %s2142 = vpop.sfrf %2141
  %p2143 = scmp.eq.s32.totalorder %s2142, 0
  %p2144 = pneg %p2143
  %2146 = shalt.err (%p2144)
  %s2147 = scalar_lea.sflag [#allocation3], 6
  %2148 = vsyncmov %s2147
  %s2149 = vpop.sfrf %2148
  %p2150 = scmp.eq.s32.totalorder %s2149, 0
  %p2151 = pneg %p2150
  %2153 = shalt.err (%p2151)
  %s2154 = scalar_lea.sflag [#allocation3], 7
  %2155 = vsyncmov %s2154
  %s2156 = vpop.sfrf %2155
  %p2157 = scmp.eq.s32.totalorder %s2156, 0
  %p2158 = pneg %p2157
  %2160 = shalt.err (%p2158)
  %s2161 = scalar_lea.sflag [#allocation3], 8
  %2162 = vsyncmov %s2161
  %s2163 = vpop.sfrf %2162
  %p2164 = scmp.eq.s32.totalorder %s2163, 0
  %p2165 = pneg %p2164
  %2167 = shalt.err (%p2165)
  %s2168 = scalar_lea.sflag [#allocation3], 9
  %2169 = vsyncmov %s2168
  %s2170 = vpop.sfrf %2169
  %p2171 = scmp.eq.s32.totalorder %s2170, 0
  %p2172 = pneg %p2171
  %2174 = shalt.err (%p2172)
  %s2175 = scalar_lea.sflag [#allocation3], 10
  %2176 = vsyncmov %s2175
  %s2177 = vpop.sfrf %2176
  %p2178 = scmp.eq.s32.totalorder %s2177, 0
  %p2179 = pneg %p2178
  %2181 = shalt.err (%p2179)
  %s2182 = scalar_lea.sflag [#allocation3], 11
  %2183 = vsyncmov %s2182
  %s2184 = vpop.sfrf %2183
  %p2185 = scmp.eq.s32.totalorder %s2184, 0
  %p2186 = pneg %p2185
  %2188 = shalt.err (%p2186)
  %s2189 = scalar_lea.sflag [#allocation3], 12
  %2190 = vsyncmov %s2189
  %s2191 = vpop.sfrf %2190
  %p2192 = scmp.eq.s32.totalorder %s2191, 0
  %p2193 = pneg %p2192
  %2195 = shalt.err (%p2193)
  %s2196 = scalar_lea.sflag [#allocation3], 13
  %2197 = vsyncmov %s2196
  %s2198 = vpop.sfrf %2197
  %p2199 = scmp.eq.s32.totalorder %s2198, 0
  %p2200 = pneg %p2199
  %2202 = shalt.err (%p2200)
  %s2203 = scalar_lea.sflag [#allocation3], 14
  %2204 = vsyncmov %s2203
  %s2205 = vpop.sfrf %2204
  %p2206 = scmp.eq.s32.totalorder %s2205, 0
  %p2207 = pneg %p2206
  %2209 = shalt.err (%p2207)
  %s2210 = scalar_lea.sflag [#allocation3], 15
  %2211 = vsyncmov %s2210
  %s2212 = vpop.sfrf %2211
  %p2213 = scmp.eq.s32.totalorder %s2212, 0
  %p2214 = pneg %p2213
  %2216 = shalt.err (%p2214)
  %s2217 = scalar_lea.sflag [#allocation3], 16
  %2218 = vsyncmov %s2217
  %s2219 = vpop.sfrf %2218
  %p2220 = scmp.eq.s32.totalorder %s2219, 0
  %p2221 = pneg %p2220
  %2223 = shalt.err (%p2221)
  %s2224 = scalar_lea.sflag [#allocation3], 17
  %2225 = vsyncmov %s2224
  %s2226 = vpop.sfrf %2225
  %p2227 = scmp.eq.s32.totalorder %s2226, 0
  %p2228 = pneg %p2227
  %2230 = shalt.err (%p2228)
  %s2231 = scalar_lea.sflag [#allocation3], 18
  %2232 = vsyncmov %s2231
  %s2233 = vpop.sfrf %2232
  %p2234 = scmp.eq.s32.totalorder %s2233, 0
  %p2235 = pneg %p2234
  %2237 = shalt.err (%p2235)
  %s2238 = scalar_lea.sflag [#allocation3], 19
  %2239 = vsyncmov %s2238
  %s2240 = vpop.sfrf %2239
  %p2241 = scmp.eq.s32.totalorder %s2240, 0
  %p2242 = pneg %p2241
  %2244 = shalt.err (%p2242)
  %s2245 = scalar_lea.sflag [#allocation3], 20
  %2246 = vsyncmov %s2245
  %s2247 = vpop.sfrf %2246
  %p2248 = scmp.eq.s32.totalorder %s2247, 0
  %p2249 = pneg %p2248
  %2251 = shalt.err (%p2249)
  %s2252 = scalar_lea.sflag [#allocation3], 21
  %2253 = vsyncmov %s2252
  %s2254 = vpop.sfrf %2253
  %p2255 = scmp.eq.s32.totalorder %s2254, 0
  %p2256 = pneg %p2255
  %2258 = shalt.err (%p2256)
  %s2259 = scalar_lea.sflag [#allocation3], 22
  %2260 = vsyncmov %s2259
  %s2261 = vpop.sfrf %2260
  %p2262 = scmp.eq.s32.totalorder %s2261, 0
  %p2263 = pneg %p2262
  %2265 = shalt.err (%p2263)
  %s2266 = scalar_lea.sflag [#allocation3], 23
  %2267 = vsyncmov %s2266
  %s2268 = vpop.sfrf %2267
  %p2269 = scmp.eq.s32.totalorder %s2268, 0
  %p2270 = pneg %p2269
  %2272 = shalt.err (%p2270)
  %s2273 = scalar_lea.sflag [#allocation3], 24
  %2274 = vsyncmov %s2273
  %s2275 = vpop.sfrf %2274
  %p2276 = scmp.eq.s32.totalorder %s2275, 0
  %p2277 = pneg %p2276
  %2279 = shalt.err (%p2277)
  %s2280 = scalar_lea.sflag [#allocation3], 25
  %2281 = vsyncmov %s2280
  %s2282 = vpop.sfrf %2281
  %p2283 = scmp.eq.s32.totalorder %s2282, 0
  %p2284 = pneg %p2283
  %2286 = shalt.err (%p2284)
  %s2287 = scalar_lea.sflag [#allocation3], 26
  %2288 = vsyncmov %s2287
  %s2289 = vpop.sfrf %2288
  %p2290 = scmp.eq.s32.totalorder %s2289, 0
  %p2291 = pneg %p2290
  %2293 = shalt.err (%p2291)
  %s2294 = scalar_lea.sflag [#allocation3], 27
  %2295 = vsyncmov %s2294
  %s2296 = vpop.sfrf %2295
  %p2297 = scmp.eq.s32.totalorder %s2296, 0
  %p2298 = pneg %p2297
  %2300 = shalt.err (%p2298)
  %s2301 = scalar_lea.sflag [#allocation3], 28
  %2302 = vsyncmov %s2301
  %s2303 = vpop.sfrf %2302
  %p2304 = scmp.eq.s32.totalorder %s2303, 0
  %p2305 = pneg %p2304
  %2307 = shalt.err (%p2305)
  %s2308 = scalar_lea.sflag [#allocation3], 29
  %2309 = vsyncmov %s2308
  %s2310 = vpop.sfrf %2309
  %p2311 = scmp.eq.s32.totalorder %s2310, 0
  %p2312 = pneg %p2311
  %2314 = shalt.err (%p2312)
  %s2315 = scalar_lea.sflag [#allocation3], 30
  %2316 = vsyncmov %s2315
  %s2317 = vpop.sfrf %2316
  %p2318 = scmp.eq.s32.totalorder %s2317, 0
  %p2319 = pneg %p2318
  %2321 = shalt.err (%p2319)
  %s2322 = scalar_lea.sflag [#allocation3], 31
  %2323 = vsyncmov %s2322
  %s2324 = vpop.sfrf %2323
  %p2325 = scmp.eq.s32.totalorder %s2324, 0
  %p2326 = pneg %p2325
  %2328 = shalt.err (%p2326)
  %s2329 = scalar_lea.sflag [#allocation3], 32
  %2330 = vsyncmov %s2329
  %s2331 = vpop.sfrf %2330
  %p2332 = scmp.eq.s32.totalorder %s2331, 0
  %p2333 = pneg %p2332
  %2335 = shalt.err (%p2333)
  %s2336 = scalar_lea.sflag [#allocation3], 33
  %2337 = vsyncmov %s2336
  %s2338 = vpop.sfrf %2337
  %p2339 = scmp.eq.s32.totalorder %s2338, 0
  %p2340 = pneg %p2339
  %2342 = shalt.err (%p2340)
  %s2343 = scalar_lea.sflag [#allocation3], 34
  %2344 = vsyncmov %s2343
  %s2345 = vpop.sfrf %2344
  %p2346 = scmp.eq.s32.totalorder %s2345, 0
  %p2347 = pneg %p2346
  %2349 = shalt.err (%p2347)
  %s2350 = scalar_lea.sflag [#allocation3], 35
  %2351 = vsyncmov %s2350
  %s2352 = vpop.sfrf %2351
  %p2353 = scmp.eq.s32.totalorder %s2352, 0
  %p2354 = pneg %p2353
  %2356 = shalt.err (%p2354)
  %s2357 = scalar_lea.sflag [#allocation3], 36
  %2358 = vsyncmov %s2357
  %s2359 = vpop.sfrf %2358
  %p2360 = scmp.eq.s32.totalorder %s2359, 0
  %p2361 = pneg %p2360
  %2363 = shalt.err (%p2361)
  %s2364 = scalar_lea.sflag [#allocation3], 37
  %2365 = vsyncmov %s2364
  %s2366 = vpop.sfrf %2365
  %p2367 = scmp.eq.s32.totalorder %s2366, 0
  %p2368 = pneg %p2367
  %2370 = shalt.err (%p2368)
  %s2371 = scalar_lea.sflag [#allocation3], 38
  %2372 = vsyncmov %s2371
  %s2373 = vpop.sfrf %2372
  %p2374 = scmp.eq.s32.totalorder %s2373, 0
  %p2375 = pneg %p2374
  %2377 = shalt.err (%p2375)
  %s2378 = scalar_lea.sflag [#allocation3], 39
  %2379 = vsyncmov %s2378
  %s2380 = vpop.sfrf %2379
  %p2381 = scmp.eq.s32.totalorder %s2380, 0
  %p2382 = pneg %p2381
  %2384 = shalt.err (%p2382)
  %s2385 = scalar_lea.sflag [#allocation3], 40
  %2386 = vsyncmov %s2385
  %s2387 = vpop.sfrf %2386
  %p2388 = scmp.eq.s32.totalorder %s2387, 0
  %p2389 = pneg %p2388
  %2391 = shalt.err (%p2389)
  %s2392 = scalar_lea.sflag [#allocation3], 41
  %2393 = vsyncmov %s2392
  %s2394 = vpop.sfrf %2393
  %p2395 = scmp.eq.s32.totalorder %s2394, 0
  %p2396 = pneg %p2395
  %2398 = shalt.err (%p2396)
  %s2399 = scalar_lea.sflag [#allocation3], 42
  %2400 = vsyncmov %s2399
  %s2401 = vpop.sfrf %2400
  %p2402 = scmp.eq.s32.totalorder %s2401, 0
  %p2403 = pneg %p2402
  %2405 = shalt.err (%p2403)
  %s2406 = scalar_lea.sflag [#allocation3], 43
  %2407 = vsyncmov %s2406
  %s2408 = vpop.sfrf %2407
  %p2409 = scmp.eq.s32.totalorder %s2408, 0
  %p2410 = pneg %p2409
  %2412 = shalt.err (%p2410)
  %s2413 = scalar_lea.sflag [#allocation3], 44
  %2414 = vsyncmov %s2413
  %s2415 = vpop.sfrf %2414
  %p2416 = scmp.eq.s32.totalorder %s2415, 0
  %p2417 = pneg %p2416
  %2419 = shalt.err (%p2417)
  %s2420 = scalar_lea.sflag [#allocation3], 45
  %2421 = vsyncmov %s2420
  %s2422 = vpop.sfrf %2421
  %p2423 = scmp.eq.s32.totalorder %s2422, 0
  %p2424 = pneg %p2423
  %2426 = shalt.err (%p2424)
  %s2427 = scalar_lea.sflag [#allocation3], 46
  %2428 = vsyncmov %s2427
  %s2429 = vpop.sfrf %2428
  %p2430 = scmp.eq.s32.totalorder %s2429, 0
  %p2431 = pneg %p2430
  %2433 = shalt.err (%p2431)
  %s2434 = scalar_lea.sflag [#allocation3], 47
  %2435 = vsyncmov %s2434
  %s2436 = vpop.sfrf %2435
  %p2437 = scmp.eq.s32.totalorder %s2436, 0
  %p2438 = pneg %p2437
  %2440 = shalt.err (%p2438)
  %s2441 = scalar_lea.sflag [#allocation3], 48
  %2442 = vsyncmov %s2441
  %s2443 = vpop.sfrf %2442
  %p2444 = scmp.eq.s32.totalorder %s2443, 0
  %p2445 = pneg %p2444
  %2447 = shalt.err (%p2445)
  %s2448 = scalar_lea.sflag [#allocation3], 49
  %2449 = vsyncmov %s2448
  %s2450 = vpop.sfrf %2449
  %p2451 = scmp.eq.s32.totalorder %s2450, 0
  %p2452 = pneg %p2451
  %2454 = shalt.err (%p2452)
  %s2455 = scalar_lea.sflag [#allocation3], 50
  %2456 = vsyncmov %s2455
  %s2457 = vpop.sfrf %2456
  %p2458 = scmp.eq.s32.totalorder %s2457, 0
  %p2459 = pneg %p2458
  %2461 = shalt.err (%p2459)
  %s2462 = scalar_lea.sflag [#allocation3], 51
  %2463 = vsyncmov %s2462
  %s2464 = vpop.sfrf %2463
  %p2465 = scmp.eq.s32.totalorder %s2464, 0
  %p2466 = pneg %p2465
  %2468 = shalt.err (%p2466)
  %s2469 = scalar_lea.sflag [#allocation3], 52
  %2470 = vsyncmov %s2469
  %s2471 = vpop.sfrf %2470
  %p2472 = scmp.eq.s32.totalorder %s2471, 0
  %p2473 = pneg %p2472
  %2475 = shalt.err (%p2473)
  %s2476 = scalar_lea.sflag [#allocation3], 53
  %2477 = vsyncmov %s2476
  %s2478 = vpop.sfrf %2477
  %p2479 = scmp.eq.s32.totalorder %s2478, 0
  %p2480 = pneg %p2479
  %2482 = shalt.err (%p2480)
  %s2483 = scalar_lea.sflag [#allocation3], 54
  %2484 = vsyncmov %s2483
  %s2485 = vpop.sfrf %2484
  %p2486 = scmp.eq.s32.totalorder %s2485, 0
  %p2487 = pneg %p2486
  %2489 = shalt.err (%p2487)
  %s2490 = scalar_lea.sflag [#allocation3], 55
  %2491 = vsyncmov %s2490
  %s2492 = vpop.sfrf %2491
  %p2493 = scmp.eq.s32.totalorder %s2492, 0
  %p2494 = pneg %p2493
  %2496 = shalt.err (%p2494)
  %s2497 = scalar_lea.sflag [#allocation3], 56
  %2498 = vsyncmov %s2497
  %s2499 = vpop.sfrf %2498
  %p2500 = scmp.eq.s32.totalorder %s2499, 0
  %p2501 = pneg %p2500
  %2503 = shalt.err (%p2501)
  %s2504 = scalar_lea.sflag [#allocation3], 57
  %2505 = vsyncmov %s2504
  %s2506 = vpop.sfrf %2505
  %p2507 = scmp.eq.s32.totalorder %s2506, 0
  %p2508 = pneg %p2507
  %2510 = shalt.err (%p2508)
  %s2511 = scalar_lea.sflag [#allocation3], 58
  %2512 = vsyncmov %s2511
  %s2513 = vpop.sfrf %2512
  %p2514 = scmp.eq.s32.totalorder %s2513, 0
  %p2515 = pneg %p2514
  %2517 = shalt.err (%p2515)
  %s2518 = scalar_lea.sflag [#allocation3], 59
  %2519 = vsyncmov %s2518
  %s2520 = vpop.sfrf %2519
  %p2521 = scmp.eq.s32.totalorder %s2520, 0
  %p2522 = pneg %p2521
  %2524 = shalt.err (%p2522)
  %s2525 = scalar_lea.sflag [#allocation3], 60
  %2526 = vsyncmov %s2525
  %s2527 = vpop.sfrf %2526
  %p2528 = scmp.eq.s32.totalorder %s2527, 0
  %p2529 = pneg %p2528
  %2531 = shalt.err (%p2529)
  %s2532 = scalar_lea.sflag [#allocation3], 61
  %2533 = vsyncmov %s2532
  %s2534 = vpop.sfrf %2533
  %p2535 = scmp.eq.s32.totalorder %s2534, 0
  %p2536 = pneg %p2535
  %2538 = shalt.err (%p2536)
  %s2539 = scalar_lea.sflag [#allocation3], 62
  %2540 = vsyncmov %s2539
  %s2541 = vpop.sfrf %2540
  %p2542 = scmp.eq.s32.totalorder %s2541, 0
  %p2543 = pneg %p2542
  %2545 = shalt.err (%p2543)
  %s2546 = scalar_lea.sflag [#allocation3], 63
  %2547 = vsyncmov %s2546
  %s2548 = vpop.sfrf %2547
  %p2549 = scmp.eq.s32.totalorder %s2548, 0
  %p2550 = pneg %p2549
  %2552 = shalt.err (%p2550)
  %s2553 = scalar_lea.sflag [#allocation3], 64
  %2554 = vsyncmov %s2553
  %s2555 = vpop.sfrf %2554
  %p2556 = scmp.eq.s32.totalorder %s2555, 0
  %p2557 = pneg %p2556
  %2559 = shalt.err (%p2557)
  %s2560 = scalar_lea.sflag [#allocation3], 65
  %2561 = vsyncmov %s2560
  %s2562 = vpop.sfrf %2561
  %p2563 = scmp.eq.s32.totalorder %s2562, 0
  %p2564 = pneg %p2563
  %2566 = shalt.err (%p2564)
  %s2567 = scalar_lea.sflag [#allocation3], 66
  %2568 = vsyncmov %s2567
  %s2569 = vpop.sfrf %2568
  %p2570 = scmp.eq.s32.totalorder %s2569, 0
  %p2571 = pneg %p2570
  %2573 = shalt.err (%p2571)
  %s2574 = scalar_lea.sflag [#allocation3], 67
  %2575 = vsyncmov %s2574
  %s2576 = vpop.sfrf %2575
  %p2577 = scmp.eq.s32.totalorder %s2576, 0
  %p2578 = pneg %p2577
  %2580 = shalt.err (%p2578)
  %s2581 = scalar_lea.sflag [#allocation3], 68
  %2582 = vsyncmov %s2581
  %s2583 = vpop.sfrf %2582
  %p2584 = scmp.eq.s32.totalorder %s2583, 0
  %p2585 = pneg %p2584
  %2587 = shalt.err (%p2585)
  %s2588 = scalar_lea.sflag [#allocation3], 69
  %2589 = vsyncmov %s2588
  %s2590 = vpop.sfrf %2589
  %p2591 = scmp.eq.s32.totalorder %s2590, 0
  %p2592 = pneg %p2591
  %2594 = shalt.err (%p2592)
  %s2595 = scalar_lea.sflag [#allocation3], 70
  %2596 = vsyncmov %s2595
  %s2597 = vpop.sfrf %2596
  %p2598 = scmp.eq.s32.totalorder %s2597, 0
  %p2599 = pneg %p2598
  %2601 = shalt.err (%p2599)
  %s2602 = scalar_lea.sflag [#allocation3], 71
  %2603 = vsyncmov %s2602
  %s2604 = vpop.sfrf %2603
  %p2605 = scmp.eq.s32.totalorder %s2604, 0
  %p2606 = pneg %p2605
  %2608 = shalt.err (%p2606)
  %s2609 = scalar_lea.sflag [#allocation3], 72
  %2610 = vsyncmov %s2609
  %s2611 = vpop.sfrf %2610
  %p2612 = scmp.eq.s32.totalorder %s2611, 0
  %p2613 = pneg %p2612
  %2615 = shalt.err (%p2613)
  %s2616 = scalar_lea.sflag [#allocation3], 73
  %2617 = vsyncmov %s2616
  %s2618 = vpop.sfrf %2617
  %p2619 = scmp.eq.s32.totalorder %s2618, 0
  %p2620 = pneg %p2619
  %2622 = shalt.err (%p2620)
  %s2623 = scalar_lea.sflag [#allocation3], 74
  %2624 = vsyncmov %s2623
  %s2625 = vpop.sfrf %2624
  %p2626 = scmp.eq.s32.totalorder %s2625, 0
  %p2627 = pneg %p2626
  %2629 = shalt.err (%p2627)
  %s2630 = scalar_lea.sflag [#allocation3], 75
  %2631 = vsyncmov %s2630
  %s2632 = vpop.sfrf %2631
  %p2633 = scmp.eq.s32.totalorder %s2632, 0
  %p2634 = pneg %p2633
  %2636 = shalt.err (%p2634)
  %s2637 = scalar_lea.sflag [#allocation3], 76
  %2638 = vsyncmov %s2637
  %s2639 = vpop.sfrf %2638
  %p2640 = scmp.eq.s32.totalorder %s2639, 0
  %p2641 = pneg %p2640
  %2643 = shalt.err (%p2641)
  %s2644 = scalar_lea.sflag [#allocation3], 77
  %2645 = vsyncmov %s2644
  %s2646 = vpop.sfrf %2645
  %p2647 = scmp.eq.s32.totalorder %s2646, 0
  %p2648 = pneg %p2647
  %2650 = shalt.err (%p2648)
  %s2651 = scalar_lea.sflag [#allocation3], 78
  %2652 = vsyncmov %s2651
  %s2653 = vpop.sfrf %2652
  %p2654 = scmp.eq.s32.totalorder %s2653, 0
  %p2655 = pneg %p2654
  %2657 = shalt.err (%p2655)
  %s2658 = scalar_lea.sflag [#allocation3], 79
  %2659 = vsyncmov %s2658
  %s2660 = vpop.sfrf %2659
  %p2661 = scmp.eq.s32.totalorder %s2660, 0
  %p2662 = pneg %p2661
  %2664 = shalt.err (%p2662)
  %s2665 = scalar_lea.sflag [#allocation3], 80
  %2666 = vsyncmov %s2665
  %s2667 = vpop.sfrf %2666
  %p2668 = scmp.eq.s32.totalorder %s2667, 0
  %p2669 = pneg %p2668
  %2671 = shalt.err (%p2669)
  %s2672 = scalar_lea.sflag [#allocation3], 81
  %2673 = vsyncmov %s2672
  %s2674 = vpop.sfrf %2673
  %p2675 = scmp.eq.s32.totalorder %s2674, 0
  %p2676 = pneg %p2675
  %2678 = shalt.err (%p2676)
  %s2679 = scalar_lea.sflag [#allocation3], 82
  %2680 = vsyncmov %s2679
  %s2681 = vpop.sfrf %2680
  %p2682 = scmp.eq.s32.totalorder %s2681, 0
  %p2683 = pneg %p2682
  %2685 = shalt.err (%p2683)
  %s2686 = scalar_lea.sflag [#allocation3], 83
  %2687 = vsyncmov %s2686
  %s2688 = vpop.sfrf %2687
  %p2689 = scmp.eq.s32.totalorder %s2688, 0
  %p2690 = pneg %p2689
  %2692 = shalt.err (%p2690)
  %s2693 = scalar_lea.sflag [#allocation3], 84
  %2694 = vsyncmov %s2693
  %s2695 = vpop.sfrf %2694
  %p2696 = scmp.eq.s32.totalorder %s2695, 0
  %p2697 = pneg %p2696
  %2699 = shalt.err (%p2697)
  %s2700 = scalar_lea.sflag [#allocation3], 85
  %2701 = vsyncmov %s2700
  %s2702 = vpop.sfrf %2701
  %p2703 = scmp.eq.s32.totalorder %s2702, 0
  %p2704 = pneg %p2703
  %2706 = shalt.err (%p2704)
  %s2707 = scalar_lea.sflag [#allocation3], 86
  %2708 = vsyncmov %s2707
  %s2709 = vpop.sfrf %2708
  %p2710 = scmp.eq.s32.totalorder %s2709, 0
  %p2711 = pneg %p2710
  %2713 = shalt.err (%p2711)
  %s2714 = scalar_lea.sflag [#allocation3], 87
  %2715 = vsyncmov %s2714
  %s2716 = vpop.sfrf %2715
  %p2717 = scmp.eq.s32.totalorder %s2716, 0
  %p2718 = pneg %p2717
  %2720 = shalt.err (%p2718)
  %s2721 = scalar_lea.sflag [#allocation3], 88
  %2722 = vsyncmov %s2721
  %s2723 = vpop.sfrf %2722
  %p2724 = scmp.eq.s32.totalorder %s2723, 0
  %p2725 = pneg %p2724
  %2727 = shalt.err (%p2725)
  %s2728 = scalar_lea.sflag [#allocation3], 89
  %2729 = vsyncmov %s2728
  %s2730 = vpop.sfrf %2729
  %p2731 = scmp.eq.s32.totalorder %s2730, 0
  %p2732 = pneg %p2731
  %2734 = shalt.err (%p2732)
  %s2735 = scalar_lea.sflag [#allocation3], 90
  %2736 = vsyncmov %s2735
  %s2737 = vpop.sfrf %2736
  %p2738 = scmp.eq.s32.totalorder %s2737, 0
  %p2739 = pneg %p2738
  %2741 = shalt.err (%p2739)
  %s2742 = scalar_lea.sflag [#allocation3], 91
  %2743 = vsyncmov %s2742
  %s2744 = vpop.sfrf %2743
  %p2745 = scmp.eq.s32.totalorder %s2744, 0
  %p2746 = pneg %p2745
  %2748 = shalt.err (%p2746)
  %s2749 = scalar_lea.sflag [#allocation3], 92
  %2750 = vsyncmov %s2749
  %s2751 = vpop.sfrf %2750
  %p2752 = scmp.eq.s32.totalorder %s2751, 0
  %p2753 = pneg %p2752
  %2755 = shalt.err (%p2753)
  %s2756 = scalar_lea.sflag [#allocation3], 93
  %2757 = vsyncmov %s2756
  %s2758 = vpop.sfrf %2757
  %p2759 = scmp.eq.s32.totalorder %s2758, 0
  %p2760 = pneg %p2759
  %2762 = shalt.err (%p2760)
  %s2763 = scalar_lea.sflag [#allocation3], 94
  %2764 = vsyncmov %s2763
  %s2765 = vpop.sfrf %2764
  %p2766 = scmp.eq.s32.totalorder %s2765, 0
  %p2767 = pneg %p2766
  %2769 = shalt.err (%p2767)
  %s2770 = scalar_lea.sflag [#allocation3], 95
  %2771 = vsyncmov %s2770
  %s2772 = vpop.sfrf %2771
  %p2773 = scmp.eq.s32.totalorder %s2772, 0
  %p2774 = pneg %p2773
  %2776 = shalt.err (%p2774)

</llo_original>
